<compile_context>
chip_gen: v7x
topology: tpu7x:2x2x1
jax: 0.10.0
libtpu: 0.0.40
codegen_flags: <defaults>
</compile_context>

<pallas_src>
import functools

import jax
import jax.numpy as jnp
from jax.experimental import pallas as pl
from jax.experimental.pallas import tpu as pltpu

LEAKY_SLOPE = 0.01      # torch.nn.LeakyReLU default negative_slope
BN_EPS = 1e-5           # torch.nn.BatchNorm2d default eps


# -----------------------------------------------------------------------------
# Fused Pallas kernel: (Conv2d -> BN -> LeakyReLU) x 2 for one (batch, row tile)
# -----------------------------------------------------------------------------
def _double_conv_kernel(x_ref, w1_ref, s1_ref, t1_ref, w2_ref, s2_ref, t2_ref,
                        o_ref, mid_ref, *, k, pad, dil, th2, ho1, wo1, wo2,
                        nrows):
    """x_ref  : (H+4*pad, W+2*pad, Cin) bf16  over-padded NHWC image
                (extra `pad` rows top/bottom supply the conv1 halo per tile)
       w1_ref : (k*k*Cin,  Cmid) bf16  conv1 weights, K ordered (kh, kw, cin)
       s1/t1  : (1, Cmid) f32          folded BN1 scale / shift (bias folded)
       w2_ref : (k*k*Cmid, Cout) bf16  conv2 weights
       s2/t2  : (1, Cout) f32          folded BN2 scale / shift
       o_ref  : (th2*Wo2, Cout) f32    lane-dense flattened output row tile
       mid_ref: (th2+span, Wo1+2*pad, Cmid) bf16  conv2-input tile scratch
    """
    span = dil * (k - 1)
    n1 = th2 + span                       # conv1 rows needed for this tile
    cin = x_ref.shape[-1]
    cmid = w1_ref.shape[-1]

    if nrows > 1:
        r0 = pl.multiple_of(pl.program_id(1) * th2, th2)
    else:
        r0 = 0

    # ---- stage 1: conv1 + BN1 + LeakyReLU over th2+span "virtual" rows -----
    wins = []
    for a in range(k):
        for b in range(k):
            wins.append(x_ref[pl.ds(r0 + a * dil, n1), pl.ds(b * dil, wo1), :])
    patch1 = jnp.concatenate(wins, axis=-1).reshape(n1 * wo1, k * k * cin)
    y1 = jnp.dot(patch1, w1_ref[...], preferred_element_type=jnp.float32)
    y1 = y1 * s1_ref[...] + t1_ref[...]
    y1 = jnp.where(y1 >= 0.0, y1, LEAKY_SLOPE * y1)
    y1 = y1.reshape(n1, wo1, cmid)

    # Halo rows outside the conv1 output extent must be *true zeros* (they are
    # conv2's zero padding), not "conv1 evaluated on zero input".
    g = jax.lax.broadcasted_iota(jnp.int32, (n1, wo1, cmid), 0) + (r0 - pad)
    y1 = jnp.where((g >= 0) & (g < ho1), y1, 0.0).astype(jnp.bfloat16)

    # Assemble the conv2 input tile (width zero padding) in VMEM, bf16.
    if pad > 0:
        mid_ref[:, :pad, :] = jnp.zeros((n1, pad, cmid), jnp.bfloat16)
        mid_ref[:, pad + wo1:, :] = jnp.zeros((n1, pad, cmid), jnp.bfloat16)
    mid_ref[:, pad:pad + wo1, :] = y1

    # ---- stage 2: conv2 + BN2 + LeakyReLU, one lane-dense f32 store --------
    wins2 = []
    for a in range(k):
        for b in range(k):
            wins2.append(mid_ref[a * dil:a * dil + th2,
                                 b * dil:b * dil + wo2, :])
    patch2 = jnp.concatenate(wins2, axis=-1).reshape(th2 * wo2, k * k * cmid)
    y2 = jnp.dot(patch2, w2_ref[...], preferred_element_type=jnp.float32)
    y2 = y2 * s2_ref[...] + t2_ref[...]
    y2 = jnp.where(y2 >= 0.0, y2, LEAKY_SLOPE * y2)
    o_ref[...] = y2.astype(o_ref.dtype)


def _pick_row_tile(ho2, wo2, wo1, span, pad, cin, cmid, cout, kk,
                   budget_bytes=12 << 20):
    """Row tile of the final output: largest divisor of ho2 whose in-kernel
    patches/activations fit `budget_bytes`; prefers >=2 row tiles (v7x has two
    TensorCores) and keeps matmul M (= t*wo2) at most ~2048."""
    def footprint(t):
        n1 = t + span
        return (n1 * wo1 * kk * cin * 2            # stage-1 bf16 im2col patch
                + t * wo2 * kk * cmid * 2          # stage-2 bf16 im2col patch
                + n1 * wo1 * cmid * 4              # stage-1 f32 epilogue
                + n1 * (wo1 + 2 * pad) * cmid * 2  # bf16 conv2-input scratch
                + 2 * t * wo2 * cout * 4)          # double-buffered f32 output
    divisors = [t for t in range(1, ho2 + 1) if ho2 % t == 0]
    fits = [t for t in divisors if footprint(t) <= budget_bytes] or [1]
    multi = [t for t in fits if ho2 // t >= 2 and t * wo2 >= 256]
    pool = multi or fits
    capped = [t for t in pool if t * wo2 <= 2048] or [min(pool)]
    return max(capped)


def double_conv_pallas(x_nhwc, p1, p2, *, k, pad, dil):
    """Fused DoubleConvBlock on an NHWC f32 input; returns NHWC f32."""
    bsz, h, w, cin = x_nhwc.shape
    span = dil * (k - 1)
    ho1, wo1 = h + 2 * pad - span, w + 2 * pad - span
    ho2, wo2 = ho1 + 2 * pad - span, wo1 + 2 * pad - span
    cmid = p1["w"].shape[-1]
    cout = p2["w"].shape[-1]

    # Rows padded by 2*pad (conv1 pad + conv2 row halo), cols by pad; one
    # bf16 cast at the block boundary feeds both MXU stages.
    xp = jnp.pad(x_nhwc, ((0, 0), (2 * pad, 2 * pad), (pad, pad), (0, 0)))
    xp = xp.astype(jnp.bfloat16)
    hp, wp = h + 4 * pad, w + 2 * pad

    th2 = _pick_row_tile(ho2, wo2, wo1, span, pad, cin, cmid, cout, k * k)
    nrows = ho2 // th2
    n1 = th2 + span

    kernel = functools.partial(_double_conv_kernel, k=k, pad=pad, dil=dil,
                               th2=th2, ho1=ho1, wo1=wo1, wo2=wo2, nrows=nrows)

    # TODO(synk): for very large spatial sizes the whole padded image stays
    # VMEM-resident per batch element; switch in_specs[0] to halo'd row tiles
    # (manual make_async_copy) once Hp*Wp*Cin outgrows the scoped VMEM budget.
    out_flat = pl.pallas_call(
        kernel,
        out_shape=jax.ShapeDtypeStruct((bsz, ho2 * wo2, cout), jnp.float32),
        grid=(bsz, nrows),
        in_specs=[
            pl.BlockSpec((None, hp, wp, cin), lambda bi, ri: (bi, 0, 0, 0)),
            pl.BlockSpec((k * k * cin, cmid), lambda bi, ri: (0, 0)),
            pl.BlockSpec((1, cmid), lambda bi, ri: (0, 0)),
            pl.BlockSpec((1, cmid), lambda bi, ri: (0, 0)),
            pl.BlockSpec((k * k * cmid, cout), lambda bi, ri: (0, 0)),
            pl.BlockSpec((1, cout), lambda bi, ri: (0, 0)),
            pl.BlockSpec((1, cout), lambda bi, ri: (0, 0)),
        ],
        out_specs=pl.BlockSpec((None, th2 * wo2, cout),
                               lambda bi, ri: (bi, ri, 0)),
        scratch_shapes=[pltpu.VMEM((n1, wo1 + 2 * pad, cmid), jnp.bfloat16)],
        compiler_params=pltpu.CompilerParams(
            dimension_semantics=("parallel", "parallel")),
    )(xp, p1["w"], p1["scale"], p1["shift"], p2["w"], p2["scale"], p2["shift"])
    return out_flat.reshape(bsz, ho2, wo2, cout)


# -----------------------------------------------------------------------------
# Module forward + parameter packing
# -----------------------------------------------------------------------------
def prepare_layer(layer):
    """Pack a torch-layout Conv2d+BatchNorm2d layer for the Pallas kernel."""
    w = layer["w"]                                   # (O, Cin, kh, kw)
    o, cin, kh, kw = w.shape
    w_mat = jnp.transpose(w, (2, 3, 1, 0)).reshape(kh * kw * cin, o)
    w_mat = w_mat.astype(jnp.bfloat16)               # (k*k*Cin, O) bf16, once
    scale = (layer["gamma"] / jnp.sqrt(layer["var"] + BN_EPS)).astype(jnp.float32)
    shift = ((layer["b"] - layer["mean"]) * scale + layer["beta"]).astype(jnp.float32)
    # TODO(synk): BatchNorm is folded with inference-mode running statistics;
    # train-mode batch statistics are not reproduced.
    return {"w": w_mat, "scale": scale.reshape(1, o), "shift": shift.reshape(1, o)}


@functools.partial(jax.jit, static_argnames=("k", "pad", "dil"))
def double_conv_block(x_nchw, params, *, k, pad, dil):
    """PyTorch DoubleConvBlock forward: (Conv2d -> BN -> LeakyReLU) * 2."""
    x = jnp.transpose(x_nchw, (0, 2, 3, 1))          # NCHW -> NHWC, once
    y = double_conv_pallas(x, params["c1"], params["c2"], k=k, pad=pad, dil=dil)
    return jnp.transpose(y, (0, 3, 1, 2))            # NHWC -> NCHW, once


# -----------------------------------------------------------------------------
# Pure-XLA reference (same bf16-operand / f32-accumulate recipe)
# -----------------------------------------------------------------------------
@functools.partial(jax.jit, static_argnames=("pad", "dil"))
def reference_double_conv(x_nchw, raw, *, pad, dil):
    x = jnp.transpose(x_nchw, (0, 2, 3, 1))
    for name in ("c1", "c2"):
        layer = raw[name]
        w_hwio = jnp.transpose(layer["w"], (2, 3, 1, 0)).astype(jnp.bfloat16)
        y = jax.lax.conv_general_dilated(
            x.astype(jnp.bfloat16), w_hwio, window_strides=(1, 1),
            padding=((pad, pad), (pad, pad)), rhs_dilation=(dil, dil),
            dimension_numbers=("NHWC", "HWIO", "NHWC"),
            preferred_element_type=jnp.float32)
        scale = layer["gamma"] / jnp.sqrt(layer["var"] + BN_EPS)
        shift = (layer["b"] - layer["mean"]) * scale + layer["beta"]
        y = y * scale + shift
        x = jnp.where(y >= 0.0, y, LEAKY_SLOPE * y)
    return jnp.transpose(x, (0, 3, 1, 2))


# -----------------------------------------------------------------------------
# Deterministic parameters + main
# -----------------------------------------------------------------------------
def init_raw_params(key, in_ch, out_ch, k):
    """Deterministic torch-layout Conv2d + BatchNorm2d parameters."""
    def conv_bn(kk, cin, cout):
        ks = jax.random.split(kk, 6)
        fan_in = float(cin * k * k)
        return {
            "w": jax.random.normal(ks[0], (cout, cin, k, k), jnp.float32)
                 * (0.5 / fan_in ** 0.5),
            "b": 0.01 * jax.random.normal(ks[1], (cout,), jnp.float32),
            "gamma": 1.0 + 0.1 * jax.random.normal(ks[2], (cout,), jnp.float32),
            "beta": 0.05 * jax.random.normal(ks[3], (cout,), jnp.float32),
            "mean": 0.05 * jax.random.normal(ks[4], (cout,), jnp.float32),
            "var": 0.9 + 0.2 * jax.random.uniform(ks[5], (cout,), jnp.float32),
        }
    k1, k2 = jax.random.split(key)
    return {"c1": conv_bn(k1, in_ch, out_ch), "c2": conv_bn(k2, out_ch, out_ch)}


if __name__ == "__main__":
    # DoubleConvBlock(in_ch=64, out_ch=128, k_size=3, pad=1, dil=1) — the
    # configuration used by the surrounding AdaPKC/MVRSS decoders — at a small
    # spatial size (yields grid=(2 batches, 2 row tiles), matmul M = 512).
    in_ch, out_ch, k_size, pad, dil = 64, 128, 3, 1, 1
    batch, height, width = 2, 32, 32

    root = jax.random.PRNGKey(0)
    k_x, k_p = jax.random.split(root)
    x = jax.random.normal(k_x, (batch, in_ch, height, width), jnp.float32)
    raw = init_raw_params(k_p, in_ch, out_ch, k_size)
    params = {"c1": prepare_layer(raw["c1"]), "c2": prepare_layer(raw["c2"])}

    out = double_conv_block(x, params, k=k_size, pad=pad, dil=dil)
    out = jax.block_until_ready(out)

    ref = jax.block_until_ready(reference_double_conv(x, raw, pad=pad, dil=dil))

    assert out.shape == (batch, out_ch, height, width), out.shape
    assert bool(jnp.all(jnp.isfinite(out)))
    max_err = float(jnp.max(jnp.abs(out - ref)))
    ref_mag = float(jnp.max(jnp.abs(ref)))
    assert max_err <= 1e-2 * max(ref_mag, 1.0), (max_err, ref_mag)
    print("KERNEL_OK")
</pallas_src>

<mosaic_0001>
module attributes {stable_mosaic.version = 11 : i64} {
  func.func @_double_conv_kernel(%arg0: i32, %arg1: i32, %arg2: memref<1x36x34x64xbf16, #tpu.memory_space<vmem>>, %arg3: memref<576x128xbf16, #tpu.memory_space<vmem>>, %arg4: memref<1x128xf32, #tpu.memory_space<vmem>>, %arg5: memref<1x128xf32, #tpu.memory_space<vmem>>, %arg6: memref<1152x128xbf16, #tpu.memory_space<vmem>>, %arg7: memref<1x128xf32, #tpu.memory_space<vmem>>, %arg8: memref<1x128xf32, #tpu.memory_space<vmem>>, %arg9: memref<1x512x128xf32, #tpu.memory_space<vmem>>, %arg10: memref<18x34x128xbf16, #tpu.memory_space<vmem>>) attributes {dimension_semantics = [#tpu.dimension_semantics<parallel>, #tpu.dimension_semantics<parallel>], iteration_bounds = array<i64: 2, 2>, scalar_prefetch = 0 : i64, scratch_operands = 1 : i64, tpu.core_type = #tpu.core_type<tc>, window_params = [{transform_indices = @transform_0, window_bounds = array<i64: 1, 36, 34, 64>}, {pipeline_mode = #tpu.pipeline_mode<synchronous>, transform_indices = @transform_1, window_bounds = array<i64: 576, 128>}, {pipeline_mode = #tpu.pipeline_mode<synchronous>, transform_indices = @transform_2, window_bounds = array<i64: 1, 128>}, {pipeline_mode = #tpu.pipeline_mode<synchronous>, transform_indices = @transform_3, window_bounds = array<i64: 1, 128>}, {pipeline_mode = #tpu.pipeline_mode<synchronous>, transform_indices = @transform_4, window_bounds = array<i64: 1152, 128>}, {pipeline_mode = #tpu.pipeline_mode<synchronous>, transform_indices = @transform_5, window_bounds = array<i64: 1, 128>}, {pipeline_mode = #tpu.pipeline_mode<synchronous>, transform_indices = @transform_6, window_bounds = array<i64: 1, 128>}, {transform_indices = @transform_7, window_bounds = array<i64: 1, 512, 128>}]} {
    %c16_i32 = arith.constant 16 : i32
    %0 = arith.muli %arg1, %c16_i32 : i32
    %1 = tpu.assume_multiple %0, 16 : i32
    %c0_i32 = arith.constant 0 : i32
    %2 = arith.addi %1, %c0_i32 : i32
    %c0 = arith.constant 0 : index
    %3 = arith.index_cast %2 : i32 to index
    %c0_0 = arith.constant 0 : index
    %c0_1 = arith.constant 0 : index
    %4 = vector.load %arg2[%c0, %3, %c0_0, %c0_1] : memref<1x36x34x64xbf16, #tpu.memory_space<vmem>>, vector<1x18x32x64xbf16>
    %5 = vector.shape_cast %4 : vector<1x18x32x64xbf16> to vector<18x32x64xbf16>
    %c0_i32_2 = arith.constant 0 : i32
    %6 = arith.addi %1, %c0_i32_2 : i32
    %c0_3 = arith.constant 0 : index
    %7 = arith.index_cast %6 : i32 to index
    %c1 = arith.constant 1 : index
    %c0_4 = arith.constant 0 : index
    %8 = vector.load %arg2[%c0_3, %7, %c1, %c0_4] : memref<1x36x34x64xbf16, #tpu.memory_space<vmem>>, vector<1x18x32x64xbf16>
    %9 = vector.shape_cast %8 : vector<1x18x32x64xbf16> to vector<18x32x64xbf16>
    %c0_i32_5 = arith.constant 0 : i32
    %10 = arith.addi %1, %c0_i32_5 : i32
    %c0_6 = arith.constant 0 : index
    %11 = arith.index_cast %10 : i32 to index
    %c2 = arith.constant 2 : index
    %c0_7 = arith.constant 0 : index
    %12 = vector.load %arg2[%c0_6, %11, %c2, %c0_7] : memref<1x36x34x64xbf16, #tpu.memory_space<vmem>>, vector<1x18x32x64xbf16>
    %13 = vector.shape_cast %12 : vector<1x18x32x64xbf16> to vector<18x32x64xbf16>
    %c1_i32 = arith.constant 1 : i32
    %14 = arith.addi %1, %c1_i32 : i32
    %c0_8 = arith.constant 0 : index
    %15 = arith.index_cast %14 : i32 to index
    %c0_9 = arith.constant 0 : index
    %c0_10 = arith.constant 0 : index
    %16 = vector.load %arg2[%c0_8, %15, %c0_9, %c0_10] : memref<1x36x34x64xbf16, #tpu.memory_space<vmem>>, vector<1x18x32x64xbf16>
    %17 = vector.shape_cast %16 : vector<1x18x32x64xbf16> to vector<18x32x64xbf16>
    %c1_i32_11 = arith.constant 1 : i32
    %18 = arith.addi %1, %c1_i32_11 : i32
    %c0_12 = arith.constant 0 : index
    %19 = arith.index_cast %18 : i32 to index
    %c1_13 = arith.constant 1 : index
    %c0_14 = arith.constant 0 : index
    %20 = vector.load %arg2[%c0_12, %19, %c1_13, %c0_14] : memref<1x36x34x64xbf16, #tpu.memory_space<vmem>>, vector<1x18x32x64xbf16>
    %21 = vector.shape_cast %20 : vector<1x18x32x64xbf16> to vector<18x32x64xbf16>
    %c1_i32_15 = arith.constant 1 : i32
    %22 = arith.addi %1, %c1_i32_15 : i32
    %c0_16 = arith.constant 0 : index
    %23 = arith.index_cast %22 : i32 to index
    %c2_17 = arith.constant 2 : index
    %c0_18 = arith.constant 0 : index
    %24 = vector.load %arg2[%c0_16, %23, %c2_17, %c0_18] : memref<1x36x34x64xbf16, #tpu.memory_space<vmem>>, vector<1x18x32x64xbf16>
    %25 = vector.shape_cast %24 : vector<1x18x32x64xbf16> to vector<18x32x64xbf16>
    %c2_i32 = arith.constant 2 : i32
    %26 = arith.addi %1, %c2_i32 : i32
    %c0_19 = arith.constant 0 : index
    %27 = arith.index_cast %26 : i32 to index
    %c0_20 = arith.constant 0 : index
    %c0_21 = arith.constant 0 : index
    %28 = vector.load %arg2[%c0_19, %27, %c0_20, %c0_21] : memref<1x36x34x64xbf16, #tpu.memory_space<vmem>>, vector<1x18x32x64xbf16>
    %29 = vector.shape_cast %28 : vector<1x18x32x64xbf16> to vector<18x32x64xbf16>
    %c2_i32_22 = arith.constant 2 : i32
    %30 = arith.addi %1, %c2_i32_22 : i32
    %c0_23 = arith.constant 0 : index
    %31 = arith.index_cast %30 : i32 to index
    %c1_24 = arith.constant 1 : index
    %c0_25 = arith.constant 0 : index
    %32 = vector.load %arg2[%c0_23, %31, %c1_24, %c0_25] : memref<1x36x34x64xbf16, #tpu.memory_space<vmem>>, vector<1x18x32x64xbf16>
    %33 = vector.shape_cast %32 : vector<1x18x32x64xbf16> to vector<18x32x64xbf16>
    %c2_i32_26 = arith.constant 2 : i32
    %34 = arith.addi %1, %c2_i32_26 : i32
    %c0_27 = arith.constant 0 : index
    %35 = arith.index_cast %34 : i32 to index
    %c2_28 = arith.constant 2 : index
    %c0_29 = arith.constant 0 : index
    %36 = vector.load %arg2[%c0_27, %35, %c2_28, %c0_29] : memref<1x36x34x64xbf16, #tpu.memory_space<vmem>>, vector<1x18x32x64xbf16>
    %37 = vector.shape_cast %36 : vector<1x18x32x64xbf16> to vector<18x32x64xbf16>
    %38 = tpu.concatenate %5, %9, %13, %17, %21, %25, %29, %33, %37 in 2 : vector<18x32x64xbf16>, vector<18x32x64xbf16>, vector<18x32x64xbf16>, vector<18x32x64xbf16>, vector<18x32x64xbf16>, vector<18x32x64xbf16>, vector<18x32x64xbf16>, vector<18x32x64xbf16>, vector<18x32x64xbf16> -> vector<18x32x576xbf16>
    %39 = vector.shape_cast %38 : vector<18x32x576xbf16> to vector<576x576xbf16>
    %c0_30 = arith.constant 0 : index
    %c0_31 = arith.constant 0 : index
    %40 = vector.load %arg3[%c0_30, %c0_31] : memref<576x128xbf16, #tpu.memory_space<vmem>>, vector<576x128xbf16>
    %cst = arith.constant dense<0.000000e+00> : vector<576x128xf32>
    %41 = tpu.matmul %39, %40, %cst {dimension_numbers = #tpu.dot_dimension_numbers<[1], [0], [0], [1], [0, 0, 1, 1], [], []>} : vector<576x576xbf16>, vector<576x128xbf16>, vector<576x128xf32> -> vector<576x128xf32>
    %c0_32 = arith.constant 0 : index
    %c0_33 = arith.constant 0 : index
    %42 = vector.load %arg4[%c0_32, %c0_33] : memref<1x128xf32, #tpu.memory_space<vmem>>, vector<1x128xf32>
    %43 = vector.broadcast %42 : vector<1x128xf32> to vector<576x128xf32>
    %44 = arith.mulf %41, %43 : vector<576x128xf32>
    %c0_34 = arith.constant 0 : index
    %c0_35 = arith.constant 0 : index
    %45 = vector.load %arg5[%c0_34, %c0_35] : memref<1x128xf32, #tpu.memory_space<vmem>>, vector<1x128xf32>
    %46 = vector.broadcast %45 : vector<1x128xf32> to vector<576x128xf32>
    %47 = arith.addf %44, %46 : vector<576x128xf32>
    %cst_36 = arith.constant 0.000000e+00 : f32
    %48 = vector.broadcast %cst_36 : f32 to vector<576x128xf32>
    %49 = arith.cmpf oge, %47, %48 : vector<576x128xf32>
    %cst_37 = arith.constant 0.00999999977 : f32
    %50 = vector.broadcast %cst_37 : f32 to vector<576x128xf32>
    %51 = arith.mulf %50, %47 : vector<576x128xf32>
    %52 = arith.select %49, %47, %51 : vector<576x128xi1>, vector<576x128xf32>
    %53 = vector.shape_cast %52 : vector<576x128xf32> to vector<18x32x128xf32>
    %54 = tpu.iota {dimensions = array<i32: 0>} : vector<18x32x128xi32>
    %c1_i32_38 = arith.constant 1 : i32
    %55 = arith.subi %1, %c1_i32_38 : i32
    %56 = vector.broadcast %55 : i32 to vector<18x32x128xi32>
    %57 = arith.addi %54, %56 : vector<18x32x128xi32>
    %c0_i32_39 = arith.constant 0 : i32
    %58 = vector.broadcast %c0_i32_39 : i32 to vector<18x32x128xi32>
    %59 = arith.cmpi sge, %57, %58 : vector<18x32x128xi32>
    %c32_i32 = arith.constant 32 : i32
    %60 = vector.broadcast %c32_i32 : i32 to vector<18x32x128xi32>
    %61 = arith.cmpi slt, %57, %60 : vector<18x32x128xi32>
    %62 = arith.andi %59, %61 : vector<18x32x128xi1>
    %cst_40 = arith.constant 0.000000e+00 : f32
    %63 = vector.broadcast %cst_40 : f32 to vector<18x32x128xf32>
    %64 = arith.select %62, %53, %63 : vector<18x32x128xi1>, vector<18x32x128xf32>
    %65 = arith.truncf %64 : vector<18x32x128xf32> to vector<18x32x128xbf16>
    %cst_41 = arith.constant 0.000000e+00 : bf16
    %66 = vector.broadcast %cst_41 : bf16 to vector<18x1x128xbf16>
    %c0_42 = arith.constant 0 : index
    %c0_43 = arith.constant 0 : index
    %c0_44 = arith.constant 0 : index
    %67 = vector.load %arg10[%c0_42, %c0_43, %c0_44] : memref<18x34x128xbf16, #tpu.memory_space<vmem>>, vector<18x1x128xbf16>
    tpu.vector_store %arg10[%c0_42, %c0_43, %c0_44], %66 {strides = array<i32>} : memref<18x34x128xbf16, #tpu.memory_space<vmem>>, vector<18x1x128xbf16>,
    %cst_45 = arith.constant 0.000000e+00 : bf16
    %68 = vector.broadcast %cst_45 : bf16 to vector<18x1x128xbf16>
    %c0_46 = arith.constant 0 : index
    %c33 = arith.constant 33 : index
    %c0_47 = arith.constant 0 : index
    %69 = vector.load %arg10[%c0_46, %c33, %c0_47] : memref<18x34x128xbf16, #tpu.memory_space<vmem>>, vector<18x1x128xbf16>
    tpu.vector_store %arg10[%c0_46, %c33, %c0_47], %68 {strides = array<i32>} : memref<18x34x128xbf16, #tpu.memory_space<vmem>>, vector<18x1x128xbf16>,
    %c0_48 = arith.constant 0 : index
    %c1_49 = arith.constant 1 : index
    %c0_50 = arith.constant 0 : index
    %70 = vector.load %arg10[%c0_48, %c1_49, %c0_50] : memref<18x34x128xbf16, #tpu.memory_space<vmem>>, vector<18x32x128xbf16>
    tpu.vector_store %arg10[%c0_48, %c1_49, %c0_50], %65 {strides = array<i32>} : memref<18x34x128xbf16, #tpu.memory_space<vmem>>, vector<18x32x128xbf16>,
    %c0_51 = arith.constant 0 : index
    %c0_52 = arith.constant 0 : index
    %c0_53 = arith.constant 0 : index
    %71 = vector.load %arg10[%c0_51, %c0_52, %c0_53] : memref<18x34x128xbf16, #tpu.memory_space<vmem>>, vector<16x32x128xbf16>
    %c0_54 = arith.constant 0 : index
    %c1_55 = arith.constant 1 : index
    %c0_56 = arith.constant 0 : index
    %72 = vector.load %arg10[%c0_54, %c1_55, %c0_56] : memref<18x34x128xbf16, #tpu.memory_space<vmem>>, vector<16x32x128xbf16>
    %c0_57 = arith.constant 0 : index
    %c2_58 = arith.constant 2 : index
    %c0_59 = arith.constant 0 : index
    %73 = vector.load %arg10[%c0_57, %c2_58, %c0_59] : memref<18x34x128xbf16, #tpu.memory_space<vmem>>, vector<16x32x128xbf16>
    %c1_60 = arith.constant 1 : index
    %c0_61 = arith.constant 0 : index
    %c0_62 = arith.constant 0 : index
    %74 = vector.load %arg10[%c1_60, %c0_61, %c0_62] : memref<18x34x128xbf16, #tpu.memory_space<vmem>>, vector<16x32x128xbf16>
    %c1_63 = arith.constant 1 : index
    %c1_64 = arith.constant 1 : index
    %c0_65 = arith.constant 0 : index
    %75 = vector.load %arg10[%c1_63, %c1_64, %c0_65] : memref<18x34x128xbf16, #tpu.memory_space<vmem>>, vector<16x32x128xbf16>
    %c1_66 = arith.constant 1 : index
    %c2_67 = arith.constant 2 : index
    %c0_68 = arith.constant 0 : index
    %76 = vector.load %arg10[%c1_66, %c2_67, %c0_68] : memref<18x34x128xbf16, #tpu.memory_space<vmem>>, vector<16x32x128xbf16>
    %c2_69 = arith.constant 2 : index
    %c0_70 = arith.constant 0 : index
    %c0_71 = arith.constant 0 : index
    %77 = vector.load %arg10[%c2_69, %c0_70, %c0_71] : memref<18x34x128xbf16, #tpu.memory_space<vmem>>, vector<16x32x128xbf16>
    %c2_72 = arith.constant 2 : index
    %c1_73 = arith.constant 1 : index
    %c0_74 = arith.constant 0 : index
    %78 = vector.load %arg10[%c2_72, %c1_73, %c0_74] : memref<18x34x128xbf16, #tpu.memory_space<vmem>>, vector<16x32x128xbf16>
    %c2_75 = arith.constant 2 : index
    %c2_76 = arith.constant 2 : index
    %c0_77 = arith.constant 0 : index
    %79 = vector.load %arg10[%c2_75, %c2_76, %c0_77] : memref<18x34x128xbf16, #tpu.memory_space<vmem>>, vector<16x32x128xbf16>
    %80 = tpu.concatenate %71, %72, %73, %74, %75, %76, %77, %78, %79 in 2 : vector<16x32x128xbf16>, vector<16x32x128xbf16>, vector<16x32x128xbf16>, vector<16x32x128xbf16>, vector<16x32x128xbf16>, vector<16x32x128xbf16>, vector<16x32x128xbf16>, vector<16x32x128xbf16>, vector<16x32x128xbf16> -> vector<16x32x1152xbf16>
    %81 = vector.shape_cast %80 : vector<16x32x1152xbf16> to vector<512x1152xbf16>
    %c0_78 = arith.constant 0 : index
    %c0_79 = arith.constant 0 : index
    %82 = vector.load %arg6[%c0_78, %c0_79] : memref<1152x128xbf16, #tpu.memory_space<vmem>>, vector<1152x128xbf16>
    %cst_80 = arith.constant dense<0.000000e+00> : vector<512x128xf32>
    %83 = tpu.matmul %81, %82, %cst_80 {dimension_numbers = #tpu.dot_dimension_numbers<[1], [0], [0], [1], [0, 0, 1, 1], [], []>} : vector<512x1152xbf16>, vector<1152x128xbf16>, vector<512x128xf32> -> vector<512x128xf32>
    %c0_81 = arith.constant 0 : index
    %c0_82 = arith.constant 0 : index
    %84 = vector.load %arg7[%c0_81, %c0_82] : memref<1x128xf32, #tpu.memory_space<vmem>>, vector<1x128xf32>
    %85 = vector.broadcast %84 : vector<1x128xf32> to vector<512x128xf32>
    %86 = arith.mulf %83, %85 : vector<512x128xf32>
    %c0_83 = arith.constant 0 : index
    %c0_84 = arith.constant 0 : index
    %87 = vector.load %arg8[%c0_83, %c0_84] : memref<1x128xf32, #tpu.memory_space<vmem>>, vector<1x128xf32>
    %88 = vector.broadcast %87 : vector<1x128xf32> to vector<512x128xf32>
    %89 = arith.addf %86, %88 : vector<512x128xf32>
    %cst_85 = arith.constant 0.000000e+00 : f32
    %90 = vector.broadcast %cst_85 : f32 to vector<512x128xf32>
    %91 = arith.cmpf oge, %89, %90 : vector<512x128xf32>
    %cst_86 = arith.constant 0.00999999977 : f32
    %92 = vector.broadcast %cst_86 : f32 to vector<512x128xf32>
    %93 = arith.mulf %92, %89 : vector<512x128xf32>
    %94 = arith.select %91, %89, %93 : vector<512x128xi1>, vector<512x128xf32>
    %c0_87 = arith.constant 0 : index
    %c0_88 = arith.constant 0 : index
    %c0_89 = arith.constant 0 : index
    %95 = vector.load %arg9[%c0_87, %c0_88, %c0_89] : memref<1x512x128xf32, #tpu.memory_space<vmem>>, vector<1x512x128xf32>
    %96 = vector.shape_cast %95 : vector<1x512x128xf32> to vector<512x128xf32>
    %97 = vector.shape_cast %94 : vector<512x128xf32> to vector<1x512x128xf32>
    tpu.vector_store %arg9[%c0_87, %c0_88, %c0_89], %97 {strides = array<i32>} : memref<1x512x128xf32, #tpu.memory_space<vmem>>, vector<1x512x128xf32>,
    return
  }
  func.func @transform_0(%arg0: i32, %arg1: i32) -> (i32, i32, i32, i32) {
    %c0_i32 = arith.constant 0 : i32
    %c0_i32_0 = arith.constant 0 : i32
    %c0_i32_1 = arith.constant 0 : i32
    %c0_i32_2 = arith.constant 0 : i32
    return %arg0, %c0_i32, %c0_i32_0, %c0_i32_1 : i32, i32, i32, i32
  }
  func.func @transform_1(%arg0: i32, %arg1: i32) -> (i32, i32) {
    %c0_i32 = arith.constant 0 : i32
    %c0_i32_0 = arith.constant 0 : i32
    %c0_i32_1 = arith.constant 0 : i32
    return %c0_i32, %c0_i32_0 : i32, i32
  }
  func.func @transform_2(%arg0: i32, %arg1: i32) -> (i32, i32) {
    %c0_i32 = arith.constant 0 : i32
    %c0_i32_0 = arith.constant 0 : i32
    %c0_i32_1 = arith.constant 0 : i32
    return %c0_i32, %c0_i32_0 : i32, i32
  }
  func.func @transform_3(%arg0: i32, %arg1: i32) -> (i32, i32) {
    %c0_i32 = arith.constant 0 : i32
    %c0_i32_0 = arith.constant 0 : i32
    %c0_i32_1 = arith.constant 0 : i32
    return %c0_i32, %c0_i32_0 : i32, i32
  }
  func.func @transform_4(%arg0: i32, %arg1: i32) -> (i32, i32) {
    %c0_i32 = arith.constant 0 : i32
    %c0_i32_0 = arith.constant 0 : i32
    %c0_i32_1 = arith.constant 0 : i32
    return %c0_i32, %c0_i32_0 : i32, i32
  }
  func.func @transform_5(%arg0: i32, %arg1: i32) -> (i32, i32) {
    %c0_i32 = arith.constant 0 : i32
    %c0_i32_0 = arith.constant 0 : i32
    %c0_i32_1 = arith.constant 0 : i32
    return %c0_i32, %c0_i32_0 : i32, i32
  }
  func.func @transform_6(%arg0: i32, %arg1: i32) -> (i32, i32) {
    %c0_i32 = arith.constant 0 : i32
    %c0_i32_0 = arith.constant 0 : i32
    %c0_i32_1 = arith.constant 0 : i32
    return %c0_i32, %c0_i32_0 : i32, i32
  }
  func.func @transform_7(%arg0: i32, %arg1: i32) -> (i32, i32, i32) {
    %c0_i32 = arith.constant 0 : i32
    %c0_i32_0 = arith.constant 0 : i32
    return %arg0, %arg1, %c0_i32 : i32, i32, i32
  }
}

</mosaic_0001>

<llo_original>
// kernel: double_conv_block.1
$region0: #{double_conv_block.1}
  #allocation0 [shape = 'u32[]', space=smem, size = 0x4, offset = 0x4, fixed_abs, tag = 'smem constant byte address 0x4 - core index']
  #allocation1 [shape = 'u32[144,128]{1,0:T(1,128)}', space=vmem, size = 0x12000, scoped, tag = 'internal scratch']
  #allocation2 [shape = 'bf16[18,34,128]{2,1,0:T(8,128)(2,1)}', space=vmem, size = 0x2d000, scoped, tag = 'scratch operand']
  %s0 = inlined_call_operand.vmem [shape: bf16[2,36,34,64], index: 0, kind: input, shape index: {}]
  %s1 = inlined_call_operand.vmem [shape: bf16[576,128], index: 1, kind: input, shape index: {}]
  %s2 = inlined_call_operand.vmem [shape: f32[1,128], index: 2, kind: input, shape index: {}]
  %s3 = inlined_call_operand.vmem [shape: f32[1,128], index: 3, kind: input, shape index: {}]
  %s4 = inlined_call_operand.vmem [shape: bf16[1152,128], index: 4, kind: input, shape index: {}]
  %s5 = inlined_call_operand.vmem [shape: f32[1,128], index: 5, kind: input, shape index: {}]
  %s6 = inlined_call_operand.vmem [shape: f32[1,128], index: 6, kind: input, shape index: {}]
  %s7 = inlined_call_operand.hbm [shape: f32[2,1024,128], index: 7, kind: output, shape index: {}]
  %s8 = sld [smem:[#allocation0]]
  $region61: #{double_conv_block.1} parent=0
    _
  %s10 = ssub.s32 1, %s8
  %s11 = scalar_select 0, %s10, %s8
  $region1: #{double_conv_block.1} parent=0
    #allocation3 [shape = 'u8[524288]{0}', space=vmem, size = 0x80000, scoped, tag = 'output window, operand 0']
    #allocation4 [shape = 's32[2]{0}', space=sflag, size = 0x8, scoped, tag = 'scoped memory for double_conv_block.1']
    %12 = vsyncpa [#allocation4], 0
    %s13 = scalar_lea.sflag [#allocation4], 1
    %14 = vsyncpa %s13, 0
    loop: start=0, step=1, limit=6
    $region2: #{double_conv_block.1} parent=1 // loop_pre_header
      _
    $region3: #{double_conv_block.1} parent=1 // loop_header
      %s16 = sphi 0, %s20
      %p17 = scmp.ge.s32.totalorder %s16, 6
      %s23 = sphi 0, %s35
      %s24 = sphi 0, %s31
      %s25 = sphi 0, %s23
      %s26 = sphi 0, %s24
      %s27 = sphi 0, %s25
      %s28 = sphi 0, %s26
      %s38 = sphi 0, %s40
      %s41 = sphi 0, %s38
      %s42 = sphi 0, %s41
      %s58 = sphi 0, %s42
      %s62 = sphi 0, %s62
      %s64 = sphi 0, %s62
      %s65 = sphi 0, %s64
      %s79 = sphi 0, %s65
      %s83 = sphi 0, %s83
      %s85 = sphi 0, %s83
      %s86 = sphi 0, %s85
      %s100 = sphi 0, %s86
      %s104 = sphi 0, %s104
      %s106 = sphi 0, %s104
      %s107 = sphi 0, %s106
      %s121 = sphi 0, %s107
      %s125 = sphi 0, %s125
      %s127 = sphi 0, %s125
      %s128 = sphi 0, %s127
      %s142 = sphi 0, %s128
      %s146 = sphi 0, %s146
      %s148 = sphi 0, %s146
      %s149 = sphi 0, %s148
      %s163 = sphi 0, %s149
      %s167 = sphi 0, %s167
      %s169 = sphi 0, %s167
      %s170 = sphi 0, %s169
      %s184 = sphi 0, %s170
      %s192 = sphi 0, %s194
      %s195 = sphi 0, %s192
      %s196 = sphi 0, %s195
      %s212 = sphi 0, %s196
    $region4: #{double_conv_block.1} parent=1 // loop_header_branch
      %19 = sbr.rel (%p17) target = $region8
    $region5: #{double_conv_block.1} parent=1 // loop_body
      %s21 = ssub.s32 %s16, 1
      %s22 = ssub.s32 %s16, 2
      %s29 = sadd.s32 1, %s24
      %p30 = scmp.ge.s32.totalorder %s29, 2
      %s31 = scalar_select %p30, 0, %s29
      %s32 = sadd.s32 1, %s23
      %s33 = scalar_select %p30, %s32, %s23
      %p34 = scmp.ge.s32.totalorder %s33, 2
      %s35 = scalar_select %p34, 0, %s33
      %s36 = ssub.s32 %s23, %s35
      %p37 = scmp.eq.s32.totalorder %s36, 0
      %s39 = sadd.s32 %s38, 1
      %s40 = scalar_select %p37, %s38, %s39
      %p43 = pneg %p37
      %p44 = scmp.eq.s32.totalorder %s16, 3
      %p45 = por %p43, %p44
      %p46 = scmp.ne.s32.totalorder %s38, %s41
      %p47 = scmp.eq.s32.totalorder %s16, 0
      %p48 = por %p46, %p47
      %p49 = scmp.ne.s32.totalorder %s38, %s41
      %p50 = scmp.eq.s32.totalorder %s21, 3
      %p51 = por %p49, %p50
      %p52 = scmp.ne.s32.totalorder %s41, %s42
      %p53 = scmp.eq.s32.totalorder %s21, 0
      %p54 = por %p52, %p53
      %p55 = scmp.ne.s32.totalorder %s41, %s42
      %p56 = scmp.eq.s32.totalorder %s22, 3
      %p57 = por %p55, %p56
      %p59 = scmp.ne.s32.totalorder %s42, %s58
      %p60 = scmp.eq.s32.totalorder %s22, 0
      %p61 = por %p59, %p60
      %s63 = sadd.s32 %s62, 1
      %p66 = scmp.eq.s32.totalorder %s16, 3
      %p67 = scmp.ne.s32.totalorder %s62, %s64
      %p68 = scmp.eq.s32.totalorder %s16, 0
      %p69 = por %p67, %p68
      %p70 = scmp.ne.s32.totalorder %s62, %s64
      %p71 = scmp.eq.s32.totalorder %s21, 3
      %p72 = por %p70, %p71
      %p73 = scmp.ne.s32.totalorder %s64, %s65
      %p74 = scmp.eq.s32.totalorder %s21, 0
      %p75 = por %p73, %p74
      %p76 = scmp.ne.s32.totalorder %s64, %s65
      %p77 = scmp.eq.s32.totalorder %s22, 3
      %p78 = por %p76, %p77
      %p80 = scmp.ne.s32.totalorder %s65, %s79
      %p81 = scmp.eq.s32.totalorder %s22, 0
      %p82 = por %p80, %p81
      %s84 = sadd.s32 %s83, 1
      %p87 = scmp.eq.s32.totalorder %s16, 3
      %p88 = scmp.ne.s32.totalorder %s83, %s85
      %p89 = scmp.eq.s32.totalorder %s16, 0
      %p90 = por %p88, %p89
      %p91 = scmp.ne.s32.totalorder %s83, %s85
      %p92 = scmp.eq.s32.totalorder %s21, 3
      %p93 = por %p91, %p92
      %p94 = scmp.ne.s32.totalorder %s85, %s86
      %p95 = scmp.eq.s32.totalorder %s21, 0
      %p96 = por %p94, %p95
      %p97 = scmp.ne.s32.totalorder %s85, %s86
      %p98 = scmp.eq.s32.totalorder %s22, 3
      %p99 = por %p97, %p98
      %p101 = scmp.ne.s32.totalorder %s86, %s100
      %p102 = scmp.eq.s32.totalorder %s22, 0
      %p103 = por %p101, %p102
      %s105 = sadd.s32 %s104, 1
      %p108 = scmp.eq.s32.totalorder %s16, 3
      %p109 = scmp.ne.s32.totalorder %s104, %s106
      %p110 = scmp.eq.s32.totalorder %s16, 0
      %p111 = por %p109, %p110
      %p112 = scmp.ne.s32.totalorder %s104, %s106
      %p113 = scmp.eq.s32.totalorder %s21, 3
      %p114 = por %p112, %p113
      %p115 = scmp.ne.s32.totalorder %s106, %s107
      %p116 = scmp.eq.s32.totalorder %s21, 0
      %p117 = por %p115, %p116
      %p118 = scmp.ne.s32.totalorder %s106, %s107
      %p119 = scmp.eq.s32.totalorder %s22, 3
      %p120 = por %p118, %p119
      %p122 = scmp.ne.s32.totalorder %s107, %s121
      %p123 = scmp.eq.s32.totalorder %s22, 0
      %p124 = por %p122, %p123
      %s126 = sadd.s32 %s125, 1
      %p129 = scmp.eq.s32.totalorder %s16, 3
      %p130 = scmp.ne.s32.totalorder %s125, %s127
      %p131 = scmp.eq.s32.totalorder %s16, 0
      %p132 = por %p130, %p131
      %p133 = scmp.ne.s32.totalorder %s125, %s127
      %p134 = scmp.eq.s32.totalorder %s21, 3
      %p135 = por %p133, %p134
      %p136 = scmp.ne.s32.totalorder %s127, %s128
      %p137 = scmp.eq.s32.totalorder %s21, 0
      %p138 = por %p136, %p137
      %p139 = scmp.ne.s32.totalorder %s127, %s128
      %p140 = scmp.eq.s32.totalorder %s22, 3
      %p141 = por %p139, %p140
      %p143 = scmp.ne.s32.totalorder %s128, %s142
      %p144 = scmp.eq.s32.totalorder %s22, 0
      %p145 = por %p143, %p144
      %s147 = sadd.s32 %s146, 1
      %p150 = scmp.eq.s32.totalorder %s16, 3
      %p151 = scmp.ne.s32.totalorder %s146, %s148
      %p152 = scmp.eq.s32.totalorder %s16, 0
      %p153 = por %p151, %p152
      %p154 = scmp.ne.s32.totalorder %s146, %s148
      %p155 = scmp.eq.s32.totalorder %s21, 3
      %p156 = por %p154, %p155
      %p157 = scmp.ne.s32.totalorder %s148, %s149
      %p158 = scmp.eq.s32.totalorder %s21, 0
      %p159 = por %p157, %p158
      %p160 = scmp.ne.s32.totalorder %s148, %s149
      %p161 = scmp.eq.s32.totalorder %s22, 3
      %p162 = por %p160, %p161
      %p164 = scmp.ne.s32.totalorder %s149, %s163
      %p165 = scmp.eq.s32.totalorder %s22, 0
      %p166 = por %p164, %p165
      %s168 = sadd.s32 %s167, 1
      %p171 = scmp.eq.s32.totalorder %s16, 3
      %p172 = scmp.ne.s32.totalorder %s167, %s169
      %p173 = scmp.eq.s32.totalorder %s16, 0
      %p174 = por %p172, %p173
      %p175 = scmp.ne.s32.totalorder %s167, %s169
      %p176 = scmp.eq.s32.totalorder %s21, 3
      %p177 = por %p175, %p176
      %p178 = scmp.ne.s32.totalorder %s169, %s170
      %p179 = scmp.eq.s32.totalorder %s21, 0
      %p180 = por %p178, %p179
      %p181 = scmp.ne.s32.totalorder %s169, %s170
      %p182 = scmp.eq.s32.totalorder %s22, 3
      %p183 = por %p181, %p182
      %p185 = scmp.ne.s32.totalorder %s170, %s184
      %p186 = scmp.eq.s32.totalorder %s22, 0
      %p187 = por %p185, %p186
      %s188 = ssub.s32 %s23, %s35
      %s189 = ssub.s32 %s24, %s31
      %s190 = sor.u32 %s188, %s189
      %p191 = scmp.eq.s32.totalorder %s190, 0
      %s193 = sadd.s32 %s192, 1
      %s194 = scalar_select %p191, %s192, %s193
      %p197 = pneg %p191
      %p198 = scmp.eq.s32.totalorder %s16, 3
      %p199 = por %p197, %p198
      %p200 = scmp.ne.s32.totalorder %s192, %s195
      %p201 = scmp.eq.s32.totalorder %s16, 0
      %p202 = por %p200, %p201
      %p203 = scmp.ne.s32.totalorder %s192, %s195
      %p204 = scmp.eq.s32.totalorder %s21, 3
      %p205 = por %p203, %p204
      %p206 = scmp.ne.s32.totalorder %s195, %s196
      %p207 = scmp.eq.s32.totalorder %s21, 0
      %p208 = por %p206, %p207
      %p209 = scmp.ne.s32.totalorder %s195, %s196
      %p210 = scmp.eq.s32.totalorder %s22, 3
      %p211 = por %p209, %p210
      %p213 = scmp.ne.s32.totalorder %s196, %s212
      %p214 = scmp.eq.s32.totalorder %s22, 0
      %p215 = por %p213, %p214
      %p216 = scmp.le.s32.totalorder 1, %s16
      %p217 = scmp.lt.s32.totalorder %s16, 5
      %p218 = pnand %p216, %p217
      %p219 = pneg %p218
      // Predicated region
      $region9: #{double_conv_block.1} parent=5 // pred_check
        _
      $region10: #{double_conv_block.1} parent=5 // pred_check_branch
        %221 = sbr.rel (%p218) target = $region12
      $region11: #{double_conv_block.1} parent=5 // pred_region
        %s222 = ssub.s32 %s16, 1
        // Predicated region
        $region13: #{double_conv_block.1} parent=11 // pred_check
          %p223 = pneg %p75
        $region14: #{double_conv_block.1} parent=11 // pred_check_branch
          %225 = sbr.rel (%p223) target = $region16
        $region15: #{double_conv_block.1} parent=11 // pred_region
          _
        $region16: #{double_conv_block.1} parent=11 // pred_fallthru
          _
        // Predicated region
        $region17: #{double_conv_block.1} parent=11 // pred_check
          %p226 = pneg %p96
        $region18: #{double_conv_block.1} parent=11 // pred_check_branch
          %228 = sbr.rel (%p226) target = $region20
        $region19: #{double_conv_block.1} parent=11 // pred_region
          _
        $region20: #{double_conv_block.1} parent=11 // pred_fallthru
          _
        // Predicated region
        $region21: #{double_conv_block.1} parent=11 // pred_check
          %p229 = pneg %p117
        $region22: #{double_conv_block.1} parent=11 // pred_check_branch
          %231 = sbr.rel (%p229) target = $region24
        $region23: #{double_conv_block.1} parent=11 // pred_region
          _
        $region24: #{double_conv_block.1} parent=11 // pred_fallthru
          _
        // Predicated region
        $region25: #{double_conv_block.1} parent=11 // pred_check
          %p232 = pneg %p138
        $region26: #{double_conv_block.1} parent=11 // pred_check_branch
          %234 = sbr.rel (%p232) target = $region28
        $region27: #{double_conv_block.1} parent=11 // pred_region
          _
        $region28: #{double_conv_block.1} parent=11 // pred_fallthru
          _
        // Predicated region
        $region29: #{double_conv_block.1} parent=11 // pred_check
          %p235 = pneg %p159
        $region30: #{double_conv_block.1} parent=11 // pred_check_branch
          %237 = sbr.rel (%p235) target = $region32
        $region31: #{double_conv_block.1} parent=11 // pred_region
          _
        $region32: #{double_conv_block.1} parent=11 // pred_fallthru
          _
        // Predicated region
        $region33: #{double_conv_block.1} parent=11 // pred_check
          %p238 = pneg %p180
        $region34: #{double_conv_block.1} parent=11 // pred_check_branch
          %240 = sbr.rel (%p238) target = $region36
        $region35: #{double_conv_block.1} parent=11 // pred_region
          _
        $region36: #{double_conv_block.1} parent=11 // pred_fallthru
          _
      $region12: #{double_conv_block.1} parent=5 // pred_fallthru
        _
      %p241 = scmp.lt.s32.totalorder %s16, 4
      // Predicated region
      $region37: #{double_conv_block.1} parent=5 // pred_check
        %p242 = pneg %p241
      $region38: #{double_conv_block.1} parent=5 // pred_check_branch
        %244 = sbr.rel (%p242) target = $region40
      $region39: #{double_conv_block.1} parent=5 // pred_region
        // Predicated region
        $region41: #{double_conv_block.1} parent=39 // pred_check
          %p245 = pneg %p48
        $region42: #{double_conv_block.1} parent=39 // pred_check_branch
          %247 = sbr.rel (%p245) target = $region44
        $region43: #{double_conv_block.1} parent=39 // pred_region
          %p248 = scmp.lt.s32.totalorder %s23, 1
          %s249 = scalar_select %p248, %s23, 1
          %s250 = smul.addr %s249, 180
          %s251 = smul.addr %s250, 4
          %s252 = scalar_lea.vmem %s0, %s251
        $region44: #{double_conv_block.1} parent=39 // pred_fallthru
          _
      $region40: #{double_conv_block.1} parent=5 // pred_fallthru
        _
      %p253 = scmp.le.s32.totalorder 1, %s16
      %p254 = scmp.lt.s32.totalorder %s16, 5
      %p255 = pnand %p253, %p254
      %p256 = pneg %p255
      // Predicated region
      $region45: #{double_conv_block.1} parent=5 // pred_check
        _
      $region46: #{double_conv_block.1} parent=5 // pred_check_branch
        %258 = sbr.rel (%p255) target = $region48
      $region47: #{double_conv_block.1} parent=5 // pred_region
        %s259 = ssub.s32 %s16, 1
        %p260 = scmp.lt.s32.totalorder %s25, 1
        %s261 = scalar_select %p260, %s25, 1
        %s262 = smul.addr %s261, 180
        %s263 = smul.addr %s262, 4
        %s264 = scalar_lea.vmem %s0, %s263
        %p265 = pneg %p54
        %p266 = pneg %p51
        %p267 = pneg %p75
        %p268 = pneg %p72
        %p269 = pneg %p96
        %p270 = pneg %p93
        %p271 = pneg %p117
        %p272 = pneg %p114
        %p273 = pneg %p138
        %p274 = pneg %p135
        %p275 = pneg %p159
        %p276 = pneg %p156
        %p277 = pneg %p180
        %p278 = pneg %p177
        %p279 = pneg %p208
        %p280 = pneg %p205
        %s281 = sand.u32 %s195, 1
        %s282 = scalar_lea.sflag [#allocation4], %s281
        %s283 = sand.u32 %s195, 1
        %s284 = smul.addr %s283, 512
        %s285 = scalar_lea.vmem [#allocation3], %s284
        %p286 = scmp.lt.s32.totalorder %s25, 1
        %s287 = scalar_select %p286, %s25, 1
        %s288 = smul.addr %s287, 180
        %s289 = smul.addr %s288, 4
        %s290 = scalar_lea.vmem %s0, %s289
        %s291 = smul.u32 64, %s26
        %s293 = smul.u32 %s26, 16
        %s294 = smul.u32 %s293, 5
        %s295 = smul.addr %s294, 4
        %s296 = scalar_lea.vmem %s290, %s295
        %v297 = vld [vmem:[%s296] sm:$0xf]
        %v298 = vld [vmem:[%s296 + $0x4] sm:$0xf]
        %v299 = vld [vmem:[%s296 + $0x8] sm:$0xf]
        %v300 = vld [vmem:[%s296 + $0xc] sm:$0xf]
        %v301 = vld [vmem:[%s296 + $0x14] sm:$0xf]
        %v302 = vld [vmem:[%s296 + $0x18] sm:$0xf]
        %v303 = vld [vmem:[%s296 + $0x1c] sm:$0xf]
        %v304 = vld [vmem:[%s296 + $0x20] sm:$0xf]
        %v305 = vld [vmem:[%s296 + $0x28] sm:$0xf]
        %v306 = vld [vmem:[%s296 + $0x2c] sm:$0xf]
        %v307 = vld [vmem:[%s296 + $0x30] sm:$0xf]
        %v308 = vld [vmem:[%s296 + $0x34] sm:$0xf]
        %v309 = vld [vmem:[%s296 + $0x3c] sm:$0xf]
        %v310 = vld [vmem:[%s296 + $0x40] sm:$0xf]
        %v311 = vld [vmem:[%s296 + $0x44] sm:$0xf]
        %v312 = vld [vmem:[%s296 + $0x48] sm:$0xf]
        %v313 = vld [vmem:[%s296 + $0x50] sm:$0xf]
        %v314 = vld [vmem:[%s296 + $0x54] sm:$0xf]
        %v315 = vld [vmem:[%s296 + $0x58] sm:$0xf]
        %v316 = vld [vmem:[%s296 + $0x5c] sm:$0xf]
        %v317 = vld [vmem:[%s296 + $0x64] sm:$0xf]
        %v318 = vld [vmem:[%s296 + $0x68] sm:$0xf]
        %v319 = vld [vmem:[%s296 + $0x6c] sm:$0xf]
        %v320 = vld [vmem:[%s296 + $0x70] sm:$0xf]
        %v321 = vld [vmem:[%s296 + $0x78] sm:$0xf]
        %v322 = vld [vmem:[%s296 + $0x7c] sm:$0xf]
        %v323 = vld [vmem:[%s296 + $0x80] sm:$0xf]
        %v324 = vld [vmem:[%s296 + $0x84] sm:$0xf]
        %v325 = vld [vmem:[%s296 + $0x8c] sm:$0xf]
        %v326 = vld [vmem:[%s296 + $0x90] sm:$0xf]
        %v327 = vld [vmem:[%s296 + $0x94] sm:$0xf]
        %v328 = vld [vmem:[%s296 + $0x98] sm:$0xf]
        %v329 = vld [vmem:[%s296 + $0xa0] sm:$0xf]
        %v330 = vld [vmem:[%s296 + $0xa4] sm:$0xf]
        %v331 = vld [vmem:[%s296 + $0xa8] sm:$0xf]
        %v332 = vld [vmem:[%s296 + $0xac] sm:$0xf]
        %v333 = vld [vmem:[%s296 + $0xb4] sm:$0xf]
        %v334 = vld [vmem:[%s296 + $0xb8] sm:$0xf]
        %v335 = vld [vmem:[%s296 + $0xbc] sm:$0xf]
        %v336 = vld [vmem:[%s296 + $0xc0] sm:$0xf]
        %v337 = vld [vmem:[%s296 + $0xc8] sm:$0xf]
        %v338 = vld [vmem:[%s296 + $0xcc] sm:$0xf]
        %v339 = vld [vmem:[%s296 + $0xd0] sm:$0xf]
        %v340 = vld [vmem:[%s296 + $0xd4] sm:$0xf]
        %v341 = vld [vmem:[%s296 + $0xdc] sm:$0xf]
        %v342 = vld [vmem:[%s296 + $0xe0] sm:$0xf]
        %v343 = vld [vmem:[%s296 + $0xe4] sm:$0xf]
        %v344 = vld [vmem:[%s296 + $0xe8] sm:$0xf]
        %v345 = vld [vmem:[%s296 + $0xf0] sm:$0xf]
        %v346 = vld [vmem:[%s296 + $0xf4] sm:$0xf]
        %v347 = vld [vmem:[%s296 + $0xf8] sm:$0xf]
        %v348 = vld [vmem:[%s296 + $0xfc] sm:$0xf]
        %v349 = vld [vmem:[%s296 + $0x104] sm:$0xf]
        %v350 = vld [vmem:[%s296 + $0x108] sm:$0xf]
        %v351 = vld [vmem:[%s296 + $0x10c] sm:$0xf]
        %v352 = vld [vmem:[%s296 + $0x110] sm:$0xf]
        %v353 = vld [vmem:[%s296 + $0x118] sm:$0xf]
        %v354 = vld [vmem:[%s296 + $0x11c] sm:$0xf]
        %v355 = vld [vmem:[%s296 + $0x120] sm:$0xf]
        %v356 = vld [vmem:[%s296 + $0x124] sm:$0xf]
        %v357 = vld [vmem:[%s296 + $0x12c] sm:$0xf]
        %v358 = vld [vmem:[%s296 + $0x130] sm:$0xf]
        %v359 = vld [vmem:[%s296 + $0x134] sm:$0xf]
        %v360 = vld [vmem:[%s296 + $0x138] sm:$0xf]
        %v361 = vld [vmem:[%s296 + $0x140] sm:$0xf]
        %v362 = vld [vmem:[%s296 + $0x144] sm:$0xf]
        %v363 = vld [vmem:[%s296 + $0x148] sm:$0xf]
        %v364 = vld [vmem:[%s296 + $0x14c] sm:$0xf]
        %v365 = vld [vmem:[%s296 + $0x154] sm:$0xf]
        %v366 = vld [vmem:[%s296 + $0x158] sm:$0xf]
        %v367 = vld [vmem:[%s296 + $0x15c] sm:$0xf]
        %v368 = vld [vmem:[%s296 + $0x160] sm:$0xf]
        %v369 = vld [vmem:[%s296 + $0x10] sm:$0x1]
        %v370 = vld [vmem:[%s296 + $0x24] sm:$0x1]
        %v371 = vld [vmem:[%s296 + $0x38] sm:$0x1]
        %v372 = vld [vmem:[%s296 + $0x4c] sm:$0x1]
        %v373 = vld [vmem:[%s296 + $0x60] sm:$0x1]
        %v374 = vld [vmem:[%s296 + $0x74] sm:$0x1]
        %v375 = vld [vmem:[%s296 + $0x88] sm:$0x1]
        %v376 = vld [vmem:[%s296 + $0x9c] sm:$0x1]
        %v377 = vld [vmem:[%s296 + $0xb0] sm:$0x1]
        %v378 = vld [vmem:[%s296 + $0xc4] sm:$0x1]
        %v379 = vld [vmem:[%s296 + $0xd8] sm:$0x1]
        %v380 = vld [vmem:[%s296 + $0xec] sm:$0x1]
        %v381 = vld [vmem:[%s296 + $0x100] sm:$0x1]
        %v382 = vld [vmem:[%s296 + $0x114] sm:$0x1]
        %v383 = vld [vmem:[%s296 + $0x128] sm:$0x1]
        %v384 = vld [vmem:[%s296 + $0x13c] sm:$0x1]
        %v385 = vld [vmem:[%s296 + $0x150] sm:$0x1]
        %v386 = vld [vmem:[%s296 + $0x164] sm:$0x1]
        %v387 = vld [vmem:[%s296] sm:$0xe]
        %v388 = vld [vmem:[%s296 + $0x14] sm:$0xe]
        %v389 = vld [vmem:[%s296 + $0x28] sm:$0xe]
        %v390 = vld [vmem:[%s296 + $0x3c] sm:$0xe]
        %v391 = vld [vmem:[%s296 + $0x50] sm:$0xe]
        %v392 = vld [vmem:[%s296 + $0x64] sm:$0xe]
        %v393 = vld [vmem:[%s296 + $0x78] sm:$0xe]
        %v394 = vld [vmem:[%s296 + $0x8c] sm:$0xe]
        %v395 = vld [vmem:[%s296 + $0xa0] sm:$0xe]
        %v396 = vld [vmem:[%s296 + $0xb4] sm:$0xe]
        %v397 = vld [vmem:[%s296 + $0xc8] sm:$0xe]
        %v398 = vld [vmem:[%s296 + $0xdc] sm:$0xe]
        %v399 = vld [vmem:[%s296 + $0xf0] sm:$0xe]
        %v400 = vld [vmem:[%s296 + $0x104] sm:$0xe]
        %v401 = vld [vmem:[%s296 + $0x118] sm:$0xe]
        %v402 = vld [vmem:[%s296 + $0x12c] sm:$0xe]
        %v403 = vld [vmem:[%s296 + $0x140] sm:$0xe]
        %v404 = vld [vmem:[%s296 + $0x154] sm:$0xe]
        %s405 = sadd.s32 %s293, 1
        %s406 = smul.u32 %s405, 5
        %s407 = smul.addr %s406, 4
        %s408 = scalar_lea.vmem %s290, %s407
        %v409 = vld [vmem:[%s408] sm:$0xf]
        %v410 = vld [vmem:[%s408 + $0x4] sm:$0xf]
        %v411 = vld [vmem:[%s408 + $0x8] sm:$0xf]
        %v412 = vld [vmem:[%s408 + $0xc] sm:$0xf]
        %v413 = vld [vmem:[%s408 + $0x14] sm:$0xf]
        %v414 = vld [vmem:[%s408 + $0x18] sm:$0xf]
        %v415 = vld [vmem:[%s408 + $0x1c] sm:$0xf]
        %v416 = vld [vmem:[%s408 + $0x20] sm:$0xf]
        %v417 = vld [vmem:[%s408 + $0x28] sm:$0xf]
        %v418 = vld [vmem:[%s408 + $0x2c] sm:$0xf]
        %v419 = vld [vmem:[%s408 + $0x30] sm:$0xf]
        %v420 = vld [vmem:[%s408 + $0x34] sm:$0xf]
        %v421 = vld [vmem:[%s408 + $0x3c] sm:$0xf]
        %v422 = vld [vmem:[%s408 + $0x40] sm:$0xf]
        %v423 = vld [vmem:[%s408 + $0x44] sm:$0xf]
        %v424 = vld [vmem:[%s408 + $0x48] sm:$0xf]
        %v425 = vld [vmem:[%s408 + $0x50] sm:$0xf]
        %v426 = vld [vmem:[%s408 + $0x54] sm:$0xf]
        %v427 = vld [vmem:[%s408 + $0x58] sm:$0xf]
        %v428 = vld [vmem:[%s408 + $0x5c] sm:$0xf]
        %v429 = vld [vmem:[%s408 + $0x64] sm:$0xf]
        %v430 = vld [vmem:[%s408 + $0x68] sm:$0xf]
        %v431 = vld [vmem:[%s408 + $0x6c] sm:$0xf]
        %v432 = vld [vmem:[%s408 + $0x70] sm:$0xf]
        %v433 = vld [vmem:[%s408 + $0x78] sm:$0xf]
        %v434 = vld [vmem:[%s408 + $0x7c] sm:$0xf]
        %v435 = vld [vmem:[%s408 + $0x80] sm:$0xf]
        %v436 = vld [vmem:[%s408 + $0x84] sm:$0xf]
        %v437 = vld [vmem:[%s408 + $0x8c] sm:$0xf]
        %v438 = vld [vmem:[%s408 + $0x90] sm:$0xf]
        %v439 = vld [vmem:[%s408 + $0x94] sm:$0xf]
        %v440 = vld [vmem:[%s408 + $0x98] sm:$0xf]
        %v441 = vld [vmem:[%s408 + $0xa0] sm:$0xf]
        %v442 = vld [vmem:[%s408 + $0xa4] sm:$0xf]
        %v443 = vld [vmem:[%s408 + $0xa8] sm:$0xf]
        %v444 = vld [vmem:[%s408 + $0xac] sm:$0xf]
        %v445 = vld [vmem:[%s408 + $0xb4] sm:$0xf]
        %v446 = vld [vmem:[%s408 + $0xb8] sm:$0xf]
        %v447 = vld [vmem:[%s408 + $0xbc] sm:$0xf]
        %v448 = vld [vmem:[%s408 + $0xc0] sm:$0xf]
        %v449 = vld [vmem:[%s408 + $0xc8] sm:$0xf]
        %v450 = vld [vmem:[%s408 + $0xcc] sm:$0xf]
        %v451 = vld [vmem:[%s408 + $0xd0] sm:$0xf]
        %v452 = vld [vmem:[%s408 + $0xd4] sm:$0xf]
        %v453 = vld [vmem:[%s408 + $0xdc] sm:$0xf]
        %v454 = vld [vmem:[%s408 + $0xe0] sm:$0xf]
        %v455 = vld [vmem:[%s408 + $0xe4] sm:$0xf]
        %v456 = vld [vmem:[%s408 + $0xe8] sm:$0xf]
        %v457 = vld [vmem:[%s408 + $0xf0] sm:$0xf]
        %v458 = vld [vmem:[%s408 + $0xf4] sm:$0xf]
        %v459 = vld [vmem:[%s408 + $0xf8] sm:$0xf]
        %v460 = vld [vmem:[%s408 + $0xfc] sm:$0xf]
        %v461 = vld [vmem:[%s408 + $0x104] sm:$0xf]
        %v462 = vld [vmem:[%s408 + $0x108] sm:$0xf]
        %v463 = vld [vmem:[%s408 + $0x10c] sm:$0xf]
        %v464 = vld [vmem:[%s408 + $0x110] sm:$0xf]
        %v465 = vld [vmem:[%s408 + $0x118] sm:$0xf]
        %v466 = vld [vmem:[%s408 + $0x11c] sm:$0xf]
        %v467 = vld [vmem:[%s408 + $0x120] sm:$0xf]
        %v468 = vld [vmem:[%s408 + $0x124] sm:$0xf]
        %v469 = vld [vmem:[%s408 + $0x12c] sm:$0xf]
        %v470 = vld [vmem:[%s408 + $0x130] sm:$0xf]
        %v471 = vld [vmem:[%s408 + $0x134] sm:$0xf]
        %v472 = vld [vmem:[%s408 + $0x138] sm:$0xf]
        %v473 = vld [vmem:[%s408 + $0x140] sm:$0xf]
        %v474 = vld [vmem:[%s408 + $0x144] sm:$0xf]
        %v475 = vld [vmem:[%s408 + $0x148] sm:$0xf]
        %v476 = vld [vmem:[%s408 + $0x14c] sm:$0xf]
        %v477 = vld [vmem:[%s408 + $0x154] sm:$0xf]
        %v478 = vld [vmem:[%s408 + $0x158] sm:$0xf]
        %v479 = vld [vmem:[%s408 + $0x15c] sm:$0xf]
        %v480 = vld [vmem:[%s408 + $0x160] sm:$0xf]
        %v481 = vld [vmem:[%s408 + $0x10] sm:$0x1]
        %v482 = vld [vmem:[%s408 + $0x24] sm:$0x1]
        %v483 = vld [vmem:[%s408 + $0x38] sm:$0x1]
        %v484 = vld [vmem:[%s408 + $0x4c] sm:$0x1]
        %v485 = vld [vmem:[%s408 + $0x60] sm:$0x1]
        %v486 = vld [vmem:[%s408 + $0x74] sm:$0x1]
        %v487 = vld [vmem:[%s408 + $0x88] sm:$0x1]
        %v488 = vld [vmem:[%s408 + $0x9c] sm:$0x1]
        %v489 = vld [vmem:[%s408 + $0xb0] sm:$0x1]
        %v490 = vld [vmem:[%s408 + $0xc4] sm:$0x1]
        %v491 = vld [vmem:[%s408 + $0xd8] sm:$0x1]
        %v492 = vld [vmem:[%s408 + $0xec] sm:$0x1]
        %v493 = vld [vmem:[%s408 + $0x100] sm:$0x1]
        %v494 = vld [vmem:[%s408 + $0x114] sm:$0x1]
        %v495 = vld [vmem:[%s408 + $0x128] sm:$0x1]
        %v496 = vld [vmem:[%s408 + $0x13c] sm:$0x1]
        %v497 = vld [vmem:[%s408 + $0x150] sm:$0x1]
        %v498 = vld [vmem:[%s408 + $0x164] sm:$0x1]
        %v499 = vld [vmem:[%s408] sm:$0xe]
        %v500 = vld [vmem:[%s408 + $0x14] sm:$0xe]
        %v501 = vld [vmem:[%s408 + $0x28] sm:$0xe]
        %v502 = vld [vmem:[%s408 + $0x3c] sm:$0xe]
        %v503 = vld [vmem:[%s408 + $0x50] sm:$0xe]
        %v504 = vld [vmem:[%s408 + $0x64] sm:$0xe]
        %v505 = vld [vmem:[%s408 + $0x78] sm:$0xe]
        %v506 = vld [vmem:[%s408 + $0x8c] sm:$0xe]
        %v507 = vld [vmem:[%s408 + $0xa0] sm:$0xe]
        %v508 = vld [vmem:[%s408 + $0xb4] sm:$0xe]
        %v509 = vld [vmem:[%s408 + $0xc8] sm:$0xe]
        %v510 = vld [vmem:[%s408 + $0xdc] sm:$0xe]
        %v511 = vld [vmem:[%s408 + $0xf0] sm:$0xe]
        %v512 = vld [vmem:[%s408 + $0x104] sm:$0xe]
        %v513 = vld [vmem:[%s408 + $0x118] sm:$0xe]
        %v514 = vld [vmem:[%s408 + $0x12c] sm:$0xe]
        %v515 = vld [vmem:[%s408 + $0x140] sm:$0xe]
        %v516 = vld [vmem:[%s408 + $0x154] sm:$0xe]
        %s517 = sadd.s32 %s293, 2
        %s518 = smul.u32 %s517, 5
        %s519 = smul.addr %s518, 4
        %s520 = scalar_lea.vmem %s290, %s519
        %v521 = vld [vmem:[%s520] sm:$0xf]
        %v522 = vld [vmem:[%s520 + $0x4] sm:$0xf]
        %v523 = vld [vmem:[%s520 + $0x8] sm:$0xf]
        %v524 = vld [vmem:[%s520 + $0xc] sm:$0xf]
        %v525 = vld [vmem:[%s520 + $0x14] sm:$0xf]
        %v526 = vld [vmem:[%s520 + $0x18] sm:$0xf]
        %v527 = vld [vmem:[%s520 + $0x1c] sm:$0xf]
        %v528 = vld [vmem:[%s520 + $0x20] sm:$0xf]
        %v529 = vld [vmem:[%s520 + $0x28] sm:$0xf]
        %v530 = vld [vmem:[%s520 + $0x2c] sm:$0xf]
        %v531 = vld [vmem:[%s520 + $0x30] sm:$0xf]
        %v532 = vld [vmem:[%s520 + $0x34] sm:$0xf]
        %v533 = vld [vmem:[%s520 + $0x3c] sm:$0xf]
        %v534 = vld [vmem:[%s520 + $0x40] sm:$0xf]
        %v535 = vld [vmem:[%s520 + $0x44] sm:$0xf]
        %v536 = vld [vmem:[%s520 + $0x48] sm:$0xf]
        %v537 = vld [vmem:[%s520 + $0x50] sm:$0xf]
        %v538 = vld [vmem:[%s520 + $0x54] sm:$0xf]
        %v539 = vld [vmem:[%s520 + $0x58] sm:$0xf]
        %v540 = vld [vmem:[%s520 + $0x5c] sm:$0xf]
        %v541 = vld [vmem:[%s520 + $0x64] sm:$0xf]
        %v542 = vld [vmem:[%s520 + $0x68] sm:$0xf]
        %v543 = vld [vmem:[%s520 + $0x6c] sm:$0xf]
        %v544 = vld [vmem:[%s520 + $0x70] sm:$0xf]
        %v545 = vld [vmem:[%s520 + $0x78] sm:$0xf]
        %v546 = vld [vmem:[%s520 + $0x7c] sm:$0xf]
        %v547 = vld [vmem:[%s520 + $0x80] sm:$0xf]
        %v548 = vld [vmem:[%s520 + $0x84] sm:$0xf]
        %v549 = vld [vmem:[%s520 + $0x8c] sm:$0xf]
        %v550 = vld [vmem:[%s520 + $0x90] sm:$0xf]
        %v551 = vld [vmem:[%s520 + $0x94] sm:$0xf]
        %v552 = vld [vmem:[%s520 + $0x98] sm:$0xf]
        %v553 = vld [vmem:[%s520 + $0xa0] sm:$0xf]
        %v554 = vld [vmem:[%s520 + $0xa4] sm:$0xf]
        %v555 = vld [vmem:[%s520 + $0xa8] sm:$0xf]
        %v556 = vld [vmem:[%s520 + $0xac] sm:$0xf]
        %v557 = vld [vmem:[%s520 + $0xb4] sm:$0xf]
        %v558 = vld [vmem:[%s520 + $0xb8] sm:$0xf]
        %v559 = vld [vmem:[%s520 + $0xbc] sm:$0xf]
        %v560 = vld [vmem:[%s520 + $0xc0] sm:$0xf]
        %v561 = vld [vmem:[%s520 + $0xc8] sm:$0xf]
        %v562 = vld [vmem:[%s520 + $0xcc] sm:$0xf]
        %v563 = vld [vmem:[%s520 + $0xd0] sm:$0xf]
        %v564 = vld [vmem:[%s520 + $0xd4] sm:$0xf]
        %v565 = vld [vmem:[%s520 + $0xdc] sm:$0xf]
        %v566 = vld [vmem:[%s520 + $0xe0] sm:$0xf]
        %v567 = vld [vmem:[%s520 + $0xe4] sm:$0xf]
        %v568 = vld [vmem:[%s520 + $0xe8] sm:$0xf]
        %v569 = vld [vmem:[%s520 + $0xf0] sm:$0xf]
        %v570 = vld [vmem:[%s520 + $0xf4] sm:$0xf]
        %v571 = vld [vmem:[%s520 + $0xf8] sm:$0xf]
        %v572 = vld [vmem:[%s520 + $0xfc] sm:$0xf]
        %v573 = vld [vmem:[%s520 + $0x104] sm:$0xf]
        %v574 = vld [vmem:[%s520 + $0x108] sm:$0xf]
        %v575 = vld [vmem:[%s520 + $0x10c] sm:$0xf]
        %v576 = vld [vmem:[%s520 + $0x110] sm:$0xf]
        %v577 = vld [vmem:[%s520 + $0x118] sm:$0xf]
        %v578 = vld [vmem:[%s520 + $0x11c] sm:$0xf]
        %v579 = vld [vmem:[%s520 + $0x120] sm:$0xf]
        %v580 = vld [vmem:[%s520 + $0x124] sm:$0xf]
        %v581 = vld [vmem:[%s520 + $0x12c] sm:$0xf]
        %v582 = vld [vmem:[%s520 + $0x130] sm:$0xf]
        %v583 = vld [vmem:[%s520 + $0x134] sm:$0xf]
        %v584 = vld [vmem:[%s520 + $0x138] sm:$0xf]
        %v585 = vld [vmem:[%s520 + $0x140] sm:$0xf]
        %v586 = vld [vmem:[%s520 + $0x144] sm:$0xf]
        %v587 = vld [vmem:[%s520 + $0x148] sm:$0xf]
        %v588 = vld [vmem:[%s520 + $0x14c] sm:$0xf]
        %v589 = vld [vmem:[%s520 + $0x154] sm:$0xf]
        %v590 = vld [vmem:[%s520 + $0x158] sm:$0xf]
        %v591 = vld [vmem:[%s520 + $0x15c] sm:$0xf]
        %v592 = vld [vmem:[%s520 + $0x160] sm:$0xf]
        %v593 = vld [vmem:[%s520 + $0x10] sm:$0x1]
        %v594 = vld [vmem:[%s520 + $0x24] sm:$0x1]
        %v595 = vld [vmem:[%s520 + $0x38] sm:$0x1]
        %v596 = vld [vmem:[%s520 + $0x4c] sm:$0x1]
        %v597 = vld [vmem:[%s520 + $0x60] sm:$0x1]
        %v598 = vld [vmem:[%s520 + $0x74] sm:$0x1]
        %v599 = vld [vmem:[%s520 + $0x88] sm:$0x1]
        %v600 = vld [vmem:[%s520 + $0x9c] sm:$0x1]
        %v601 = vld [vmem:[%s520 + $0xb0] sm:$0x1]
        %v602 = vld [vmem:[%s520 + $0xc4] sm:$0x1]
        %v603 = vld [vmem:[%s520 + $0xd8] sm:$0x1]
        %v604 = vld [vmem:[%s520 + $0xec] sm:$0x1]
        %v605 = vld [vmem:[%s520 + $0x100] sm:$0x1]
        %v606 = vld [vmem:[%s520 + $0x114] sm:$0x1]
        %v607 = vld [vmem:[%s520 + $0x128] sm:$0x1]
        %v608 = vld [vmem:[%s520 + $0x13c] sm:$0x1]
        %v609 = vld [vmem:[%s520 + $0x150] sm:$0x1]
        %v610 = vld [vmem:[%s520 + $0x164] sm:$0x1]
        %v611 = vld [vmem:[%s520] sm:$0xe]
        %v612 = vld [vmem:[%s520 + $0x14] sm:$0xe]
        %v613 = vld [vmem:[%s520 + $0x28] sm:$0xe]
        %v614 = vld [vmem:[%s520 + $0x3c] sm:$0xe]
        %v615 = vld [vmem:[%s520 + $0x50] sm:$0xe]
        %v616 = vld [vmem:[%s520 + $0x64] sm:$0xe]
        %v617 = vld [vmem:[%s520 + $0x78] sm:$0xe]
        %v618 = vld [vmem:[%s520 + $0x8c] sm:$0xe]
        %v619 = vld [vmem:[%s520 + $0xa0] sm:$0xe]
        %v620 = vld [vmem:[%s520 + $0xb4] sm:$0xe]
        %v621 = vld [vmem:[%s520 + $0xc8] sm:$0xe]
        %v622 = vld [vmem:[%s520 + $0xdc] sm:$0xe]
        %v623 = vld [vmem:[%s520 + $0xf0] sm:$0xe]
        %v624 = vld [vmem:[%s520 + $0x104] sm:$0xe]
        %v625 = vld [vmem:[%s520 + $0x118] sm:$0xe]
        %v626 = vld [vmem:[%s520 + $0x12c] sm:$0xe]
        %v627 = vld [vmem:[%s520 + $0x140] sm:$0xe]
        %v628 = vld [vmem:[%s520 + $0x154] sm:$0xe]
        %v701 = vunpack.c.l.b16 %v297
        %v702 = vunpack.c.l.b16 %v298
        %v703 = vunpack.c.l.b16 %v299
        %v704 = vunpack.c.l.b16 %v300
        %v705 = vunpack.c.l.b16 %v301
        %v706 = vunpack.c.l.b16 %v302
        %v707 = vunpack.c.l.b16 %v303
        %v708 = vunpack.c.l.b16 %v304
        %v709 = vunpack.c.l.b16 %v305
        %v710 = vunpack.c.l.b16 %v306
        %v711 = vunpack.c.l.b16 %v307
        %v712 = vunpack.c.l.b16 %v308
        %v713 = vunpack.c.l.b16 %v309
        %v714 = vunpack.c.l.b16 %v310
        %v715 = vunpack.c.l.b16 %v311
        %v716 = vunpack.c.l.b16 %v312
        %v717 = vunpack.c.l.b16 %v313
        %v718 = vunpack.c.l.b16 %v314
        %v719 = vunpack.c.l.b16 %v315
        %v720 = vunpack.c.l.b16 %v316
        %v721 = vunpack.c.l.b16 %v317
        %v722 = vunpack.c.l.b16 %v318
        %v723 = vunpack.c.l.b16 %v319
        %v724 = vunpack.c.l.b16 %v320
        %v725 = vunpack.c.l.b16 %v321
        %v726 = vunpack.c.l.b16 %v322
        %v727 = vunpack.c.l.b16 %v323
        %v728 = vunpack.c.l.b16 %v324
        %v729 = vunpack.c.l.b16 %v325
        %v730 = vunpack.c.l.b16 %v326
        %v731 = vunpack.c.l.b16 %v327
        %v732 = vunpack.c.l.b16 %v328
        %v733 = vunpack.c.l.b16 %v329
        %v734 = vunpack.c.l.b16 %v330
        %v735 = vunpack.c.l.b16 %v331
        %v736 = vunpack.c.l.b16 %v332
        %v737 = vunpack.c.l.b16 %v333
        %v738 = vunpack.c.l.b16 %v334
        %v739 = vunpack.c.l.b16 %v335
        %v740 = vunpack.c.l.b16 %v336
        %v741 = vunpack.c.l.b16 %v337
        %v742 = vunpack.c.l.b16 %v338
        %v743 = vunpack.c.l.b16 %v339
        %v744 = vunpack.c.l.b16 %v340
        %v745 = vunpack.c.l.b16 %v341
        %v746 = vunpack.c.l.b16 %v342
        %v747 = vunpack.c.l.b16 %v343
        %v748 = vunpack.c.l.b16 %v344
        %v749 = vunpack.c.l.b16 %v345
        %v750 = vunpack.c.l.b16 %v346
        %v751 = vunpack.c.l.b16 %v347
        %v752 = vunpack.c.l.b16 %v348
        %v753 = vunpack.c.l.b16 %v349
        %v754 = vunpack.c.l.b16 %v350
        %v755 = vunpack.c.l.b16 %v351
        %v756 = vunpack.c.l.b16 %v352
        %v757 = vunpack.c.l.b16 %v353
        %v758 = vunpack.c.l.b16 %v354
        %v759 = vunpack.c.l.b16 %v355
        %v760 = vunpack.c.l.b16 %v356
        %v761 = vunpack.c.l.b16 %v357
        %v762 = vunpack.c.l.b16 %v358
        %v763 = vunpack.c.l.b16 %v359
        %v764 = vunpack.c.l.b16 %v360
        %v765 = vunpack.c.l.b16 %v361
        %v766 = vunpack.c.l.b16 %v362
        %v767 = vunpack.c.l.b16 %v363
        %v768 = vunpack.c.l.b16 %v364
        %v769 = vunpack.c.l.b16 %v365
        %v770 = vunpack.c.l.b16 %v366
        %v771 = vunpack.c.l.b16 %v367
        %v772 = vunpack.c.l.b16 %v368
        %v773 = vpack.c.b16 %v702, %v701
        %v774 = vpack.c.b16 %v704, %v703
        %v775 = vpack.c.b16 %v706, %v705
        %v776 = vpack.c.b16 %v708, %v707
        %v777 = vpack.c.b16 %v710, %v709
        %v778 = vpack.c.b16 %v712, %v711
        %v779 = vpack.c.b16 %v714, %v713
        %v780 = vpack.c.b16 %v716, %v715
        %v781 = vpack.c.b16 %v718, %v717
        %v782 = vpack.c.b16 %v720, %v719
        %v783 = vpack.c.b16 %v722, %v721
        %v784 = vpack.c.b16 %v724, %v723
        %v785 = vpack.c.b16 %v726, %v725
        %v786 = vpack.c.b16 %v728, %v727
        %v787 = vpack.c.b16 %v730, %v729
        %v788 = vpack.c.b16 %v732, %v731
        %v789 = vpack.c.b16 %v734, %v733
        %v790 = vpack.c.b16 %v736, %v735
        %v791 = vpack.c.b16 %v738, %v737
        %v792 = vpack.c.b16 %v740, %v739
        %v793 = vpack.c.b16 %v742, %v741
        %v794 = vpack.c.b16 %v744, %v743
        %v795 = vpack.c.b16 %v746, %v745
        %v796 = vpack.c.b16 %v748, %v747
        %v797 = vpack.c.b16 %v750, %v749
        %v798 = vpack.c.b16 %v752, %v751
        %v799 = vpack.c.b16 %v754, %v753
        %v800 = vpack.c.b16 %v756, %v755
        %v801 = vpack.c.b16 %v758, %v757
        %v802 = vpack.c.b16 %v760, %v759
        %v803 = vpack.c.b16 %v762, %v761
        %v804 = vpack.c.b16 %v764, %v763
        %v805 = vpack.c.b16 %v766, %v765
        %v806 = vpack.c.b16 %v768, %v767
        %v807 = vpack.c.b16 %v770, %v769
        %v808 = vpack.c.b16 %v772, %v771
        %v827 = vunpack.c.l.b16 %v369
        %v828 = vunpack.c.l.b16 %v370
        %v829 = vunpack.c.l.b16 %v371
        %v830 = vunpack.c.l.b16 %v372
        %v831 = vunpack.c.l.b16 %v373
        %v832 = vunpack.c.l.b16 %v374
        %v833 = vunpack.c.l.b16 %v375
        %v834 = vunpack.c.l.b16 %v376
        %v835 = vunpack.c.l.b16 %v377
        %v836 = vunpack.c.l.b16 %v378
        %v837 = vunpack.c.l.b16 %v379
        %v838 = vunpack.c.l.b16 %v380
        %v839 = vunpack.c.l.b16 %v381
        %v840 = vunpack.c.l.b16 %v382
        %v841 = vunpack.c.l.b16 %v383
        %v842 = vunpack.c.l.b16 %v384
        %v843 = vunpack.c.l.b16 %v385
        %v844 = vunpack.c.l.b16 %v386
        %v845 = vpack.c.b16 %v827, %v827
        %v846 = vpack.c.b16 %v828, %v828
        %v847 = vpack.c.b16 %v829, %v829
        %v848 = vpack.c.b16 %v830, %v830
        %v849 = vpack.c.b16 %v831, %v831
        %v850 = vpack.c.b16 %v832, %v832
        %v851 = vpack.c.b16 %v833, %v833
        %v852 = vpack.c.b16 %v834, %v834
        %v853 = vpack.c.b16 %v835, %v835
        %v854 = vpack.c.b16 %v836, %v836
        %v855 = vpack.c.b16 %v837, %v837
        %v856 = vpack.c.b16 %v838, %v838
        %v857 = vpack.c.b16 %v839, %v839
        %v858 = vpack.c.b16 %v840, %v840
        %v859 = vpack.c.b16 %v841, %v841
        %v860 = vpack.c.b16 %v842, %v842
        %v861 = vpack.c.b16 %v843, %v843
        %v862 = vpack.c.b16 %v844, %v844
        %vm863 = vsmask.f32 7424
        %v865 = vshrl.u32 %v773, 16
        %v867 = vshll.u32 %v773, 16
        %v869 = vrot.slane %v867, 1
        %v870 = vor.u32 %v865, %v869
        %v872 = vshll.u32 %v774, 16
        %v874 = vrot.slane %v872, 1
        %v875 = vsel %vm863, %v870, %v874
        %v876 = vshrl.u32 %v774, 16
        %v878 = vor.u32 %v876, %v874
        %v880 = vshll.u32 %v845, 16
        %v882 = vrot.slane %v880, 1
        %v883 = vsel %vm863, %v878, %v882
        %v885 = vshrl.u32 %v775, 16
        %v887 = vshll.u32 %v775, 16
        %v889 = vrot.slane %v887, 1
        %v890 = vor.u32 %v885, %v889
        %v892 = vshll.u32 %v776, 16
        %v894 = vrot.slane %v892, 1
        %v895 = vsel %vm863, %v890, %v894
        %v896 = vshrl.u32 %v776, 16
        %v898 = vor.u32 %v896, %v894
        %v900 = vshll.u32 %v846, 16
        %v902 = vrot.slane %v900, 1
        %v903 = vsel %vm863, %v898, %v902
        %v905 = vshrl.u32 %v777, 16
        %v907 = vshll.u32 %v777, 16
        %v909 = vrot.slane %v907, 1
        %v910 = vor.u32 %v905, %v909
        %v912 = vshll.u32 %v778, 16
        %v914 = vrot.slane %v912, 1
        %v915 = vsel %vm863, %v910, %v914
        %v916 = vshrl.u32 %v778, 16
        %v918 = vor.u32 %v916, %v914
        %v920 = vshll.u32 %v847, 16
        %v922 = vrot.slane %v920, 1
        %v923 = vsel %vm863, %v918, %v922
        %v925 = vshrl.u32 %v779, 16
        %v927 = vshll.u32 %v779, 16
        %v929 = vrot.slane %v927, 1
        %v930 = vor.u32 %v925, %v929
        %v932 = vshll.u32 %v780, 16
        %v934 = vrot.slane %v932, 1
        %v935 = vsel %vm863, %v930, %v934
        %v936 = vshrl.u32 %v780, 16
        %v938 = vor.u32 %v936, %v934
        %v940 = vshll.u32 %v848, 16
        %v942 = vrot.slane %v940, 1
        %v943 = vsel %vm863, %v938, %v942
        %v945 = vshrl.u32 %v781, 16
        %v947 = vshll.u32 %v781, 16
        %v949 = vrot.slane %v947, 1
        %v950 = vor.u32 %v945, %v949
        %v952 = vshll.u32 %v782, 16
        %v954 = vrot.slane %v952, 1
        %v955 = vsel %vm863, %v950, %v954
        %v956 = vshrl.u32 %v782, 16
        %v958 = vor.u32 %v956, %v954
        %v960 = vshll.u32 %v849, 16
        %v962 = vrot.slane %v960, 1
        %v963 = vsel %vm863, %v958, %v962
        %v965 = vshrl.u32 %v783, 16
        %v967 = vshll.u32 %v783, 16
        %v969 = vrot.slane %v967, 1
        %v970 = vor.u32 %v965, %v969
        %v972 = vshll.u32 %v784, 16
        %v974 = vrot.slane %v972, 1
        %v975 = vsel %vm863, %v970, %v974
        %v976 = vshrl.u32 %v784, 16
        %v978 = vor.u32 %v976, %v974
        %v980 = vshll.u32 %v850, 16
        %v982 = vrot.slane %v980, 1
        %v983 = vsel %vm863, %v978, %v982
        %v985 = vshrl.u32 %v785, 16
        %v987 = vshll.u32 %v785, 16
        %v989 = vrot.slane %v987, 1
        %v990 = vor.u32 %v985, %v989
        %v992 = vshll.u32 %v786, 16
        %v994 = vrot.slane %v992, 1
        %v995 = vsel %vm863, %v990, %v994
        %v996 = vshrl.u32 %v786, 16
        %v998 = vor.u32 %v996, %v994
        %v1000 = vshll.u32 %v851, 16
        %v1002 = vrot.slane %v1000, 1
        %v1003 = vsel %vm863, %v998, %v1002
        %v1005 = vshrl.u32 %v787, 16
        %v1007 = vshll.u32 %v787, 16
        %v1009 = vrot.slane %v1007, 1
        %v1010 = vor.u32 %v1005, %v1009
        %v1012 = vshll.u32 %v788, 16
        %v1014 = vrot.slane %v1012, 1
        %v1015 = vsel %vm863, %v1010, %v1014
        %v1016 = vshrl.u32 %v788, 16
        %v1018 = vor.u32 %v1016, %v1014
        %v1020 = vshll.u32 %v852, 16
        %v1022 = vrot.slane %v1020, 1
        %v1023 = vsel %vm863, %v1018, %v1022
        %v1025 = vshrl.u32 %v789, 16
        %v1027 = vshll.u32 %v789, 16
        %v1029 = vrot.slane %v1027, 1
        %v1030 = vor.u32 %v1025, %v1029
        %v1032 = vshll.u32 %v790, 16
        %v1034 = vrot.slane %v1032, 1
        %v1035 = vsel %vm863, %v1030, %v1034
        %v1036 = vshrl.u32 %v790, 16
        %v1038 = vor.u32 %v1036, %v1034
        %v1040 = vshll.u32 %v853, 16
        %v1042 = vrot.slane %v1040, 1
        %v1043 = vsel %vm863, %v1038, %v1042
        %v1045 = vshrl.u32 %v791, 16
        %v1047 = vshll.u32 %v791, 16
        %v1049 = vrot.slane %v1047, 1
        %v1050 = vor.u32 %v1045, %v1049
        %v1052 = vshll.u32 %v792, 16
        %v1054 = vrot.slane %v1052, 1
        %v1055 = vsel %vm863, %v1050, %v1054
        %v1056 = vshrl.u32 %v792, 16
        %v1058 = vor.u32 %v1056, %v1054
        %v1060 = vshll.u32 %v854, 16
        %v1062 = vrot.slane %v1060, 1
        %v1063 = vsel %vm863, %v1058, %v1062
        %v1065 = vshrl.u32 %v793, 16
        %v1067 = vshll.u32 %v793, 16
        %v1069 = vrot.slane %v1067, 1
        %v1070 = vor.u32 %v1065, %v1069
        %v1072 = vshll.u32 %v794, 16
        %v1074 = vrot.slane %v1072, 1
        %v1075 = vsel %vm863, %v1070, %v1074
        %v1076 = vshrl.u32 %v794, 16
        %v1078 = vor.u32 %v1076, %v1074
        %v1080 = vshll.u32 %v855, 16
        %v1082 = vrot.slane %v1080, 1
        %v1083 = vsel %vm863, %v1078, %v1082
        %v1085 = vshrl.u32 %v795, 16
        %v1087 = vshll.u32 %v795, 16
        %v1089 = vrot.slane %v1087, 1
        %v1090 = vor.u32 %v1085, %v1089
        %v1092 = vshll.u32 %v796, 16
        %v1094 = vrot.slane %v1092, 1
        %v1095 = vsel %vm863, %v1090, %v1094
        %v1096 = vshrl.u32 %v796, 16
        %v1098 = vor.u32 %v1096, %v1094
        %v1100 = vshll.u32 %v856, 16
        %v1102 = vrot.slane %v1100, 1
        %v1103 = vsel %vm863, %v1098, %v1102
        %v1105 = vshrl.u32 %v797, 16
        %v1107 = vshll.u32 %v797, 16
        %v1109 = vrot.slane %v1107, 1
        %v1110 = vor.u32 %v1105, %v1109
        %v1112 = vshll.u32 %v798, 16
        %v1114 = vrot.slane %v1112, 1
        %v1115 = vsel %vm863, %v1110, %v1114
        %v1116 = vshrl.u32 %v798, 16
        %v1118 = vor.u32 %v1116, %v1114
        %v1120 = vshll.u32 %v857, 16
        %v1122 = vrot.slane %v1120, 1
        %v1123 = vsel %vm863, %v1118, %v1122
        %v1125 = vshrl.u32 %v799, 16
        %v1127 = vshll.u32 %v799, 16
        %v1129 = vrot.slane %v1127, 1
        %v1130 = vor.u32 %v1125, %v1129
        %v1132 = vshll.u32 %v800, 16
        %v1134 = vrot.slane %v1132, 1
        %v1135 = vsel %vm863, %v1130, %v1134
        %v1136 = vshrl.u32 %v800, 16
        %v1138 = vor.u32 %v1136, %v1134
        %v1140 = vshll.u32 %v858, 16
        %v1142 = vrot.slane %v1140, 1
        %v1143 = vsel %vm863, %v1138, %v1142
        %v1145 = vshrl.u32 %v801, 16
        %v1147 = vshll.u32 %v801, 16
        %v1149 = vrot.slane %v1147, 1
        %v1150 = vor.u32 %v1145, %v1149
        %v1152 = vshll.u32 %v802, 16
        %v1154 = vrot.slane %v1152, 1
        %v1155 = vsel %vm863, %v1150, %v1154
        %v1156 = vshrl.u32 %v802, 16
        %v1158 = vor.u32 %v1156, %v1154
        %v1160 = vshll.u32 %v859, 16
        %v1162 = vrot.slane %v1160, 1
        %v1163 = vsel %vm863, %v1158, %v1162
        %v1165 = vshrl.u32 %v803, 16
        %v1167 = vshll.u32 %v803, 16
        %v1169 = vrot.slane %v1167, 1
        %v1170 = vor.u32 %v1165, %v1169
        %v1172 = vshll.u32 %v804, 16
        %v1174 = vrot.slane %v1172, 1
        %v1175 = vsel %vm863, %v1170, %v1174
        %v1176 = vshrl.u32 %v804, 16
        %v1178 = vor.u32 %v1176, %v1174
        %v1180 = vshll.u32 %v860, 16
        %v1182 = vrot.slane %v1180, 1
        %v1183 = vsel %vm863, %v1178, %v1182
        %v1185 = vshrl.u32 %v805, 16
        %v1187 = vshll.u32 %v805, 16
        %v1189 = vrot.slane %v1187, 1
        %v1190 = vor.u32 %v1185, %v1189
        %v1192 = vshll.u32 %v806, 16
        %v1194 = vrot.slane %v1192, 1
        %v1195 = vsel %vm863, %v1190, %v1194
        %v1196 = vshrl.u32 %v806, 16
        %v1198 = vor.u32 %v1196, %v1194
        %v1200 = vshll.u32 %v861, 16
        %v1202 = vrot.slane %v1200, 1
        %v1203 = vsel %vm863, %v1198, %v1202
        %v1205 = vshrl.u32 %v807, 16
        %v1207 = vshll.u32 %v807, 16
        %v1209 = vrot.slane %v1207, 1
        %v1210 = vor.u32 %v1205, %v1209
        %v1212 = vshll.u32 %v808, 16
        %v1214 = vrot.slane %v1212, 1
        %v1215 = vsel %vm863, %v1210, %v1214
        %v1216 = vshrl.u32 %v808, 16
        %v1218 = vor.u32 %v1216, %v1214
        %v1220 = vshll.u32 %v862, 16
        %v1222 = vrot.slane %v1220, 1
        %v1223 = vsel %vm863, %v1218, %v1222
        %1224 = vrot.lane.b32.xlu0 %v875, 64
        %v1225 = vpop.permute.xlu0 %1224
        %1226 = vrot.lane.b32.xlu0 %v883, 64
        %v1227 = vpop.permute.xlu0 %1226
        %1228 = vrot.lane.b32.xlu0 %v895, 64
        %v1229 = vpop.permute.xlu0 %1228
        %1230 = vrot.lane.b32.xlu0 %v903, 64
        %v1231 = vpop.permute.xlu0 %1230
        %1232 = vrot.lane.b32.xlu0 %v915, 64
        %v1233 = vpop.permute.xlu0 %1232
        %1234 = vrot.lane.b32.xlu0 %v923, 64
        %v1235 = vpop.permute.xlu0 %1234
        %1236 = vrot.lane.b32.xlu0 %v935, 64
        %v1237 = vpop.permute.xlu0 %1236
        %1238 = vrot.lane.b32.xlu0 %v943, 64
        %v1239 = vpop.permute.xlu0 %1238
        %1240 = vrot.lane.b32.xlu0 %v955, 64
        %v1241 = vpop.permute.xlu0 %1240
        %1242 = vrot.lane.b32.xlu0 %v963, 64
        %v1243 = vpop.permute.xlu0 %1242
        %1244 = vrot.lane.b32.xlu0 %v975, 64
        %v1245 = vpop.permute.xlu0 %1244
        %1246 = vrot.lane.b32.xlu0 %v983, 64
        %v1247 = vpop.permute.xlu0 %1246
        %1248 = vrot.lane.b32.xlu0 %v995, 64
        %v1249 = vpop.permute.xlu0 %1248
        %1250 = vrot.lane.b32.xlu0 %v1003, 64
        %v1251 = vpop.permute.xlu0 %1250
        %1252 = vrot.lane.b32.xlu0 %v1015, 64
        %v1253 = vpop.permute.xlu0 %1252
        %1254 = vrot.lane.b32.xlu0 %v1023, 64
        %v1255 = vpop.permute.xlu0 %1254
        %1256 = vrot.lane.b32.xlu0 %v1035, 64
        %v1257 = vpop.permute.xlu0 %1256
        %1258 = vrot.lane.b32.xlu0 %v1043, 64
        %v1259 = vpop.permute.xlu0 %1258
        %1260 = vrot.lane.b32.xlu0 %v1055, 64
        %v1261 = vpop.permute.xlu0 %1260
        %1262 = vrot.lane.b32.xlu0 %v1063, 64
        %v1263 = vpop.permute.xlu0 %1262
        %1264 = vrot.lane.b32.xlu0 %v1075, 64
        %v1265 = vpop.permute.xlu0 %1264
        %1266 = vrot.lane.b32.xlu0 %v1083, 64
        %v1267 = vpop.permute.xlu0 %1266
        %1268 = vrot.lane.b32.xlu0 %v1095, 64
        %v1269 = vpop.permute.xlu0 %1268
        %1270 = vrot.lane.b32.xlu0 %v1103, 64
        %v1271 = vpop.permute.xlu0 %1270
        %1272 = vrot.lane.b32.xlu0 %v1115, 64
        %v1273 = vpop.permute.xlu0 %1272
        %1274 = vrot.lane.b32.xlu0 %v1123, 64
        %v1275 = vpop.permute.xlu0 %1274
        %1276 = vrot.lane.b32.xlu0 %v1135, 64
        %v1277 = vpop.permute.xlu0 %1276
        %1278 = vrot.lane.b32.xlu0 %v1143, 64
        %v1279 = vpop.permute.xlu0 %1278
        %1280 = vrot.lane.b32.xlu0 %v1155, 64
        %v1281 = vpop.permute.xlu0 %1280
        %1282 = vrot.lane.b32.xlu0 %v1163, 64
        %v1283 = vpop.permute.xlu0 %1282
        %1284 = vrot.lane.b32.xlu0 %v1175, 64
        %v1285 = vpop.permute.xlu0 %1284
        %1286 = vrot.lane.b32.xlu0 %v1183, 64
        %v1287 = vpop.permute.xlu0 %1286
        %1288 = vrot.lane.b32.xlu0 %v1195, 64
        %v1289 = vpop.permute.xlu0 %1288
        %1290 = vrot.lane.b32.xlu0 %v1203, 64
        %v1291 = vpop.permute.xlu0 %1290
        %1292 = vrot.lane.b32.xlu0 %v1215, 64
        %v1293 = vpop.permute.xlu0 %1292
        %1294 = vrot.lane.b32.xlu0 %v1223, 64
        %v1295 = vpop.permute.xlu0 %1294
        %v1314 = vunpack.c.l.b16 %v387
        %v1315 = vunpack.c.l.b16 %v388
        %v1316 = vunpack.c.l.b16 %v389
        %v1317 = vunpack.c.l.b16 %v390
        %v1318 = vunpack.c.l.b16 %v391
        %v1319 = vunpack.c.l.b16 %v392
        %v1320 = vunpack.c.l.b16 %v393
        %v1321 = vunpack.c.l.b16 %v394
        %v1322 = vunpack.c.l.b16 %v395
        %v1323 = vunpack.c.l.b16 %v396
        %v1324 = vunpack.c.l.b16 %v397
        %v1325 = vunpack.c.l.b16 %v398
        %v1326 = vunpack.c.l.b16 %v399
        %v1327 = vunpack.c.l.b16 %v400
        %v1328 = vunpack.c.l.b16 %v401
        %v1329 = vunpack.c.l.b16 %v402
        %v1330 = vunpack.c.l.b16 %v403
        %v1331 = vunpack.c.l.b16 %v404
        %v1332 = vpack.c.b16 %v702, %v1314
        %v1333 = vpack.c.b16 %v706, %v1315
        %v1334 = vpack.c.b16 %v710, %v1316
        %v1335 = vpack.c.b16 %v714, %v1317
        %v1336 = vpack.c.b16 %v718, %v1318
        %v1337 = vpack.c.b16 %v722, %v1319
        %v1338 = vpack.c.b16 %v726, %v1320
        %v1339 = vpack.c.b16 %v730, %v1321
        %v1340 = vpack.c.b16 %v734, %v1322
        %v1341 = vpack.c.b16 %v738, %v1323
        %v1342 = vpack.c.b16 %v742, %v1324
        %v1343 = vpack.c.b16 %v746, %v1325
        %v1344 = vpack.c.b16 %v750, %v1326
        %v1345 = vpack.c.b16 %v754, %v1327
        %v1346 = vpack.c.b16 %v758, %v1328
        %v1347 = vpack.c.b16 %v762, %v1329
        %v1348 = vpack.c.b16 %v766, %v1330
        %v1349 = vpack.c.b16 %v770, %v1331
        %vm1350 = vcmask 1046528
        %v1351 = vrot.slane %v1332, 1
        %v1352 = vrot.slane %v774, 1
        %v1353 = vsel %vm1350, %v1351, %v1352
        %v1354 = vrot.slane %v845, 1
        %v1355 = vsel %vm1350, %v1352, %v1354
        %v1356 = vrot.slane %v1333, 1
        %v1357 = vrot.slane %v776, 1
        %v1358 = vsel %vm1350, %v1356, %v1357
        %v1359 = vrot.slane %v846, 1
        %v1360 = vsel %vm1350, %v1357, %v1359
        %v1361 = vrot.slane %v1334, 1
        %v1362 = vrot.slane %v778, 1
        %v1363 = vsel %vm1350, %v1361, %v1362
        %v1364 = vrot.slane %v847, 1
        %v1365 = vsel %vm1350, %v1362, %v1364
        %v1366 = vrot.slane %v1335, 1
        %v1367 = vrot.slane %v780, 1
        %v1368 = vsel %vm1350, %v1366, %v1367
        %v1369 = vrot.slane %v848, 1
        %v1370 = vsel %vm1350, %v1367, %v1369
        %v1371 = vrot.slane %v1336, 1
        %v1372 = vrot.slane %v782, 1
        %v1373 = vsel %vm1350, %v1371, %v1372
        %v1374 = vrot.slane %v849, 1
        %v1375 = vsel %vm1350, %v1372, %v1374
        %v1376 = vrot.slane %v1337, 1
        %v1377 = vrot.slane %v784, 1
        %v1378 = vsel %vm1350, %v1376, %v1377
        %v1379 = vrot.slane %v850, 1
        %v1380 = vsel %vm1350, %v1377, %v1379
        %v1381 = vrot.slane %v1338, 1
        %v1382 = vrot.slane %v786, 1
        %v1383 = vsel %vm1350, %v1381, %v1382
        %v1384 = vrot.slane %v851, 1
        %v1385 = vsel %vm1350, %v1382, %v1384
        %v1386 = vrot.slane %v1339, 1
        %v1387 = vrot.slane %v788, 1
        %v1388 = vsel %vm1350, %v1386, %v1387
        %v1389 = vrot.slane %v852, 1
        %v1390 = vsel %vm1350, %v1387, %v1389
        %v1391 = vrot.slane %v1340, 1
        %v1392 = vrot.slane %v790, 1
        %v1393 = vsel %vm1350, %v1391, %v1392
        %v1394 = vrot.slane %v853, 1
        %v1395 = vsel %vm1350, %v1392, %v1394
        %v1396 = vrot.slane %v1341, 1
        %v1397 = vrot.slane %v792, 1
        %v1398 = vsel %vm1350, %v1396, %v1397
        %v1399 = vrot.slane %v854, 1
        %v1400 = vsel %vm1350, %v1397, %v1399
        %v1401 = vrot.slane %v1342, 1
        %v1402 = vrot.slane %v794, 1
        %v1403 = vsel %vm1350, %v1401, %v1402
        %v1404 = vrot.slane %v855, 1
        %v1405 = vsel %vm1350, %v1402, %v1404
        %v1406 = vrot.slane %v1343, 1
        %v1407 = vrot.slane %v796, 1
        %v1408 = vsel %vm1350, %v1406, %v1407
        %v1409 = vrot.slane %v856, 1
        %v1410 = vsel %vm1350, %v1407, %v1409
        %v1411 = vrot.slane %v1344, 1
        %v1412 = vrot.slane %v798, 1
        %v1413 = vsel %vm1350, %v1411, %v1412
        %v1414 = vrot.slane %v857, 1
        %v1415 = vsel %vm1350, %v1412, %v1414
        %v1416 = vrot.slane %v1345, 1
        %v1417 = vrot.slane %v800, 1
        %v1418 = vsel %vm1350, %v1416, %v1417
        %v1419 = vrot.slane %v858, 1
        %v1420 = vsel %vm1350, %v1417, %v1419
        %v1421 = vrot.slane %v1346, 1
        %v1422 = vrot.slane %v802, 1
        %v1423 = vsel %vm1350, %v1421, %v1422
        %v1424 = vrot.slane %v859, 1
        %v1425 = vsel %vm1350, %v1422, %v1424
        %v1426 = vrot.slane %v1347, 1
        %v1427 = vrot.slane %v804, 1
        %v1428 = vsel %vm1350, %v1426, %v1427
        %v1429 = vrot.slane %v860, 1
        %v1430 = vsel %vm1350, %v1427, %v1429
        %v1431 = vrot.slane %v1348, 1
        %v1432 = vrot.slane %v806, 1
        %v1433 = vsel %vm1350, %v1431, %v1432
        %v1434 = vrot.slane %v861, 1
        %v1435 = vsel %vm1350, %v1432, %v1434
        %v1436 = vrot.slane %v1349, 1
        %v1437 = vrot.slane %v808, 1
        %v1438 = vsel %vm1350, %v1436, %v1437
        %v1439 = vrot.slane %v862, 1
        %v1440 = vsel %vm1350, %v1437, %v1439
        %v1513 = vunpack.c.l.b16 %v409
        %v1514 = vunpack.c.l.b16 %v410
        %v1515 = vunpack.c.l.b16 %v411
        %v1516 = vunpack.c.l.b16 %v412
        %v1517 = vunpack.c.l.b16 %v413
        %v1518 = vunpack.c.l.b16 %v414
        %v1519 = vunpack.c.l.b16 %v415
        %v1520 = vunpack.c.l.b16 %v416
        %v1521 = vunpack.c.l.b16 %v417
        %v1522 = vunpack.c.l.b16 %v418
        %v1523 = vunpack.c.l.b16 %v419
        %v1524 = vunpack.c.l.b16 %v420
        %v1525 = vunpack.c.l.b16 %v421
        %v1526 = vunpack.c.l.b16 %v422
        %v1527 = vunpack.c.l.b16 %v423
        %v1528 = vunpack.c.l.b16 %v424
        %v1529 = vunpack.c.l.b16 %v425
        %v1530 = vunpack.c.l.b16 %v426
        %v1531 = vunpack.c.l.b16 %v427
        %v1532 = vunpack.c.l.b16 %v428
        %v1533 = vunpack.c.l.b16 %v429
        %v1534 = vunpack.c.l.b16 %v430
        %v1535 = vunpack.c.l.b16 %v431
        %v1536 = vunpack.c.l.b16 %v432
        %v1537 = vunpack.c.l.b16 %v433
        %v1538 = vunpack.c.l.b16 %v434
        %v1539 = vunpack.c.l.b16 %v435
        %v1540 = vunpack.c.l.b16 %v436
        %v1541 = vunpack.c.l.b16 %v437
        %v1542 = vunpack.c.l.b16 %v438
        %v1543 = vunpack.c.l.b16 %v439
        %v1544 = vunpack.c.l.b16 %v440
        %v1545 = vunpack.c.l.b16 %v441
        %v1546 = vunpack.c.l.b16 %v442
        %v1547 = vunpack.c.l.b16 %v443
        %v1548 = vunpack.c.l.b16 %v444
        %v1549 = vunpack.c.l.b16 %v445
        %v1550 = vunpack.c.l.b16 %v446
        %v1551 = vunpack.c.l.b16 %v447
        %v1552 = vunpack.c.l.b16 %v448
        %v1553 = vunpack.c.l.b16 %v449
        %v1554 = vunpack.c.l.b16 %v450
        %v1555 = vunpack.c.l.b16 %v451
        %v1556 = vunpack.c.l.b16 %v452
        %v1557 = vunpack.c.l.b16 %v453
        %v1558 = vunpack.c.l.b16 %v454
        %v1559 = vunpack.c.l.b16 %v455
        %v1560 = vunpack.c.l.b16 %v456
        %v1561 = vunpack.c.l.b16 %v457
        %v1562 = vunpack.c.l.b16 %v458
        %v1563 = vunpack.c.l.b16 %v459
        %v1564 = vunpack.c.l.b16 %v460
        %v1565 = vunpack.c.l.b16 %v461
        %v1566 = vunpack.c.l.b16 %v462
        %v1567 = vunpack.c.l.b16 %v463
        %v1568 = vunpack.c.l.b16 %v464
        %v1569 = vunpack.c.l.b16 %v465
        %v1570 = vunpack.c.l.b16 %v466
        %v1571 = vunpack.c.l.b16 %v467
        %v1572 = vunpack.c.l.b16 %v468
        %v1573 = vunpack.c.l.b16 %v469
        %v1574 = vunpack.c.l.b16 %v470
        %v1575 = vunpack.c.l.b16 %v471
        %v1576 = vunpack.c.l.b16 %v472
        %v1577 = vunpack.c.l.b16 %v473
        %v1578 = vunpack.c.l.b16 %v474
        %v1579 = vunpack.c.l.b16 %v475
        %v1580 = vunpack.c.l.b16 %v476
        %v1581 = vunpack.c.l.b16 %v477
        %v1582 = vunpack.c.l.b16 %v478
        %v1583 = vunpack.c.l.b16 %v479
        %v1584 = vunpack.c.l.b16 %v480
        %v1585 = vpack.c.b16 %v1514, %v1513
        %v1586 = vpack.c.b16 %v1516, %v1515
        %v1587 = vpack.c.b16 %v1518, %v1517
        %v1588 = vpack.c.b16 %v1520, %v1519
        %v1589 = vpack.c.b16 %v1522, %v1521
        %v1590 = vpack.c.b16 %v1524, %v1523
        %v1591 = vpack.c.b16 %v1526, %v1525
        %v1592 = vpack.c.b16 %v1528, %v1527
        %v1593 = vpack.c.b16 %v1530, %v1529
        %v1594 = vpack.c.b16 %v1532, %v1531
        %v1595 = vpack.c.b16 %v1534, %v1533
        %v1596 = vpack.c.b16 %v1536, %v1535
        %v1597 = vpack.c.b16 %v1538, %v1537
        %v1598 = vpack.c.b16 %v1540, %v1539
        %v1599 = vpack.c.b16 %v1542, %v1541
        %v1600 = vpack.c.b16 %v1544, %v1543
        %v1601 = vpack.c.b16 %v1546, %v1545
        %v1602 = vpack.c.b16 %v1548, %v1547
        %v1603 = vpack.c.b16 %v1550, %v1549
        %v1604 = vpack.c.b16 %v1552, %v1551
        %v1605 = vpack.c.b16 %v1554, %v1553
        %v1606 = vpack.c.b16 %v1556, %v1555
        %v1607 = vpack.c.b16 %v1558, %v1557
        %v1608 = vpack.c.b16 %v1560, %v1559
        %v1609 = vpack.c.b16 %v1562, %v1561
        %v1610 = vpack.c.b16 %v1564, %v1563
        %v1611 = vpack.c.b16 %v1566, %v1565
        %v1612 = vpack.c.b16 %v1568, %v1567
        %v1613 = vpack.c.b16 %v1570, %v1569
        %v1614 = vpack.c.b16 %v1572, %v1571
        %v1615 = vpack.c.b16 %v1574, %v1573
        %v1616 = vpack.c.b16 %v1576, %v1575
        %v1617 = vpack.c.b16 %v1578, %v1577
        %v1618 = vpack.c.b16 %v1580, %v1579
        %v1619 = vpack.c.b16 %v1582, %v1581
        %v1620 = vpack.c.b16 %v1584, %v1583
        %1621 = vrot.lane.b32.xlu0 %v1585, 64
        %v1622 = vpop.permute.xlu0 %1621
        %1623 = vrot.lane.b32.xlu0 %v1586, 64
        %v1624 = vpop.permute.xlu0 %1623
        %1625 = vrot.lane.b32.xlu0 %v1587, 64
        %v1626 = vpop.permute.xlu0 %1625
        %1627 = vrot.lane.b32.xlu0 %v1588, 64
        %v1628 = vpop.permute.xlu0 %1627
        %1629 = vrot.lane.b32.xlu0 %v1589, 64
        %v1630 = vpop.permute.xlu0 %1629
        %1631 = vrot.lane.b32.xlu0 %v1590, 64
        %v1632 = vpop.permute.xlu0 %1631
        %1633 = vrot.lane.b32.xlu0 %v1591, 64
        %v1634 = vpop.permute.xlu0 %1633
        %1635 = vrot.lane.b32.xlu0 %v1592, 64
        %v1636 = vpop.permute.xlu0 %1635
        %1637 = vrot.lane.b32.xlu0 %v1593, 64
        %v1638 = vpop.permute.xlu0 %1637
        %1639 = vrot.lane.b32.xlu0 %v1594, 64
        %v1640 = vpop.permute.xlu0 %1639
        %1641 = vrot.lane.b32.xlu0 %v1595, 64
        %v1642 = vpop.permute.xlu0 %1641
        %1643 = vrot.lane.b32.xlu0 %v1596, 64
        %v1644 = vpop.permute.xlu0 %1643
        %1645 = vrot.lane.b32.xlu0 %v1597, 64
        %v1646 = vpop.permute.xlu0 %1645
        %1647 = vrot.lane.b32.xlu0 %v1598, 64
        %v1648 = vpop.permute.xlu0 %1647
        %1649 = vrot.lane.b32.xlu0 %v1599, 64
        %v1650 = vpop.permute.xlu0 %1649
        %1651 = vrot.lane.b32.xlu0 %v1600, 64
        %v1652 = vpop.permute.xlu0 %1651
        %1653 = vrot.lane.b32.xlu0 %v1601, 64
        %v1654 = vpop.permute.xlu0 %1653
        %1655 = vrot.lane.b32.xlu0 %v1602, 64
        %v1656 = vpop.permute.xlu0 %1655
        %1657 = vrot.lane.b32.xlu0 %v1603, 64
        %v1658 = vpop.permute.xlu0 %1657
        %1659 = vrot.lane.b32.xlu0 %v1604, 64
        %v1660 = vpop.permute.xlu0 %1659
        %1661 = vrot.lane.b32.xlu0 %v1605, 64
        %v1662 = vpop.permute.xlu0 %1661
        %1663 = vrot.lane.b32.xlu0 %v1606, 64
        %v1664 = vpop.permute.xlu0 %1663
        %1665 = vrot.lane.b32.xlu0 %v1607, 64
        %v1666 = vpop.permute.xlu0 %1665
        %1667 = vrot.lane.b32.xlu0 %v1608, 64
        %v1668 = vpop.permute.xlu0 %1667
        %1669 = vrot.lane.b32.xlu0 %v1609, 64
        %v1670 = vpop.permute.xlu0 %1669
        %1671 = vrot.lane.b32.xlu0 %v1610, 64
        %v1672 = vpop.permute.xlu0 %1671
        %1673 = vrot.lane.b32.xlu0 %v1611, 64
        %v1674 = vpop.permute.xlu0 %1673
        %1675 = vrot.lane.b32.xlu0 %v1612, 64
        %v1676 = vpop.permute.xlu0 %1675
        %1677 = vrot.lane.b32.xlu0 %v1613, 64
        %v1678 = vpop.permute.xlu0 %1677
        %1679 = vrot.lane.b32.xlu0 %v1614, 64
        %v1680 = vpop.permute.xlu0 %1679
        %1681 = vrot.lane.b32.xlu0 %v1615, 64
        %v1682 = vpop.permute.xlu0 %1681
        %1683 = vrot.lane.b32.xlu0 %v1616, 64
        %v1684 = vpop.permute.xlu0 %1683
        %1685 = vrot.lane.b32.xlu0 %v1617, 64
        %v1686 = vpop.permute.xlu0 %1685
        %1687 = vrot.lane.b32.xlu0 %v1618, 64
        %v1688 = vpop.permute.xlu0 %1687
        %1689 = vrot.lane.b32.xlu0 %v1619, 64
        %v1690 = vpop.permute.xlu0 %1689
        %1691 = vrot.lane.b32.xlu0 %v1620, 64
        %v1692 = vpop.permute.xlu0 %1691
        %v1711 = vunpack.c.l.b16 %v481
        %v1712 = vunpack.c.l.b16 %v482
        %v1713 = vunpack.c.l.b16 %v483
        %v1714 = vunpack.c.l.b16 %v484
        %v1715 = vunpack.c.l.b16 %v485
        %v1716 = vunpack.c.l.b16 %v486
        %v1717 = vunpack.c.l.b16 %v487
        %v1718 = vunpack.c.l.b16 %v488
        %v1719 = vunpack.c.l.b16 %v489
        %v1720 = vunpack.c.l.b16 %v490
        %v1721 = vunpack.c.l.b16 %v491
        %v1722 = vunpack.c.l.b16 %v492
        %v1723 = vunpack.c.l.b16 %v493
        %v1724 = vunpack.c.l.b16 %v494
        %v1725 = vunpack.c.l.b16 %v495
        %v1726 = vunpack.c.l.b16 %v496
        %v1727 = vunpack.c.l.b16 %v497
        %v1728 = vunpack.c.l.b16 %v498
        %v1729 = vpack.c.b16 %v1711, %v1711
        %v1730 = vpack.c.b16 %v1712, %v1712
        %v1731 = vpack.c.b16 %v1713, %v1713
        %v1732 = vpack.c.b16 %v1714, %v1714
        %v1733 = vpack.c.b16 %v1715, %v1715
        %v1734 = vpack.c.b16 %v1716, %v1716
        %v1735 = vpack.c.b16 %v1717, %v1717
        %v1736 = vpack.c.b16 %v1718, %v1718
        %v1737 = vpack.c.b16 %v1719, %v1719
        %v1738 = vpack.c.b16 %v1720, %v1720
        %v1739 = vpack.c.b16 %v1721, %v1721
        %v1740 = vpack.c.b16 %v1722, %v1722
        %v1741 = vpack.c.b16 %v1723, %v1723
        %v1742 = vpack.c.b16 %v1724, %v1724
        %v1743 = vpack.c.b16 %v1725, %v1725
        %v1744 = vpack.c.b16 %v1726, %v1726
        %v1745 = vpack.c.b16 %v1727, %v1727
        %v1746 = vpack.c.b16 %v1728, %v1728
        %v1748 = vshrl.u32 %v1585, 16
        %v1750 = vshll.u32 %v1585, 16
        %v1752 = vrot.slane %v1750, 1
        %v1753 = vor.u32 %v1748, %v1752
        %v1755 = vshll.u32 %v1586, 16
        %v1757 = vrot.slane %v1755, 1
        %v1758 = vsel %vm863, %v1753, %v1757
        %v1759 = vshrl.u32 %v1586, 16
        %v1761 = vor.u32 %v1759, %v1757
        %v1763 = vshll.u32 %v1729, 16
        %v1765 = vrot.slane %v1763, 1
        %v1766 = vsel %vm863, %v1761, %v1765
        %v1768 = vshrl.u32 %v1587, 16
        %v1770 = vshll.u32 %v1587, 16
        %v1772 = vrot.slane %v1770, 1
        %v1773 = vor.u32 %v1768, %v1772
        %v1775 = vshll.u32 %v1588, 16
        %v1777 = vrot.slane %v1775, 1
        %v1778 = vsel %vm863, %v1773, %v1777
        %v1779 = vshrl.u32 %v1588, 16
        %v1781 = vor.u32 %v1779, %v1777
        %v1783 = vshll.u32 %v1730, 16
        %v1785 = vrot.slane %v1783, 1
        %v1786 = vsel %vm863, %v1781, %v1785
        %v1788 = vshrl.u32 %v1589, 16
        %v1790 = vshll.u32 %v1589, 16
        %v1792 = vrot.slane %v1790, 1
        %v1793 = vor.u32 %v1788, %v1792
        %v1795 = vshll.u32 %v1590, 16
        %v1797 = vrot.slane %v1795, 1
        %v1798 = vsel %vm863, %v1793, %v1797
        %v1799 = vshrl.u32 %v1590, 16
        %v1801 = vor.u32 %v1799, %v1797
        %v1803 = vshll.u32 %v1731, 16
        %v1805 = vrot.slane %v1803, 1
        %v1806 = vsel %vm863, %v1801, %v1805
        %v1808 = vshrl.u32 %v1591, 16
        %v1810 = vshll.u32 %v1591, 16
        %v1812 = vrot.slane %v1810, 1
        %v1813 = vor.u32 %v1808, %v1812
        %v1815 = vshll.u32 %v1592, 16
        %v1817 = vrot.slane %v1815, 1
        %v1818 = vsel %vm863, %v1813, %v1817
        %v1819 = vshrl.u32 %v1592, 16
        %v1821 = vor.u32 %v1819, %v1817
        %v1823 = vshll.u32 %v1732, 16
        %v1825 = vrot.slane %v1823, 1
        %v1826 = vsel %vm863, %v1821, %v1825
        %v1828 = vshrl.u32 %v1593, 16
        %v1830 = vshll.u32 %v1593, 16
        %v1832 = vrot.slane %v1830, 1
        %v1833 = vor.u32 %v1828, %v1832
        %v1835 = vshll.u32 %v1594, 16
        %v1837 = vrot.slane %v1835, 1
        %v1838 = vsel %vm863, %v1833, %v1837
        %v1839 = vshrl.u32 %v1594, 16
        %v1841 = vor.u32 %v1839, %v1837
        %v1843 = vshll.u32 %v1733, 16
        %v1845 = vrot.slane %v1843, 1
        %v1846 = vsel %vm863, %v1841, %v1845
        %v1848 = vshrl.u32 %v1595, 16
        %v1850 = vshll.u32 %v1595, 16
        %v1852 = vrot.slane %v1850, 1
        %v1853 = vor.u32 %v1848, %v1852
        %v1855 = vshll.u32 %v1596, 16
        %v1857 = vrot.slane %v1855, 1
        %v1858 = vsel %vm863, %v1853, %v1857
        %v1859 = vshrl.u32 %v1596, 16
        %v1861 = vor.u32 %v1859, %v1857
        %v1863 = vshll.u32 %v1734, 16
        %v1865 = vrot.slane %v1863, 1
        %v1866 = vsel %vm863, %v1861, %v1865
        %v1868 = vshrl.u32 %v1597, 16
        %v1870 = vshll.u32 %v1597, 16
        %v1872 = vrot.slane %v1870, 1
        %v1873 = vor.u32 %v1868, %v1872
        %v1875 = vshll.u32 %v1598, 16
        %v1877 = vrot.slane %v1875, 1
        %v1878 = vsel %vm863, %v1873, %v1877
        %v1879 = vshrl.u32 %v1598, 16
        %v1881 = vor.u32 %v1879, %v1877
        %v1883 = vshll.u32 %v1735, 16
        %v1885 = vrot.slane %v1883, 1
        %v1886 = vsel %vm863, %v1881, %v1885
        %v1888 = vshrl.u32 %v1599, 16
        %v1890 = vshll.u32 %v1599, 16
        %v1892 = vrot.slane %v1890, 1
        %v1893 = vor.u32 %v1888, %v1892
        %v1895 = vshll.u32 %v1600, 16
        %v1897 = vrot.slane %v1895, 1
        %v1898 = vsel %vm863, %v1893, %v1897
        %v1899 = vshrl.u32 %v1600, 16
        %v1901 = vor.u32 %v1899, %v1897
        %v1903 = vshll.u32 %v1736, 16
        %v1905 = vrot.slane %v1903, 1
        %v1906 = vsel %vm863, %v1901, %v1905
        %v1908 = vshrl.u32 %v1601, 16
        %v1910 = vshll.u32 %v1601, 16
        %v1912 = vrot.slane %v1910, 1
        %v1913 = vor.u32 %v1908, %v1912
        %v1915 = vshll.u32 %v1602, 16
        %v1917 = vrot.slane %v1915, 1
        %v1918 = vsel %vm863, %v1913, %v1917
        %v1919 = vshrl.u32 %v1602, 16
        %v1921 = vor.u32 %v1919, %v1917
        %v1923 = vshll.u32 %v1737, 16
        %v1925 = vrot.slane %v1923, 1
        %v1926 = vsel %vm863, %v1921, %v1925
        %v1928 = vshrl.u32 %v1603, 16
        %v1930 = vshll.u32 %v1603, 16
        %v1932 = vrot.slane %v1930, 1
        %v1933 = vor.u32 %v1928, %v1932
        %v1935 = vshll.u32 %v1604, 16
        %v1937 = vrot.slane %v1935, 1
        %v1938 = vsel %vm863, %v1933, %v1937
        %v1939 = vshrl.u32 %v1604, 16
        %v1941 = vor.u32 %v1939, %v1937
        %v1943 = vshll.u32 %v1738, 16
        %v1945 = vrot.slane %v1943, 1
        %v1946 = vsel %vm863, %v1941, %v1945
        %v1948 = vshrl.u32 %v1605, 16
        %v1950 = vshll.u32 %v1605, 16
        %v1952 = vrot.slane %v1950, 1
        %v1953 = vor.u32 %v1948, %v1952
        %v1955 = vshll.u32 %v1606, 16
        %v1957 = vrot.slane %v1955, 1
        %v1958 = vsel %vm863, %v1953, %v1957
        %v1959 = vshrl.u32 %v1606, 16
        %v1961 = vor.u32 %v1959, %v1957
        %v1963 = vshll.u32 %v1739, 16
        %v1965 = vrot.slane %v1963, 1
        %v1966 = vsel %vm863, %v1961, %v1965
        %v1968 = vshrl.u32 %v1607, 16
        %v1970 = vshll.u32 %v1607, 16
        %v1972 = vrot.slane %v1970, 1
        %v1973 = vor.u32 %v1968, %v1972
        %v1975 = vshll.u32 %v1608, 16
        %v1977 = vrot.slane %v1975, 1
        %v1978 = vsel %vm863, %v1973, %v1977
        %v1979 = vshrl.u32 %v1608, 16
        %v1981 = vor.u32 %v1979, %v1977
        %v1983 = vshll.u32 %v1740, 16
        %v1985 = vrot.slane %v1983, 1
        %v1986 = vsel %vm863, %v1981, %v1985
        %v1988 = vshrl.u32 %v1609, 16
        %v1990 = vshll.u32 %v1609, 16
        %v1992 = vrot.slane %v1990, 1
        %v1993 = vor.u32 %v1988, %v1992
        %v1995 = vshll.u32 %v1610, 16
        %v1997 = vrot.slane %v1995, 1
        %v1998 = vsel %vm863, %v1993, %v1997
        %v1999 = vshrl.u32 %v1610, 16
        %v2001 = vor.u32 %v1999, %v1997
        %v2003 = vshll.u32 %v1741, 16
        %v2005 = vrot.slane %v2003, 1
        %v2006 = vsel %vm863, %v2001, %v2005
        %v2008 = vshrl.u32 %v1611, 16
        %v2010 = vshll.u32 %v1611, 16
        %v2012 = vrot.slane %v2010, 1
        %v2013 = vor.u32 %v2008, %v2012
        %v2015 = vshll.u32 %v1612, 16
        %v2017 = vrot.slane %v2015, 1
        %v2018 = vsel %vm863, %v2013, %v2017
        %v2019 = vshrl.u32 %v1612, 16
        %v2021 = vor.u32 %v2019, %v2017
        %v2023 = vshll.u32 %v1742, 16
        %v2025 = vrot.slane %v2023, 1
        %v2026 = vsel %vm863, %v2021, %v2025
        %v2028 = vshrl.u32 %v1613, 16
        %v2030 = vshll.u32 %v1613, 16
        %v2032 = vrot.slane %v2030, 1
        %v2033 = vor.u32 %v2028, %v2032
        %v2035 = vshll.u32 %v1614, 16
        %v2037 = vrot.slane %v2035, 1
        %v2038 = vsel %vm863, %v2033, %v2037
        %v2039 = vshrl.u32 %v1614, 16
        %v2041 = vor.u32 %v2039, %v2037
        %v2043 = vshll.u32 %v1743, 16
        %v2045 = vrot.slane %v2043, 1
        %v2046 = vsel %vm863, %v2041, %v2045
        %v2048 = vshrl.u32 %v1615, 16
        %v2050 = vshll.u32 %v1615, 16
        %v2052 = vrot.slane %v2050, 1
        %v2053 = vor.u32 %v2048, %v2052
        %v2055 = vshll.u32 %v1616, 16
        %v2057 = vrot.slane %v2055, 1
        %v2058 = vsel %vm863, %v2053, %v2057
        %v2059 = vshrl.u32 %v1616, 16
        %v2061 = vor.u32 %v2059, %v2057
        %v2063 = vshll.u32 %v1744, 16
        %v2065 = vrot.slane %v2063, 1
        %v2066 = vsel %vm863, %v2061, %v2065
        %v2068 = vshrl.u32 %v1617, 16
        %v2070 = vshll.u32 %v1617, 16
        %v2072 = vrot.slane %v2070, 1
        %v2073 = vor.u32 %v2068, %v2072
        %v2075 = vshll.u32 %v1618, 16
        %v2077 = vrot.slane %v2075, 1
        %v2078 = vsel %vm863, %v2073, %v2077
        %v2079 = vshrl.u32 %v1618, 16
        %v2081 = vor.u32 %v2079, %v2077
        %v2083 = vshll.u32 %v1745, 16
        %v2085 = vrot.slane %v2083, 1
        %v2086 = vsel %vm863, %v2081, %v2085
        %v2088 = vshrl.u32 %v1619, 16
        %v2090 = vshll.u32 %v1619, 16
        %v2092 = vrot.slane %v2090, 1
        %v2093 = vor.u32 %v2088, %v2092
        %v2095 = vshll.u32 %v1620, 16
        %v2097 = vrot.slane %v2095, 1
        %v2098 = vsel %vm863, %v2093, %v2097
        %v2099 = vshrl.u32 %v1620, 16
        %v2101 = vor.u32 %v2099, %v2097
        %v2103 = vshll.u32 %v1746, 16
        %v2105 = vrot.slane %v2103, 1
        %v2106 = vsel %vm863, %v2101, %v2105
        %v2125 = vunpack.c.l.b16 %v499
        %v2126 = vunpack.c.l.b16 %v500
        %v2127 = vunpack.c.l.b16 %v501
        %v2128 = vunpack.c.l.b16 %v502
        %v2129 = vunpack.c.l.b16 %v503
        %v2130 = vunpack.c.l.b16 %v504
        %v2131 = vunpack.c.l.b16 %v505
        %v2132 = vunpack.c.l.b16 %v506
        %v2133 = vunpack.c.l.b16 %v507
        %v2134 = vunpack.c.l.b16 %v508
        %v2135 = vunpack.c.l.b16 %v509
        %v2136 = vunpack.c.l.b16 %v510
        %v2137 = vunpack.c.l.b16 %v511
        %v2138 = vunpack.c.l.b16 %v512
        %v2139 = vunpack.c.l.b16 %v513
        %v2140 = vunpack.c.l.b16 %v514
        %v2141 = vunpack.c.l.b16 %v515
        %v2142 = vunpack.c.l.b16 %v516
        %v2143 = vpack.c.b16 %v1514, %v2125
        %v2144 = vpack.c.b16 %v1518, %v2126
        %v2145 = vpack.c.b16 %v1522, %v2127
        %v2146 = vpack.c.b16 %v1526, %v2128
        %v2147 = vpack.c.b16 %v1530, %v2129
        %v2148 = vpack.c.b16 %v1534, %v2130
        %v2149 = vpack.c.b16 %v1538, %v2131
        %v2150 = vpack.c.b16 %v1542, %v2132
        %v2151 = vpack.c.b16 %v1546, %v2133
        %v2152 = vpack.c.b16 %v1550, %v2134
        %v2153 = vpack.c.b16 %v1554, %v2135
        %v2154 = vpack.c.b16 %v1558, %v2136
        %v2155 = vpack.c.b16 %v1562, %v2137
        %v2156 = vpack.c.b16 %v1566, %v2138
        %v2157 = vpack.c.b16 %v1570, %v2139
        %v2158 = vpack.c.b16 %v1574, %v2140
        %v2159 = vpack.c.b16 %v1578, %v2141
        %v2160 = vpack.c.b16 %v1582, %v2142
        %v2161 = vrot.slane %v2143, 1
        %v2162 = vrot.slane %v1586, 1
        %v2163 = vsel %vm1350, %v2161, %v2162
        %v2164 = vrot.slane %v1729, 1
        %v2165 = vsel %vm1350, %v2162, %v2164
        %v2166 = vrot.slane %v2144, 1
        %v2167 = vrot.slane %v1588, 1
        %v2168 = vsel %vm1350, %v2166, %v2167
        %v2169 = vrot.slane %v1730, 1
        %v2170 = vsel %vm1350, %v2167, %v2169
        %v2171 = vrot.slane %v2145, 1
        %v2172 = vrot.slane %v1590, 1
        %v2173 = vsel %vm1350, %v2171, %v2172
        %v2174 = vrot.slane %v1731, 1
        %v2175 = vsel %vm1350, %v2172, %v2174
        %v2176 = vrot.slane %v2146, 1
        %v2177 = vrot.slane %v1592, 1
        %v2178 = vsel %vm1350, %v2176, %v2177
        %v2179 = vrot.slane %v1732, 1
        %v2180 = vsel %vm1350, %v2177, %v2179
        %v2181 = vrot.slane %v2147, 1
        %v2182 = vrot.slane %v1594, 1
        %v2183 = vsel %vm1350, %v2181, %v2182
        %v2184 = vrot.slane %v1733, 1
        %v2185 = vsel %vm1350, %v2182, %v2184
        %v2186 = vrot.slane %v2148, 1
        %v2187 = vrot.slane %v1596, 1
        %v2188 = vsel %vm1350, %v2186, %v2187
        %v2189 = vrot.slane %v1734, 1
        %v2190 = vsel %vm1350, %v2187, %v2189
        %v2191 = vrot.slane %v2149, 1
        %v2192 = vrot.slane %v1598, 1
        %v2193 = vsel %vm1350, %v2191, %v2192
        %v2194 = vrot.slane %v1735, 1
        %v2195 = vsel %vm1350, %v2192, %v2194
        %v2196 = vrot.slane %v2150, 1
        %v2197 = vrot.slane %v1600, 1
        %v2198 = vsel %vm1350, %v2196, %v2197
        %v2199 = vrot.slane %v1736, 1
        %v2200 = vsel %vm1350, %v2197, %v2199
        %v2201 = vrot.slane %v2151, 1
        %v2202 = vrot.slane %v1602, 1
        %v2203 = vsel %vm1350, %v2201, %v2202
        %v2204 = vrot.slane %v1737, 1
        %v2205 = vsel %vm1350, %v2202, %v2204
        %v2206 = vrot.slane %v2152, 1
        %v2207 = vrot.slane %v1604, 1
        %v2208 = vsel %vm1350, %v2206, %v2207
        %v2209 = vrot.slane %v1738, 1
        %v2210 = vsel %vm1350, %v2207, %v2209
        %v2211 = vrot.slane %v2153, 1
        %v2212 = vrot.slane %v1606, 1
        %v2213 = vsel %vm1350, %v2211, %v2212
        %v2214 = vrot.slane %v1739, 1
        %v2215 = vsel %vm1350, %v2212, %v2214
        %v2216 = vrot.slane %v2154, 1
        %v2217 = vrot.slane %v1608, 1
        %v2218 = vsel %vm1350, %v2216, %v2217
        %v2219 = vrot.slane %v1740, 1
        %v2220 = vsel %vm1350, %v2217, %v2219
        %v2221 = vrot.slane %v2155, 1
        %v2222 = vrot.slane %v1610, 1
        %v2223 = vsel %vm1350, %v2221, %v2222
        %v2224 = vrot.slane %v1741, 1
        %v2225 = vsel %vm1350, %v2222, %v2224
        %v2226 = vrot.slane %v2156, 1
        %v2227 = vrot.slane %v1612, 1
        %v2228 = vsel %vm1350, %v2226, %v2227
        %v2229 = vrot.slane %v1742, 1
        %v2230 = vsel %vm1350, %v2227, %v2229
        %v2231 = vrot.slane %v2157, 1
        %v2232 = vrot.slane %v1614, 1
        %v2233 = vsel %vm1350, %v2231, %v2232
        %v2234 = vrot.slane %v1743, 1
        %v2235 = vsel %vm1350, %v2232, %v2234
        %v2236 = vrot.slane %v2158, 1
        %v2237 = vrot.slane %v1616, 1
        %v2238 = vsel %vm1350, %v2236, %v2237
        %v2239 = vrot.slane %v1744, 1
        %v2240 = vsel %vm1350, %v2237, %v2239
        %v2241 = vrot.slane %v2159, 1
        %v2242 = vrot.slane %v1618, 1
        %v2243 = vsel %vm1350, %v2241, %v2242
        %v2244 = vrot.slane %v1745, 1
        %v2245 = vsel %vm1350, %v2242, %v2244
        %v2246 = vrot.slane %v2160, 1
        %v2247 = vrot.slane %v1620, 1
        %v2248 = vsel %vm1350, %v2246, %v2247
        %v2249 = vrot.slane %v1746, 1
        %v2250 = vsel %vm1350, %v2247, %v2249
        %2251 = vrot.lane.b32.xlu0 %v2163, 64
        %v2252 = vpop.permute.xlu0 %2251
        %2253 = vrot.lane.b32.xlu0 %v2165, 64
        %v2254 = vpop.permute.xlu0 %2253
        %2255 = vrot.lane.b32.xlu0 %v2168, 64
        %v2256 = vpop.permute.xlu0 %2255
        %2257 = vrot.lane.b32.xlu0 %v2170, 64
        %v2258 = vpop.permute.xlu0 %2257
        %2259 = vrot.lane.b32.xlu0 %v2173, 64
        %v2260 = vpop.permute.xlu0 %2259
        %2261 = vrot.lane.b32.xlu0 %v2175, 64
        %v2262 = vpop.permute.xlu0 %2261
        %2263 = vrot.lane.b32.xlu0 %v2178, 64
        %v2264 = vpop.permute.xlu0 %2263
        %2265 = vrot.lane.b32.xlu0 %v2180, 64
        %v2266 = vpop.permute.xlu0 %2265
        %2267 = vrot.lane.b32.xlu0 %v2183, 64
        %v2268 = vpop.permute.xlu0 %2267
        %2269 = vrot.lane.b32.xlu0 %v2185, 64
        %v2270 = vpop.permute.xlu0 %2269
        %2271 = vrot.lane.b32.xlu0 %v2188, 64
        %v2272 = vpop.permute.xlu0 %2271
        %2273 = vrot.lane.b32.xlu0 %v2190, 64
        %v2274 = vpop.permute.xlu0 %2273
        %2275 = vrot.lane.b32.xlu0 %v2193, 64
        %v2276 = vpop.permute.xlu0 %2275
        %2277 = vrot.lane.b32.xlu0 %v2195, 64
        %v2278 = vpop.permute.xlu0 %2277
        %2279 = vrot.lane.b32.xlu0 %v2198, 64
        %v2280 = vpop.permute.xlu0 %2279
        %2281 = vrot.lane.b32.xlu0 %v2200, 64
        %v2282 = vpop.permute.xlu0 %2281
        %2283 = vrot.lane.b32.xlu0 %v2203, 64
        %v2284 = vpop.permute.xlu0 %2283
        %2285 = vrot.lane.b32.xlu0 %v2205, 64
        %v2286 = vpop.permute.xlu0 %2285
        %2287 = vrot.lane.b32.xlu0 %v2208, 64
        %v2288 = vpop.permute.xlu0 %2287
        %2289 = vrot.lane.b32.xlu0 %v2210, 64
        %v2290 = vpop.permute.xlu0 %2289
        %2291 = vrot.lane.b32.xlu0 %v2213, 64
        %v2292 = vpop.permute.xlu0 %2291
        %2293 = vrot.lane.b32.xlu0 %v2215, 64
        %v2294 = vpop.permute.xlu0 %2293
        %2295 = vrot.lane.b32.xlu0 %v2218, 64
        %v2296 = vpop.permute.xlu0 %2295
        %2297 = vrot.lane.b32.xlu0 %v2220, 64
        %v2298 = vpop.permute.xlu0 %2297
        %2299 = vrot.lane.b32.xlu0 %v2223, 64
        %v2300 = vpop.permute.xlu0 %2299
        %2301 = vrot.lane.b32.xlu0 %v2225, 64
        %v2302 = vpop.permute.xlu0 %2301
        %2303 = vrot.lane.b32.xlu0 %v2228, 64
        %v2304 = vpop.permute.xlu0 %2303
        %2305 = vrot.lane.b32.xlu0 %v2230, 64
        %v2306 = vpop.permute.xlu0 %2305
        %2307 = vrot.lane.b32.xlu0 %v2233, 64
        %v2308 = vpop.permute.xlu0 %2307
        %2309 = vrot.lane.b32.xlu0 %v2235, 64
        %v2310 = vpop.permute.xlu0 %2309
        %2311 = vrot.lane.b32.xlu0 %v2238, 64
        %v2312 = vpop.permute.xlu0 %2311
        %2313 = vrot.lane.b32.xlu0 %v2240, 64
        %v2314 = vpop.permute.xlu0 %2313
        %2315 = vrot.lane.b32.xlu0 %v2243, 64
        %v2316 = vpop.permute.xlu0 %2315
        %2317 = vrot.lane.b32.xlu0 %v2245, 64
        %v2318 = vpop.permute.xlu0 %2317
        %2319 = vrot.lane.b32.xlu0 %v2248, 64
        %v2320 = vpop.permute.xlu0 %2319
        %2321 = vrot.lane.b32.xlu0 %v2250, 64
        %v2322 = vpop.permute.xlu0 %2321
        %v2395 = vunpack.c.l.b16 %v521
        %v2396 = vunpack.c.l.b16 %v522
        %v2397 = vunpack.c.l.b16 %v523
        %v2398 = vunpack.c.l.b16 %v524
        %v2399 = vunpack.c.l.b16 %v525
        %v2400 = vunpack.c.l.b16 %v526
        %v2401 = vunpack.c.l.b16 %v527
        %v2402 = vunpack.c.l.b16 %v528
        %v2403 = vunpack.c.l.b16 %v529
        %v2404 = vunpack.c.l.b16 %v530
        %v2405 = vunpack.c.l.b16 %v531
        %v2406 = vunpack.c.l.b16 %v532
        %v2407 = vunpack.c.l.b16 %v533
        %v2408 = vunpack.c.l.b16 %v534
        %v2409 = vunpack.c.l.b16 %v535
        %v2410 = vunpack.c.l.b16 %v536
        %v2411 = vunpack.c.l.b16 %v537
        %v2412 = vunpack.c.l.b16 %v538
        %v2413 = vunpack.c.l.b16 %v539
        %v2414 = vunpack.c.l.b16 %v540
        %v2415 = vunpack.c.l.b16 %v541
        %v2416 = vunpack.c.l.b16 %v542
        %v2417 = vunpack.c.l.b16 %v543
        %v2418 = vunpack.c.l.b16 %v544
        %v2419 = vunpack.c.l.b16 %v545
        %v2420 = vunpack.c.l.b16 %v546
        %v2421 = vunpack.c.l.b16 %v547
        %v2422 = vunpack.c.l.b16 %v548
        %v2423 = vunpack.c.l.b16 %v549
        %v2424 = vunpack.c.l.b16 %v550
        %v2425 = vunpack.c.l.b16 %v551
        %v2426 = vunpack.c.l.b16 %v552
        %v2427 = vunpack.c.l.b16 %v553
        %v2428 = vunpack.c.l.b16 %v554
        %v2429 = vunpack.c.l.b16 %v555
        %v2430 = vunpack.c.l.b16 %v556
        %v2431 = vunpack.c.l.b16 %v557
        %v2432 = vunpack.c.l.b16 %v558
        %v2433 = vunpack.c.l.b16 %v559
        %v2434 = vunpack.c.l.b16 %v560
        %v2435 = vunpack.c.l.b16 %v561
        %v2436 = vunpack.c.l.b16 %v562
        %v2437 = vunpack.c.l.b16 %v563
        %v2438 = vunpack.c.l.b16 %v564
        %v2439 = vunpack.c.l.b16 %v565
        %v2440 = vunpack.c.l.b16 %v566
        %v2441 = vunpack.c.l.b16 %v567
        %v2442 = vunpack.c.l.b16 %v568
        %v2443 = vunpack.c.l.b16 %v569
        %v2444 = vunpack.c.l.b16 %v570
        %v2445 = vunpack.c.l.b16 %v571
        %v2446 = vunpack.c.l.b16 %v572
        %v2447 = vunpack.c.l.b16 %v573
        %v2448 = vunpack.c.l.b16 %v574
        %v2449 = vunpack.c.l.b16 %v575
        %v2450 = vunpack.c.l.b16 %v576
        %v2451 = vunpack.c.l.b16 %v577
        %v2452 = vunpack.c.l.b16 %v578
        %v2453 = vunpack.c.l.b16 %v579
        %v2454 = vunpack.c.l.b16 %v580
        %v2455 = vunpack.c.l.b16 %v581
        %v2456 = vunpack.c.l.b16 %v582
        %v2457 = vunpack.c.l.b16 %v583
        %v2458 = vunpack.c.l.b16 %v584
        %v2459 = vunpack.c.l.b16 %v585
        %v2460 = vunpack.c.l.b16 %v586
        %v2461 = vunpack.c.l.b16 %v587
        %v2462 = vunpack.c.l.b16 %v588
        %v2463 = vunpack.c.l.b16 %v589
        %v2464 = vunpack.c.l.b16 %v590
        %v2465 = vunpack.c.l.b16 %v591
        %v2466 = vunpack.c.l.b16 %v592
        %v2467 = vpack.c.b16 %v2396, %v2395
        %v2468 = vpack.c.b16 %v2398, %v2397
        %v2469 = vpack.c.b16 %v2400, %v2399
        %v2470 = vpack.c.b16 %v2402, %v2401
        %v2471 = vpack.c.b16 %v2404, %v2403
        %v2472 = vpack.c.b16 %v2406, %v2405
        %v2473 = vpack.c.b16 %v2408, %v2407
        %v2474 = vpack.c.b16 %v2410, %v2409
        %v2475 = vpack.c.b16 %v2412, %v2411
        %v2476 = vpack.c.b16 %v2414, %v2413
        %v2477 = vpack.c.b16 %v2416, %v2415
        %v2478 = vpack.c.b16 %v2418, %v2417
        %v2479 = vpack.c.b16 %v2420, %v2419
        %v2480 = vpack.c.b16 %v2422, %v2421
        %v2481 = vpack.c.b16 %v2424, %v2423
        %v2482 = vpack.c.b16 %v2426, %v2425
        %v2483 = vpack.c.b16 %v2428, %v2427
        %v2484 = vpack.c.b16 %v2430, %v2429
        %v2485 = vpack.c.b16 %v2432, %v2431
        %v2486 = vpack.c.b16 %v2434, %v2433
        %v2487 = vpack.c.b16 %v2436, %v2435
        %v2488 = vpack.c.b16 %v2438, %v2437
        %v2489 = vpack.c.b16 %v2440, %v2439
        %v2490 = vpack.c.b16 %v2442, %v2441
        %v2491 = vpack.c.b16 %v2444, %v2443
        %v2492 = vpack.c.b16 %v2446, %v2445
        %v2493 = vpack.c.b16 %v2448, %v2447
        %v2494 = vpack.c.b16 %v2450, %v2449
        %v2495 = vpack.c.b16 %v2452, %v2451
        %v2496 = vpack.c.b16 %v2454, %v2453
        %v2497 = vpack.c.b16 %v2456, %v2455
        %v2498 = vpack.c.b16 %v2458, %v2457
        %v2499 = vpack.c.b16 %v2460, %v2459
        %v2500 = vpack.c.b16 %v2462, %v2461
        %v2501 = vpack.c.b16 %v2464, %v2463
        %v2502 = vpack.c.b16 %v2466, %v2465
        %v2521 = vunpack.c.l.b16 %v593
        %v2522 = vunpack.c.l.b16 %v594
        %v2523 = vunpack.c.l.b16 %v595
        %v2524 = vunpack.c.l.b16 %v596
        %v2525 = vunpack.c.l.b16 %v597
        %v2526 = vunpack.c.l.b16 %v598
        %v2527 = vunpack.c.l.b16 %v599
        %v2528 = vunpack.c.l.b16 %v600
        %v2529 = vunpack.c.l.b16 %v601
        %v2530 = vunpack.c.l.b16 %v602
        %v2531 = vunpack.c.l.b16 %v603
        %v2532 = vunpack.c.l.b16 %v604
        %v2533 = vunpack.c.l.b16 %v605
        %v2534 = vunpack.c.l.b16 %v606
        %v2535 = vunpack.c.l.b16 %v607
        %v2536 = vunpack.c.l.b16 %v608
        %v2537 = vunpack.c.l.b16 %v609
        %v2538 = vunpack.c.l.b16 %v610
        %v2539 = vpack.c.b16 %v2521, %v2521
        %v2540 = vpack.c.b16 %v2522, %v2522
        %v2541 = vpack.c.b16 %v2523, %v2523
        %v2542 = vpack.c.b16 %v2524, %v2524
        %v2543 = vpack.c.b16 %v2525, %v2525
        %v2544 = vpack.c.b16 %v2526, %v2526
        %v2545 = vpack.c.b16 %v2527, %v2527
        %v2546 = vpack.c.b16 %v2528, %v2528
        %v2547 = vpack.c.b16 %v2529, %v2529
        %v2548 = vpack.c.b16 %v2530, %v2530
        %v2549 = vpack.c.b16 %v2531, %v2531
        %v2550 = vpack.c.b16 %v2532, %v2532
        %v2551 = vpack.c.b16 %v2533, %v2533
        %v2552 = vpack.c.b16 %v2534, %v2534
        %v2553 = vpack.c.b16 %v2535, %v2535
        %v2554 = vpack.c.b16 %v2536, %v2536
        %v2555 = vpack.c.b16 %v2537, %v2537
        %v2556 = vpack.c.b16 %v2538, %v2538
        %v2558 = vshrl.u32 %v2467, 16
        %v2560 = vshll.u32 %v2467, 16
        %v2562 = vrot.slane %v2560, 1
        %v2563 = vor.u32 %v2558, %v2562
        %v2565 = vshll.u32 %v2468, 16
        %v2567 = vrot.slane %v2565, 1
        %v2568 = vsel %vm863, %v2563, %v2567
        %v2569 = vshrl.u32 %v2468, 16
        %v2571 = vor.u32 %v2569, %v2567
        %v2573 = vshll.u32 %v2539, 16
        %v2575 = vrot.slane %v2573, 1
        %v2576 = vsel %vm863, %v2571, %v2575
        %v2578 = vshrl.u32 %v2469, 16
        %v2580 = vshll.u32 %v2469, 16
        %v2582 = vrot.slane %v2580, 1
        %v2583 = vor.u32 %v2578, %v2582
        %v2585 = vshll.u32 %v2470, 16
        %v2587 = vrot.slane %v2585, 1
        %v2588 = vsel %vm863, %v2583, %v2587
        %v2589 = vshrl.u32 %v2470, 16
        %v2591 = vor.u32 %v2589, %v2587
        %v2593 = vshll.u32 %v2540, 16
        %v2595 = vrot.slane %v2593, 1
        %v2596 = vsel %vm863, %v2591, %v2595
        %v2598 = vshrl.u32 %v2471, 16
        %v2600 = vshll.u32 %v2471, 16
        %v2602 = vrot.slane %v2600, 1
        %v2603 = vor.u32 %v2598, %v2602
        %v2605 = vshll.u32 %v2472, 16
        %v2607 = vrot.slane %v2605, 1
        %v2608 = vsel %vm863, %v2603, %v2607
        %v2609 = vshrl.u32 %v2472, 16
        %v2611 = vor.u32 %v2609, %v2607
        %v2613 = vshll.u32 %v2541, 16
        %v2615 = vrot.slane %v2613, 1
        %v2616 = vsel %vm863, %v2611, %v2615
        %v2618 = vshrl.u32 %v2473, 16
        %v2620 = vshll.u32 %v2473, 16
        %v2622 = vrot.slane %v2620, 1
        %v2623 = vor.u32 %v2618, %v2622
        %v2625 = vshll.u32 %v2474, 16
        %v2627 = vrot.slane %v2625, 1
        %v2628 = vsel %vm863, %v2623, %v2627
        %v2629 = vshrl.u32 %v2474, 16
        %v2631 = vor.u32 %v2629, %v2627
        %v2633 = vshll.u32 %v2542, 16
        %v2635 = vrot.slane %v2633, 1
        %v2636 = vsel %vm863, %v2631, %v2635
        %v2638 = vshrl.u32 %v2475, 16
        %v2640 = vshll.u32 %v2475, 16
        %v2642 = vrot.slane %v2640, 1
        %v2643 = vor.u32 %v2638, %v2642
        %v2645 = vshll.u32 %v2476, 16
        %v2647 = vrot.slane %v2645, 1
        %v2648 = vsel %vm863, %v2643, %v2647
        %v2649 = vshrl.u32 %v2476, 16
        %v2651 = vor.u32 %v2649, %v2647
        %v2653 = vshll.u32 %v2543, 16
        %v2655 = vrot.slane %v2653, 1
        %v2656 = vsel %vm863, %v2651, %v2655
        %v2658 = vshrl.u32 %v2477, 16
        %v2660 = vshll.u32 %v2477, 16
        %v2662 = vrot.slane %v2660, 1
        %v2663 = vor.u32 %v2658, %v2662
        %v2665 = vshll.u32 %v2478, 16
        %v2667 = vrot.slane %v2665, 1
        %v2668 = vsel %vm863, %v2663, %v2667
        %v2669 = vshrl.u32 %v2478, 16
        %v2671 = vor.u32 %v2669, %v2667
        %v2673 = vshll.u32 %v2544, 16
        %v2675 = vrot.slane %v2673, 1
        %v2676 = vsel %vm863, %v2671, %v2675
        %v2678 = vshrl.u32 %v2479, 16
        %v2680 = vshll.u32 %v2479, 16
        %v2682 = vrot.slane %v2680, 1
        %v2683 = vor.u32 %v2678, %v2682
        %v2685 = vshll.u32 %v2480, 16
        %v2687 = vrot.slane %v2685, 1
        %v2688 = vsel %vm863, %v2683, %v2687
        %v2689 = vshrl.u32 %v2480, 16
        %v2691 = vor.u32 %v2689, %v2687
        %v2693 = vshll.u32 %v2545, 16
        %v2695 = vrot.slane %v2693, 1
        %v2696 = vsel %vm863, %v2691, %v2695
        %v2698 = vshrl.u32 %v2481, 16
        %v2700 = vshll.u32 %v2481, 16
        %v2702 = vrot.slane %v2700, 1
        %v2703 = vor.u32 %v2698, %v2702
        %v2705 = vshll.u32 %v2482, 16
        %v2707 = vrot.slane %v2705, 1
        %v2708 = vsel %vm863, %v2703, %v2707
        %v2709 = vshrl.u32 %v2482, 16
        %v2711 = vor.u32 %v2709, %v2707
        %v2713 = vshll.u32 %v2546, 16
        %v2715 = vrot.slane %v2713, 1
        %v2716 = vsel %vm863, %v2711, %v2715
        %v2718 = vshrl.u32 %v2483, 16
        %v2720 = vshll.u32 %v2483, 16
        %v2722 = vrot.slane %v2720, 1
        %v2723 = vor.u32 %v2718, %v2722
        %v2725 = vshll.u32 %v2484, 16
        %v2727 = vrot.slane %v2725, 1
        %v2728 = vsel %vm863, %v2723, %v2727
        %v2729 = vshrl.u32 %v2484, 16
        %v2731 = vor.u32 %v2729, %v2727
        %v2733 = vshll.u32 %v2547, 16
        %v2735 = vrot.slane %v2733, 1
        %v2736 = vsel %vm863, %v2731, %v2735
        %v2738 = vshrl.u32 %v2485, 16
        %v2740 = vshll.u32 %v2485, 16
        %v2742 = vrot.slane %v2740, 1
        %v2743 = vor.u32 %v2738, %v2742
        %v2745 = vshll.u32 %v2486, 16
        %v2747 = vrot.slane %v2745, 1
        %v2748 = vsel %vm863, %v2743, %v2747
        %v2749 = vshrl.u32 %v2486, 16
        %v2751 = vor.u32 %v2749, %v2747
        %v2753 = vshll.u32 %v2548, 16
        %v2755 = vrot.slane %v2753, 1
        %v2756 = vsel %vm863, %v2751, %v2755
        %v2758 = vshrl.u32 %v2487, 16
        %v2760 = vshll.u32 %v2487, 16
        %v2762 = vrot.slane %v2760, 1
        %v2763 = vor.u32 %v2758, %v2762
        %v2765 = vshll.u32 %v2488, 16
        %v2767 = vrot.slane %v2765, 1
        %v2768 = vsel %vm863, %v2763, %v2767
        %v2769 = vshrl.u32 %v2488, 16
        %v2771 = vor.u32 %v2769, %v2767
        %v2773 = vshll.u32 %v2549, 16
        %v2775 = vrot.slane %v2773, 1
        %v2776 = vsel %vm863, %v2771, %v2775
        %v2778 = vshrl.u32 %v2489, 16
        %v2780 = vshll.u32 %v2489, 16
        %v2782 = vrot.slane %v2780, 1
        %v2783 = vor.u32 %v2778, %v2782
        %v2785 = vshll.u32 %v2490, 16
        %v2787 = vrot.slane %v2785, 1
        %v2788 = vsel %vm863, %v2783, %v2787
        %v2789 = vshrl.u32 %v2490, 16
        %v2791 = vor.u32 %v2789, %v2787
        %v2793 = vshll.u32 %v2550, 16
        %v2795 = vrot.slane %v2793, 1
        %v2796 = vsel %vm863, %v2791, %v2795
        %v2798 = vshrl.u32 %v2491, 16
        %v2800 = vshll.u32 %v2491, 16
        %v2802 = vrot.slane %v2800, 1
        %v2803 = vor.u32 %v2798, %v2802
        %v2805 = vshll.u32 %v2492, 16
        %v2807 = vrot.slane %v2805, 1
        %v2808 = vsel %vm863, %v2803, %v2807
        %v2809 = vshrl.u32 %v2492, 16
        %v2811 = vor.u32 %v2809, %v2807
        %v2813 = vshll.u32 %v2551, 16
        %v2815 = vrot.slane %v2813, 1
        %v2816 = vsel %vm863, %v2811, %v2815
        %v2818 = vshrl.u32 %v2493, 16
        %v2820 = vshll.u32 %v2493, 16
        %v2822 = vrot.slane %v2820, 1
        %v2823 = vor.u32 %v2818, %v2822
        %v2825 = vshll.u32 %v2494, 16
        %v2827 = vrot.slane %v2825, 1
        %v2828 = vsel %vm863, %v2823, %v2827
        %v2829 = vshrl.u32 %v2494, 16
        %v2831 = vor.u32 %v2829, %v2827
        %v2833 = vshll.u32 %v2552, 16
        %v2835 = vrot.slane %v2833, 1
        %v2836 = vsel %vm863, %v2831, %v2835
        %v2838 = vshrl.u32 %v2495, 16
        %v2840 = vshll.u32 %v2495, 16
        %v2842 = vrot.slane %v2840, 1
        %v2843 = vor.u32 %v2838, %v2842
        %v2845 = vshll.u32 %v2496, 16
        %v2847 = vrot.slane %v2845, 1
        %v2848 = vsel %vm863, %v2843, %v2847
        %v2849 = vshrl.u32 %v2496, 16
        %v2851 = vor.u32 %v2849, %v2847
        %v2853 = vshll.u32 %v2553, 16
        %v2855 = vrot.slane %v2853, 1
        %v2856 = vsel %vm863, %v2851, %v2855
        %v2858 = vshrl.u32 %v2497, 16
        %v2860 = vshll.u32 %v2497, 16
        %v2862 = vrot.slane %v2860, 1
        %v2863 = vor.u32 %v2858, %v2862
        %v2865 = vshll.u32 %v2498, 16
        %v2867 = vrot.slane %v2865, 1
        %v2868 = vsel %vm863, %v2863, %v2867
        %v2869 = vshrl.u32 %v2498, 16
        %v2871 = vor.u32 %v2869, %v2867
        %v2873 = vshll.u32 %v2554, 16
        %v2875 = vrot.slane %v2873, 1
        %v2876 = vsel %vm863, %v2871, %v2875
        %v2878 = vshrl.u32 %v2499, 16
        %v2880 = vshll.u32 %v2499, 16
        %v2882 = vrot.slane %v2880, 1
        %v2883 = vor.u32 %v2878, %v2882
        %v2885 = vshll.u32 %v2500, 16
        %v2887 = vrot.slane %v2885, 1
        %v2888 = vsel %vm863, %v2883, %v2887
        %v2889 = vshrl.u32 %v2500, 16
        %v2891 = vor.u32 %v2889, %v2887
        %v2893 = vshll.u32 %v2555, 16
        %v2895 = vrot.slane %v2893, 1
        %v2896 = vsel %vm863, %v2891, %v2895
        %v2898 = vshrl.u32 %v2501, 16
        %v2900 = vshll.u32 %v2501, 16
        %v2902 = vrot.slane %v2900, 1
        %v2903 = vor.u32 %v2898, %v2902
        %v2905 = vshll.u32 %v2502, 16
        %v2907 = vrot.slane %v2905, 1
        %v2908 = vsel %vm863, %v2903, %v2907
        %v2909 = vshrl.u32 %v2502, 16
        %v2911 = vor.u32 %v2909, %v2907
        %v2913 = vshll.u32 %v2556, 16
        %v2915 = vrot.slane %v2913, 1
        %v2916 = vsel %vm863, %v2911, %v2915
        %2917 = vrot.lane.b32.xlu0 %v2568, 64
        %v2918 = vpop.permute.xlu0 %2917
        %2919 = vrot.lane.b32.xlu0 %v2576, 64
        %v2920 = vpop.permute.xlu0 %2919
        %2921 = vrot.lane.b32.xlu0 %v2588, 64
        %v2922 = vpop.permute.xlu0 %2921
        %2923 = vrot.lane.b32.xlu0 %v2596, 64
        %v2924 = vpop.permute.xlu0 %2923
        %2925 = vrot.lane.b32.xlu0 %v2608, 64
        %v2926 = vpop.permute.xlu0 %2925
        %2927 = vrot.lane.b32.xlu0 %v2616, 64
        %v2928 = vpop.permute.xlu0 %2927
        %2929 = vrot.lane.b32.xlu0 %v2628, 64
        %v2930 = vpop.permute.xlu0 %2929
        %2931 = vrot.lane.b32.xlu0 %v2636, 64
        %v2932 = vpop.permute.xlu0 %2931
        %2933 = vrot.lane.b32.xlu0 %v2648, 64
        %v2934 = vpop.permute.xlu0 %2933
        %2935 = vrot.lane.b32.xlu0 %v2656, 64
        %v2936 = vpop.permute.xlu0 %2935
        %2937 = vrot.lane.b32.xlu0 %v2668, 64
        %v2938 = vpop.permute.xlu0 %2937
        %2939 = vrot.lane.b32.xlu0 %v2676, 64
        %v2940 = vpop.permute.xlu0 %2939
        %2941 = vrot.lane.b32.xlu0 %v2688, 64
        %v2942 = vpop.permute.xlu0 %2941
        %2943 = vrot.lane.b32.xlu0 %v2696, 64
        %v2944 = vpop.permute.xlu0 %2943
        %2945 = vrot.lane.b32.xlu0 %v2708, 64
        %v2946 = vpop.permute.xlu0 %2945
        %2947 = vrot.lane.b32.xlu0 %v2716, 64
        %v2948 = vpop.permute.xlu0 %2947
        %2949 = vrot.lane.b32.xlu0 %v2728, 64
        %v2950 = vpop.permute.xlu0 %2949
        %2951 = vrot.lane.b32.xlu0 %v2736, 64
        %v2952 = vpop.permute.xlu0 %2951
        %2953 = vrot.lane.b32.xlu0 %v2748, 64
        %v2954 = vpop.permute.xlu0 %2953
        %2955 = vrot.lane.b32.xlu0 %v2756, 64
        %v2956 = vpop.permute.xlu0 %2955
        %2957 = vrot.lane.b32.xlu0 %v2768, 64
        %v2958 = vpop.permute.xlu0 %2957
        %2959 = vrot.lane.b32.xlu0 %v2776, 64
        %v2960 = vpop.permute.xlu0 %2959
        %2961 = vrot.lane.b32.xlu0 %v2788, 64
        %v2962 = vpop.permute.xlu0 %2961
        %2963 = vrot.lane.b32.xlu0 %v2796, 64
        %v2964 = vpop.permute.xlu0 %2963
        %2965 = vrot.lane.b32.xlu0 %v2808, 64
        %v2966 = vpop.permute.xlu0 %2965
        %2967 = vrot.lane.b32.xlu0 %v2816, 64
        %v2968 = vpop.permute.xlu0 %2967
        %2969 = vrot.lane.b32.xlu0 %v2828, 64
        %v2970 = vpop.permute.xlu0 %2969
        %2971 = vrot.lane.b32.xlu0 %v2836, 64
        %v2972 = vpop.permute.xlu0 %2971
        %2973 = vrot.lane.b32.xlu0 %v2848, 64
        %v2974 = vpop.permute.xlu0 %2973
        %2975 = vrot.lane.b32.xlu0 %v2856, 64
        %v2976 = vpop.permute.xlu0 %2975
        %2977 = vrot.lane.b32.xlu0 %v2868, 64
        %v2978 = vpop.permute.xlu0 %2977
        %2979 = vrot.lane.b32.xlu0 %v2876, 64
        %v2980 = vpop.permute.xlu0 %2979
        %2981 = vrot.lane.b32.xlu0 %v2888, 64
        %v2982 = vpop.permute.xlu0 %2981
        %2983 = vrot.lane.b32.xlu0 %v2896, 64
        %v2984 = vpop.permute.xlu0 %2983
        %2985 = vrot.lane.b32.xlu0 %v2908, 64
        %v2986 = vpop.permute.xlu0 %2985
        %2987 = vrot.lane.b32.xlu0 %v2916, 64
        %v2988 = vpop.permute.xlu0 %2987
        %v3007 = vunpack.c.l.b16 %v611
        %v3008 = vunpack.c.l.b16 %v612
        %v3009 = vunpack.c.l.b16 %v613
        %v3010 = vunpack.c.l.b16 %v614
        %v3011 = vunpack.c.l.b16 %v615
        %v3012 = vunpack.c.l.b16 %v616
        %v3013 = vunpack.c.l.b16 %v617
        %v3014 = vunpack.c.l.b16 %v618
        %v3015 = vunpack.c.l.b16 %v619
        %v3016 = vunpack.c.l.b16 %v620
        %v3017 = vunpack.c.l.b16 %v621
        %v3018 = vunpack.c.l.b16 %v622
        %v3019 = vunpack.c.l.b16 %v623
        %v3020 = vunpack.c.l.b16 %v624
        %v3021 = vunpack.c.l.b16 %v625
        %v3022 = vunpack.c.l.b16 %v626
        %v3023 = vunpack.c.l.b16 %v627
        %v3024 = vunpack.c.l.b16 %v628
        %v3025 = vpack.c.b16 %v2396, %v3007
        %v3026 = vpack.c.b16 %v2400, %v3008
        %v3027 = vpack.c.b16 %v2404, %v3009
        %v3028 = vpack.c.b16 %v2408, %v3010
        %v3029 = vpack.c.b16 %v2412, %v3011
        %v3030 = vpack.c.b16 %v2416, %v3012
        %v3031 = vpack.c.b16 %v2420, %v3013
        %v3032 = vpack.c.b16 %v2424, %v3014
        %v3033 = vpack.c.b16 %v2428, %v3015
        %v3034 = vpack.c.b16 %v2432, %v3016
        %v3035 = vpack.c.b16 %v2436, %v3017
        %v3036 = vpack.c.b16 %v2440, %v3018
        %v3037 = vpack.c.b16 %v2444, %v3019
        %v3038 = vpack.c.b16 %v2448, %v3020
        %v3039 = vpack.c.b16 %v2452, %v3021
        %v3040 = vpack.c.b16 %v2456, %v3022
        %v3041 = vpack.c.b16 %v2460, %v3023
        %v3042 = vpack.c.b16 %v2464, %v3024
        %v3043 = vrot.slane %v3025, 1
        %v3044 = vrot.slane %v2468, 1
        %v3045 = vsel %vm1350, %v3043, %v3044
        %v3046 = vrot.slane %v2539, 1
        %v3047 = vsel %vm1350, %v3044, %v3046
        %v3048 = vrot.slane %v3026, 1
        %v3049 = vrot.slane %v2470, 1
        %v3050 = vsel %vm1350, %v3048, %v3049
        %v3051 = vrot.slane %v2540, 1
        %v3052 = vsel %vm1350, %v3049, %v3051
        %v3053 = vrot.slane %v3027, 1
        %v3054 = vrot.slane %v2472, 1
        %v3055 = vsel %vm1350, %v3053, %v3054
        %v3056 = vrot.slane %v2541, 1
        %v3057 = vsel %vm1350, %v3054, %v3056
        %v3058 = vrot.slane %v3028, 1
        %v3059 = vrot.slane %v2474, 1
        %v3060 = vsel %vm1350, %v3058, %v3059
        %v3061 = vrot.slane %v2542, 1
        %v3062 = vsel %vm1350, %v3059, %v3061
        %v3063 = vrot.slane %v3029, 1
        %v3064 = vrot.slane %v2476, 1
        %v3065 = vsel %vm1350, %v3063, %v3064
        %v3066 = vrot.slane %v2543, 1
        %v3067 = vsel %vm1350, %v3064, %v3066
        %v3068 = vrot.slane %v3030, 1
        %v3069 = vrot.slane %v2478, 1
        %v3070 = vsel %vm1350, %v3068, %v3069
        %v3071 = vrot.slane %v2544, 1
        %v3072 = vsel %vm1350, %v3069, %v3071
        %v3073 = vrot.slane %v3031, 1
        %v3074 = vrot.slane %v2480, 1
        %v3075 = vsel %vm1350, %v3073, %v3074
        %v3076 = vrot.slane %v2545, 1
        %v3077 = vsel %vm1350, %v3074, %v3076
        %v3078 = vrot.slane %v3032, 1
        %v3079 = vrot.slane %v2482, 1
        %v3080 = vsel %vm1350, %v3078, %v3079
        %v3081 = vrot.slane %v2546, 1
        %v3082 = vsel %vm1350, %v3079, %v3081
        %v3083 = vrot.slane %v3033, 1
        %v3084 = vrot.slane %v2484, 1
        %v3085 = vsel %vm1350, %v3083, %v3084
        %v3086 = vrot.slane %v2547, 1
        %v3087 = vsel %vm1350, %v3084, %v3086
        %v3088 = vrot.slane %v3034, 1
        %v3089 = vrot.slane %v2486, 1
        %v3090 = vsel %vm1350, %v3088, %v3089
        %v3091 = vrot.slane %v2548, 1
        %v3092 = vsel %vm1350, %v3089, %v3091
        %v3093 = vrot.slane %v3035, 1
        %v3094 = vrot.slane %v2488, 1
        %v3095 = vsel %vm1350, %v3093, %v3094
        %v3096 = vrot.slane %v2549, 1
        %v3097 = vsel %vm1350, %v3094, %v3096
        %v3098 = vrot.slane %v3036, 1
        %v3099 = vrot.slane %v2490, 1
        %v3100 = vsel %vm1350, %v3098, %v3099
        %v3101 = vrot.slane %v2550, 1
        %v3102 = vsel %vm1350, %v3099, %v3101
        %v3103 = vrot.slane %v3037, 1
        %v3104 = vrot.slane %v2492, 1
        %v3105 = vsel %vm1350, %v3103, %v3104
        %v3106 = vrot.slane %v2551, 1
        %v3107 = vsel %vm1350, %v3104, %v3106
        %v3108 = vrot.slane %v3038, 1
        %v3109 = vrot.slane %v2494, 1
        %v3110 = vsel %vm1350, %v3108, %v3109
        %v3111 = vrot.slane %v2552, 1
        %v3112 = vsel %vm1350, %v3109, %v3111
        %v3113 = vrot.slane %v3039, 1
        %v3114 = vrot.slane %v2496, 1
        %v3115 = vsel %vm1350, %v3113, %v3114
        %v3116 = vrot.slane %v2553, 1
        %v3117 = vsel %vm1350, %v3114, %v3116
        %v3118 = vrot.slane %v3040, 1
        %v3119 = vrot.slane %v2498, 1
        %v3120 = vsel %vm1350, %v3118, %v3119
        %v3121 = vrot.slane %v2554, 1
        %v3122 = vsel %vm1350, %v3119, %v3121
        %v3123 = vrot.slane %v3041, 1
        %v3124 = vrot.slane %v2500, 1
        %v3125 = vsel %vm1350, %v3123, %v3124
        %v3126 = vrot.slane %v2555, 1
        %v3127 = vsel %vm1350, %v3124, %v3126
        %v3128 = vrot.slane %v3042, 1
        %v3129 = vrot.slane %v2502, 1
        %v3130 = vsel %vm1350, %v3128, %v3129
        %v3131 = vrot.slane %v2556, 1
        %v3132 = vsel %vm1350, %v3129, %v3131
        %vm3133 = vcmask 523264
        %v3135 = vsel %vm3133, %v773, %v1225
        %v3138 = vsel %vm3133, %v774, %v1227
        %v3141 = vsel %vm3133, %v775, %v1229
        %v3144 = vsel %vm3133, %v776, %v1231
        %v3147 = vsel %vm3133, %v777, %v1233
        %v3150 = vsel %vm3133, %v778, %v1235
        %v3153 = vsel %vm3133, %v779, %v1237
        %v3156 = vsel %vm3133, %v780, %v1239
        %v3159 = vsel %vm3133, %v781, %v1241
        %v3162 = vsel %vm3133, %v782, %v1243
        %v3165 = vsel %vm3133, %v783, %v1245
        %v3168 = vsel %vm3133, %v784, %v1247
        %v3171 = vsel %vm3133, %v785, %v1249
        %v3174 = vsel %vm3133, %v786, %v1251
        %v3177 = vsel %vm3133, %v787, %v1253
        %v3180 = vsel %vm3133, %v788, %v1255
        %v3183 = vsel %vm3133, %v789, %v1257
        %v3186 = vsel %vm3133, %v790, %v1259
        %v3189 = vsel %vm3133, %v791, %v1261
        %v3192 = vsel %vm3133, %v792, %v1263
        %v3195 = vsel %vm3133, %v793, %v1265
        %v3198 = vsel %vm3133, %v794, %v1267
        %v3201 = vsel %vm3133, %v795, %v1269
        %v3204 = vsel %vm3133, %v796, %v1271
        %v3207 = vsel %vm3133, %v797, %v1273
        %v3210 = vsel %vm3133, %v798, %v1275
        %v3213 = vsel %vm3133, %v799, %v1277
        %v3216 = vsel %vm3133, %v800, %v1279
        %v3219 = vsel %vm3133, %v801, %v1281
        %v3222 = vsel %vm3133, %v802, %v1283
        %v3225 = vsel %vm3133, %v803, %v1285
        %v3228 = vsel %vm3133, %v804, %v1287
        %v3231 = vsel %vm3133, %v805, %v1289
        %v3234 = vsel %vm3133, %v806, %v1291
        %v3237 = vsel %vm3133, %v807, %v1293
        %v3240 = vsel %vm3133, %v808, %v1295
        %v3244 = vsel %vm3133, %v1353, %v1622
        %v3248 = vsel %vm3133, %v1355, %v1624
        %v3252 = vsel %vm3133, %v1358, %v1626
        %v3256 = vsel %vm3133, %v1360, %v1628
        %v3260 = vsel %vm3133, %v1363, %v1630
        %v3264 = vsel %vm3133, %v1365, %v1632
        %v3268 = vsel %vm3133, %v1368, %v1634
        %v3272 = vsel %vm3133, %v1370, %v1636
        %v3276 = vsel %vm3133, %v1373, %v1638
        %v3280 = vsel %vm3133, %v1375, %v1640
        %v3284 = vsel %vm3133, %v1378, %v1642
        %v3288 = vsel %vm3133, %v1380, %v1644
        %v3292 = vsel %vm3133, %v1383, %v1646
        %v3296 = vsel %vm3133, %v1385, %v1648
        %v3300 = vsel %vm3133, %v1388, %v1650
        %v3304 = vsel %vm3133, %v1390, %v1652
        %v3308 = vsel %vm3133, %v1393, %v1654
        %v3312 = vsel %vm3133, %v1395, %v1656
        %v3316 = vsel %vm3133, %v1398, %v1658
        %v3320 = vsel %vm3133, %v1400, %v1660
        %v3324 = vsel %vm3133, %v1403, %v1662
        %v3328 = vsel %vm3133, %v1405, %v1664
        %v3332 = vsel %vm3133, %v1408, %v1666
        %v3336 = vsel %vm3133, %v1410, %v1668
        %v3340 = vsel %vm3133, %v1413, %v1670
        %v3344 = vsel %vm3133, %v1415, %v1672
        %v3348 = vsel %vm3133, %v1418, %v1674
        %v3352 = vsel %vm3133, %v1420, %v1676
        %v3356 = vsel %vm3133, %v1423, %v1678
        %v3360 = vsel %vm3133, %v1425, %v1680
        %v3364 = vsel %vm3133, %v1428, %v1682
        %v3368 = vsel %vm3133, %v1430, %v1684
        %v3372 = vsel %vm3133, %v1433, %v1686
        %v3376 = vsel %vm3133, %v1435, %v1688
        %v3380 = vsel %vm3133, %v1438, %v1690
        %v3384 = vsel %vm3133, %v1440, %v1692
        %v3388 = vsel %vm3133, %v1758, %v2252
        %v3392 = vsel %vm3133, %v1766, %v2254
        %v3396 = vsel %vm3133, %v1778, %v2256
        %v3400 = vsel %vm3133, %v1786, %v2258
        %v3404 = vsel %vm3133, %v1798, %v2260
        %v3408 = vsel %vm3133, %v1806, %v2262
        %v3412 = vsel %vm3133, %v1818, %v2264
        %v3416 = vsel %vm3133, %v1826, %v2266
        %v3420 = vsel %vm3133, %v1838, %v2268
        %v3424 = vsel %vm3133, %v1846, %v2270
        %v3428 = vsel %vm3133, %v1858, %v2272
        %v3432 = vsel %vm3133, %v1866, %v2274
        %v3436 = vsel %vm3133, %v1878, %v2276
        %v3440 = vsel %vm3133, %v1886, %v2278
        %v3444 = vsel %vm3133, %v1898, %v2280
        %v3448 = vsel %vm3133, %v1906, %v2282
        %v3452 = vsel %vm3133, %v1918, %v2284
        %v3456 = vsel %vm3133, %v1926, %v2286
        %v3460 = vsel %vm3133, %v1938, %v2288
        %v3464 = vsel %vm3133, %v1946, %v2290
        %v3468 = vsel %vm3133, %v1958, %v2292
        %v3472 = vsel %vm3133, %v1966, %v2294
        %v3476 = vsel %vm3133, %v1978, %v2296
        %v3480 = vsel %vm3133, %v1986, %v2298
        %v3484 = vsel %vm3133, %v1998, %v2300
        %v3488 = vsel %vm3133, %v2006, %v2302
        %v3492 = vsel %vm3133, %v2018, %v2304
        %v3496 = vsel %vm3133, %v2026, %v2306
        %v3500 = vsel %vm3133, %v2038, %v2308
        %v3504 = vsel %vm3133, %v2046, %v2310
        %v3508 = vsel %vm3133, %v2058, %v2312
        %v3512 = vsel %vm3133, %v2066, %v2314
        %v3516 = vsel %vm3133, %v2078, %v2316
        %v3520 = vsel %vm3133, %v2086, %v2318
        %v3524 = vsel %vm3133, %v2098, %v2320
        %v3528 = vsel %vm3133, %v2106, %v2322
        %v3531 = vsel %vm3133, %v2467, %v2918
        %v3534 = vsel %vm3133, %v2468, %v2920
        %v3537 = vsel %vm3133, %v2469, %v2922
        %v3540 = vsel %vm3133, %v2470, %v2924
        %v3543 = vsel %vm3133, %v2471, %v2926
        %v3546 = vsel %vm3133, %v2472, %v2928
        %v3549 = vsel %vm3133, %v2473, %v2930
        %v3552 = vsel %vm3133, %v2474, %v2932
        %v3555 = vsel %vm3133, %v2475, %v2934
        %v3558 = vsel %vm3133, %v2476, %v2936
        %v3561 = vsel %vm3133, %v2477, %v2938
        %v3564 = vsel %vm3133, %v2478, %v2940
        %v3567 = vsel %vm3133, %v2479, %v2942
        %v3570 = vsel %vm3133, %v2480, %v2944
        %v3573 = vsel %vm3133, %v2481, %v2946
        %v3576 = vsel %vm3133, %v2482, %v2948
        %v3579 = vsel %vm3133, %v2483, %v2950
        %v3582 = vsel %vm3133, %v2484, %v2952
        %v3585 = vsel %vm3133, %v2485, %v2954
        %v3588 = vsel %vm3133, %v2486, %v2956
        %v3591 = vsel %vm3133, %v2487, %v2958
        %v3594 = vsel %vm3133, %v2488, %v2960
        %v3597 = vsel %vm3133, %v2489, %v2962
        %v3600 = vsel %vm3133, %v2490, %v2964
        %v3603 = vsel %vm3133, %v2491, %v2966
        %v3606 = vsel %vm3133, %v2492, %v2968
        %v3609 = vsel %vm3133, %v2493, %v2970
        %v3612 = vsel %vm3133, %v2494, %v2972
        %v3615 = vsel %vm3133, %v2495, %v2974
        %v3618 = vsel %vm3133, %v2496, %v2976
        %v3621 = vsel %vm3133, %v2497, %v2978
        %v3624 = vsel %vm3133, %v2498, %v2980
        %v3627 = vsel %vm3133, %v2499, %v2982
        %v3630 = vsel %vm3133, %v2500, %v2984
        %v3633 = vsel %vm3133, %v2501, %v2986
        %v3636 = vsel %vm3133, %v2502, %v2988
        %v3638 = vld [vmem:[%s1] sm:$0xf]
        %v3639 = vld [vmem:[%s1 + $0x4] sm:$0xf]
        %v3640 = vld [vmem:[%s1 + $0x8] sm:$0xf]
        %v3641 = vld [vmem:[%s1 + $0xc] sm:$0xf]
        %v3642 = vld [vmem:[%s1 + $0x10] sm:$0xf]
        %v3643 = vld [vmem:[%s1 + $0x14] sm:$0xf]
        %v3644 = vld [vmem:[%s1 + $0x18] sm:$0xf]
        %v3645 = vld [vmem:[%s1 + $0x1c] sm:$0xf]
        %v3646 = vld [vmem:[%s1 + $0x20] sm:$0xf]
        %v3647 = vld [vmem:[%s1 + $0x24] sm:$0xf]
        %v3648 = vld [vmem:[%s1 + $0x28] sm:$0xf]
        %v3649 = vld [vmem:[%s1 + $0x2c] sm:$0xf]
        %v3650 = vld [vmem:[%s1 + $0x30] sm:$0xf]
        %v3651 = vld [vmem:[%s1 + $0x34] sm:$0xf]
        %v3652 = vld [vmem:[%s1 + $0x38] sm:$0xf]
        %v3653 = vld [vmem:[%s1 + $0x3c] sm:$0xf]
        %v3654 = vld [vmem:[%s1 + $0x40] sm:$0xf]
        %v3655 = vld [vmem:[%s1 + $0x44] sm:$0xf]
        %v3656 = vld [vmem:[%s1 + $0x48] sm:$0xf]
        %v3657 = vld [vmem:[%s1 + $0x4c] sm:$0xf]
        %v3658 = vld [vmem:[%s1 + $0x50] sm:$0xf]
        %v3659 = vld [vmem:[%s1 + $0x54] sm:$0xf]
        %v3660 = vld [vmem:[%s1 + $0x58] sm:$0xf]
        %v3661 = vld [vmem:[%s1 + $0x5c] sm:$0xf]
        %v3662 = vld [vmem:[%s1 + $0x60] sm:$0xf]
        %v3663 = vld [vmem:[%s1 + $0x64] sm:$0xf]
        %v3664 = vld [vmem:[%s1 + $0x68] sm:$0xf]
        %v3665 = vld [vmem:[%s1 + $0x6c] sm:$0xf]
        %v3666 = vld [vmem:[%s1 + $0x70] sm:$0xf]
        %v3667 = vld [vmem:[%s1 + $0x74] sm:$0xf]
        %v3668 = vld [vmem:[%s1 + $0x78] sm:$0xf]
        %v3669 = vld [vmem:[%s1 + $0x7c] sm:$0xf]
        %v3670 = vld [vmem:[%s1 + $0x80] sm:$0xf]
        %v3671 = vld [vmem:[%s1 + $0x84] sm:$0xf]
        %v3672 = vld [vmem:[%s1 + $0x88] sm:$0xf]
        %v3673 = vld [vmem:[%s1 + $0x8c] sm:$0xf]
        %v3674 = vld [vmem:[%s1 + $0x90] sm:$0xf]
        %v3675 = vld [vmem:[%s1 + $0x94] sm:$0xf]
        %v3676 = vld [vmem:[%s1 + $0x98] sm:$0xf]
        %v3677 = vld [vmem:[%s1 + $0x9c] sm:$0xf]
        %v3678 = vld [vmem:[%s1 + $0xa0] sm:$0xf]
        %v3679 = vld [vmem:[%s1 + $0xa4] sm:$0xf]
        %v3680 = vld [vmem:[%s1 + $0xa8] sm:$0xf]
        %v3681 = vld [vmem:[%s1 + $0xac] sm:$0xf]
        %v3682 = vld [vmem:[%s1 + $0xb0] sm:$0xf]
        %v3683 = vld [vmem:[%s1 + $0xb4] sm:$0xf]
        %v3684 = vld [vmem:[%s1 + $0xb8] sm:$0xf]
        %v3685 = vld [vmem:[%s1 + $0xbc] sm:$0xf]
        %v3686 = vld [vmem:[%s1 + $0xc0] sm:$0xf]
        %v3687 = vld [vmem:[%s1 + $0xc4] sm:$0xf]
        %v3688 = vld [vmem:[%s1 + $0xc8] sm:$0xf]
        %v3689 = vld [vmem:[%s1 + $0xcc] sm:$0xf]
        %v3690 = vld [vmem:[%s1 + $0xd0] sm:$0xf]
        %v3691 = vld [vmem:[%s1 + $0xd4] sm:$0xf]
        %v3692 = vld [vmem:[%s1 + $0xd8] sm:$0xf]
        %v3693 = vld [vmem:[%s1 + $0xdc] sm:$0xf]
        %v3694 = vld [vmem:[%s1 + $0xe0] sm:$0xf]
        %v3695 = vld [vmem:[%s1 + $0xe4] sm:$0xf]
        %v3696 = vld [vmem:[%s1 + $0xe8] sm:$0xf]
        %v3697 = vld [vmem:[%s1 + $0xec] sm:$0xf]
        %v3698 = vld [vmem:[%s1 + $0xf0] sm:$0xf]
        %v3699 = vld [vmem:[%s1 + $0xf4] sm:$0xf]
        %v3700 = vld [vmem:[%s1 + $0xf8] sm:$0xf]
        %v3701 = vld [vmem:[%s1 + $0xfc] sm:$0xf]
        %v3702 = vld [vmem:[%s1 + $0x100] sm:$0xf]
        %v3703 = vld [vmem:[%s1 + $0x104] sm:$0xf]
        %v3704 = vld [vmem:[%s1 + $0x108] sm:$0xf]
        %v3705 = vld [vmem:[%s1 + $0x10c] sm:$0xf]
        %v3706 = vld [vmem:[%s1 + $0x110] sm:$0xf]
        %v3707 = vld [vmem:[%s1 + $0x114] sm:$0xf]
        %v3708 = vld [vmem:[%s1 + $0x118] sm:$0xf]
        %v3709 = vld [vmem:[%s1 + $0x11c] sm:$0xf]
        %v3782 = vunpack.c.l.b16 %v3638
        %v3783 = vunpack.c.l.b16 %v3639
        %v3784 = vunpack.c.l.b16 %v3640
        %v3785 = vunpack.c.l.b16 %v3641
        %v3786 = vunpack.c.l.b16 %v3642
        %v3787 = vunpack.c.l.b16 %v3643
        %v3788 = vunpack.c.l.b16 %v3644
        %v3789 = vunpack.c.l.b16 %v3645
        %v3790 = vunpack.c.l.b16 %v3646
        %v3791 = vunpack.c.l.b16 %v3647
        %v3792 = vunpack.c.l.b16 %v3648
        %v3793 = vunpack.c.l.b16 %v3649
        %v3794 = vunpack.c.l.b16 %v3650
        %v3795 = vunpack.c.l.b16 %v3651
        %v3796 = vunpack.c.l.b16 %v3652
        %v3797 = vunpack.c.l.b16 %v3653
        %v3798 = vunpack.c.l.b16 %v3654
        %v3799 = vunpack.c.l.b16 %v3655
        %v3800 = vunpack.c.l.b16 %v3656
        %v3801 = vunpack.c.l.b16 %v3657
        %v3802 = vunpack.c.l.b16 %v3658
        %v3803 = vunpack.c.l.b16 %v3659
        %v3804 = vunpack.c.l.b16 %v3660
        %v3805 = vunpack.c.l.b16 %v3661
        %v3806 = vunpack.c.l.b16 %v3662
        %v3807 = vunpack.c.l.b16 %v3663
        %v3808 = vunpack.c.l.b16 %v3664
        %v3809 = vunpack.c.l.b16 %v3665
        %v3810 = vunpack.c.l.b16 %v3666
        %v3811 = vunpack.c.l.b16 %v3667
        %v3812 = vunpack.c.l.b16 %v3668
        %v3813 = vunpack.c.l.b16 %v3669
        %v3814 = vunpack.c.l.b16 %v3670
        %v3815 = vunpack.c.l.b16 %v3671
        %v3816 = vunpack.c.l.b16 %v3672
        %v3817 = vunpack.c.l.b16 %v3673
        %v3818 = vunpack.c.l.b16 %v3674
        %v3819 = vunpack.c.l.b16 %v3675
        %v3820 = vunpack.c.l.b16 %v3676
        %v3821 = vunpack.c.l.b16 %v3677
        %v3822 = vunpack.c.l.b16 %v3678
        %v3823 = vunpack.c.l.b16 %v3679
        %v3824 = vunpack.c.l.b16 %v3680
        %v3825 = vunpack.c.l.b16 %v3681
        %v3826 = vunpack.c.l.b16 %v3682
        %v3827 = vunpack.c.l.b16 %v3683
        %v3828 = vunpack.c.l.b16 %v3684
        %v3829 = vunpack.c.l.b16 %v3685
        %v3830 = vunpack.c.l.b16 %v3686
        %v3831 = vunpack.c.l.b16 %v3687
        %v3832 = vunpack.c.l.b16 %v3688
        %v3833 = vunpack.c.l.b16 %v3689
        %v3834 = vunpack.c.l.b16 %v3690
        %v3835 = vunpack.c.l.b16 %v3691
        %v3836 = vunpack.c.l.b16 %v3692
        %v3837 = vunpack.c.l.b16 %v3693
        %v3838 = vunpack.c.l.b16 %v3694
        %v3839 = vunpack.c.l.b16 %v3695
        %v3840 = vunpack.c.l.b16 %v3696
        %v3841 = vunpack.c.l.b16 %v3697
        %v3842 = vunpack.c.l.b16 %v3698
        %v3843 = vunpack.c.l.b16 %v3699
        %v3844 = vunpack.c.l.b16 %v3700
        %v3845 = vunpack.c.l.b16 %v3701
        %v3846 = vunpack.c.l.b16 %v3702
        %v3847 = vunpack.c.l.b16 %v3703
        %v3848 = vunpack.c.l.b16 %v3704
        %v3849 = vunpack.c.l.b16 %v3705
        %v3850 = vunpack.c.l.b16 %v3706
        %v3851 = vunpack.c.l.b16 %v3707
        %v3852 = vunpack.c.l.b16 %v3708
        %v3853 = vunpack.c.l.b16 %v3709
        %v3854 = vpack.c.b16 %v3783, %v3782
        %v3855 = vpack.c.b16 %v3785, %v3784
        %v3856 = vpack.c.b16 %v3787, %v3786
        %v3857 = vpack.c.b16 %v3789, %v3788
        %v3858 = vpack.c.b16 %v3791, %v3790
        %v3859 = vpack.c.b16 %v3793, %v3792
        %v3860 = vpack.c.b16 %v3795, %v3794
        %v3861 = vpack.c.b16 %v3797, %v3796
        %v3862 = vpack.c.b16 %v3799, %v3798
        %v3863 = vpack.c.b16 %v3801, %v3800
        %v3864 = vpack.c.b16 %v3803, %v3802
        %v3865 = vpack.c.b16 %v3805, %v3804
        %v3866 = vpack.c.b16 %v3807, %v3806
        %v3867 = vpack.c.b16 %v3809, %v3808
        %v3868 = vpack.c.b16 %v3811, %v3810
        %v3869 = vpack.c.b16 %v3813, %v3812
        %v3870 = vpack.c.b16 %v3815, %v3814
        %v3871 = vpack.c.b16 %v3817, %v3816
        %v3872 = vpack.c.b16 %v3819, %v3818
        %v3873 = vpack.c.b16 %v3821, %v3820
        %v3874 = vpack.c.b16 %v3823, %v3822
        %v3875 = vpack.c.b16 %v3825, %v3824
        %v3876 = vpack.c.b16 %v3827, %v3826
        %v3877 = vpack.c.b16 %v3829, %v3828
        %v3878 = vpack.c.b16 %v3831, %v3830
        %v3879 = vpack.c.b16 %v3833, %v3832
        %v3880 = vpack.c.b16 %v3835, %v3834
        %v3881 = vpack.c.b16 %v3837, %v3836
        %v3882 = vpack.c.b16 %v3839, %v3838
        %v3883 = vpack.c.b16 %v3841, %v3840
        %v3884 = vpack.c.b16 %v3843, %v3842
        %v3885 = vpack.c.b16 %v3845, %v3844
        %v3886 = vpack.c.b16 %v3847, %v3846
        %v3887 = vpack.c.b16 %v3849, %v3848
        %v3888 = vpack.c.b16 %v3851, %v3850
        %v3889 = vpack.c.b16 %v3853, %v3852
        %v3927 = vsel %vm3133, %v3045, 0
        %v3930 = vsel %vm3133, %v3047, 0
        %v3933 = vsel %vm3133, %v3050, 0
        %v3936 = vsel %vm3133, %v3052, 0
        %v3939 = vsel %vm3133, %v3055, 0
        %v3942 = vsel %vm3133, %v3057, 0
        %v3945 = vsel %vm3133, %v3060, 0
        %v3948 = vsel %vm3133, %v3062, 0
        %v3951 = vsel %vm3133, %v3065, 0
        %v3954 = vsel %vm3133, %v3067, 0
        %v3957 = vsel %vm3133, %v3070, 0
        %v3960 = vsel %vm3133, %v3072, 0
        %v3963 = vsel %vm3133, %v3075, 0
        %v3966 = vsel %vm3133, %v3077, 0
        %v3969 = vsel %vm3133, %v3080, 0
        %v3972 = vsel %vm3133, %v3082, 0
        %v3975 = vsel %vm3133, %v3085, 0
        %v3978 = vsel %vm3133, %v3087, 0
        %v3981 = vsel %vm3133, %v3090, 0
        %v3984 = vsel %vm3133, %v3092, 0
        %v3987 = vsel %vm3133, %v3095, 0
        %v3990 = vsel %vm3133, %v3097, 0
        %v3993 = vsel %vm3133, %v3100, 0
        %v3996 = vsel %vm3133, %v3102, 0
        %v3999 = vsel %vm3133, %v3105, 0
        %v4002 = vsel %vm3133, %v3107, 0
        %v4005 = vsel %vm3133, %v3110, 0
        %v4008 = vsel %vm3133, %v3112, 0
        %v4011 = vsel %vm3133, %v3115, 0
        %v4014 = vsel %vm3133, %v3117, 0
        %v4017 = vsel %vm3133, %v3120, 0
        %v4020 = vsel %vm3133, %v3122, 0
        %v4023 = vsel %vm3133, %v3125, 0
        %v4026 = vsel %vm3133, %v3127, 0
        %v4029 = vsel %vm3133, %v3130, 0
        %v4032 = vsel %vm3133, %v3132, 0
        %4034 = vmatprep.subr.bf16.mxu0 0
        %4035 = vmatpush1.bf16.msra.mxu0 %v3854
        %4036 = vmatprep.subr.bf16.mxu0 0
        %4037 = vmatpush1.bf16.msra.mxu0 %v3855
        %4038 = vmatprep.subr.bf16.mxu0 0
        %4039 = vmatpush1.bf16.msra.mxu0 %v3856
        %4040 = vmatprep.subr.bf16.mxu0 0
        %4041 = vmatpush1.bf16.msra.mxu0 %v3857
        %4042 = vmatprep.subr.bf16.mxu0 0
        %4043 = vmatpush1.bf16.msra.mxu0 %v3858
        %4044 = vmatprep.subr.bf16.mxu0 0
        %4045 = vmatpush1.bf16.msra.mxu0 %v3859
        %4046 = vmatprep.subr.bf16.mxu0 0
        %4047 = vmatpush1.bf16.msra.mxu0 %v3860
        %4048 = vmatprep.subr.bf16.mxu0 0
        %4049 = vmatpush1.bf16.msra.mxu0 %v3861
        %4050 = vmatprep.subr.bf16.mxu0 0
        %4051 = vmatpush1.bf16.msra.mxu0 %v3862
        %4052 = vmatprep.subr.bf16.mxu0 0
        %4053 = vmatpush1.bf16.msra.mxu0 %v3863
        %4054 = vmatprep.subr.bf16.mxu0 0
        %4055 = vmatpush1.bf16.msra.mxu0 %v3864
        %4056 = vmatprep.subr.bf16.mxu0 0
        %4057 = vmatpush1.bf16.msra.mxu0 %v3865
        %4058 = vmatprep.subr.bf16.mxu0 0
        %4059 = vmatpush1.bf16.msra.mxu0 %v3866
        %4060 = vmatprep.subr.bf16.mxu0 0
        %4061 = vmatpush1.bf16.msra.mxu0 %v3867
        %4062 = vmatprep.subr.bf16.mxu0 0
        %4063 = vmatpush1.bf16.msra.mxu0 %v3868
        %4064 = vmatprep.subr.bf16.mxu0 0
        %4065 = vmatpush1.bf16.msra.mxu0 %v3869
        %4066 = vmatprep.mubr.bf16.mxu0 %v3244
        %4067 = vmatmul.mubr.bf16.gmra.mrb[0].mxu0 %v3135
        %v4068 = vpop.f32.mrb[0].mxu0
        %v4069 = vadd.f32 0.0, %v4068
        %v4070 = vpop.f32.mrb[0].mxu0
        %v4071 = vpop.f32.mrb[0].mxu0
        %v4072 = vadd.f32 0.0, %v4071
        %v4073 = vpop.f32.mrb[0].mxu0
        %4074 = vmatprep.mubr.bf16.mxu0 %v3248
        %4075 = vmatmul.mubr.bf16.gmra.mrb[0].mxu0 %v3138
        %v4076 = vpop.f32.mrb[0].mxu0
        %v4077 = vadd.f32 0.0, %v4076
        %v4078 = vpop.f32.mrb[0].mxu0
        %v4079 = vpop.f32.mrb[0].mxu0
        %v4080 = vadd.f32 0.0, %v4079
        %v4081 = vpop.f32.mrb[0].mxu0
        %4082 = vmatprep.mubr.bf16.mxu0 %v3252
        %4083 = vmatmul.mubr.bf16.gmra.mrb[0].mxu0 %v3141
        %v4084 = vpop.f32.mrb[0].mxu0
        %v4085 = vadd.f32 0.0, %v4084
        %v4086 = vpop.f32.mrb[0].mxu0
        %v4087 = vpop.f32.mrb[0].mxu0
        %v4088 = vadd.f32 0.0, %v4087
        %v4089 = vpop.f32.mrb[0].mxu0
        %4090 = vmatprep.mubr.bf16.mxu0 %v3256
        %4091 = vmatmul.mubr.bf16.gmra.mrb[0].mxu0 %v3144
        %v4092 = vpop.f32.mrb[0].mxu0
        %v4093 = vadd.f32 0.0, %v4092
        %v4094 = vpop.f32.mrb[0].mxu0
        %v4095 = vpop.f32.mrb[0].mxu0
        %v4096 = vadd.f32 0.0, %v4095
        %v4097 = vpop.f32.mrb[0].mxu0
        %4098 = vmatprep.mubr.bf16.mxu0 %v3260
        %4099 = vmatmul.mubr.bf16.gmra.mrb[0].mxu0 %v3147
        %v4100 = vpop.f32.mrb[0].mxu0
        %v4101 = vadd.f32 0.0, %v4100
        %v4102 = vpop.f32.mrb[0].mxu0
        %v4103 = vpop.f32.mrb[0].mxu0
        %v4104 = vadd.f32 0.0, %v4103
        %v4105 = vpop.f32.mrb[0].mxu0
        %4106 = vmatprep.mubr.bf16.mxu0 %v3264
        %4107 = vmatmul.mubr.bf16.gmra.mrb[0].mxu0 %v3150
        %v4108 = vpop.f32.mrb[0].mxu0
        %v4109 = vadd.f32 0.0, %v4108
        %v4110 = vpop.f32.mrb[0].mxu0
        %v4111 = vpop.f32.mrb[0].mxu0
        %v4112 = vadd.f32 0.0, %v4111
        %v4113 = vpop.f32.mrb[0].mxu0
        %4114 = vmatprep.mubr.bf16.mxu0 %v3268
        %4115 = vmatmul.mubr.bf16.gmra.mrb[0].mxu0 %v3153
        %v4116 = vpop.f32.mrb[0].mxu0
        %v4117 = vadd.f32 0.0, %v4116
        %v4118 = vpop.f32.mrb[0].mxu0
        %v4119 = vpop.f32.mrb[0].mxu0
        %v4120 = vadd.f32 0.0, %v4119
        %v4121 = vpop.f32.mrb[0].mxu0
        %4122 = vmatprep.mubr.bf16.mxu0 %v3272
        %4123 = vmatmul.mubr.bf16.gmra.mrb[0].mxu0 %v3156
        %v4124 = vpop.f32.mrb[0].mxu0
        %v4125 = vadd.f32 0.0, %v4124
        %v4126 = vpop.f32.mrb[0].mxu0
        %v4127 = vpop.f32.mrb[0].mxu0
        %v4128 = vadd.f32 0.0, %v4127
        %v4129 = vpop.f32.mrb[0].mxu0
        %4130 = vmatprep.mubr.bf16.mxu0 %v3276
        %4131 = vmatmul.mubr.bf16.gmra.mrb[0].mxu0 %v3159
        %v4132 = vpop.f32.mrb[0].mxu0
        %v4133 = vadd.f32 0.0, %v4132
        %v4134 = vpop.f32.mrb[0].mxu0
        %v4135 = vpop.f32.mrb[0].mxu0
        %v4136 = vadd.f32 0.0, %v4135
        %v4137 = vpop.f32.mrb[0].mxu0
        %4138 = vmatprep.mubr.bf16.mxu0 %v3280
        %4139 = vmatmul.mubr.bf16.gmra.mrb[0].mxu0 %v3162
        %v4140 = vpop.f32.mrb[0].mxu0
        %v4141 = vadd.f32 0.0, %v4140
        %v4142 = vpop.f32.mrb[0].mxu0
        %v4143 = vpop.f32.mrb[0].mxu0
        %v4144 = vadd.f32 0.0, %v4143
        %v4145 = vpop.f32.mrb[0].mxu0
        %4146 = vmatprep.mubr.bf16.mxu0 %v3284
        %4147 = vmatmul.mubr.bf16.gmra.mrb[0].mxu0 %v3165
        %v4148 = vpop.f32.mrb[0].mxu0
        %v4149 = vadd.f32 0.0, %v4148
        %v4150 = vpop.f32.mrb[0].mxu0
        %v4151 = vpop.f32.mrb[0].mxu0
        %v4152 = vadd.f32 0.0, %v4151
        %v4153 = vpop.f32.mrb[0].mxu0
        %4154 = vmatprep.mubr.bf16.mxu0 %v3288
        %4155 = vmatmul.mubr.bf16.gmra.mrb[0].mxu0 %v3168
        %v4156 = vpop.f32.mrb[0].mxu0
        %v4157 = vadd.f32 0.0, %v4156
        %v4158 = vpop.f32.mrb[0].mxu0
        %v4159 = vpop.f32.mrb[0].mxu0
        %v4160 = vadd.f32 0.0, %v4159
        %v4161 = vpop.f32.mrb[0].mxu0
        %4162 = vmatprep.mubr.bf16.mxu0 %v3292
        %4163 = vmatmul.mubr.bf16.gmra.mrb[0].mxu0 %v3171
        %v4164 = vpop.f32.mrb[0].mxu0
        %v4165 = vadd.f32 0.0, %v4164
        %v4166 = vpop.f32.mrb[0].mxu0
        %v4167 = vpop.f32.mrb[0].mxu0
        %v4168 = vadd.f32 0.0, %v4167
        %v4169 = vpop.f32.mrb[0].mxu0
        %4170 = vmatprep.mubr.bf16.mxu0 %v3296
        %4171 = vmatmul.mubr.bf16.gmra.mrb[0].mxu0 %v3174
        %v4172 = vpop.f32.mrb[0].mxu0
        %v4173 = vadd.f32 0.0, %v4172
        %v4174 = vpop.f32.mrb[0].mxu0
        %v4175 = vpop.f32.mrb[0].mxu0
        %v4176 = vadd.f32 0.0, %v4175
        %v4177 = vpop.f32.mrb[0].mxu0
        %4178 = vmatprep.mubr.bf16.mxu0 %v3300
        %4179 = vmatmul.mubr.bf16.gmra.mrb[0].mxu0 %v3177
        %v4180 = vpop.f32.mrb[0].mxu0
        %v4181 = vadd.f32 0.0, %v4180
        %v4182 = vpop.f32.mrb[0].mxu0
        %v4183 = vpop.f32.mrb[0].mxu0
        %v4184 = vadd.f32 0.0, %v4183
        %v4185 = vpop.f32.mrb[0].mxu0
        %4186 = vmatprep.mubr.bf16.mxu0 %v3304
        %4187 = vmatmul.mubr.bf16.gmra.mrb[0].mxu0 %v3180
        %v4188 = vpop.f32.mrb[0].mxu0
        %v4189 = vadd.f32 0.0, %v4188
        %v4190 = vpop.f32.mrb[0].mxu0
        %v4191 = vpop.f32.mrb[0].mxu0
        %v4192 = vadd.f32 0.0, %v4191
        %v4193 = vpop.f32.mrb[0].mxu0
        %4194 = vmatprep.mubr.bf16.mxu0 %v3308
        %4195 = vmatmul.mubr.bf16.gmra.mrb[0].mxu0 %v3183
        %v4196 = vpop.f32.mrb[0].mxu0
        %v4197 = vadd.f32 0.0, %v4196
        %v4198 = vpop.f32.mrb[0].mxu0
        %v4199 = vpop.f32.mrb[0].mxu0
        %v4200 = vadd.f32 0.0, %v4199
        %v4201 = vpop.f32.mrb[0].mxu0
        %4202 = vmatprep.mubr.bf16.mxu0 %v3312
        %4203 = vmatmul.mubr.bf16.gmra.mrb[0].mxu0 %v3186
        %v4204 = vpop.f32.mrb[0].mxu0
        %v4205 = vadd.f32 0.0, %v4204
        %v4206 = vpop.f32.mrb[0].mxu0
        %v4207 = vpop.f32.mrb[0].mxu0
        %v4208 = vadd.f32 0.0, %v4207
        %v4209 = vpop.f32.mrb[0].mxu0
        %4210 = vmatprep.mubr.bf16.mxu0 %v3316
        %4211 = vmatmul.mubr.bf16.gmra.mrb[0].mxu0 %v3189
        %v4212 = vpop.f32.mrb[0].mxu0
        %v4213 = vadd.f32 0.0, %v4212
        %v4214 = vpop.f32.mrb[0].mxu0
        %v4215 = vpop.f32.mrb[0].mxu0
        %v4216 = vadd.f32 0.0, %v4215
        %v4217 = vpop.f32.mrb[0].mxu0
        %4218 = vmatprep.mubr.bf16.mxu0 %v3320
        %4219 = vmatmul.mubr.bf16.gmra.mrb[0].mxu0 %v3192
        %v4220 = vpop.f32.mrb[0].mxu0
        %v4221 = vadd.f32 0.0, %v4220
        %v4222 = vpop.f32.mrb[0].mxu0
        %v4223 = vpop.f32.mrb[0].mxu0
        %v4224 = vadd.f32 0.0, %v4223
        %v4225 = vpop.f32.mrb[0].mxu0
        %4226 = vmatprep.mubr.bf16.mxu0 %v3324
        %4227 = vmatmul.mubr.bf16.gmra.mrb[0].mxu0 %v3195
        %v4228 = vpop.f32.mrb[0].mxu0
        %v4229 = vadd.f32 0.0, %v4228
        %v4230 = vpop.f32.mrb[0].mxu0
        %v4231 = vpop.f32.mrb[0].mxu0
        %v4232 = vadd.f32 0.0, %v4231
        %v4233 = vpop.f32.mrb[0].mxu0
        %4234 = vmatprep.mubr.bf16.mxu0 %v3328
        %4235 = vmatmul.mubr.bf16.gmra.mrb[0].mxu0 %v3198
        %v4236 = vpop.f32.mrb[0].mxu0
        %v4237 = vadd.f32 0.0, %v4236
        %v4238 = vpop.f32.mrb[0].mxu0
        %v4239 = vpop.f32.mrb[0].mxu0
        %v4240 = vadd.f32 0.0, %v4239
        %v4241 = vpop.f32.mrb[0].mxu0
        %4242 = vmatprep.mubr.bf16.mxu0 %v3332
        %4243 = vmatmul.mubr.bf16.gmra.mrb[0].mxu0 %v3201
        %v4244 = vpop.f32.mrb[0].mxu0
        %v4245 = vadd.f32 0.0, %v4244
        %v4246 = vpop.f32.mrb[0].mxu0
        %v4247 = vpop.f32.mrb[0].mxu0
        %v4248 = vadd.f32 0.0, %v4247
        %v4249 = vpop.f32.mrb[0].mxu0
        %4250 = vmatprep.mubr.bf16.mxu0 %v3336
        %4251 = vmatmul.mubr.bf16.gmra.mrb[0].mxu0 %v3204
        %v4252 = vpop.f32.mrb[0].mxu0
        %v4253 = vadd.f32 0.0, %v4252
        %v4254 = vpop.f32.mrb[0].mxu0
        %v4255 = vpop.f32.mrb[0].mxu0
        %v4256 = vadd.f32 0.0, %v4255
        %v4257 = vpop.f32.mrb[0].mxu0
        %4258 = vmatprep.mubr.bf16.mxu0 %v3340
        %4259 = vmatmul.mubr.bf16.gmra.mrb[0].mxu0 %v3207
        %v4260 = vpop.f32.mrb[0].mxu0
        %v4261 = vadd.f32 0.0, %v4260
        %v4262 = vpop.f32.mrb[0].mxu0
        %v4263 = vpop.f32.mrb[0].mxu0
        %v4264 = vadd.f32 0.0, %v4263
        %v4265 = vpop.f32.mrb[0].mxu0
        %4266 = vmatprep.mubr.bf16.mxu0 %v3344
        %4267 = vmatmul.mubr.bf16.gmra.mrb[0].mxu0 %v3210
        %v4268 = vpop.f32.mrb[0].mxu0
        %v4269 = vadd.f32 0.0, %v4268
        %v4270 = vpop.f32.mrb[0].mxu0
        %v4271 = vpop.f32.mrb[0].mxu0
        %v4272 = vadd.f32 0.0, %v4271
        %v4273 = vpop.f32.mrb[0].mxu0
        %4274 = vmatprep.mubr.bf16.mxu0 %v3348
        %4275 = vmatmul.mubr.bf16.gmra.mrb[0].mxu0 %v3213
        %v4276 = vpop.f32.mrb[0].mxu0
        %v4277 = vadd.f32 0.0, %v4276
        %v4278 = vpop.f32.mrb[0].mxu0
        %v4279 = vpop.f32.mrb[0].mxu0
        %v4280 = vadd.f32 0.0, %v4279
        %v4281 = vpop.f32.mrb[0].mxu0
        %4282 = vmatprep.mubr.bf16.mxu0 %v3352
        %4283 = vmatmul.mubr.bf16.gmra.mrb[0].mxu0 %v3216
        %v4284 = vpop.f32.mrb[0].mxu0
        %v4285 = vadd.f32 0.0, %v4284
        %v4286 = vpop.f32.mrb[0].mxu0
        %v4287 = vpop.f32.mrb[0].mxu0
        %v4288 = vadd.f32 0.0, %v4287
        %v4289 = vpop.f32.mrb[0].mxu0
        %4290 = vmatprep.mubr.bf16.mxu0 %v3356
        %4291 = vmatmul.mubr.bf16.gmra.mrb[0].mxu0 %v3219
        %v4292 = vpop.f32.mrb[0].mxu0
        %v4293 = vadd.f32 0.0, %v4292
        %v4294 = vpop.f32.mrb[0].mxu0
        %v4295 = vpop.f32.mrb[0].mxu0
        %v4296 = vadd.f32 0.0, %v4295
        %v4297 = vpop.f32.mrb[0].mxu0
        %4298 = vmatprep.mubr.bf16.mxu0 %v3360
        %4299 = vmatmul.mubr.bf16.gmra.mrb[0].mxu0 %v3222
        %v4300 = vpop.f32.mrb[0].mxu0
        %v4301 = vadd.f32 0.0, %v4300
        %v4302 = vpop.f32.mrb[0].mxu0
        %v4303 = vpop.f32.mrb[0].mxu0
        %v4304 = vadd.f32 0.0, %v4303
        %v4305 = vpop.f32.mrb[0].mxu0
        %4306 = vmatprep.mubr.bf16.mxu0 %v3364
        %4307 = vmatmul.mubr.bf16.gmra.mrb[0].mxu0 %v3225
        %v4308 = vpop.f32.mrb[0].mxu0
        %v4309 = vadd.f32 0.0, %v4308
        %v4310 = vpop.f32.mrb[0].mxu0
        %v4311 = vpop.f32.mrb[0].mxu0
        %v4312 = vadd.f32 0.0, %v4311
        %v4313 = vpop.f32.mrb[0].mxu0
        %4314 = vmatprep.mubr.bf16.mxu0 %v3368
        %4315 = vmatmul.mubr.bf16.gmra.mrb[0].mxu0 %v3228
        %v4316 = vpop.f32.mrb[0].mxu0
        %v4317 = vadd.f32 0.0, %v4316
        %v4318 = vpop.f32.mrb[0].mxu0
        %v4319 = vpop.f32.mrb[0].mxu0
        %v4320 = vadd.f32 0.0, %v4319
        %v4321 = vpop.f32.mrb[0].mxu0
        %4322 = vmatprep.mubr.bf16.mxu0 %v3372
        %4323 = vmatmul.mubr.bf16.gmra.mrb[0].mxu0 %v3231
        %v4324 = vpop.f32.mrb[0].mxu0
        %v4325 = vadd.f32 0.0, %v4324
        %v4326 = vpop.f32.mrb[0].mxu0
        %v4327 = vpop.f32.mrb[0].mxu0
        %v4328 = vadd.f32 0.0, %v4327
        %v4329 = vpop.f32.mrb[0].mxu0
        %4330 = vmatprep.mubr.bf16.mxu0 %v3376
        %4331 = vmatmul.mubr.bf16.gmra.mrb[0].mxu0 %v3234
        %v4332 = vpop.f32.mrb[0].mxu0
        %v4333 = vadd.f32 0.0, %v4332
        %v4334 = vpop.f32.mrb[0].mxu0
        %v4335 = vpop.f32.mrb[0].mxu0
        %v4336 = vadd.f32 0.0, %v4335
        %v4337 = vpop.f32.mrb[0].mxu0
        %4338 = vmatprep.mubr.bf16.mxu0 %v3380
        %4339 = vmatmul.mubr.bf16.gmra.mrb[0].mxu0 %v3237
        %v4340 = vpop.f32.mrb[0].mxu0
        %v4341 = vadd.f32 0.0, %v4340
        %v4342 = vpop.f32.mrb[0].mxu0
        %v4343 = vpop.f32.mrb[0].mxu0
        %v4344 = vadd.f32 0.0, %v4343
        %v4345 = vpop.f32.mrb[0].mxu0
        %4346 = vmatprep.mubr.bf16.mxu0 %v3384
        %4347 = vmatmul.mubr.bf16.gmra.mrb[0].mxu0 %v3240
        %v4348 = vpop.f32.mrb[0].mxu0
        %v4349 = vadd.f32 0.0, %v4348
        %v4350 = vpop.f32.mrb[0].mxu0
        %v4351 = vpop.f32.mrb[0].mxu0
        %v4352 = vadd.f32 0.0, %v4351
        %v4353 = vpop.f32.mrb[0].mxu0
        %4354 = vdwg.mxu0
        %4355 = vmatprep.subr.bf16.mxu0 0
        %4356 = vmatpush1.bf16.msra.mxu0 %v3870
        %4357 = vmatprep.subr.bf16.mxu0 0
        %4358 = vmatpush1.bf16.msra.mxu0 %v3871
        %4359 = vmatprep.subr.bf16.mxu0 0
        %4360 = vmatpush1.bf16.msra.mxu0 %v3872
        %4361 = vmatprep.subr.bf16.mxu0 0
        %4362 = vmatpush1.bf16.msra.mxu0 %v3873
        %4363 = vmatprep.subr.bf16.mxu0 0
        %4364 = vmatpush1.bf16.msra.mxu0 %v3874
        %4365 = vmatprep.subr.bf16.mxu0 0
        %4366 = vmatpush1.bf16.msra.mxu0 %v3875
        %4367 = vmatprep.subr.bf16.mxu0 0
        %4368 = vmatpush1.bf16.msra.mxu0 %v3876
        %4369 = vmatprep.subr.bf16.mxu0 0
        %4370 = vmatpush1.bf16.msra.mxu0 %v3877
        %4371 = vmatprep.subr.bf16.mxu0 0
        %4372 = vmatpush1.bf16.msra.mxu0 %v3878
        %4373 = vmatprep.subr.bf16.mxu0 0
        %4374 = vmatpush1.bf16.msra.mxu0 %v3879
        %4375 = vmatprep.subr.bf16.mxu0 0
        %4376 = vmatpush1.bf16.msra.mxu0 %v3880
        %4377 = vmatprep.subr.bf16.mxu0 0
        %4378 = vmatpush1.bf16.msra.mxu0 %v3881
        %4379 = vmatprep.subr.bf16.mxu0 0
        %4380 = vmatpush1.bf16.msra.mxu0 %v3882
        %4381 = vmatprep.subr.bf16.mxu0 0
        %4382 = vmatpush1.bf16.msra.mxu0 %v3883
        %4383 = vmatprep.subr.bf16.mxu0 0
        %4384 = vmatpush1.bf16.msra.mxu0 %v3884
        %4385 = vmatprep.subr.bf16.mxu0 0
        %4386 = vmatpush1.bf16.msra.mxu0 %v3885
        %4387 = vmatprep.mubr.bf16.mxu0 %v3531
        %4388 = vmatmul.mubr.bf16.gmra.mrb[0].mxu0 %v3388
        %v4389 = vpop.f32.mrb[0].mxu0
        %v4390 = vadd.f32 %v4069, %v4389
        %v4391 = vpop.f32.mrb[0].mxu0
        %v4392 = vpop.f32.mrb[0].mxu0
        %v4393 = vadd.f32 %v4072, %v4392
        %v4394 = vpop.f32.mrb[0].mxu0
        %4395 = vmatprep.mubr.bf16.mxu0 %v3534
        %4396 = vmatmul.mubr.bf16.gmra.mrb[0].mxu0 %v3392
        %v4397 = vpop.f32.mrb[0].mxu0
        %v4398 = vadd.f32 %v4077, %v4397
        %v4399 = vpop.f32.mrb[0].mxu0
        %v4400 = vpop.f32.mrb[0].mxu0
        %v4401 = vadd.f32 %v4080, %v4400
        %v4402 = vpop.f32.mrb[0].mxu0
        %4403 = vmatprep.mubr.bf16.mxu0 %v3537
        %4404 = vmatmul.mubr.bf16.gmra.mrb[0].mxu0 %v3396
        %v4405 = vpop.f32.mrb[0].mxu0
        %v4406 = vadd.f32 %v4085, %v4405
        %v4407 = vpop.f32.mrb[0].mxu0
        %v4408 = vpop.f32.mrb[0].mxu0
        %v4409 = vadd.f32 %v4088, %v4408
        %v4410 = vpop.f32.mrb[0].mxu0
        %4411 = vmatprep.mubr.bf16.mxu0 %v3540
        %4412 = vmatmul.mubr.bf16.gmra.mrb[0].mxu0 %v3400
        %v4413 = vpop.f32.mrb[0].mxu0
        %v4414 = vadd.f32 %v4093, %v4413
        %v4415 = vpop.f32.mrb[0].mxu0
        %v4416 = vpop.f32.mrb[0].mxu0
        %v4417 = vadd.f32 %v4096, %v4416
        %v4418 = vpop.f32.mrb[0].mxu0
        %4419 = vmatprep.mubr.bf16.mxu0 %v3543
        %4420 = vmatmul.mubr.bf16.gmra.mrb[0].mxu0 %v3404
        %v4421 = vpop.f32.mrb[0].mxu0
        %v4422 = vadd.f32 %v4101, %v4421
        %v4423 = vpop.f32.mrb[0].mxu0
        %v4424 = vpop.f32.mrb[0].mxu0
        %v4425 = vadd.f32 %v4104, %v4424
        %v4426 = vpop.f32.mrb[0].mxu0
        %4427 = vmatprep.mubr.bf16.mxu0 %v3546
        %4428 = vmatmul.mubr.bf16.gmra.mrb[0].mxu0 %v3408
        %v4429 = vpop.f32.mrb[0].mxu0
        %v4430 = vadd.f32 %v4109, %v4429
        %v4431 = vpop.f32.mrb[0].mxu0
        %v4432 = vpop.f32.mrb[0].mxu0
        %v4433 = vadd.f32 %v4112, %v4432
        %v4434 = vpop.f32.mrb[0].mxu0
        %4435 = vmatprep.mubr.bf16.mxu0 %v3549
        %4436 = vmatmul.mubr.bf16.gmra.mrb[0].mxu0 %v3412
        %v4437 = vpop.f32.mrb[0].mxu0
        %v4438 = vadd.f32 %v4117, %v4437
        %v4439 = vpop.f32.mrb[0].mxu0
        %v4440 = vpop.f32.mrb[0].mxu0
        %v4441 = vadd.f32 %v4120, %v4440
        %v4442 = vpop.f32.mrb[0].mxu0
        %4443 = vmatprep.mubr.bf16.mxu0 %v3552
        %4444 = vmatmul.mubr.bf16.gmra.mrb[0].mxu0 %v3416
        %v4445 = vpop.f32.mrb[0].mxu0
        %v4446 = vadd.f32 %v4125, %v4445
        %v4447 = vpop.f32.mrb[0].mxu0
        %v4448 = vpop.f32.mrb[0].mxu0
        %v4449 = vadd.f32 %v4128, %v4448
        %v4450 = vpop.f32.mrb[0].mxu0
        %4451 = vmatprep.mubr.bf16.mxu0 %v3555
        %4452 = vmatmul.mubr.bf16.gmra.mrb[0].mxu0 %v3420
        %v4453 = vpop.f32.mrb[0].mxu0
        %v4454 = vadd.f32 %v4133, %v4453
        %v4455 = vpop.f32.mrb[0].mxu0
        %v4456 = vpop.f32.mrb[0].mxu0
        %v4457 = vadd.f32 %v4136, %v4456
        %v4458 = vpop.f32.mrb[0].mxu0
        %4459 = vmatprep.mubr.bf16.mxu0 %v3558
        %4460 = vmatmul.mubr.bf16.gmra.mrb[0].mxu0 %v3424
        %v4461 = vpop.f32.mrb[0].mxu0
        %v4462 = vadd.f32 %v4141, %v4461
        %v4463 = vpop.f32.mrb[0].mxu0
        %v4464 = vpop.f32.mrb[0].mxu0
        %v4465 = vadd.f32 %v4144, %v4464
        %v4466 = vpop.f32.mrb[0].mxu0
        %4467 = vmatprep.mubr.bf16.mxu0 %v3561
        %4468 = vmatmul.mubr.bf16.gmra.mrb[0].mxu0 %v3428
        %v4469 = vpop.f32.mrb[0].mxu0
        %v4470 = vadd.f32 %v4149, %v4469
        %v4471 = vpop.f32.mrb[0].mxu0
        %v4472 = vpop.f32.mrb[0].mxu0
        %v4473 = vadd.f32 %v4152, %v4472
        %v4474 = vpop.f32.mrb[0].mxu0
        %4475 = vmatprep.mubr.bf16.mxu0 %v3564
        %4476 = vmatmul.mubr.bf16.gmra.mrb[0].mxu0 %v3432
        %v4477 = vpop.f32.mrb[0].mxu0
        %v4478 = vadd.f32 %v4157, %v4477
        %v4479 = vpop.f32.mrb[0].mxu0
        %v4480 = vpop.f32.mrb[0].mxu0
        %v4481 = vadd.f32 %v4160, %v4480
        %v4482 = vpop.f32.mrb[0].mxu0
        %4483 = vmatprep.mubr.bf16.mxu0 %v3567
        %4484 = vmatmul.mubr.bf16.gmra.mrb[0].mxu0 %v3436
        %v4485 = vpop.f32.mrb[0].mxu0
        %v4486 = vadd.f32 %v4165, %v4485
        %v4487 = vpop.f32.mrb[0].mxu0
        %v4488 = vpop.f32.mrb[0].mxu0
        %v4489 = vadd.f32 %v4168, %v4488
        %v4490 = vpop.f32.mrb[0].mxu0
        %4491 = vmatprep.mubr.bf16.mxu0 %v3570
        %4492 = vmatmul.mubr.bf16.gmra.mrb[0].mxu0 %v3440
        %v4493 = vpop.f32.mrb[0].mxu0
        %v4494 = vadd.f32 %v4173, %v4493
        %v4495 = vpop.f32.mrb[0].mxu0
        %v4496 = vpop.f32.mrb[0].mxu0
        %v4497 = vadd.f32 %v4176, %v4496
        %v4498 = vpop.f32.mrb[0].mxu0
        %4499 = vmatprep.mubr.bf16.mxu0 %v3573
        %4500 = vmatmul.mubr.bf16.gmra.mrb[0].mxu0 %v3444
        %v4501 = vpop.f32.mrb[0].mxu0
        %v4502 = vadd.f32 %v4181, %v4501
        %v4503 = vpop.f32.mrb[0].mxu0
        %v4504 = vpop.f32.mrb[0].mxu0
        %v4505 = vadd.f32 %v4184, %v4504
        %v4506 = vpop.f32.mrb[0].mxu0
        %4507 = vmatprep.mubr.bf16.mxu0 %v3576
        %4508 = vmatmul.mubr.bf16.gmra.mrb[0].mxu0 %v3448
        %v4509 = vpop.f32.mrb[0].mxu0
        %v4510 = vadd.f32 %v4189, %v4509
        %v4511 = vpop.f32.mrb[0].mxu0
        %v4512 = vpop.f32.mrb[0].mxu0
        %v4513 = vadd.f32 %v4192, %v4512
        %v4514 = vpop.f32.mrb[0].mxu0
        %4515 = vmatprep.mubr.bf16.mxu0 %v3579
        %4516 = vmatmul.mubr.bf16.gmra.mrb[0].mxu0 %v3452
        %v4517 = vpop.f32.mrb[0].mxu0
        %v4518 = vadd.f32 %v4197, %v4517
        %v4519 = vpop.f32.mrb[0].mxu0
        %v4520 = vpop.f32.mrb[0].mxu0
        %v4521 = vadd.f32 %v4200, %v4520
        %v4522 = vpop.f32.mrb[0].mxu0
        %4523 = vmatprep.mubr.bf16.mxu0 %v3582
        %4524 = vmatmul.mubr.bf16.gmra.mrb[0].mxu0 %v3456
        %v4525 = vpop.f32.mrb[0].mxu0
        %v4526 = vadd.f32 %v4205, %v4525
        %v4527 = vpop.f32.mrb[0].mxu0
        %v4528 = vpop.f32.mrb[0].mxu0
        %v4529 = vadd.f32 %v4208, %v4528
        %v4530 = vpop.f32.mrb[0].mxu0
        %4531 = vmatprep.mubr.bf16.mxu0 %v3585
        %4532 = vmatmul.mubr.bf16.gmra.mrb[0].mxu0 %v3460
        %v4533 = vpop.f32.mrb[0].mxu0
        %v4534 = vadd.f32 %v4213, %v4533
        %v4535 = vpop.f32.mrb[0].mxu0
        %v4536 = vpop.f32.mrb[0].mxu0
        %v4537 = vadd.f32 %v4216, %v4536
        %v4538 = vpop.f32.mrb[0].mxu0
        %4539 = vmatprep.mubr.bf16.mxu0 %v3588
        %4540 = vmatmul.mubr.bf16.gmra.mrb[0].mxu0 %v3464
        %v4541 = vpop.f32.mrb[0].mxu0
        %v4542 = vadd.f32 %v4221, %v4541
        %v4543 = vpop.f32.mrb[0].mxu0
        %v4544 = vpop.f32.mrb[0].mxu0
        %v4545 = vadd.f32 %v4224, %v4544
        %v4546 = vpop.f32.mrb[0].mxu0
        %4547 = vmatprep.mubr.bf16.mxu0 %v3591
        %4548 = vmatmul.mubr.bf16.gmra.mrb[0].mxu0 %v3468
        %v4549 = vpop.f32.mrb[0].mxu0
        %v4550 = vadd.f32 %v4229, %v4549
        %v4551 = vpop.f32.mrb[0].mxu0
        %v4552 = vpop.f32.mrb[0].mxu0
        %v4553 = vadd.f32 %v4232, %v4552
        %v4554 = vpop.f32.mrb[0].mxu0
        %4555 = vmatprep.mubr.bf16.mxu0 %v3594
        %4556 = vmatmul.mubr.bf16.gmra.mrb[0].mxu0 %v3472
        %v4557 = vpop.f32.mrb[0].mxu0
        %v4558 = vadd.f32 %v4237, %v4557
        %v4559 = vpop.f32.mrb[0].mxu0
        %v4560 = vpop.f32.mrb[0].mxu0
        %v4561 = vadd.f32 %v4240, %v4560
        %v4562 = vpop.f32.mrb[0].mxu0
        %4563 = vmatprep.mubr.bf16.mxu0 %v3597
        %4564 = vmatmul.mubr.bf16.gmra.mrb[0].mxu0 %v3476
        %v4565 = vpop.f32.mrb[0].mxu0
        %v4566 = vadd.f32 %v4245, %v4565
        %v4567 = vpop.f32.mrb[0].mxu0
        %v4568 = vpop.f32.mrb[0].mxu0
        %v4569 = vadd.f32 %v4248, %v4568
        %v4570 = vpop.f32.mrb[0].mxu0
        %4571 = vmatprep.mubr.bf16.mxu0 %v3600
        %4572 = vmatmul.mubr.bf16.gmra.mrb[0].mxu0 %v3480
        %v4573 = vpop.f32.mrb[0].mxu0
        %v4574 = vadd.f32 %v4253, %v4573
        %v4575 = vpop.f32.mrb[0].mxu0
        %v4576 = vpop.f32.mrb[0].mxu0
        %v4577 = vadd.f32 %v4256, %v4576
        %v4578 = vpop.f32.mrb[0].mxu0
        %4579 = vmatprep.mubr.bf16.mxu0 %v3603
        %4580 = vmatmul.mubr.bf16.gmra.mrb[0].mxu0 %v3484
        %v4581 = vpop.f32.mrb[0].mxu0
        %v4582 = vadd.f32 %v4261, %v4581
        %v4583 = vpop.f32.mrb[0].mxu0
        %v4584 = vpop.f32.mrb[0].mxu0
        %v4585 = vadd.f32 %v4264, %v4584
        %v4586 = vpop.f32.mrb[0].mxu0
        %4587 = vmatprep.mubr.bf16.mxu0 %v3606
        %4588 = vmatmul.mubr.bf16.gmra.mrb[0].mxu0 %v3488
        %v4589 = vpop.f32.mrb[0].mxu0
        %v4590 = vadd.f32 %v4269, %v4589
        %v4591 = vpop.f32.mrb[0].mxu0
        %v4592 = vpop.f32.mrb[0].mxu0
        %v4593 = vadd.f32 %v4272, %v4592
        %v4594 = vpop.f32.mrb[0].mxu0
        %4595 = vmatprep.mubr.bf16.mxu0 %v3609
        %4596 = vmatmul.mubr.bf16.gmra.mrb[0].mxu0 %v3492
        %v4597 = vpop.f32.mrb[0].mxu0
        %v4598 = vadd.f32 %v4277, %v4597
        %v4599 = vpop.f32.mrb[0].mxu0
        %v4600 = vpop.f32.mrb[0].mxu0
        %v4601 = vadd.f32 %v4280, %v4600
        %v4602 = vpop.f32.mrb[0].mxu0
        %4603 = vmatprep.mubr.bf16.mxu0 %v3612
        %4604 = vmatmul.mubr.bf16.gmra.mrb[0].mxu0 %v3496
        %v4605 = vpop.f32.mrb[0].mxu0
        %v4606 = vadd.f32 %v4285, %v4605
        %v4607 = vpop.f32.mrb[0].mxu0
        %v4608 = vpop.f32.mrb[0].mxu0
        %v4609 = vadd.f32 %v4288, %v4608
        %v4610 = vpop.f32.mrb[0].mxu0
        %4611 = vmatprep.mubr.bf16.mxu0 %v3615
        %4612 = vmatmul.mubr.bf16.gmra.mrb[0].mxu0 %v3500
        %v4613 = vpop.f32.mrb[0].mxu0
        %v4614 = vadd.f32 %v4293, %v4613
        %v4615 = vpop.f32.mrb[0].mxu0
        %v4616 = vpop.f32.mrb[0].mxu0
        %v4617 = vadd.f32 %v4296, %v4616
        %v4618 = vpop.f32.mrb[0].mxu0
        %4619 = vmatprep.mubr.bf16.mxu0 %v3618
        %4620 = vmatmul.mubr.bf16.gmra.mrb[0].mxu0 %v3504
        %v4621 = vpop.f32.mrb[0].mxu0
        %v4622 = vadd.f32 %v4301, %v4621
        %v4623 = vpop.f32.mrb[0].mxu0
        %v4624 = vpop.f32.mrb[0].mxu0
        %v4625 = vadd.f32 %v4304, %v4624
        %v4626 = vpop.f32.mrb[0].mxu0
        %4627 = vmatprep.mubr.bf16.mxu0 %v3621
        %4628 = vmatmul.mubr.bf16.gmra.mrb[0].mxu0 %v3508
        %v4629 = vpop.f32.mrb[0].mxu0
        %v4630 = vadd.f32 %v4309, %v4629
        %v4631 = vpop.f32.mrb[0].mxu0
        %v4632 = vpop.f32.mrb[0].mxu0
        %v4633 = vadd.f32 %v4312, %v4632
        %v4634 = vpop.f32.mrb[0].mxu0
        %4635 = vmatprep.mubr.bf16.mxu0 %v3624
        %4636 = vmatmul.mubr.bf16.gmra.mrb[0].mxu0 %v3512
        %v4637 = vpop.f32.mrb[0].mxu0
        %v4638 = vadd.f32 %v4317, %v4637
        %v4639 = vpop.f32.mrb[0].mxu0
        %v4640 = vpop.f32.mrb[0].mxu0
        %v4641 = vadd.f32 %v4320, %v4640
        %v4642 = vpop.f32.mrb[0].mxu0
        %4643 = vmatprep.mubr.bf16.mxu0 %v3627
        %4644 = vmatmul.mubr.bf16.gmra.mrb[0].mxu0 %v3516
        %v4645 = vpop.f32.mrb[0].mxu0
        %v4646 = vadd.f32 %v4325, %v4645
        %v4647 = vpop.f32.mrb[0].mxu0
        %v4648 = vpop.f32.mrb[0].mxu0
        %v4649 = vadd.f32 %v4328, %v4648
        %v4650 = vpop.f32.mrb[0].mxu0
        %4651 = vmatprep.mubr.bf16.mxu0 %v3630
        %4652 = vmatmul.mubr.bf16.gmra.mrb[0].mxu0 %v3520
        %v4653 = vpop.f32.mrb[0].mxu0
        %v4654 = vadd.f32 %v4333, %v4653
        %v4655 = vpop.f32.mrb[0].mxu0
        %v4656 = vpop.f32.mrb[0].mxu0
        %v4657 = vadd.f32 %v4336, %v4656
        %v4658 = vpop.f32.mrb[0].mxu0
        %4659 = vmatprep.mubr.bf16.mxu0 %v3633
        %4660 = vmatmul.mubr.bf16.gmra.mrb[0].mxu0 %v3524
        %v4661 = vpop.f32.mrb[0].mxu0
        %v4662 = vadd.f32 %v4341, %v4661
        %v4663 = vpop.f32.mrb[0].mxu0
        %v4664 = vpop.f32.mrb[0].mxu0
        %v4665 = vadd.f32 %v4344, %v4664
        %v4666 = vpop.f32.mrb[0].mxu0
        %4667 = vmatprep.mubr.bf16.mxu0 %v3636
        %4668 = vmatmul.mubr.bf16.gmra.mrb[0].mxu0 %v3528
        %v4669 = vpop.f32.mrb[0].mxu0
        %v4670 = vadd.f32 %v4349, %v4669
        %v4671 = vpop.f32.mrb[0].mxu0
        %v4672 = vpop.f32.mrb[0].mxu0
        %v4673 = vadd.f32 %v4352, %v4672
        %v4674 = vpop.f32.mrb[0].mxu0
        %4675 = vdwg.mxu0
        %4676 = vmatprep.subr.bf16.mxu0 0
        %4677 = vmatpush1.bf16.msra.mxu0 %v3886
        %4678 = vmatprep.subr.bf16.mxu0 0
        %4679 = vmatpush1.bf16.msra.mxu0 %v3887
        %4680 = vmatprep.subr.bf16.mxu0 0
        %4681 = vmatpush1.bf16.msra.mxu0 %v3888
        %4682 = vmatprep.subr.bf16.mxu0 0
        %4683 = vmatpush1.bf16.msra.mxu0 %v3889
        %4684 = vmatprep.subr.bf16.mxu0 0
        %4685 = vmatpush1.bf16.msra.mxu0 0
        %4686 = vmatprep.subr.bf16.mxu0 0
        %4687 = vmatpush1.bf16.msra.mxu0 0
        %4688 = vmatprep.subr.bf16.mxu0 0
        %4689 = vmatpush1.bf16.msra.mxu0 0
        %4690 = vmatprep.subr.bf16.mxu0 0
        %4691 = vmatpush1.bf16.msra.mxu0 0
        %4692 = vmatprep.subr.bf16.mxu0 0
        %4693 = vmatpush1.bf16.msra.mxu0 0
        %4694 = vmatprep.subr.bf16.mxu0 0
        %4695 = vmatpush1.bf16.msra.mxu0 0
        %4696 = vmatprep.subr.bf16.mxu0 0
        %4697 = vmatpush1.bf16.msra.mxu0 0
        %4698 = vmatprep.subr.bf16.mxu0 0
        %4699 = vmatpush1.bf16.msra.mxu0 0
        %4700 = vmatprep.subr.bf16.mxu0 0
        %4701 = vmatpush1.bf16.msra.mxu0 0
        %4702 = vmatprep.subr.bf16.mxu0 0
        %4703 = vmatpush1.bf16.msra.mxu0 0
        %4704 = vmatprep.subr.bf16.mxu0 0
        %4705 = vmatpush1.bf16.msra.mxu0 0
        %4706 = vmatprep.subr.bf16.mxu0 0
        %4707 = vmatpush1.bf16.msra.mxu0 0
        %4708 = vmatprep.mubr.bf16.mxu0 0
        %4709 = vmatmul.mubr.bf16.gmra.mrb[0].mxu0 %v3927
        %v4710 = vpop.f32.mrb[0].mxu0
        %v4711 = vadd.f32 %v4390, %v4710
        %v4712 = vpop.f32.mrb[0].mxu0
        %v4713 = vpop.f32.mrb[0].mxu0
        %v4714 = vadd.f32 %v4393, %v4713
        %v4715 = vpop.f32.mrb[0].mxu0
        %4716 = vmatprep.mubr.bf16.mxu0 0
        %4717 = vmatmul.mubr.bf16.gmra.mrb[0].mxu0 %v3930
        %v4718 = vpop.f32.mrb[0].mxu0
        %v4719 = vadd.f32 %v4398, %v4718
        %v4720 = vpop.f32.mrb[0].mxu0
        %v4721 = vpop.f32.mrb[0].mxu0
        %v4722 = vadd.f32 %v4401, %v4721
        %v4723 = vpop.f32.mrb[0].mxu0
        %4724 = vmatprep.mubr.bf16.mxu0 0
        %4725 = vmatmul.mubr.bf16.gmra.mrb[0].mxu0 %v3933
        %v4726 = vpop.f32.mrb[0].mxu0
        %v4727 = vadd.f32 %v4406, %v4726
        %v4728 = vpop.f32.mrb[0].mxu0
        %v4729 = vpop.f32.mrb[0].mxu0
        %v4730 = vadd.f32 %v4409, %v4729
        %v4731 = vpop.f32.mrb[0].mxu0
        %4732 = vmatprep.mubr.bf16.mxu0 0
        %4733 = vmatmul.mubr.bf16.gmra.mrb[0].mxu0 %v3936
        %v4734 = vpop.f32.mrb[0].mxu0
        %v4735 = vadd.f32 %v4414, %v4734
        %v4736 = vpop.f32.mrb[0].mxu0
        %v4737 = vpop.f32.mrb[0].mxu0
        %v4738 = vadd.f32 %v4417, %v4737
        %v4739 = vpop.f32.mrb[0].mxu0
        %4740 = vmatprep.mubr.bf16.mxu0 0
        %4741 = vmatmul.mubr.bf16.gmra.mrb[0].mxu0 %v3939
        %v4742 = vpop.f32.mrb[0].mxu0
        %v4743 = vadd.f32 %v4422, %v4742
        %v4744 = vpop.f32.mrb[0].mxu0
        %v4745 = vpop.f32.mrb[0].mxu0
        %v4746 = vadd.f32 %v4425, %v4745
        %v4747 = vpop.f32.mrb[0].mxu0
        %4748 = vmatprep.mubr.bf16.mxu0 0
        %4749 = vmatmul.mubr.bf16.gmra.mrb[0].mxu0 %v3942
        %v4750 = vpop.f32.mrb[0].mxu0
        %v4751 = vadd.f32 %v4430, %v4750
        %v4752 = vpop.f32.mrb[0].mxu0
        %v4753 = vpop.f32.mrb[0].mxu0
        %v4754 = vadd.f32 %v4433, %v4753
        %v4755 = vpop.f32.mrb[0].mxu0
        %4756 = vmatprep.mubr.bf16.mxu0 0
        %4757 = vmatmul.mubr.bf16.gmra.mrb[0].mxu0 %v3945
        %v4758 = vpop.f32.mrb[0].mxu0
        %v4759 = vadd.f32 %v4438, %v4758
        %v4760 = vpop.f32.mrb[0].mxu0
        %v4761 = vpop.f32.mrb[0].mxu0
        %v4762 = vadd.f32 %v4441, %v4761
        %v4763 = vpop.f32.mrb[0].mxu0
        %4764 = vmatprep.mubr.bf16.mxu0 0
        %4765 = vmatmul.mubr.bf16.gmra.mrb[0].mxu0 %v3948
        %v4766 = vpop.f32.mrb[0].mxu0
        %v4767 = vadd.f32 %v4446, %v4766
        %v4768 = vpop.f32.mrb[0].mxu0
        %v4769 = vpop.f32.mrb[0].mxu0
        %v4770 = vadd.f32 %v4449, %v4769
        %v4771 = vpop.f32.mrb[0].mxu0
        %4772 = vmatprep.mubr.bf16.mxu0 0
        %4773 = vmatmul.mubr.bf16.gmra.mrb[0].mxu0 %v3951
        %v4774 = vpop.f32.mrb[0].mxu0
        %v4775 = vadd.f32 %v4454, %v4774
        %v4776 = vpop.f32.mrb[0].mxu0
        %v4777 = vpop.f32.mrb[0].mxu0
        %v4778 = vadd.f32 %v4457, %v4777
        %v4779 = vpop.f32.mrb[0].mxu0
        %4780 = vmatprep.mubr.bf16.mxu0 0
        %4781 = vmatmul.mubr.bf16.gmra.mrb[0].mxu0 %v3954
        %v4782 = vpop.f32.mrb[0].mxu0
        %v4783 = vadd.f32 %v4462, %v4782
        %v4784 = vpop.f32.mrb[0].mxu0
        %v4785 = vpop.f32.mrb[0].mxu0
        %v4786 = vadd.f32 %v4465, %v4785
        %v4787 = vpop.f32.mrb[0].mxu0
        %4788 = vmatprep.mubr.bf16.mxu0 0
        %4789 = vmatmul.mubr.bf16.gmra.mrb[0].mxu0 %v3957
        %v4790 = vpop.f32.mrb[0].mxu0
        %v4791 = vadd.f32 %v4470, %v4790
        %v4792 = vpop.f32.mrb[0].mxu0
        %v4793 = vpop.f32.mrb[0].mxu0
        %v4794 = vadd.f32 %v4473, %v4793
        %v4795 = vpop.f32.mrb[0].mxu0
        %4796 = vmatprep.mubr.bf16.mxu0 0
        %4797 = vmatmul.mubr.bf16.gmra.mrb[0].mxu0 %v3960
        %v4798 = vpop.f32.mrb[0].mxu0
        %v4799 = vadd.f32 %v4478, %v4798
        %v4800 = vpop.f32.mrb[0].mxu0
        %v4801 = vpop.f32.mrb[0].mxu0
        %v4802 = vadd.f32 %v4481, %v4801
        %v4803 = vpop.f32.mrb[0].mxu0
        %4804 = vmatprep.mubr.bf16.mxu0 0
        %4805 = vmatmul.mubr.bf16.gmra.mrb[0].mxu0 %v3963
        %v4806 = vpop.f32.mrb[0].mxu0
        %v4807 = vadd.f32 %v4486, %v4806
        %v4808 = vpop.f32.mrb[0].mxu0
        %v4809 = vpop.f32.mrb[0].mxu0
        %v4810 = vadd.f32 %v4489, %v4809
        %v4811 = vpop.f32.mrb[0].mxu0
        %4812 = vmatprep.mubr.bf16.mxu0 0
        %4813 = vmatmul.mubr.bf16.gmra.mrb[0].mxu0 %v3966
        %v4814 = vpop.f32.mrb[0].mxu0
        %v4815 = vadd.f32 %v4494, %v4814
        %v4816 = vpop.f32.mrb[0].mxu0
        %v4817 = vpop.f32.mrb[0].mxu0
        %v4818 = vadd.f32 %v4497, %v4817
        %v4819 = vpop.f32.mrb[0].mxu0
        %4820 = vmatprep.mubr.bf16.mxu0 0
        %4821 = vmatmul.mubr.bf16.gmra.mrb[0].mxu0 %v3969
        %v4822 = vpop.f32.mrb[0].mxu0
        %v4823 = vadd.f32 %v4502, %v4822
        %v4824 = vpop.f32.mrb[0].mxu0
        %v4825 = vpop.f32.mrb[0].mxu0
        %v4826 = vadd.f32 %v4505, %v4825
        %v4827 = vpop.f32.mrb[0].mxu0
        %4828 = vmatprep.mubr.bf16.mxu0 0
        %4829 = vmatmul.mubr.bf16.gmra.mrb[0].mxu0 %v3972
        %v4830 = vpop.f32.mrb[0].mxu0
        %v4831 = vadd.f32 %v4510, %v4830
        %v4832 = vpop.f32.mrb[0].mxu0
        %v4833 = vpop.f32.mrb[0].mxu0
        %v4834 = vadd.f32 %v4513, %v4833
        %v4835 = vpop.f32.mrb[0].mxu0
        %4836 = vmatprep.mubr.bf16.mxu0 0
        %4837 = vmatmul.mubr.bf16.gmra.mrb[0].mxu0 %v3975
        %v4838 = vpop.f32.mrb[0].mxu0
        %v4839 = vadd.f32 %v4518, %v4838
        %v4840 = vpop.f32.mrb[0].mxu0
        %v4841 = vpop.f32.mrb[0].mxu0
        %v4842 = vadd.f32 %v4521, %v4841
        %v4843 = vpop.f32.mrb[0].mxu0
        %4844 = vmatprep.mubr.bf16.mxu0 0
        %4845 = vmatmul.mubr.bf16.gmra.mrb[0].mxu0 %v3978
        %v4846 = vpop.f32.mrb[0].mxu0
        %v4847 = vadd.f32 %v4526, %v4846
        %v4848 = vpop.f32.mrb[0].mxu0
        %v4849 = vpop.f32.mrb[0].mxu0
        %v4850 = vadd.f32 %v4529, %v4849
        %v4851 = vpop.f32.mrb[0].mxu0
        %4852 = vmatprep.mubr.bf16.mxu0 0
        %4853 = vmatmul.mubr.bf16.gmra.mrb[0].mxu0 %v3981
        %v4854 = vpop.f32.mrb[0].mxu0
        %v4855 = vadd.f32 %v4534, %v4854
        %v4856 = vpop.f32.mrb[0].mxu0
        %v4857 = vpop.f32.mrb[0].mxu0
        %v4858 = vadd.f32 %v4537, %v4857
        %v4859 = vpop.f32.mrb[0].mxu0
        %4860 = vmatprep.mubr.bf16.mxu0 0
        %4861 = vmatmul.mubr.bf16.gmra.mrb[0].mxu0 %v3984
        %v4862 = vpop.f32.mrb[0].mxu0
        %v4863 = vadd.f32 %v4542, %v4862
        %v4864 = vpop.f32.mrb[0].mxu0
        %v4865 = vpop.f32.mrb[0].mxu0
        %v4866 = vadd.f32 %v4545, %v4865
        %v4867 = vpop.f32.mrb[0].mxu0
        %4868 = vmatprep.mubr.bf16.mxu0 0
        %4869 = vmatmul.mubr.bf16.gmra.mrb[0].mxu0 %v3987
        %v4870 = vpop.f32.mrb[0].mxu0
        %v4871 = vadd.f32 %v4550, %v4870
        %v4872 = vpop.f32.mrb[0].mxu0
        %v4873 = vpop.f32.mrb[0].mxu0
        %v4874 = vadd.f32 %v4553, %v4873
        %v4875 = vpop.f32.mrb[0].mxu0
        %4876 = vmatprep.mubr.bf16.mxu0 0
        %4877 = vmatmul.mubr.bf16.gmra.mrb[0].mxu0 %v3990
        %v4878 = vpop.f32.mrb[0].mxu0
        %v4879 = vadd.f32 %v4558, %v4878
        %v4880 = vpop.f32.mrb[0].mxu0
        %v4881 = vpop.f32.mrb[0].mxu0
        %v4882 = vadd.f32 %v4561, %v4881
        %v4883 = vpop.f32.mrb[0].mxu0
        %4884 = vmatprep.mubr.bf16.mxu0 0
        %4885 = vmatmul.mubr.bf16.gmra.mrb[0].mxu0 %v3993
        %v4886 = vpop.f32.mrb[0].mxu0
        %v4887 = vadd.f32 %v4566, %v4886
        %v4888 = vpop.f32.mrb[0].mxu0
        %v4889 = vpop.f32.mrb[0].mxu0
        %v4890 = vadd.f32 %v4569, %v4889
        %v4891 = vpop.f32.mrb[0].mxu0
        %4892 = vmatprep.mubr.bf16.mxu0 0
        %4893 = vmatmul.mubr.bf16.gmra.mrb[0].mxu0 %v3996
        %v4894 = vpop.f32.mrb[0].mxu0
        %v4895 = vadd.f32 %v4574, %v4894
        %v4896 = vpop.f32.mrb[0].mxu0
        %v4897 = vpop.f32.mrb[0].mxu0
        %v4898 = vadd.f32 %v4577, %v4897
        %v4899 = vpop.f32.mrb[0].mxu0
        %4900 = vmatprep.mubr.bf16.mxu0 0
        %4901 = vmatmul.mubr.bf16.gmra.mrb[0].mxu0 %v3999
        %v4902 = vpop.f32.mrb[0].mxu0
        %v4903 = vadd.f32 %v4582, %v4902
        %v4904 = vpop.f32.mrb[0].mxu0
        %v4905 = vpop.f32.mrb[0].mxu0
        %v4906 = vadd.f32 %v4585, %v4905
        %v4907 = vpop.f32.mrb[0].mxu0
        %4908 = vmatprep.mubr.bf16.mxu0 0
        %4909 = vmatmul.mubr.bf16.gmra.mrb[0].mxu0 %v4002
        %v4910 = vpop.f32.mrb[0].mxu0
        %v4911 = vadd.f32 %v4590, %v4910
        %v4912 = vpop.f32.mrb[0].mxu0
        %v4913 = vpop.f32.mrb[0].mxu0
        %v4914 = vadd.f32 %v4593, %v4913
        %v4915 = vpop.f32.mrb[0].mxu0
        %4916 = vmatprep.mubr.bf16.mxu0 0
        %4917 = vmatmul.mubr.bf16.gmra.mrb[0].mxu0 %v4005
        %v4918 = vpop.f32.mrb[0].mxu0
        %v4919 = vadd.f32 %v4598, %v4918
        %v4920 = vpop.f32.mrb[0].mxu0
        %v4921 = vpop.f32.mrb[0].mxu0
        %v4922 = vadd.f32 %v4601, %v4921
        %v4923 = vpop.f32.mrb[0].mxu0
        %4924 = vmatprep.mubr.bf16.mxu0 0
        %4925 = vmatmul.mubr.bf16.gmra.mrb[0].mxu0 %v4008
        %v4926 = vpop.f32.mrb[0].mxu0
        %v4927 = vadd.f32 %v4606, %v4926
        %v4928 = vpop.f32.mrb[0].mxu0
        %v4929 = vpop.f32.mrb[0].mxu0
        %v4930 = vadd.f32 %v4609, %v4929
        %v4931 = vpop.f32.mrb[0].mxu0
        %4932 = vmatprep.mubr.bf16.mxu0 0
        %4933 = vmatmul.mubr.bf16.gmra.mrb[0].mxu0 %v4011
        %v4934 = vpop.f32.mrb[0].mxu0
        %v4935 = vadd.f32 %v4614, %v4934
        %v4936 = vpop.f32.mrb[0].mxu0
        %v4937 = vpop.f32.mrb[0].mxu0
        %v4938 = vadd.f32 %v4617, %v4937
        %v4939 = vpop.f32.mrb[0].mxu0
        %4940 = vmatprep.mubr.bf16.mxu0 0
        %4941 = vmatmul.mubr.bf16.gmra.mrb[0].mxu0 %v4014
        %v4942 = vpop.f32.mrb[0].mxu0
        %v4943 = vadd.f32 %v4622, %v4942
        %v4944 = vpop.f32.mrb[0].mxu0
        %v4945 = vpop.f32.mrb[0].mxu0
        %v4946 = vadd.f32 %v4625, %v4945
        %v4947 = vpop.f32.mrb[0].mxu0
        %4948 = vmatprep.mubr.bf16.mxu0 0
        %4949 = vmatmul.mubr.bf16.gmra.mrb[0].mxu0 %v4017
        %v4950 = vpop.f32.mrb[0].mxu0
        %v4951 = vadd.f32 %v4630, %v4950
        %v4952 = vpop.f32.mrb[0].mxu0
        %v4953 = vpop.f32.mrb[0].mxu0
        %v4954 = vadd.f32 %v4633, %v4953
        %v4955 = vpop.f32.mrb[0].mxu0
        %4956 = vmatprep.mubr.bf16.mxu0 0
        %4957 = vmatmul.mubr.bf16.gmra.mrb[0].mxu0 %v4020
        %v4958 = vpop.f32.mrb[0].mxu0
        %v4959 = vadd.f32 %v4638, %v4958
        %v4960 = vpop.f32.mrb[0].mxu0
        %v4961 = vpop.f32.mrb[0].mxu0
        %v4962 = vadd.f32 %v4641, %v4961
        %v4963 = vpop.f32.mrb[0].mxu0
        %4964 = vmatprep.mubr.bf16.mxu0 0
        %4965 = vmatmul.mubr.bf16.gmra.mrb[0].mxu0 %v4023
        %v4966 = vpop.f32.mrb[0].mxu0
        %v4967 = vadd.f32 %v4646, %v4966
        %v4968 = vpop.f32.mrb[0].mxu0
        %v4969 = vpop.f32.mrb[0].mxu0
        %v4970 = vadd.f32 %v4649, %v4969
        %v4971 = vpop.f32.mrb[0].mxu0
        %4972 = vmatprep.mubr.bf16.mxu0 0
        %4973 = vmatmul.mubr.bf16.gmra.mrb[0].mxu0 %v4026
        %v4974 = vpop.f32.mrb[0].mxu0
        %v4975 = vadd.f32 %v4654, %v4974
        %v4976 = vpop.f32.mrb[0].mxu0
        %v4977 = vpop.f32.mrb[0].mxu0
        %v4978 = vadd.f32 %v4657, %v4977
        %v4979 = vpop.f32.mrb[0].mxu0
        %4980 = vmatprep.mubr.bf16.mxu0 0
        %4981 = vmatmul.mubr.bf16.gmra.mrb[0].mxu0 %v4029
        %v4982 = vpop.f32.mrb[0].mxu0
        %v4983 = vadd.f32 %v4662, %v4982
        %v4984 = vpop.f32.mrb[0].mxu0
        %v4985 = vpop.f32.mrb[0].mxu0
        %v4986 = vadd.f32 %v4665, %v4985
        %v4987 = vpop.f32.mrb[0].mxu0
        %4988 = vmatprep.mubr.bf16.mxu0 0
        %4989 = vmatmul.mubr.bf16.gmra.mrb[0].mxu0 %v4032
        %v4990 = vpop.f32.mrb[0].mxu0
        %v4991 = vadd.f32 %v4670, %v4990
        %v4992 = vpop.f32.mrb[0].mxu0
        %v4993 = vpop.f32.mrb[0].mxu0
        %v4994 = vadd.f32 %v4673, %v4993
        %v4995 = vpop.f32.mrb[0].mxu0
        %4996 = vdwg.mxu0
        %v4997 = vld [vmem:[%s2] sm:$0x1]
        %v4999 = vlaneseq
        %v5000 = vshrl.u32 %v4999, 7
        %v5001 = vsub.s32 0, %v5000
        %v5002 = vrot.slane %v4997, %v5001
        %v5004 = vmul.f32 %v4711, %v5002
        %v5005 = vmul.f32 %v4714, %v5002
        %v5006 = vmul.f32 %v4719, %v5002
        %v5007 = vmul.f32 %v4722, %v5002
        %v5008 = vmul.f32 %v4727, %v5002
        %v5009 = vmul.f32 %v4730, %v5002
        %v5010 = vmul.f32 %v4735, %v5002
        %v5011 = vmul.f32 %v4738, %v5002
        %v5012 = vmul.f32 %v4743, %v5002
        %v5013 = vmul.f32 %v4746, %v5002
        %v5014 = vmul.f32 %v4751, %v5002
        %v5015 = vmul.f32 %v4754, %v5002
        %v5016 = vmul.f32 %v4759, %v5002
        %v5017 = vmul.f32 %v4762, %v5002
        %v5018 = vmul.f32 %v4767, %v5002
        %v5019 = vmul.f32 %v4770, %v5002
        %v5020 = vmul.f32 %v4775, %v5002
        %v5021 = vmul.f32 %v4778, %v5002
        %v5022 = vmul.f32 %v4783, %v5002
        %v5023 = vmul.f32 %v4786, %v5002
        %v5024 = vmul.f32 %v4791, %v5002
        %v5025 = vmul.f32 %v4794, %v5002
        %v5026 = vmul.f32 %v4799, %v5002
        %v5027 = vmul.f32 %v4802, %v5002
        %v5028 = vmul.f32 %v4807, %v5002
        %v5029 = vmul.f32 %v4810, %v5002
        %v5030 = vmul.f32 %v4815, %v5002
        %v5031 = vmul.f32 %v4818, %v5002
        %v5032 = vmul.f32 %v4823, %v5002
        %v5033 = vmul.f32 %v4826, %v5002
        %v5034 = vmul.f32 %v4831, %v5002
        %v5035 = vmul.f32 %v4834, %v5002
        %v5036 = vmul.f32 %v4839, %v5002
        %v5037 = vmul.f32 %v4842, %v5002
        %v5038 = vmul.f32 %v4847, %v5002
        %v5039 = vmul.f32 %v4850, %v5002
        %v5040 = vmul.f32 %v4855, %v5002
        %v5041 = vmul.f32 %v4858, %v5002
        %v5042 = vmul.f32 %v4863, %v5002
        %v5043 = vmul.f32 %v4866, %v5002
        %v5044 = vmul.f32 %v4871, %v5002
        %v5045 = vmul.f32 %v4874, %v5002
        %v5046 = vmul.f32 %v4879, %v5002
        %v5047 = vmul.f32 %v4882, %v5002
        %v5048 = vmul.f32 %v4887, %v5002
        %v5049 = vmul.f32 %v4890, %v5002
        %v5050 = vmul.f32 %v4895, %v5002
        %v5051 = vmul.f32 %v4898, %v5002
        %v5052 = vmul.f32 %v4903, %v5002
        %v5053 = vmul.f32 %v4906, %v5002
        %v5054 = vmul.f32 %v4911, %v5002
        %v5055 = vmul.f32 %v4914, %v5002
        %v5056 = vmul.f32 %v4919, %v5002
        %v5057 = vmul.f32 %v4922, %v5002
        %v5058 = vmul.f32 %v4927, %v5002
        %v5059 = vmul.f32 %v4930, %v5002
        %v5060 = vmul.f32 %v4935, %v5002
        %v5061 = vmul.f32 %v4938, %v5002
        %v5062 = vmul.f32 %v4943, %v5002
        %v5063 = vmul.f32 %v4946, %v5002
        %v5064 = vmul.f32 %v4951, %v5002
        %v5065 = vmul.f32 %v4954, %v5002
        %v5066 = vmul.f32 %v4959, %v5002
        %v5067 = vmul.f32 %v4962, %v5002
        %v5068 = vmul.f32 %v4967, %v5002
        %v5069 = vmul.f32 %v4970, %v5002
        %v5070 = vmul.f32 %v4975, %v5002
        %v5071 = vmul.f32 %v4978, %v5002
        %v5072 = vmul.f32 %v4983, %v5002
        %v5073 = vmul.f32 %v4986, %v5002
        %v5074 = vmul.f32 %v4991, %v5002
        %v5075 = vmul.f32 %v4994, %v5002
        %v5076 = vld [vmem:[%s3] sm:$0x1]
        %v5078 = vlaneseq
        %v5079 = vshrl.u32 %v5078, 7
        %v5080 = vsub.s32 0, %v5079
        %v5081 = vrot.slane %v5076, %v5080
        %v5083 = vadd.f32 %v5004, %v5081
        %v5084 = vadd.f32 %v5005, %v5081
        %v5085 = vadd.f32 %v5006, %v5081
        %v5086 = vadd.f32 %v5007, %v5081
        %v5087 = vadd.f32 %v5008, %v5081
        %v5088 = vadd.f32 %v5009, %v5081
        %v5089 = vadd.f32 %v5010, %v5081
        %v5090 = vadd.f32 %v5011, %v5081
        %v5091 = vadd.f32 %v5012, %v5081
        %v5092 = vadd.f32 %v5013, %v5081
        %v5093 = vadd.f32 %v5014, %v5081
        %v5094 = vadd.f32 %v5015, %v5081
        %v5095 = vadd.f32 %v5016, %v5081
        %v5096 = vadd.f32 %v5017, %v5081
        %v5097 = vadd.f32 %v5018, %v5081
        %v5098 = vadd.f32 %v5019, %v5081
        %v5099 = vadd.f32 %v5020, %v5081
        %v5100 = vadd.f32 %v5021, %v5081
        %v5101 = vadd.f32 %v5022, %v5081
        %v5102 = vadd.f32 %v5023, %v5081
        %v5103 = vadd.f32 %v5024, %v5081
        %v5104 = vadd.f32 %v5025, %v5081
        %v5105 = vadd.f32 %v5026, %v5081
        %v5106 = vadd.f32 %v5027, %v5081
        %v5107 = vadd.f32 %v5028, %v5081
        %v5108 = vadd.f32 %v5029, %v5081
        %v5109 = vadd.f32 %v5030, %v5081
        %v5110 = vadd.f32 %v5031, %v5081
        %v5111 = vadd.f32 %v5032, %v5081
        %v5112 = vadd.f32 %v5033, %v5081
        %v5113 = vadd.f32 %v5034, %v5081
        %v5114 = vadd.f32 %v5035, %v5081
        %v5115 = vadd.f32 %v5036, %v5081
        %v5116 = vadd.f32 %v5037, %v5081
        %v5117 = vadd.f32 %v5038, %v5081
        %v5118 = vadd.f32 %v5039, %v5081
        %v5119 = vadd.f32 %v5040, %v5081
        %v5120 = vadd.f32 %v5041, %v5081
        %v5121 = vadd.f32 %v5042, %v5081
        %v5122 = vadd.f32 %v5043, %v5081
        %v5123 = vadd.f32 %v5044, %v5081
        %v5124 = vadd.f32 %v5045, %v5081
        %v5125 = vadd.f32 %v5046, %v5081
        %v5126 = vadd.f32 %v5047, %v5081
        %v5127 = vadd.f32 %v5048, %v5081
        %v5128 = vadd.f32 %v5049, %v5081
        %v5129 = vadd.f32 %v5050, %v5081
        %v5130 = vadd.f32 %v5051, %v5081
        %v5131 = vadd.f32 %v5052, %v5081
        %v5132 = vadd.f32 %v5053, %v5081
        %v5133 = vadd.f32 %v5054, %v5081
        %v5134 = vadd.f32 %v5055, %v5081
        %v5135 = vadd.f32 %v5056, %v5081
        %v5136 = vadd.f32 %v5057, %v5081
        %v5137 = vadd.f32 %v5058, %v5081
        %v5138 = vadd.f32 %v5059, %v5081
        %v5139 = vadd.f32 %v5060, %v5081
        %v5140 = vadd.f32 %v5061, %v5081
        %v5141 = vadd.f32 %v5062, %v5081
        %v5142 = vadd.f32 %v5063, %v5081
        %v5143 = vadd.f32 %v5064, %v5081
        %v5144 = vadd.f32 %v5065, %v5081
        %v5145 = vadd.f32 %v5066, %v5081
        %v5146 = vadd.f32 %v5067, %v5081
        %v5147 = vadd.f32 %v5068, %v5081
        %v5148 = vadd.f32 %v5069, %v5081
        %v5149 = vadd.f32 %v5070, %v5081
        %v5150 = vadd.f32 %v5071, %v5081
        %v5151 = vadd.f32 %v5072, %v5081
        %v5152 = vadd.f32 %v5073, %v5081
        %v5153 = vadd.f32 %v5074, %v5081
        %v5154 = vadd.f32 %v5075, %v5081
        %vm5155 = vcmp.ge.f32.partialorder %v5083, 0.0
        %vm5156 = vcmp.ge.f32.partialorder %v5084, 0.0
        %vm5157 = vcmp.ge.f32.partialorder %v5085, 0.0
        %vm5158 = vcmp.ge.f32.partialorder %v5086, 0.0
        %vm5159 = vcmp.ge.f32.partialorder %v5087, 0.0
        %vm5160 = vcmp.ge.f32.partialorder %v5088, 0.0
        %vm5161 = vcmp.ge.f32.partialorder %v5089, 0.0
        %vm5162 = vcmp.ge.f32.partialorder %v5090, 0.0
        %vm5163 = vcmp.ge.f32.partialorder %v5091, 0.0
        %vm5164 = vcmp.ge.f32.partialorder %v5092, 0.0
        %vm5165 = vcmp.ge.f32.partialorder %v5093, 0.0
        %vm5166 = vcmp.ge.f32.partialorder %v5094, 0.0
        %vm5167 = vcmp.ge.f32.partialorder %v5095, 0.0
        %vm5168 = vcmp.ge.f32.partialorder %v5096, 0.0
        %vm5169 = vcmp.ge.f32.partialorder %v5097, 0.0
        %vm5170 = vcmp.ge.f32.partialorder %v5098, 0.0
        %vm5171 = vcmp.ge.f32.partialorder %v5099, 0.0
        %vm5172 = vcmp.ge.f32.partialorder %v5100, 0.0
        %vm5173 = vcmp.ge.f32.partialorder %v5101, 0.0
        %vm5174 = vcmp.ge.f32.partialorder %v5102, 0.0
        %vm5175 = vcmp.ge.f32.partialorder %v5103, 0.0
        %vm5176 = vcmp.ge.f32.partialorder %v5104, 0.0
        %vm5177 = vcmp.ge.f32.partialorder %v5105, 0.0
        %vm5178 = vcmp.ge.f32.partialorder %v5106, 0.0
        %vm5179 = vcmp.ge.f32.partialorder %v5107, 0.0
        %vm5180 = vcmp.ge.f32.partialorder %v5108, 0.0
        %vm5181 = vcmp.ge.f32.partialorder %v5109, 0.0
        %vm5182 = vcmp.ge.f32.partialorder %v5110, 0.0
        %vm5183 = vcmp.ge.f32.partialorder %v5111, 0.0
        %vm5184 = vcmp.ge.f32.partialorder %v5112, 0.0
        %vm5185 = vcmp.ge.f32.partialorder %v5113, 0.0
        %vm5186 = vcmp.ge.f32.partialorder %v5114, 0.0
        %vm5187 = vcmp.ge.f32.partialorder %v5115, 0.0
        %vm5188 = vcmp.ge.f32.partialorder %v5116, 0.0
        %vm5189 = vcmp.ge.f32.partialorder %v5117, 0.0
        %vm5190 = vcmp.ge.f32.partialorder %v5118, 0.0
        %vm5191 = vcmp.ge.f32.partialorder %v5119, 0.0
        %vm5192 = vcmp.ge.f32.partialorder %v5120, 0.0
        %vm5193 = vcmp.ge.f32.partialorder %v5121, 0.0
        %vm5194 = vcmp.ge.f32.partialorder %v5122, 0.0
        %vm5195 = vcmp.ge.f32.partialorder %v5123, 0.0
        %vm5196 = vcmp.ge.f32.partialorder %v5124, 0.0
        %vm5197 = vcmp.ge.f32.partialorder %v5125, 0.0
        %vm5198 = vcmp.ge.f32.partialorder %v5126, 0.0
        %vm5199 = vcmp.ge.f32.partialorder %v5127, 0.0
        %vm5200 = vcmp.ge.f32.partialorder %v5128, 0.0
        %vm5201 = vcmp.ge.f32.partialorder %v5129, 0.0
        %vm5202 = vcmp.ge.f32.partialorder %v5130, 0.0
        %vm5203 = vcmp.ge.f32.partialorder %v5131, 0.0
        %vm5204 = vcmp.ge.f32.partialorder %v5132, 0.0
        %vm5205 = vcmp.ge.f32.partialorder %v5133, 0.0
        %vm5206 = vcmp.ge.f32.partialorder %v5134, 0.0
        %vm5207 = vcmp.ge.f32.partialorder %v5135, 0.0
        %vm5208 = vcmp.ge.f32.partialorder %v5136, 0.0
        %vm5209 = vcmp.ge.f32.partialorder %v5137, 0.0
        %vm5210 = vcmp.ge.f32.partialorder %v5138, 0.0
        %vm5211 = vcmp.ge.f32.partialorder %v5139, 0.0
        %vm5212 = vcmp.ge.f32.partialorder %v5140, 0.0
        %vm5213 = vcmp.ge.f32.partialorder %v5141, 0.0
        %vm5214 = vcmp.ge.f32.partialorder %v5142, 0.0
        %vm5215 = vcmp.ge.f32.partialorder %v5143, 0.0
        %vm5216 = vcmp.ge.f32.partialorder %v5144, 0.0
        %vm5217 = vcmp.ge.f32.partialorder %v5145, 0.0
        %vm5218 = vcmp.ge.f32.partialorder %v5146, 0.0
        %vm5219 = vcmp.ge.f32.partialorder %v5147, 0.0
        %vm5220 = vcmp.ge.f32.partialorder %v5148, 0.0
        %vm5221 = vcmp.ge.f32.partialorder %v5149, 0.0
        %vm5222 = vcmp.ge.f32.partialorder %v5150, 0.0
        %vm5223 = vcmp.ge.f32.partialorder %v5151, 0.0
        %vm5224 = vcmp.ge.f32.partialorder %v5152, 0.0
        %vm5225 = vcmp.ge.f32.partialorder %v5153, 0.0
        %vm5226 = vcmp.ge.f32.partialorder %v5154, 0.0
        %v5227 = vmul.f32 %v5083, 0.01
        %v5228 = vmul.f32 %v5084, 0.01
        %v5229 = vmul.f32 %v5085, 0.01
        %v5230 = vmul.f32 %v5086, 0.01
        %v5231 = vmul.f32 %v5087, 0.01
        %v5232 = vmul.f32 %v5088, 0.01
        %v5233 = vmul.f32 %v5089, 0.01
        %v5234 = vmul.f32 %v5090, 0.01
        %v5235 = vmul.f32 %v5091, 0.01
        %v5236 = vmul.f32 %v5092, 0.01
        %v5237 = vmul.f32 %v5093, 0.01
        %v5238 = vmul.f32 %v5094, 0.01
        %v5239 = vmul.f32 %v5095, 0.01
        %v5240 = vmul.f32 %v5096, 0.01
        %v5241 = vmul.f32 %v5097, 0.01
        %v5242 = vmul.f32 %v5098, 0.01
        %v5243 = vmul.f32 %v5099, 0.01
        %v5244 = vmul.f32 %v5100, 0.01
        %v5245 = vmul.f32 %v5101, 0.01
        %v5246 = vmul.f32 %v5102, 0.01
        %v5247 = vmul.f32 %v5103, 0.01
        %v5248 = vmul.f32 %v5104, 0.01
        %v5249 = vmul.f32 %v5105, 0.01
        %v5250 = vmul.f32 %v5106, 0.01
        %v5251 = vmul.f32 %v5107, 0.01
        %v5252 = vmul.f32 %v5108, 0.01
        %v5253 = vmul.f32 %v5109, 0.01
        %v5254 = vmul.f32 %v5110, 0.01
        %v5255 = vmul.f32 %v5111, 0.01
        %v5256 = vmul.f32 %v5112, 0.01
        %v5257 = vmul.f32 %v5113, 0.01
        %v5258 = vmul.f32 %v5114, 0.01
        %v5259 = vmul.f32 %v5115, 0.01
        %v5260 = vmul.f32 %v5116, 0.01
        %v5261 = vmul.f32 %v5117, 0.01
        %v5262 = vmul.f32 %v5118, 0.01
        %v5263 = vmul.f32 %v5119, 0.01
        %v5264 = vmul.f32 %v5120, 0.01
        %v5265 = vmul.f32 %v5121, 0.01
        %v5266 = vmul.f32 %v5122, 0.01
        %v5267 = vmul.f32 %v5123, 0.01
        %v5268 = vmul.f32 %v5124, 0.01
        %v5269 = vmul.f32 %v5125, 0.01
        %v5270 = vmul.f32 %v5126, 0.01
        %v5271 = vmul.f32 %v5127, 0.01
        %v5272 = vmul.f32 %v5128, 0.01
        %v5273 = vmul.f32 %v5129, 0.01
        %v5274 = vmul.f32 %v5130, 0.01
        %v5275 = vmul.f32 %v5131, 0.01
        %v5276 = vmul.f32 %v5132, 0.01
        %v5277 = vmul.f32 %v5133, 0.01
        %v5278 = vmul.f32 %v5134, 0.01
        %v5279 = vmul.f32 %v5135, 0.01
        %v5280 = vmul.f32 %v5136, 0.01
        %v5281 = vmul.f32 %v5137, 0.01
        %v5282 = vmul.f32 %v5138, 0.01
        %v5283 = vmul.f32 %v5139, 0.01
        %v5284 = vmul.f32 %v5140, 0.01
        %v5285 = vmul.f32 %v5141, 0.01
        %v5286 = vmul.f32 %v5142, 0.01
        %v5287 = vmul.f32 %v5143, 0.01
        %v5288 = vmul.f32 %v5144, 0.01
        %v5289 = vmul.f32 %v5145, 0.01
        %v5290 = vmul.f32 %v5146, 0.01
        %v5291 = vmul.f32 %v5147, 0.01
        %v5292 = vmul.f32 %v5148, 0.01
        %v5293 = vmul.f32 %v5149, 0.01
        %v5294 = vmul.f32 %v5150, 0.01
        %v5295 = vmul.f32 %v5151, 0.01
        %v5296 = vmul.f32 %v5152, 0.01
        %v5297 = vmul.f32 %v5153, 0.01
        %v5298 = vmul.f32 %v5154, 0.01
        %v5299 = vsel %vm5155, %v5083, %v5227
        %v5300 = vsel %vm5156, %v5084, %v5228
        %v5301 = vsel %vm5157, %v5085, %v5229
        %v5302 = vsel %vm5158, %v5086, %v5230
        %v5303 = vsel %vm5159, %v5087, %v5231
        %v5304 = vsel %vm5160, %v5088, %v5232
        %v5305 = vsel %vm5161, %v5089, %v5233
        %v5306 = vsel %vm5162, %v5090, %v5234
        %v5307 = vsel %vm5163, %v5091, %v5235
        %v5308 = vsel %vm5164, %v5092, %v5236
        %v5309 = vsel %vm5165, %v5093, %v5237
        %v5310 = vsel %vm5166, %v5094, %v5238
        %v5311 = vsel %vm5167, %v5095, %v5239
        %v5312 = vsel %vm5168, %v5096, %v5240
        %v5313 = vsel %vm5169, %v5097, %v5241
        %v5314 = vsel %vm5170, %v5098, %v5242
        %v5315 = vsel %vm5171, %v5099, %v5243
        %v5316 = vsel %vm5172, %v5100, %v5244
        %v5317 = vsel %vm5173, %v5101, %v5245
        %v5318 = vsel %vm5174, %v5102, %v5246
        %v5319 = vsel %vm5175, %v5103, %v5247
        %v5320 = vsel %vm5176, %v5104, %v5248
        %v5321 = vsel %vm5177, %v5105, %v5249
        %v5322 = vsel %vm5178, %v5106, %v5250
        %v5323 = vsel %vm5179, %v5107, %v5251
        %v5324 = vsel %vm5180, %v5108, %v5252
        %v5325 = vsel %vm5181, %v5109, %v5253
        %v5326 = vsel %vm5182, %v5110, %v5254
        %v5327 = vsel %vm5183, %v5111, %v5255
        %v5328 = vsel %vm5184, %v5112, %v5256
        %v5329 = vsel %vm5185, %v5113, %v5257
        %v5330 = vsel %vm5186, %v5114, %v5258
        %v5331 = vsel %vm5187, %v5115, %v5259
        %v5332 = vsel %vm5188, %v5116, %v5260
        %v5333 = vsel %vm5189, %v5117, %v5261
        %v5334 = vsel %vm5190, %v5118, %v5262
        %v5335 = vsel %vm5191, %v5119, %v5263
        %v5336 = vsel %vm5192, %v5120, %v5264
        %v5337 = vsel %vm5193, %v5121, %v5265
        %v5338 = vsel %vm5194, %v5122, %v5266
        %v5339 = vsel %vm5195, %v5123, %v5267
        %v5340 = vsel %vm5196, %v5124, %v5268
        %v5341 = vsel %vm5197, %v5125, %v5269
        %v5342 = vsel %vm5198, %v5126, %v5270
        %v5343 = vsel %vm5199, %v5127, %v5271
        %v5344 = vsel %vm5200, %v5128, %v5272
        %v5345 = vsel %vm5201, %v5129, %v5273
        %v5346 = vsel %vm5202, %v5130, %v5274
        %v5347 = vsel %vm5203, %v5131, %v5275
        %v5348 = vsel %vm5204, %v5132, %v5276
        %v5349 = vsel %vm5205, %v5133, %v5277
        %v5350 = vsel %vm5206, %v5134, %v5278
        %v5351 = vsel %vm5207, %v5135, %v5279
        %v5352 = vsel %vm5208, %v5136, %v5280
        %v5353 = vsel %vm5209, %v5137, %v5281
        %v5354 = vsel %vm5210, %v5138, %v5282
        %v5355 = vsel %vm5211, %v5139, %v5283
        %v5356 = vsel %vm5212, %v5140, %v5284
        %v5357 = vsel %vm5213, %v5141, %v5285
        %v5358 = vsel %vm5214, %v5142, %v5286
        %v5359 = vsel %vm5215, %v5143, %v5287
        %v5360 = vsel %vm5216, %v5144, %v5288
        %v5361 = vsel %vm5217, %v5145, %v5289
        %v5362 = vsel %vm5218, %v5146, %v5290
        %v5363 = vsel %vm5219, %v5147, %v5291
        %v5364 = vsel %vm5220, %v5148, %v5292
        %v5365 = vsel %vm5221, %v5149, %v5293
        %v5366 = vsel %vm5222, %v5150, %v5294
        %v5367 = vsel %vm5223, %v5151, %v5295
        %v5368 = vsel %vm5224, %v5152, %v5296
        %v5369 = vsel %vm5225, %v5153, %v5297
        %v5370 = vsel %vm5226, %v5154, %v5298
        %s5371 = ssub.s32 %s293, 1
        %v5372 = vstv %s5371
        %v5373 = vadd.s32 %v5372, 1
        %v5374 = vadd.s32 %v5372, 2
        %v5375 = vadd.s32 %v5372, 3
        %v5376 = vadd.s32 %v5372, 4
        %v5377 = vadd.s32 %v5372, 5
        %v5378 = vadd.s32 %v5372, 6
        %v5379 = vadd.s32 %v5372, 7
        %v5380 = vadd.s32 %v5372, 8
        %v5381 = vadd.s32 %v5372, 9
        %v5382 = vadd.s32 %v5372, 10
        %v5383 = vadd.s32 %v5372, 11
        %v5384 = vadd.s32 %v5372, 12
        %v5385 = vadd.s32 %v5372, 13
        %v5386 = vadd.s32 %v5372, 14
        %v5387 = vadd.s32 %v5372, 15
        %v5388 = vadd.s32 %v5372, 16
        %v5389 = vadd.s32 %v5372, 17
        %vm5390 = vcmp.ge.s32.totalorder %v5372, 0
        %vm5391 = vcmp.ge.s32.totalorder %v5373, 0
        %vm5392 = vcmp.ge.s32.totalorder %v5374, 0
        %vm5393 = vcmp.ge.s32.totalorder %v5375, 0
        %vm5394 = vcmp.ge.s32.totalorder %v5376, 0
        %vm5395 = vcmp.ge.s32.totalorder %v5377, 0
        %vm5396 = vcmp.ge.s32.totalorder %v5378, 0
        %vm5397 = vcmp.ge.s32.totalorder %v5379, 0
        %vm5398 = vcmp.ge.s32.totalorder %v5380, 0
        %vm5399 = vcmp.ge.s32.totalorder %v5381, 0
        %vm5400 = vcmp.ge.s32.totalorder %v5382, 0
        %vm5401 = vcmp.ge.s32.totalorder %v5383, 0
        %vm5402 = vcmp.ge.s32.totalorder %v5384, 0
        %vm5403 = vcmp.ge.s32.totalorder %v5385, 0
        %vm5404 = vcmp.ge.s32.totalorder %v5386, 0
        %vm5405 = vcmp.ge.s32.totalorder %v5387, 0
        %vm5406 = vcmp.ge.s32.totalorder %v5388, 0
        %vm5407 = vcmp.ge.s32.totalorder %v5389, 0
        %vm5408 = vcmp.lt.s32.totalorder %v5372, 32
        %vm5409 = vcmp.lt.s32.totalorder %v5373, 32
        %vm5410 = vcmp.lt.s32.totalorder %v5374, 32
        %vm5411 = vcmp.lt.s32.totalorder %v5375, 32
        %vm5412 = vcmp.lt.s32.totalorder %v5376, 32
        %vm5413 = vcmp.lt.s32.totalorder %v5377, 32
        %vm5414 = vcmp.lt.s32.totalorder %v5378, 32
        %vm5415 = vcmp.lt.s32.totalorder %v5379, 32
        %vm5416 = vcmp.lt.s32.totalorder %v5380, 32
        %vm5417 = vcmp.lt.s32.totalorder %v5381, 32
        %vm5418 = vcmp.lt.s32.totalorder %v5382, 32
        %vm5419 = vcmp.lt.s32.totalorder %v5383, 32
        %vm5420 = vcmp.lt.s32.totalorder %v5384, 32
        %vm5421 = vcmp.lt.s32.totalorder %v5385, 32
        %vm5422 = vcmp.lt.s32.totalorder %v5386, 32
        %vm5423 = vcmp.lt.s32.totalorder %v5387, 32
        %vm5424 = vcmp.lt.s32.totalorder %v5388, 32
        %vm5425 = vcmp.lt.s32.totalorder %v5389, 32
        %vm5426 = vmand %vm5390, %vm5408
        %vm5427 = vmand %vm5391, %vm5409
        %vm5428 = vmand %vm5392, %vm5410
        %vm5429 = vmand %vm5393, %vm5411
        %vm5430 = vmand %vm5394, %vm5412
        %vm5431 = vmand %vm5395, %vm5413
        %vm5432 = vmand %vm5396, %vm5414
        %vm5433 = vmand %vm5397, %vm5415
        %vm5434 = vmand %vm5398, %vm5416
        %vm5435 = vmand %vm5399, %vm5417
        %vm5436 = vmand %vm5400, %vm5418
        %vm5437 = vmand %vm5401, %vm5419
        %vm5438 = vmand %vm5402, %vm5420
        %vm5439 = vmand %vm5403, %vm5421
        %vm5440 = vmand %vm5404, %vm5422
        %vm5441 = vmand %vm5405, %vm5423
        %vm5442 = vmand %vm5406, %vm5424
        %vm5443 = vmand %vm5407, %vm5425
        %v5444 = vsel %vm5426, %v5299, 0.0
        %v5445 = vsel %vm5426, %v5300, 0.0
        %v5446 = vsel %vm5426, %v5301, 0.0
        %v5447 = vsel %vm5426, %v5302, 0.0
        %v5448 = vsel %vm5427, %v5303, 0.0
        %v5449 = vsel %vm5427, %v5304, 0.0
        %v5450 = vsel %vm5427, %v5305, 0.0
        %v5451 = vsel %vm5427, %v5306, 0.0
        %v5452 = vsel %vm5428, %v5307, 0.0
        %v5453 = vsel %vm5428, %v5308, 0.0
        %v5454 = vsel %vm5428, %v5309, 0.0
        %v5455 = vsel %vm5428, %v5310, 0.0
        %v5456 = vsel %vm5429, %v5311, 0.0
        %v5457 = vsel %vm5429, %v5312, 0.0
        %v5458 = vsel %vm5429, %v5313, 0.0
        %v5459 = vsel %vm5429, %v5314, 0.0
        %v5460 = vsel %vm5430, %v5315, 0.0
        %v5461 = vsel %vm5430, %v5316, 0.0
        %v5462 = vsel %vm5430, %v5317, 0.0
        %v5463 = vsel %vm5430, %v5318, 0.0
        %v5464 = vsel %vm5431, %v5319, 0.0
        %v5465 = vsel %vm5431, %v5320, 0.0
        %v5466 = vsel %vm5431, %v5321, 0.0
        %v5467 = vsel %vm5431, %v5322, 0.0
        %v5468 = vsel %vm5432, %v5323, 0.0
        %v5469 = vsel %vm5432, %v5324, 0.0
        %v5470 = vsel %vm5432, %v5325, 0.0
        %v5471 = vsel %vm5432, %v5326, 0.0
        %v5472 = vsel %vm5433, %v5327, 0.0
        %v5473 = vsel %vm5433, %v5328, 0.0
        %v5474 = vsel %vm5433, %v5329, 0.0
        %v5475 = vsel %vm5433, %v5330, 0.0
        %v5476 = vsel %vm5434, %v5331, 0.0
        %v5477 = vsel %vm5434, %v5332, 0.0
        %v5478 = vsel %vm5434, %v5333, 0.0
        %v5479 = vsel %vm5434, %v5334, 0.0
        %v5480 = vsel %vm5435, %v5335, 0.0
        %v5481 = vsel %vm5435, %v5336, 0.0
        %v5482 = vsel %vm5435, %v5337, 0.0
        %v5483 = vsel %vm5435, %v5338, 0.0
        %v5484 = vsel %vm5436, %v5339, 0.0
        %v5485 = vsel %vm5436, %v5340, 0.0
        %v5486 = vsel %vm5436, %v5341, 0.0
        %v5487 = vsel %vm5436, %v5342, 0.0
        %v5488 = vsel %vm5437, %v5343, 0.0
        %v5489 = vsel %vm5437, %v5344, 0.0
        %v5490 = vsel %vm5437, %v5345, 0.0
        %v5491 = vsel %vm5437, %v5346, 0.0
        %v5492 = vsel %vm5438, %v5347, 0.0
        %v5493 = vsel %vm5438, %v5348, 0.0
        %v5494 = vsel %vm5438, %v5349, 0.0
        %v5495 = vsel %vm5438, %v5350, 0.0
        %v5496 = vsel %vm5439, %v5351, 0.0
        %v5497 = vsel %vm5439, %v5352, 0.0
        %v5498 = vsel %vm5439, %v5353, 0.0
        %v5499 = vsel %vm5439, %v5354, 0.0
        %v5500 = vsel %vm5440, %v5355, 0.0
        %v5501 = vsel %vm5440, %v5356, 0.0
        %v5502 = vsel %vm5440, %v5357, 0.0
        %v5503 = vsel %vm5440, %v5358, 0.0
        %v5504 = vsel %vm5441, %v5359, 0.0
        %v5505 = vsel %vm5441, %v5360, 0.0
        %v5506 = vsel %vm5441, %v5361, 0.0
        %v5507 = vsel %vm5441, %v5362, 0.0
        %v5508 = vsel %vm5442, %v5363, 0.0
        %v5509 = vsel %vm5442, %v5364, 0.0
        %v5510 = vsel %vm5442, %v5365, 0.0
        %v5511 = vsel %vm5442, %v5366, 0.0
        %v5512 = vsel %vm5443, %v5367, 0.0
        %v5513 = vsel %vm5443, %v5368, 0.0
        %v5514 = vsel %vm5443, %v5369, 0.0
        %v5515 = vsel %vm5443, %v5370, 0.0
        %v5516 = vpack.c.bf16 %v5445, %v5444
        %v5517 = vpack.c.bf16 %v5447, %v5446
        %v5518 = vpack.c.bf16 %v5449, %v5448
        %v5519 = vpack.c.bf16 %v5451, %v5450
        %v5520 = vpack.c.bf16 %v5453, %v5452
        %v5521 = vpack.c.bf16 %v5455, %v5454
        %v5522 = vpack.c.bf16 %v5457, %v5456
        %v5523 = vpack.c.bf16 %v5459, %v5458
        %v5524 = vpack.c.bf16 %v5461, %v5460
        %v5525 = vpack.c.bf16 %v5463, %v5462
        %v5526 = vpack.c.bf16 %v5465, %v5464
        %v5527 = vpack.c.bf16 %v5467, %v5466
        %v5528 = vpack.c.bf16 %v5469, %v5468
        %v5529 = vpack.c.bf16 %v5471, %v5470
        %v5530 = vpack.c.bf16 %v5473, %v5472
        %v5531 = vpack.c.bf16 %v5475, %v5474
        %v5532 = vpack.c.bf16 %v5477, %v5476
        %v5533 = vpack.c.bf16 %v5479, %v5478
        %v5534 = vpack.c.bf16 %v5481, %v5480
        %v5535 = vpack.c.bf16 %v5483, %v5482
        %v5536 = vpack.c.bf16 %v5485, %v5484
        %v5537 = vpack.c.bf16 %v5487, %v5486
        %v5538 = vpack.c.bf16 %v5489, %v5488
        %v5539 = vpack.c.bf16 %v5491, %v5490
        %v5540 = vpack.c.bf16 %v5493, %v5492
        %v5541 = vpack.c.bf16 %v5495, %v5494
        %v5542 = vpack.c.bf16 %v5497, %v5496
        %v5543 = vpack.c.bf16 %v5499, %v5498
        %v5544 = vpack.c.bf16 %v5501, %v5500
        %v5545 = vpack.c.bf16 %v5503, %v5502
        %v5546 = vpack.c.bf16 %v5505, %v5504
        %v5547 = vpack.c.bf16 %v5507, %v5506
        %v5548 = vpack.c.bf16 %v5509, %v5508
        %v5549 = vpack.c.bf16 %v5511, %v5510
        %v5550 = vpack.c.bf16 %v5513, %v5512
        %v5551 = vpack.c.bf16 %v5515, %v5514
        %vm5552 = vcmask 1040384
        %vm5553 = vsmask.f32 256
        %vm5554 = vmand %vm5552, %vm5553
        %v5555 = vld [vmem:[#allocation2] sm:$0x1]
        %v5556 = vsel %vm5554, 0, %v5555
        %5557 = vst [vmem:[#allocation2] sm:$0x1] %v5556
        %v5558 = vld [vmem:[#allocation2 + $0x14] sm:$0x1]
        %v5559 = vsel %vm5554, 0, %v5558
        %5560 = vst [vmem:[#allocation2 + $0x14] sm:$0x1] %v5559
        %v5561 = vld [vmem:[#allocation2 + $0x28] sm:$0x1]
        %v5562 = vsel %vm5554, 0, %v5561
        %5563 = vst [vmem:[#allocation2 + $0x28] sm:$0x1] %v5562
        %v5564 = vld [vmem:[#allocation2 + $0x3c] sm:$0x1]
        %v5565 = vsel %vm5554, 0, %v5564
        %5566 = vst [vmem:[#allocation2 + $0x3c] sm:$0x1] %v5565
        %v5567 = vld [vmem:[#allocation2 + $0x50] sm:$0x1]
        %v5568 = vsel %vm5554, 0, %v5567
        %5569 = vst [vmem:[#allocation2 + $0x50] sm:$0x1] %v5568
        %v5570 = vld [vmem:[#allocation2 + $0x64] sm:$0x1]
        %v5571 = vsel %vm5554, 0, %v5570
        %5572 = vst [vmem:[#allocation2 + $0x64] sm:$0x1] %v5571
        %v5573 = vld [vmem:[#allocation2 + $0x78] sm:$0x1]
        %v5574 = vsel %vm5554, 0, %v5573
        %5575 = vst [vmem:[#allocation2 + $0x78] sm:$0x1] %v5574
        %v5576 = vld [vmem:[#allocation2 + $0x8c] sm:$0x1]
        %v5577 = vsel %vm5554, 0, %v5576
        %5578 = vst [vmem:[#allocation2 + $0x8c] sm:$0x1] %v5577
        %v5579 = vld [vmem:[#allocation2 + $0xa0] sm:$0x1]
        %v5580 = vsel %vm5554, 0, %v5579
        %5581 = vst [vmem:[#allocation2 + $0xa0] sm:$0x1] %v5580
        %v5582 = vld [vmem:[#allocation2 + $0xb4] sm:$0x1]
        %v5583 = vsel %vm5554, 0, %v5582
        %5584 = vst [vmem:[#allocation2 + $0xb4] sm:$0x1] %v5583
        %v5585 = vld [vmem:[#allocation2 + $0xc8] sm:$0x1]
        %v5586 = vsel %vm5554, 0, %v5585
        %5587 = vst [vmem:[#allocation2 + $0xc8] sm:$0x1] %v5586
        %v5588 = vld [vmem:[#allocation2 + $0xdc] sm:$0x1]
        %v5589 = vsel %vm5554, 0, %v5588
        %5590 = vst [vmem:[#allocation2 + $0xdc] sm:$0x1] %v5589
        %v5591 = vld [vmem:[#allocation2 + $0xf0] sm:$0x1]
        %v5592 = vsel %vm5554, 0, %v5591
        %5593 = vst [vmem:[#allocation2 + $0xf0] sm:$0x1] %v5592
        %v5594 = vld [vmem:[#allocation2 + $0x104] sm:$0x1]
        %v5595 = vsel %vm5554, 0, %v5594
        %5596 = vst [vmem:[#allocation2 + $0x104] sm:$0x1] %v5595
        %v5597 = vld [vmem:[#allocation2 + $0x118] sm:$0x1]
        %v5598 = vsel %vm5554, 0, %v5597
        %5599 = vst [vmem:[#allocation2 + $0x118] sm:$0x1] %v5598
        %v5600 = vld [vmem:[#allocation2 + $0x12c] sm:$0x1]
        %v5601 = vsel %vm5554, 0, %v5600
        %5602 = vst [vmem:[#allocation2 + $0x12c] sm:$0x1] %v5601
        %v5603 = vld [vmem:[#allocation2 + $0x140] sm:$0x1]
        %v5604 = vsel %vm5554, 0, %v5603
        %5605 = vst [vmem:[#allocation2 + $0x140] sm:$0x1] %v5604
        %v5606 = vld [vmem:[#allocation2 + $0x154] sm:$0x1]
        %v5607 = vsel %vm5554, 0, %v5606
        %5608 = vst [vmem:[#allocation2 + $0x154] sm:$0x1] %v5607
        %vm5609 = vsmask.f32 7938
        %vm5610 = vmand %vm5552, %vm5609
        %v5611 = vld [vmem:[#allocation2 + $0x10] sm:$0x1]
        %v5612 = vsel %vm5610, 0, %v5611
        %5613 = vst [vmem:[#allocation2 + $0x10] sm:$0x1] %v5612
        %v5614 = vld [vmem:[#allocation2 + $0x24] sm:$0x1]
        %v5615 = vsel %vm5610, 0, %v5614
        %5616 = vst [vmem:[#allocation2 + $0x24] sm:$0x1] %v5615
        %v5617 = vld [vmem:[#allocation2 + $0x38] sm:$0x1]
        %v5618 = vsel %vm5610, 0, %v5617
        %5619 = vst [vmem:[#allocation2 + $0x38] sm:$0x1] %v5618
        %v5620 = vld [vmem:[#allocation2 + $0x4c] sm:$0x1]
        %v5621 = vsel %vm5610, 0, %v5620
        %5622 = vst [vmem:[#allocation2 + $0x4c] sm:$0x1] %v5621
        %v5623 = vld [vmem:[#allocation2 + $0x60] sm:$0x1]
        %v5624 = vsel %vm5610, 0, %v5623
        %5625 = vst [vmem:[#allocation2 + $0x60] sm:$0x1] %v5624
        %v5626 = vld [vmem:[#allocation2 + $0x74] sm:$0x1]
        %v5627 = vsel %vm5610, 0, %v5626
        %5628 = vst [vmem:[#allocation2 + $0x74] sm:$0x1] %v5627
        %v5629 = vld [vmem:[#allocation2 + $0x88] sm:$0x1]
        %v5630 = vsel %vm5610, 0, %v5629
        %5631 = vst [vmem:[#allocation2 + $0x88] sm:$0x1] %v5630
        %v5632 = vld [vmem:[#allocation2 + $0x9c] sm:$0x1]
        %v5633 = vsel %vm5610, 0, %v5632
        %5634 = vst [vmem:[#allocation2 + $0x9c] sm:$0x1] %v5633
        %v5635 = vld [vmem:[#allocation2 + $0xb0] sm:$0x1]
        %v5636 = vsel %vm5610, 0, %v5635
        %5637 = vst [vmem:[#allocation2 + $0xb0] sm:$0x1] %v5636
        %v5638 = vld [vmem:[#allocation2 + $0xc4] sm:$0x1]
        %v5639 = vsel %vm5610, 0, %v5638
        %5640 = vst [vmem:[#allocation2 + $0xc4] sm:$0x1] %v5639
        %v5641 = vld [vmem:[#allocation2 + $0xd8] sm:$0x1]
        %v5642 = vsel %vm5610, 0, %v5641
        %5643 = vst [vmem:[#allocation2 + $0xd8] sm:$0x1] %v5642
        %v5644 = vld [vmem:[#allocation2 + $0xec] sm:$0x1]
        %v5645 = vsel %vm5610, 0, %v5644
        %5646 = vst [vmem:[#allocation2 + $0xec] sm:$0x1] %v5645
        %v5647 = vld [vmem:[#allocation2 + $0x100] sm:$0x1]
        %v5648 = vsel %vm5610, 0, %v5647
        %5649 = vst [vmem:[#allocation2 + $0x100] sm:$0x1] %v5648
        %v5650 = vld [vmem:[#allocation2 + $0x114] sm:$0x1]
        %v5651 = vsel %vm5610, 0, %v5650
        %5652 = vst [vmem:[#allocation2 + $0x114] sm:$0x1] %v5651
        %v5653 = vld [vmem:[#allocation2 + $0x128] sm:$0x1]
        %v5654 = vsel %vm5610, 0, %v5653
        %5655 = vst [vmem:[#allocation2 + $0x128] sm:$0x1] %v5654
        %v5656 = vld [vmem:[#allocation2 + $0x13c] sm:$0x1]
        %v5657 = vsel %vm5610, 0, %v5656
        %5658 = vst [vmem:[#allocation2 + $0x13c] sm:$0x1] %v5657
        %v5659 = vld [vmem:[#allocation2 + $0x150] sm:$0x1]
        %v5660 = vsel %vm5610, 0, %v5659
        %5661 = vst [vmem:[#allocation2 + $0x150] sm:$0x1] %v5660
        %v5662 = vld [vmem:[#allocation2 + $0x164] sm:$0x1]
        %v5663 = vsel %vm5610, 0, %v5662
        %5664 = vst [vmem:[#allocation2 + $0x164] sm:$0x1] %v5663
        %v5701 = vunpack.c.l.b16 %v5516
        %v5702 = vunpack.c.h.b16 %v5516
        %v5703 = vunpack.c.l.b16 %v5517
        %v5704 = vunpack.c.h.b16 %v5517
        %v5705 = vunpack.c.l.b16 %v5518
        %v5706 = vunpack.c.h.b16 %v5518
        %v5707 = vunpack.c.l.b16 %v5519
        %v5708 = vunpack.c.h.b16 %v5519
        %v5709 = vunpack.c.l.b16 %v5520
        %v5710 = vunpack.c.h.b16 %v5520
        %v5711 = vunpack.c.l.b16 %v5521
        %v5712 = vunpack.c.h.b16 %v5521
        %v5713 = vunpack.c.l.b16 %v5522
        %v5714 = vunpack.c.h.b16 %v5522
        %v5715 = vunpack.c.l.b16 %v5523
        %v5716 = vunpack.c.h.b16 %v5523
        %v5717 = vunpack.c.l.b16 %v5524
        %v5718 = vunpack.c.h.b16 %v5524
        %v5719 = vunpack.c.l.b16 %v5525
        %v5720 = vunpack.c.h.b16 %v5525
        %v5721 = vunpack.c.l.b16 %v5526
        %v5722 = vunpack.c.h.b16 %v5526
        %v5723 = vunpack.c.l.b16 %v5527
        %v5724 = vunpack.c.h.b16 %v5527
        %v5725 = vunpack.c.l.b16 %v5528
        %v5726 = vunpack.c.h.b16 %v5528
        %v5727 = vunpack.c.l.b16 %v5529
        %v5728 = vunpack.c.h.b16 %v5529
        %v5729 = vunpack.c.l.b16 %v5530
        %v5730 = vunpack.c.h.b16 %v5530
        %v5731 = vunpack.c.l.b16 %v5531
        %v5732 = vunpack.c.h.b16 %v5531
        %v5733 = vunpack.c.l.b16 %v5532
        %v5734 = vunpack.c.h.b16 %v5532
        %v5735 = vunpack.c.l.b16 %v5533
        %v5736 = vunpack.c.h.b16 %v5533
        %v5737 = vunpack.c.l.b16 %v5534
        %v5738 = vunpack.c.h.b16 %v5534
        %v5739 = vunpack.c.l.b16 %v5535
        %v5740 = vunpack.c.h.b16 %v5535
        %v5741 = vunpack.c.l.b16 %v5536
        %v5742 = vunpack.c.h.b16 %v5536
        %v5743 = vunpack.c.l.b16 %v5537
        %v5744 = vunpack.c.h.b16 %v5537
        %v5745 = vunpack.c.l.b16 %v5538
        %v5746 = vunpack.c.h.b16 %v5538
        %v5747 = vunpack.c.l.b16 %v5539
        %v5748 = vunpack.c.h.b16 %v5539
        %v5749 = vunpack.c.l.b16 %v5540
        %v5750 = vunpack.c.h.b16 %v5540
        %v5751 = vunpack.c.l.b16 %v5541
        %v5752 = vunpack.c.h.b16 %v5541
        %v5753 = vunpack.c.l.b16 %v5542
        %v5754 = vunpack.c.h.b16 %v5542
        %v5755 = vunpack.c.l.b16 %v5543
        %v5756 = vunpack.c.h.b16 %v5543
        %v5757 = vunpack.c.l.b16 %v5544
        %v5758 = vunpack.c.h.b16 %v5544
        %v5759 = vunpack.c.l.b16 %v5545
        %v5760 = vunpack.c.h.b16 %v5545
        %v5761 = vunpack.c.l.b16 %v5546
        %v5762 = vunpack.c.h.b16 %v5546
        %v5763 = vunpack.c.l.b16 %v5547
        %v5764 = vunpack.c.h.b16 %v5547
        %v5765 = vunpack.c.l.b16 %v5548
        %v5766 = vunpack.c.h.b16 %v5548
        %v5767 = vunpack.c.l.b16 %v5549
        %v5768 = vunpack.c.h.b16 %v5549
        %v5769 = vunpack.c.l.b16 %v5550
        %v5770 = vunpack.c.h.b16 %v5550
        %v5771 = vunpack.c.l.b16 %v5551
        %v5772 = vunpack.c.h.b16 %v5551
        %v5773 = vpack.c.b16 %v5701, %v5701
        %v5774 = vpack.c.b16 %v5702, %v5702
        %v5775 = vpack.c.b16 %v5703, %v5703
        %v5776 = vpack.c.b16 %v5704, %v5704
        %v5777 = vpack.c.b16 %v5705, %v5705
        %v5778 = vpack.c.b16 %v5706, %v5706
        %v5779 = vpack.c.b16 %v5707, %v5707
        %v5780 = vpack.c.b16 %v5708, %v5708
        %v5781 = vpack.c.b16 %v5709, %v5709
        %v5782 = vpack.c.b16 %v5710, %v5710
        %v5783 = vpack.c.b16 %v5711, %v5711
        %v5784 = vpack.c.b16 %v5712, %v5712
        %v5785 = vpack.c.b16 %v5713, %v5713
        %v5786 = vpack.c.b16 %v5714, %v5714
        %v5787 = vpack.c.b16 %v5715, %v5715
        %v5788 = vpack.c.b16 %v5716, %v5716
        %v5789 = vpack.c.b16 %v5717, %v5717
        %v5790 = vpack.c.b16 %v5718, %v5718
        %v5791 = vpack.c.b16 %v5719, %v5719
        %v5792 = vpack.c.b16 %v5720, %v5720
        %v5793 = vpack.c.b16 %v5721, %v5721
        %v5794 = vpack.c.b16 %v5722, %v5722
        %v5795 = vpack.c.b16 %v5723, %v5723
        %v5796 = vpack.c.b16 %v5724, %v5724
        %v5797 = vpack.c.b16 %v5725, %v5725
        %v5798 = vpack.c.b16 %v5726, %v5726
        %v5799 = vpack.c.b16 %v5727, %v5727
        %v5800 = vpack.c.b16 %v5728, %v5728
        %v5801 = vpack.c.b16 %v5729, %v5729
        %v5802 = vpack.c.b16 %v5730, %v5730
        %v5803 = vpack.c.b16 %v5731, %v5731
        %v5804 = vpack.c.b16 %v5732, %v5732
        %v5805 = vpack.c.b16 %v5733, %v5733
        %v5806 = vpack.c.b16 %v5734, %v5734
        %v5807 = vpack.c.b16 %v5735, %v5735
        %v5808 = vpack.c.b16 %v5736, %v5736
        %v5809 = vpack.c.b16 %v5737, %v5737
        %v5810 = vpack.c.b16 %v5738, %v5738
        %v5811 = vpack.c.b16 %v5739, %v5739
        %v5812 = vpack.c.b16 %v5740, %v5740
        %v5813 = vpack.c.b16 %v5741, %v5741
        %v5814 = vpack.c.b16 %v5742, %v5742
        %v5815 = vpack.c.b16 %v5743, %v5743
        %v5816 = vpack.c.b16 %v5744, %v5744
        %v5817 = vpack.c.b16 %v5745, %v5745
        %v5818 = vpack.c.b16 %v5746, %v5746
        %v5819 = vpack.c.b16 %v5747, %v5747
        %v5820 = vpack.c.b16 %v5748, %v5748
        %v5821 = vpack.c.b16 %v5749, %v5749
        %v5822 = vpack.c.b16 %v5750, %v5750
        %v5823 = vpack.c.b16 %v5751, %v5751
        %v5824 = vpack.c.b16 %v5752, %v5752
        %v5825 = vpack.c.b16 %v5753, %v5753
        %v5826 = vpack.c.b16 %v5754, %v5754
        %v5827 = vpack.c.b16 %v5755, %v5755
        %v5828 = vpack.c.b16 %v5756, %v5756
        %v5829 = vpack.c.b16 %v5757, %v5757
        %v5830 = vpack.c.b16 %v5758, %v5758
        %v5831 = vpack.c.b16 %v5759, %v5759
        %v5832 = vpack.c.b16 %v5760, %v5760
        %v5833 = vpack.c.b16 %v5761, %v5761
        %v5834 = vpack.c.b16 %v5762, %v5762
        %v5835 = vpack.c.b16 %v5763, %v5763
        %v5836 = vpack.c.b16 %v5764, %v5764
        %v5837 = vpack.c.b16 %v5765, %v5765
        %v5838 = vpack.c.b16 %v5766, %v5766
        %v5839 = vpack.c.b16 %v5767, %v5767
        %v5840 = vpack.c.b16 %v5768, %v5768
        %v5841 = vpack.c.b16 %v5769, %v5769
        %v5842 = vpack.c.b16 %v5770, %v5770
        %v5843 = vpack.c.b16 %v5771, %v5771
        %v5844 = vpack.c.b16 %v5772, %v5772
        %vm5845 = vsmask.f32 4368
        %vm5846 = vmor %vm5553, %vm5845
        %v5848 = vshrl.u32 %v5773, 16
        %v5850 = vrot.slane %v5848, 7
        %v5851 = vshll.u32 %v5773, 16
        %v5853 = vor.u32 %v5850, %v5851
        %v5854 = vrot.slane %v5850, 4
        %v5856 = vshrl.u32 %v5774, 16
        %v5858 = vrot.slane %v5856, 7
        %v5859 = vshll.u32 %v5774, 16
        %v5861 = vor.u32 %v5858, %v5859
        %v5862 = vsel %vm5846, %v5854, %v5861
        %v5863 = vrot.slane %v5858, 4
        %v5865 = vshrl.u32 %v5775, 16
        %v5867 = vrot.slane %v5865, 7
        %v5868 = vshll.u32 %v5775, 16
        %v5870 = vor.u32 %v5867, %v5868
        %v5871 = vsel %vm5846, %v5863, %v5870
        %v5872 = vrot.slane %v5867, 4
        %v5874 = vshrl.u32 %v5776, 16
        %v5876 = vrot.slane %v5874, 7
        %v5877 = vshll.u32 %v5776, 16
        %v5879 = vor.u32 %v5876, %v5877
        %v5880 = vsel %vm5846, %v5872, %v5879
        %v5881 = vrot.slane %v5876, 4
        %v5883 = vshrl.u32 %v5777, 16
        %v5885 = vrot.slane %v5883, 7
        %v5886 = vshll.u32 %v5777, 16
        %v5888 = vor.u32 %v5885, %v5886
        %v5889 = vrot.slane %v5885, 4
        %v5891 = vshrl.u32 %v5778, 16
        %v5893 = vrot.slane %v5891, 7
        %v5894 = vshll.u32 %v5778, 16
        %v5896 = vor.u32 %v5893, %v5894
        %v5897 = vsel %vm5846, %v5889, %v5896
        %v5898 = vrot.slane %v5893, 4
        %v5900 = vshrl.u32 %v5779, 16
        %v5902 = vrot.slane %v5900, 7
        %v5903 = vshll.u32 %v5779, 16
        %v5905 = vor.u32 %v5902, %v5903
        %v5906 = vsel %vm5846, %v5898, %v5905
        %v5907 = vrot.slane %v5902, 4
        %v5909 = vshrl.u32 %v5780, 16
        %v5911 = vrot.slane %v5909, 7
        %v5912 = vshll.u32 %v5780, 16
        %v5914 = vor.u32 %v5911, %v5912
        %v5915 = vsel %vm5846, %v5907, %v5914
        %v5916 = vrot.slane %v5911, 4
        %v5918 = vshrl.u32 %v5781, 16
        %v5920 = vrot.slane %v5918, 7
        %v5921 = vshll.u32 %v5781, 16
        %v5923 = vor.u32 %v5920, %v5921
        %v5924 = vrot.slane %v5920, 4
        %v5926 = vshrl.u32 %v5782, 16
        %v5928 = vrot.slane %v5926, 7
        %v5929 = vshll.u32 %v5782, 16
        %v5931 = vor.u32 %v5928, %v5929
        %v5932 = vsel %vm5846, %v5924, %v5931
        %v5933 = vrot.slane %v5928, 4
        %v5935 = vshrl.u32 %v5783, 16
        %v5937 = vrot.slane %v5935, 7
        %v5938 = vshll.u32 %v5783, 16
        %v5940 = vor.u32 %v5937, %v5938
        %v5941 = vsel %vm5846, %v5933, %v5940
        %v5942 = vrot.slane %v5937, 4
        %v5944 = vshrl.u32 %v5784, 16
        %v5946 = vrot.slane %v5944, 7
        %v5947 = vshll.u32 %v5784, 16
        %v5949 = vor.u32 %v5946, %v5947
        %v5950 = vsel %vm5846, %v5942, %v5949
        %v5951 = vrot.slane %v5946, 4
        %v5953 = vshrl.u32 %v5785, 16
        %v5955 = vrot.slane %v5953, 7
        %v5956 = vshll.u32 %v5785, 16
        %v5958 = vor.u32 %v5955, %v5956
        %v5959 = vrot.slane %v5955, 4
        %v5961 = vshrl.u32 %v5786, 16
        %v5963 = vrot.slane %v5961, 7
        %v5964 = vshll.u32 %v5786, 16
        %v5966 = vor.u32 %v5963, %v5964
        %v5967 = vsel %vm5846, %v5959, %v5966
        %v5968 = vrot.slane %v5963, 4
        %v5970 = vshrl.u32 %v5787, 16
        %v5972 = vrot.slane %v5970, 7
        %v5973 = vshll.u32 %v5787, 16
        %v5975 = vor.u32 %v5972, %v5973
        %v5976 = vsel %vm5846, %v5968, %v5975
        %v5977 = vrot.slane %v5972, 4
        %v5979 = vshrl.u32 %v5788, 16
        %v5981 = vrot.slane %v5979, 7
        %v5982 = vshll.u32 %v5788, 16
        %v5984 = vor.u32 %v5981, %v5982
        %v5985 = vsel %vm5846, %v5977, %v5984
        %v5986 = vrot.slane %v5981, 4
        %v5988 = vshrl.u32 %v5789, 16
        %v5990 = vrot.slane %v5988, 7
        %v5991 = vshll.u32 %v5789, 16
        %v5993 = vor.u32 %v5990, %v5991
        %v5994 = vrot.slane %v5990, 4
        %v5996 = vshrl.u32 %v5790, 16
        %v5998 = vrot.slane %v5996, 7
        %v5999 = vshll.u32 %v5790, 16
        %v6001 = vor.u32 %v5998, %v5999
        %v6002 = vsel %vm5846, %v5994, %v6001
        %v6003 = vrot.slane %v5998, 4
        %v6005 = vshrl.u32 %v5791, 16
        %v6007 = vrot.slane %v6005, 7
        %v6008 = vshll.u32 %v5791, 16
        %v6010 = vor.u32 %v6007, %v6008
        %v6011 = vsel %vm5846, %v6003, %v6010
        %v6012 = vrot.slane %v6007, 4
        %v6014 = vshrl.u32 %v5792, 16
        %v6016 = vrot.slane %v6014, 7
        %v6017 = vshll.u32 %v5792, 16
        %v6019 = vor.u32 %v6016, %v6017
        %v6020 = vsel %vm5846, %v6012, %v6019
        %v6021 = vrot.slane %v6016, 4
        %v6023 = vshrl.u32 %v5793, 16
        %v6025 = vrot.slane %v6023, 7
        %v6026 = vshll.u32 %v5793, 16
        %v6028 = vor.u32 %v6025, %v6026
        %v6029 = vrot.slane %v6025, 4
        %v6031 = vshrl.u32 %v5794, 16
        %v6033 = vrot.slane %v6031, 7
        %v6034 = vshll.u32 %v5794, 16
        %v6036 = vor.u32 %v6033, %v6034
        %v6037 = vsel %vm5846, %v6029, %v6036
        %v6038 = vrot.slane %v6033, 4
        %v6040 = vshrl.u32 %v5795, 16
        %v6042 = vrot.slane %v6040, 7
        %v6043 = vshll.u32 %v5795, 16
        %v6045 = vor.u32 %v6042, %v6043
        %v6046 = vsel %vm5846, %v6038, %v6045
        %v6047 = vrot.slane %v6042, 4
        %v6049 = vshrl.u32 %v5796, 16
        %v6051 = vrot.slane %v6049, 7
        %v6052 = vshll.u32 %v5796, 16
        %v6054 = vor.u32 %v6051, %v6052
        %v6055 = vsel %vm5846, %v6047, %v6054
        %v6056 = vrot.slane %v6051, 4
        %v6058 = vshrl.u32 %v5797, 16
        %v6060 = vrot.slane %v6058, 7
        %v6061 = vshll.u32 %v5797, 16
        %v6063 = vor.u32 %v6060, %v6061
        %v6064 = vrot.slane %v6060, 4
        %v6066 = vshrl.u32 %v5798, 16
        %v6068 = vrot.slane %v6066, 7
        %v6069 = vshll.u32 %v5798, 16
        %v6071 = vor.u32 %v6068, %v6069
        %v6072 = vsel %vm5846, %v6064, %v6071
        %v6073 = vrot.slane %v6068, 4
        %v6075 = vshrl.u32 %v5799, 16
        %v6077 = vrot.slane %v6075, 7
        %v6078 = vshll.u32 %v5799, 16
        %v6080 = vor.u32 %v6077, %v6078
        %v6081 = vsel %vm5846, %v6073, %v6080
        %v6082 = vrot.slane %v6077, 4
        %v6084 = vshrl.u32 %v5800, 16
        %v6086 = vrot.slane %v6084, 7
        %v6087 = vshll.u32 %v5800, 16
        %v6089 = vor.u32 %v6086, %v6087
        %v6090 = vsel %vm5846, %v6082, %v6089
        %v6091 = vrot.slane %v6086, 4
        %v6093 = vshrl.u32 %v5801, 16
        %v6095 = vrot.slane %v6093, 7
        %v6096 = vshll.u32 %v5801, 16
        %v6098 = vor.u32 %v6095, %v6096
        %v6099 = vrot.slane %v6095, 4
        %v6101 = vshrl.u32 %v5802, 16
        %v6103 = vrot.slane %v6101, 7
        %v6104 = vshll.u32 %v5802, 16
        %v6106 = vor.u32 %v6103, %v6104
        %v6107 = vsel %vm5846, %v6099, %v6106
        %v6108 = vrot.slane %v6103, 4
        %v6110 = vshrl.u32 %v5803, 16
        %v6112 = vrot.slane %v6110, 7
        %v6113 = vshll.u32 %v5803, 16
        %v6115 = vor.u32 %v6112, %v6113
        %v6116 = vsel %vm5846, %v6108, %v6115
        %v6117 = vrot.slane %v6112, 4
        %v6119 = vshrl.u32 %v5804, 16
        %v6121 = vrot.slane %v6119, 7
        %v6122 = vshll.u32 %v5804, 16
        %v6124 = vor.u32 %v6121, %v6122
        %v6125 = vsel %vm5846, %v6117, %v6124
        %v6126 = vrot.slane %v6121, 4
        %v6128 = vshrl.u32 %v5805, 16
        %v6130 = vrot.slane %v6128, 7
        %v6131 = vshll.u32 %v5805, 16
        %v6133 = vor.u32 %v6130, %v6131
        %v6134 = vrot.slane %v6130, 4
        %v6136 = vshrl.u32 %v5806, 16
        %v6138 = vrot.slane %v6136, 7
        %v6139 = vshll.u32 %v5806, 16
        %v6141 = vor.u32 %v6138, %v6139
        %v6142 = vsel %vm5846, %v6134, %v6141
        %v6143 = vrot.slane %v6138, 4
        %v6145 = vshrl.u32 %v5807, 16
        %v6147 = vrot.slane %v6145, 7
        %v6148 = vshll.u32 %v5807, 16
        %v6150 = vor.u32 %v6147, %v6148
        %v6151 = vsel %vm5846, %v6143, %v6150
        %v6152 = vrot.slane %v6147, 4
        %v6154 = vshrl.u32 %v5808, 16
        %v6156 = vrot.slane %v6154, 7
        %v6157 = vshll.u32 %v5808, 16
        %v6159 = vor.u32 %v6156, %v6157
        %v6160 = vsel %vm5846, %v6152, %v6159
        %v6161 = vrot.slane %v6156, 4
        %v6163 = vshrl.u32 %v5809, 16
        %v6165 = vrot.slane %v6163, 7
        %v6166 = vshll.u32 %v5809, 16
        %v6168 = vor.u32 %v6165, %v6166
        %v6169 = vrot.slane %v6165, 4
        %v6171 = vshrl.u32 %v5810, 16
        %v6173 = vrot.slane %v6171, 7
        %v6174 = vshll.u32 %v5810, 16
        %v6176 = vor.u32 %v6173, %v6174
        %v6177 = vsel %vm5846, %v6169, %v6176
        %v6178 = vrot.slane %v6173, 4
        %v6180 = vshrl.u32 %v5811, 16
        %v6182 = vrot.slane %v6180, 7
        %v6183 = vshll.u32 %v5811, 16
        %v6185 = vor.u32 %v6182, %v6183
        %v6186 = vsel %vm5846, %v6178, %v6185
        %v6187 = vrot.slane %v6182, 4
        %v6189 = vshrl.u32 %v5812, 16
        %v6191 = vrot.slane %v6189, 7
        %v6192 = vshll.u32 %v5812, 16
        %v6194 = vor.u32 %v6191, %v6192
        %v6195 = vsel %vm5846, %v6187, %v6194
        %v6196 = vrot.slane %v6191, 4
        %v6198 = vshrl.u32 %v5813, 16
        %v6200 = vrot.slane %v6198, 7
        %v6201 = vshll.u32 %v5813, 16
        %v6203 = vor.u32 %v6200, %v6201
        %v6204 = vrot.slane %v6200, 4
        %v6206 = vshrl.u32 %v5814, 16
        %v6208 = vrot.slane %v6206, 7
        %v6209 = vshll.u32 %v5814, 16
        %v6211 = vor.u32 %v6208, %v6209
        %v6212 = vsel %vm5846, %v6204, %v6211
        %v6213 = vrot.slane %v6208, 4
        %v6215 = vshrl.u32 %v5815, 16
        %v6217 = vrot.slane %v6215, 7
        %v6218 = vshll.u32 %v5815, 16
        %v6220 = vor.u32 %v6217, %v6218
        %v6221 = vsel %vm5846, %v6213, %v6220
        %v6222 = vrot.slane %v6217, 4
        %v6224 = vshrl.u32 %v5816, 16
        %v6226 = vrot.slane %v6224, 7
        %v6227 = vshll.u32 %v5816, 16
        %v6229 = vor.u32 %v6226, %v6227
        %v6230 = vsel %vm5846, %v6222, %v6229
        %v6231 = vrot.slane %v6226, 4
        %v6233 = vshrl.u32 %v5817, 16
        %v6235 = vrot.slane %v6233, 7
        %v6236 = vshll.u32 %v5817, 16
        %v6238 = vor.u32 %v6235, %v6236
        %v6239 = vrot.slane %v6235, 4
        %v6241 = vshrl.u32 %v5818, 16
        %v6243 = vrot.slane %v6241, 7
        %v6244 = vshll.u32 %v5818, 16
        %v6246 = vor.u32 %v6243, %v6244
        %v6247 = vsel %vm5846, %v6239, %v6246
        %v6248 = vrot.slane %v6243, 4
        %v6250 = vshrl.u32 %v5819, 16
        %v6252 = vrot.slane %v6250, 7
        %v6253 = vshll.u32 %v5819, 16
        %v6255 = vor.u32 %v6252, %v6253
        %v6256 = vsel %vm5846, %v6248, %v6255
        %v6257 = vrot.slane %v6252, 4
        %v6259 = vshrl.u32 %v5820, 16
        %v6261 = vrot.slane %v6259, 7
        %v6262 = vshll.u32 %v5820, 16
        %v6264 = vor.u32 %v6261, %v6262
        %v6265 = vsel %vm5846, %v6257, %v6264
        %v6266 = vrot.slane %v6261, 4
        %v6268 = vshrl.u32 %v5821, 16
        %v6270 = vrot.slane %v6268, 7
        %v6271 = vshll.u32 %v5821, 16
        %v6273 = vor.u32 %v6270, %v6271
        %v6274 = vrot.slane %v6270, 4
        %v6276 = vshrl.u32 %v5822, 16
        %v6278 = vrot.slane %v6276, 7
        %v6279 = vshll.u32 %v5822, 16
        %v6281 = vor.u32 %v6278, %v6279
        %v6282 = vsel %vm5846, %v6274, %v6281
        %v6283 = vrot.slane %v6278, 4
        %v6285 = vshrl.u32 %v5823, 16
        %v6287 = vrot.slane %v6285, 7
        %v6288 = vshll.u32 %v5823, 16
        %v6290 = vor.u32 %v6287, %v6288
        %v6291 = vsel %vm5846, %v6283, %v6290
        %v6292 = vrot.slane %v6287, 4
        %v6294 = vshrl.u32 %v5824, 16
        %v6296 = vrot.slane %v6294, 7
        %v6297 = vshll.u32 %v5824, 16
        %v6299 = vor.u32 %v6296, %v6297
        %v6300 = vsel %vm5846, %v6292, %v6299
        %v6301 = vrot.slane %v6296, 4
        %v6303 = vshrl.u32 %v5825, 16
        %v6305 = vrot.slane %v6303, 7
        %v6306 = vshll.u32 %v5825, 16
        %v6308 = vor.u32 %v6305, %v6306
        %v6309 = vrot.slane %v6305, 4
        %v6311 = vshrl.u32 %v5826, 16
        %v6313 = vrot.slane %v6311, 7
        %v6314 = vshll.u32 %v5826, 16
        %v6316 = vor.u32 %v6313, %v6314
        %v6317 = vsel %vm5846, %v6309, %v6316
        %v6318 = vrot.slane %v6313, 4
        %v6320 = vshrl.u32 %v5827, 16
        %v6322 = vrot.slane %v6320, 7
        %v6323 = vshll.u32 %v5827, 16
        %v6325 = vor.u32 %v6322, %v6323
        %v6326 = vsel %vm5846, %v6318, %v6325
        %v6327 = vrot.slane %v6322, 4
        %v6329 = vshrl.u32 %v5828, 16
        %v6331 = vrot.slane %v6329, 7
        %v6332 = vshll.u32 %v5828, 16
        %v6334 = vor.u32 %v6331, %v6332
        %v6335 = vsel %vm5846, %v6327, %v6334
        %v6336 = vrot.slane %v6331, 4
        %v6338 = vshrl.u32 %v5829, 16
        %v6340 = vrot.slane %v6338, 7
        %v6341 = vshll.u32 %v5829, 16
        %v6343 = vor.u32 %v6340, %v6341
        %v6344 = vrot.slane %v6340, 4
        %v6346 = vshrl.u32 %v5830, 16
        %v6348 = vrot.slane %v6346, 7
        %v6349 = vshll.u32 %v5830, 16
        %v6351 = vor.u32 %v6348, %v6349
        %v6352 = vsel %vm5846, %v6344, %v6351
        %v6353 = vrot.slane %v6348, 4
        %v6355 = vshrl.u32 %v5831, 16
        %v6357 = vrot.slane %v6355, 7
        %v6358 = vshll.u32 %v5831, 16
        %v6360 = vor.u32 %v6357, %v6358
        %v6361 = vsel %vm5846, %v6353, %v6360
        %v6362 = vrot.slane %v6357, 4
        %v6364 = vshrl.u32 %v5832, 16
        %v6366 = vrot.slane %v6364, 7
        %v6367 = vshll.u32 %v5832, 16
        %v6369 = vor.u32 %v6366, %v6367
        %v6370 = vsel %vm5846, %v6362, %v6369
        %v6371 = vrot.slane %v6366, 4
        %v6373 = vshrl.u32 %v5833, 16
        %v6375 = vrot.slane %v6373, 7
        %v6376 = vshll.u32 %v5833, 16
        %v6378 = vor.u32 %v6375, %v6376
        %v6379 = vrot.slane %v6375, 4
        %v6381 = vshrl.u32 %v5834, 16
        %v6383 = vrot.slane %v6381, 7
        %v6384 = vshll.u32 %v5834, 16
        %v6386 = vor.u32 %v6383, %v6384
        %v6387 = vsel %vm5846, %v6379, %v6386
        %v6388 = vrot.slane %v6383, 4
        %v6390 = vshrl.u32 %v5835, 16
        %v6392 = vrot.slane %v6390, 7
        %v6393 = vshll.u32 %v5835, 16
        %v6395 = vor.u32 %v6392, %v6393
        %v6396 = vsel %vm5846, %v6388, %v6395
        %v6397 = vrot.slane %v6392, 4
        %v6399 = vshrl.u32 %v5836, 16
        %v6401 = vrot.slane %v6399, 7
        %v6402 = vshll.u32 %v5836, 16
        %v6404 = vor.u32 %v6401, %v6402
        %v6405 = vsel %vm5846, %v6397, %v6404
        %v6406 = vrot.slane %v6401, 4
        %v6408 = vshrl.u32 %v5837, 16
        %v6410 = vrot.slane %v6408, 7
        %v6411 = vshll.u32 %v5837, 16
        %v6413 = vor.u32 %v6410, %v6411
        %v6414 = vrot.slane %v6410, 4
        %v6416 = vshrl.u32 %v5838, 16
        %v6418 = vrot.slane %v6416, 7
        %v6419 = vshll.u32 %v5838, 16
        %v6421 = vor.u32 %v6418, %v6419
        %v6422 = vsel %vm5846, %v6414, %v6421
        %v6423 = vrot.slane %v6418, 4
        %v6425 = vshrl.u32 %v5839, 16
        %v6427 = vrot.slane %v6425, 7
        %v6428 = vshll.u32 %v5839, 16
        %v6430 = vor.u32 %v6427, %v6428
        %v6431 = vsel %vm5846, %v6423, %v6430
        %v6432 = vrot.slane %v6427, 4
        %v6434 = vshrl.u32 %v5840, 16
        %v6436 = vrot.slane %v6434, 7
        %v6437 = vshll.u32 %v5840, 16
        %v6439 = vor.u32 %v6436, %v6437
        %v6440 = vsel %vm5846, %v6432, %v6439
        %v6441 = vrot.slane %v6436, 4
        %v6443 = vshrl.u32 %v5841, 16
        %v6445 = vrot.slane %v6443, 7
        %v6446 = vshll.u32 %v5841, 16
        %v6448 = vor.u32 %v6445, %v6446
        %v6449 = vrot.slane %v6445, 4
        %v6451 = vshrl.u32 %v5842, 16
        %v6453 = vrot.slane %v6451, 7
        %v6454 = vshll.u32 %v5842, 16
        %v6456 = vor.u32 %v6453, %v6454
        %v6457 = vsel %vm5846, %v6449, %v6456
        %v6458 = vrot.slane %v6453, 4
        %v6460 = vshrl.u32 %v5843, 16
        %v6462 = vrot.slane %v6460, 7
        %v6463 = vshll.u32 %v5843, 16
        %v6465 = vor.u32 %v6462, %v6463
        %v6466 = vsel %vm5846, %v6458, %v6465
        %v6467 = vrot.slane %v6462, 4
        %v6469 = vshrl.u32 %v5844, 16
        %v6471 = vrot.slane %v6469, 7
        %v6472 = vshll.u32 %v5844, 16
        %v6474 = vor.u32 %v6471, %v6472
        %v6475 = vsel %vm5846, %v6467, %v6474
        %v6476 = vrot.slane %v6471, 4
        %vm6567 = vcmask 1043456
        %vm6568 = vmand %vm6567, %vm5609
        %v6569 = vld [vmem:[#allocation2] sm:$0xf]
        %v6570 = vsel %vm6568, %v5853, %v6569
        %6571 = vst [vmem:[#allocation2] sm:$0xf] %v6570
        %6572 = vst [vmem:[#allocation2 + $0x4] sm:$0xf] %v5862
        %6573 = vst [vmem:[#allocation2 + $0x8] sm:$0xf] %v5871
        %6574 = vst [vmem:[#allocation2 + $0xc] sm:$0xf] %v5880
        %v6575 = vld [vmem:[#allocation2 + $0x10] sm:$0x1]
        %v6576 = vsel %vm5554, %v5881, %v6575
        %6577 = vst [vmem:[#allocation2 + $0x10] sm:$0x1] %v6576
        %v6578 = vld [vmem:[#allocation2 + $0x14] sm:$0xf]
        %v6579 = vsel %vm6568, %v5888, %v6578
        %6580 = vst [vmem:[#allocation2 + $0x14] sm:$0xf] %v6579
        %6581 = vst [vmem:[#allocation2 + $0x18] sm:$0xf] %v5897
        %6582 = vst [vmem:[#allocation2 + $0x1c] sm:$0xf] %v5906
        %6583 = vst [vmem:[#allocation2 + $0x20] sm:$0xf] %v5915
        %v6584 = vld [vmem:[#allocation2 + $0x24] sm:$0x1]
        %v6585 = vsel %vm5554, %v5916, %v6584
        %6586 = vst [vmem:[#allocation2 + $0x24] sm:$0x1] %v6585
        %v6587 = vld [vmem:[#allocation2 + $0x28] sm:$0xf]
        %v6588 = vsel %vm6568, %v5923, %v6587
        %6589 = vst [vmem:[#allocation2 + $0x28] sm:$0xf] %v6588
        %6590 = vst [vmem:[#allocation2 + $0x2c] sm:$0xf] %v5932
        %6591 = vst [vmem:[#allocation2 + $0x30] sm:$0xf] %v5941
        %6592 = vst [vmem:[#allocation2 + $0x34] sm:$0xf] %v5950
        %v6593 = vld [vmem:[#allocation2 + $0x38] sm:$0x1]
        %v6594 = vsel %vm5554, %v5951, %v6593
        %6595 = vst [vmem:[#allocation2 + $0x38] sm:$0x1] %v6594
        %v6596 = vld [vmem:[#allocation2 + $0x3c] sm:$0xf]
        %v6597 = vsel %vm6568, %v5958, %v6596
        %6598 = vst [vmem:[#allocation2 + $0x3c] sm:$0xf] %v6597
        %6599 = vst [vmem:[#allocation2 + $0x40] sm:$0xf] %v5967
        %6600 = vst [vmem:[#allocation2 + $0x44] sm:$0xf] %v5976
        %6601 = vst [vmem:[#allocation2 + $0x48] sm:$0xf] %v5985
        %v6602 = vld [vmem:[#allocation2 + $0x4c] sm:$0x1]
        %v6603 = vsel %vm5554, %v5986, %v6602
        %6604 = vst [vmem:[#allocation2 + $0x4c] sm:$0x1] %v6603
        %v6605 = vld [vmem:[#allocation2 + $0x50] sm:$0xf]
        %v6606 = vsel %vm6568, %v5993, %v6605
        %6607 = vst [vmem:[#allocation2 + $0x50] sm:$0xf] %v6606
        %6608 = vst [vmem:[#allocation2 + $0x54] sm:$0xf] %v6002
        %6609 = vst [vmem:[#allocation2 + $0x58] sm:$0xf] %v6011
        %6610 = vst [vmem:[#allocation2 + $0x5c] sm:$0xf] %v6020
        %v6611 = vld [vmem:[#allocation2 + $0x60] sm:$0x1]
        %v6612 = vsel %vm5554, %v6021, %v6611
        %6613 = vst [vmem:[#allocation2 + $0x60] sm:$0x1] %v6612
        %v6614 = vld [vmem:[#allocation2 + $0x64] sm:$0xf]
        %v6615 = vsel %vm6568, %v6028, %v6614
        %6616 = vst [vmem:[#allocation2 + $0x64] sm:$0xf] %v6615
        %6617 = vst [vmem:[#allocation2 + $0x68] sm:$0xf] %v6037
        %6618 = vst [vmem:[#allocation2 + $0x6c] sm:$0xf] %v6046
        %6619 = vst [vmem:[#allocation2 + $0x70] sm:$0xf] %v6055
        %v6620 = vld [vmem:[#allocation2 + $0x74] sm:$0x1]
        %v6621 = vsel %vm5554, %v6056, %v6620
        %6622 = vst [vmem:[#allocation2 + $0x74] sm:$0x1] %v6621
        %v6623 = vld [vmem:[#allocation2 + $0x78] sm:$0xf]
        %v6624 = vsel %vm6568, %v6063, %v6623
        %6625 = vst [vmem:[#allocation2 + $0x78] sm:$0xf] %v6624
        %6626 = vst [vmem:[#allocation2 + $0x7c] sm:$0xf] %v6072
        %6627 = vst [vmem:[#allocation2 + $0x80] sm:$0xf] %v6081
        %6628 = vst [vmem:[#allocation2 + $0x84] sm:$0xf] %v6090
        %v6629 = vld [vmem:[#allocation2 + $0x88] sm:$0x1]
        %v6630 = vsel %vm5554, %v6091, %v6629
        %6631 = vst [vmem:[#allocation2 + $0x88] sm:$0x1] %v6630
        %v6632 = vld [vmem:[#allocation2 + $0x8c] sm:$0xf]
        %v6633 = vsel %vm6568, %v6098, %v6632
        %6634 = vst [vmem:[#allocation2 + $0x8c] sm:$0xf] %v6633
        %6635 = vst [vmem:[#allocation2 + $0x90] sm:$0xf] %v6107
        %6636 = vst [vmem:[#allocation2 + $0x94] sm:$0xf] %v6116
        %6637 = vst [vmem:[#allocation2 + $0x98] sm:$0xf] %v6125
        %v6638 = vld [vmem:[#allocation2 + $0x9c] sm:$0x1]
        %v6639 = vsel %vm5554, %v6126, %v6638
        %6640 = vst [vmem:[#allocation2 + $0x9c] sm:$0x1] %v6639
        %v6641 = vld [vmem:[#allocation2 + $0xa0] sm:$0xf]
        %v6642 = vsel %vm6568, %v6133, %v6641
        %6643 = vst [vmem:[#allocation2 + $0xa0] sm:$0xf] %v6642
        %6644 = vst [vmem:[#allocation2 + $0xa4] sm:$0xf] %v6142
        %6645 = vst [vmem:[#allocation2 + $0xa8] sm:$0xf] %v6151
        %6646 = vst [vmem:[#allocation2 + $0xac] sm:$0xf] %v6160
        %v6647 = vld [vmem:[#allocation2 + $0xb0] sm:$0x1]
        %v6648 = vsel %vm5554, %v6161, %v6647
        %6649 = vst [vmem:[#allocation2 + $0xb0] sm:$0x1] %v6648
        %v6650 = vld [vmem:[#allocation2 + $0xb4] sm:$0xf]
        %v6651 = vsel %vm6568, %v6168, %v6650
        %6652 = vst [vmem:[#allocation2 + $0xb4] sm:$0xf] %v6651
        %6653 = vst [vmem:[#allocation2 + $0xb8] sm:$0xf] %v6177
        %6654 = vst [vmem:[#allocation2 + $0xbc] sm:$0xf] %v6186
        %6655 = vst [vmem:[#allocation2 + $0xc0] sm:$0xf] %v6195
        %v6656 = vld [vmem:[#allocation2 + $0xc4] sm:$0x1]
        %v6657 = vsel %vm5554, %v6196, %v6656
        %6658 = vst [vmem:[#allocation2 + $0xc4] sm:$0x1] %v6657
        %v6659 = vld [vmem:[#allocation2 + $0xc8] sm:$0xf]
        %v6660 = vsel %vm6568, %v6203, %v6659
        %6661 = vst [vmem:[#allocation2 + $0xc8] sm:$0xf] %v6660
        %6662 = vst [vmem:[#allocation2 + $0xcc] sm:$0xf] %v6212
        %6663 = vst [vmem:[#allocation2 + $0xd0] sm:$0xf] %v6221
        %6664 = vst [vmem:[#allocation2 + $0xd4] sm:$0xf] %v6230
        %v6665 = vld [vmem:[#allocation2 + $0xd8] sm:$0x1]
        %v6666 = vsel %vm5554, %v6231, %v6665
        %6667 = vst [vmem:[#allocation2 + $0xd8] sm:$0x1] %v6666
        %v6668 = vld [vmem:[#allocation2 + $0xdc] sm:$0xf]
        %v6669 = vsel %vm6568, %v6238, %v6668
        %6670 = vst [vmem:[#allocation2 + $0xdc] sm:$0xf] %v6669
        %6671 = vst [vmem:[#allocation2 + $0xe0] sm:$0xf] %v6247
        %6672 = vst [vmem:[#allocation2 + $0xe4] sm:$0xf] %v6256
        %6673 = vst [vmem:[#allocation2 + $0xe8] sm:$0xf] %v6265
        %v6674 = vld [vmem:[#allocation2 + $0xec] sm:$0x1]
        %v6675 = vsel %vm5554, %v6266, %v6674
        %6676 = vst [vmem:[#allocation2 + $0xec] sm:$0x1] %v6675
        %v6677 = vld [vmem:[#allocation2 + $0xf0] sm:$0xf]
        %v6678 = vsel %vm6568, %v6273, %v6677
        %6679 = vst [vmem:[#allocation2 + $0xf0] sm:$0xf] %v6678
        %6680 = vst [vmem:[#allocation2 + $0xf4] sm:$0xf] %v6282
        %6681 = vst [vmem:[#allocation2 + $0xf8] sm:$0xf] %v6291
        %6682 = vst [vmem:[#allocation2 + $0xfc] sm:$0xf] %v6300
        %v6683 = vld [vmem:[#allocation2 + $0x100] sm:$0x1]
        %v6684 = vsel %vm5554, %v6301, %v6683
        %6685 = vst [vmem:[#allocation2 + $0x100] sm:$0x1] %v6684
        %v6686 = vld [vmem:[#allocation2 + $0x104] sm:$0xf]
        %v6687 = vsel %vm6568, %v6308, %v6686
        %6688 = vst [vmem:[#allocation2 + $0x104] sm:$0xf] %v6687
        %6689 = vst [vmem:[#allocation2 + $0x108] sm:$0xf] %v6317
        %6690 = vst [vmem:[#allocation2 + $0x10c] sm:$0xf] %v6326
        %6691 = vst [vmem:[#allocation2 + $0x110] sm:$0xf] %v6335
        %v6692 = vld [vmem:[#allocation2 + $0x114] sm:$0x1]
        %v6693 = vsel %vm5554, %v6336, %v6692
        %6694 = vst [vmem:[#allocation2 + $0x114] sm:$0x1] %v6693
        %v6695 = vld [vmem:[#allocation2 + $0x118] sm:$0xf]
        %v6696 = vsel %vm6568, %v6343, %v6695
        %6697 = vst [vmem:[#allocation2 + $0x118] sm:$0xf] %v6696
        %6698 = vst [vmem:[#allocation2 + $0x11c] sm:$0xf] %v6352
        %6699 = vst [vmem:[#allocation2 + $0x120] sm:$0xf] %v6361
        %6700 = vst [vmem:[#allocation2 + $0x124] sm:$0xf] %v6370
        %v6701 = vld [vmem:[#allocation2 + $0x128] sm:$0x1]
        %v6702 = vsel %vm5554, %v6371, %v6701
        %6703 = vst [vmem:[#allocation2 + $0x128] sm:$0x1] %v6702
        %v6704 = vld [vmem:[#allocation2 + $0x12c] sm:$0xf]
        %v6705 = vsel %vm6568, %v6378, %v6704
        %6706 = vst [vmem:[#allocation2 + $0x12c] sm:$0xf] %v6705
        %6707 = vst [vmem:[#allocation2 + $0x130] sm:$0xf] %v6387
        %6708 = vst [vmem:[#allocation2 + $0x134] sm:$0xf] %v6396
        %6709 = vst [vmem:[#allocation2 + $0x138] sm:$0xf] %v6405
        %v6710 = vld [vmem:[#allocation2 + $0x13c] sm:$0x1]
        %v6711 = vsel %vm5554, %v6406, %v6710
        %6712 = vst [vmem:[#allocation2 + $0x13c] sm:$0x1] %v6711
        %v6713 = vld [vmem:[#allocation2 + $0x140] sm:$0xf]
        %v6714 = vsel %vm6568, %v6413, %v6713
        %6715 = vst [vmem:[#allocation2 + $0x140] sm:$0xf] %v6714
        %6716 = vst [vmem:[#allocation2 + $0x144] sm:$0xf] %v6422
        %6717 = vst [vmem:[#allocation2 + $0x148] sm:$0xf] %v6431
        %6718 = vst [vmem:[#allocation2 + $0x14c] sm:$0xf] %v6440
        %v6719 = vld [vmem:[#allocation2 + $0x150] sm:$0x1]
        %v6720 = vsel %vm5554, %v6441, %v6719
        %6721 = vst [vmem:[#allocation2 + $0x150] sm:$0x1] %v6720
        %v6722 = vld [vmem:[#allocation2 + $0x154] sm:$0xf]
        %v6723 = vsel %vm6568, %v6448, %v6722
        %6724 = vst [vmem:[#allocation2 + $0x154] sm:$0xf] %v6723
        %6725 = vst [vmem:[#allocation2 + $0x158] sm:$0xf] %v6457
        %6726 = vst [vmem:[#allocation2 + $0x15c] sm:$0xf] %v6466
        %6727 = vst [vmem:[#allocation2 + $0x160] sm:$0xf] %v6475
        %v6728 = vld [vmem:[#allocation2 + $0x164] sm:$0x1]
        %v6729 = vsel %vm5554, %v6476, %v6728
        %6730 = vst [vmem:[#allocation2 + $0x164] sm:$0x1] %v6729
        %v6731 = vld [vmem:[#allocation2] sm:$0xf]
        %v6732 = vld [vmem:[#allocation2 + $0x4] sm:$0xf]
        %v6733 = vld [vmem:[#allocation2 + $0x8] sm:$0xf]
        %v6734 = vld [vmem:[#allocation2 + $0xc] sm:$0xf]
        %v6735 = vld [vmem:[#allocation2 + $0x14] sm:$0xf]
        %v6736 = vld [vmem:[#allocation2 + $0x18] sm:$0xf]
        %v6737 = vld [vmem:[#allocation2 + $0x1c] sm:$0xf]
        %v6738 = vld [vmem:[#allocation2 + $0x20] sm:$0xf]
        %v6739 = vld [vmem:[#allocation2 + $0x28] sm:$0xf]
        %v6740 = vld [vmem:[#allocation2 + $0x2c] sm:$0xf]
        %v6741 = vld [vmem:[#allocation2 + $0x30] sm:$0xf]
        %v6742 = vld [vmem:[#allocation2 + $0x34] sm:$0xf]
        %v6743 = vld [vmem:[#allocation2 + $0x3c] sm:$0xf]
        %v6744 = vld [vmem:[#allocation2 + $0x40] sm:$0xf]
        %v6745 = vld [vmem:[#allocation2 + $0x44] sm:$0xf]
        %v6746 = vld [vmem:[#allocation2 + $0x48] sm:$0xf]
        %v6747 = vld [vmem:[#allocation2 + $0x50] sm:$0xf]
        %v6748 = vld [vmem:[#allocation2 + $0x54] sm:$0xf]
        %v6749 = vld [vmem:[#allocation2 + $0x58] sm:$0xf]
        %v6750 = vld [vmem:[#allocation2 + $0x5c] sm:$0xf]
        %v6751 = vld [vmem:[#allocation2 + $0x64] sm:$0xf]
        %v6752 = vld [vmem:[#allocation2 + $0x68] sm:$0xf]
        %v6753 = vld [vmem:[#allocation2 + $0x6c] sm:$0xf]
        %v6754 = vld [vmem:[#allocation2 + $0x70] sm:$0xf]
        %v6755 = vld [vmem:[#allocation2 + $0x78] sm:$0xf]
        %v6756 = vld [vmem:[#allocation2 + $0x7c] sm:$0xf]
        %v6757 = vld [vmem:[#allocation2 + $0x80] sm:$0xf]
        %v6758 = vld [vmem:[#allocation2 + $0x84] sm:$0xf]
        %v6759 = vld [vmem:[#allocation2 + $0x8c] sm:$0xf]
        %v6760 = vld [vmem:[#allocation2 + $0x90] sm:$0xf]
        %v6761 = vld [vmem:[#allocation2 + $0x94] sm:$0xf]
        %v6762 = vld [vmem:[#allocation2 + $0x98] sm:$0xf]
        %v6763 = vld [vmem:[#allocation2 + $0xa0] sm:$0xf]
        %v6764 = vld [vmem:[#allocation2 + $0xa4] sm:$0xf]
        %v6765 = vld [vmem:[#allocation2 + $0xa8] sm:$0xf]
        %v6766 = vld [vmem:[#allocation2 + $0xac] sm:$0xf]
        %v6767 = vld [vmem:[#allocation2 + $0xb4] sm:$0xf]
        %v6768 = vld [vmem:[#allocation2 + $0xb8] sm:$0xf]
        %v6769 = vld [vmem:[#allocation2 + $0xbc] sm:$0xf]
        %v6770 = vld [vmem:[#allocation2 + $0xc0] sm:$0xf]
        %v6771 = vld [vmem:[#allocation2 + $0xc8] sm:$0xf]
        %v6772 = vld [vmem:[#allocation2 + $0xcc] sm:$0xf]
        %v6773 = vld [vmem:[#allocation2 + $0xd0] sm:$0xf]
        %v6774 = vld [vmem:[#allocation2 + $0xd4] sm:$0xf]
        %v6775 = vld [vmem:[#allocation2 + $0xdc] sm:$0xf]
        %v6776 = vld [vmem:[#allocation2 + $0xe0] sm:$0xf]
        %v6777 = vld [vmem:[#allocation2 + $0xe4] sm:$0xf]
        %v6778 = vld [vmem:[#allocation2 + $0xe8] sm:$0xf]
        %v6779 = vld [vmem:[#allocation2 + $0xf0] sm:$0xf]
        %v6780 = vld [vmem:[#allocation2 + $0xf4] sm:$0xf]
        %v6781 = vld [vmem:[#allocation2 + $0xf8] sm:$0xf]
        %v6782 = vld [vmem:[#allocation2 + $0xfc] sm:$0xf]
        %v6783 = vld [vmem:[#allocation2 + $0x104] sm:$0xf]
        %v6784 = vld [vmem:[#allocation2 + $0x108] sm:$0xf]
        %v6785 = vld [vmem:[#allocation2 + $0x10c] sm:$0xf]
        %v6786 = vld [vmem:[#allocation2 + $0x110] sm:$0xf]
        %v6787 = vld [vmem:[#allocation2 + $0x118] sm:$0xf]
        %v6788 = vld [vmem:[#allocation2 + $0x11c] sm:$0xf]
        %v6789 = vld [vmem:[#allocation2 + $0x120] sm:$0xf]
        %v6790 = vld [vmem:[#allocation2 + $0x124] sm:$0xf]
        %v6791 = vld [vmem:[#allocation2 + $0x12c] sm:$0xf]
        %v6792 = vld [vmem:[#allocation2 + $0x130] sm:$0xf]
        %v6793 = vld [vmem:[#allocation2 + $0x134] sm:$0xf]
        %v6794 = vld [vmem:[#allocation2 + $0x138] sm:$0xf]
        %v6795 = vld [vmem:[#allocation2 + $0x10] sm:$0x1]
        %v6796 = vld [vmem:[#allocation2 + $0x24] sm:$0x1]
        %v6797 = vld [vmem:[#allocation2 + $0x38] sm:$0x1]
        %v6798 = vld [vmem:[#allocation2 + $0x4c] sm:$0x1]
        %v6799 = vld [vmem:[#allocation2 + $0x60] sm:$0x1]
        %v6800 = vld [vmem:[#allocation2 + $0x74] sm:$0x1]
        %v6801 = vld [vmem:[#allocation2 + $0x88] sm:$0x1]
        %v6802 = vld [vmem:[#allocation2 + $0x9c] sm:$0x1]
        %v6803 = vld [vmem:[#allocation2 + $0xb0] sm:$0x1]
        %v6804 = vld [vmem:[#allocation2 + $0xc4] sm:$0x1]
        %v6805 = vld [vmem:[#allocation2 + $0xd8] sm:$0x1]
        %v6806 = vld [vmem:[#allocation2 + $0xec] sm:$0x1]
        %v6807 = vld [vmem:[#allocation2 + $0x100] sm:$0x1]
        %v6808 = vld [vmem:[#allocation2 + $0x114] sm:$0x1]
        %v6809 = vld [vmem:[#allocation2 + $0x128] sm:$0x1]
        %v6810 = vld [vmem:[#allocation2 + $0x13c] sm:$0x1]
        %v6811 = vld [vmem:[#allocation2] sm:$0xe]
        %v6812 = vld [vmem:[#allocation2 + $0x14] sm:$0xe]
        %v6813 = vld [vmem:[#allocation2 + $0x28] sm:$0xe]
        %v6814 = vld [vmem:[#allocation2 + $0x3c] sm:$0xe]
        %v6815 = vld [vmem:[#allocation2 + $0x50] sm:$0xe]
        %v6816 = vld [vmem:[#allocation2 + $0x64] sm:$0xe]
        %v6817 = vld [vmem:[#allocation2 + $0x78] sm:$0xe]
        %v6818 = vld [vmem:[#allocation2 + $0x8c] sm:$0xe]
        %v6819 = vld [vmem:[#allocation2 + $0xa0] sm:$0xe]
        %v6820 = vld [vmem:[#allocation2 + $0xb4] sm:$0xe]
        %v6821 = vld [vmem:[#allocation2 + $0xc8] sm:$0xe]
        %v6822 = vld [vmem:[#allocation2 + $0xdc] sm:$0xe]
        %v6823 = vld [vmem:[#allocation2 + $0xf0] sm:$0xe]
        %v6824 = vld [vmem:[#allocation2 + $0x104] sm:$0xe]
        %v6825 = vld [vmem:[#allocation2 + $0x118] sm:$0xe]
        %v6826 = vld [vmem:[#allocation2 + $0x12c] sm:$0xe]
        %s6827 = scalar_lea.vmem [#allocation2], 20
        %v6828 = vld [vmem:[%s6827] sm:$0xf]
        %v6829 = vld [vmem:[%s6827 + $0x4] sm:$0xf]
        %v6830 = vld [vmem:[%s6827 + $0x8] sm:$0xf]
        %v6831 = vld [vmem:[%s6827 + $0xc] sm:$0xf]
        %v6832 = vld [vmem:[%s6827 + $0x14] sm:$0xf]
        %v6833 = vld [vmem:[%s6827 + $0x18] sm:$0xf]
        %v6834 = vld [vmem:[%s6827 + $0x1c] sm:$0xf]
        %v6835 = vld [vmem:[%s6827 + $0x20] sm:$0xf]
        %v6836 = vld [vmem:[%s6827 + $0x28] sm:$0xf]
        %v6837 = vld [vmem:[%s6827 + $0x2c] sm:$0xf]
        %v6838 = vld [vmem:[%s6827 + $0x30] sm:$0xf]
        %v6839 = vld [vmem:[%s6827 + $0x34] sm:$0xf]
        %v6840 = vld [vmem:[%s6827 + $0x3c] sm:$0xf]
        %v6841 = vld [vmem:[%s6827 + $0x40] sm:$0xf]
        %v6842 = vld [vmem:[%s6827 + $0x44] sm:$0xf]
        %v6843 = vld [vmem:[%s6827 + $0x48] sm:$0xf]
        %v6844 = vld [vmem:[%s6827 + $0x50] sm:$0xf]
        %v6845 = vld [vmem:[%s6827 + $0x54] sm:$0xf]
        %v6846 = vld [vmem:[%s6827 + $0x58] sm:$0xf]
        %v6847 = vld [vmem:[%s6827 + $0x5c] sm:$0xf]
        %v6848 = vld [vmem:[%s6827 + $0x64] sm:$0xf]
        %v6849 = vld [vmem:[%s6827 + $0x68] sm:$0xf]
        %v6850 = vld [vmem:[%s6827 + $0x6c] sm:$0xf]
        %v6851 = vld [vmem:[%s6827 + $0x70] sm:$0xf]
        %v6852 = vld [vmem:[%s6827 + $0x78] sm:$0xf]
        %v6853 = vld [vmem:[%s6827 + $0x7c] sm:$0xf]
        %v6854 = vld [vmem:[%s6827 + $0x80] sm:$0xf]
        %v6855 = vld [vmem:[%s6827 + $0x84] sm:$0xf]
        %v6856 = vld [vmem:[%s6827 + $0x8c] sm:$0xf]
        %v6857 = vld [vmem:[%s6827 + $0x90] sm:$0xf]
        %v6858 = vld [vmem:[%s6827 + $0x94] sm:$0xf]
        %v6859 = vld [vmem:[%s6827 + $0x98] sm:$0xf]
        %v6860 = vld [vmem:[%s6827 + $0xa0] sm:$0xf]
        %v6861 = vld [vmem:[%s6827 + $0xa4] sm:$0xf]
        %v6862 = vld [vmem:[%s6827 + $0xa8] sm:$0xf]
        %v6863 = vld [vmem:[%s6827 + $0xac] sm:$0xf]
        %v6864 = vld [vmem:[%s6827 + $0xb4] sm:$0xf]
        %v6865 = vld [vmem:[%s6827 + $0xb8] sm:$0xf]
        %v6866 = vld [vmem:[%s6827 + $0xbc] sm:$0xf]
        %v6867 = vld [vmem:[%s6827 + $0xc0] sm:$0xf]
        %v6868 = vld [vmem:[%s6827 + $0xc8] sm:$0xf]
        %v6869 = vld [vmem:[%s6827 + $0xcc] sm:$0xf]
        %v6870 = vld [vmem:[%s6827 + $0xd0] sm:$0xf]
        %v6871 = vld [vmem:[%s6827 + $0xd4] sm:$0xf]
        %v6872 = vld [vmem:[%s6827 + $0xdc] sm:$0xf]
        %v6873 = vld [vmem:[%s6827 + $0xe0] sm:$0xf]
        %v6874 = vld [vmem:[%s6827 + $0xe4] sm:$0xf]
        %v6875 = vld [vmem:[%s6827 + $0xe8] sm:$0xf]
        %v6876 = vld [vmem:[%s6827 + $0xf0] sm:$0xf]
        %v6877 = vld [vmem:[%s6827 + $0xf4] sm:$0xf]
        %v6878 = vld [vmem:[%s6827 + $0xf8] sm:$0xf]
        %v6879 = vld [vmem:[%s6827 + $0xfc] sm:$0xf]
        %v6880 = vld [vmem:[%s6827 + $0x104] sm:$0xf]
        %v6881 = vld [vmem:[%s6827 + $0x108] sm:$0xf]
        %v6882 = vld [vmem:[%s6827 + $0x10c] sm:$0xf]
        %v6883 = vld [vmem:[%s6827 + $0x110] sm:$0xf]
        %v6884 = vld [vmem:[%s6827 + $0x118] sm:$0xf]
        %v6885 = vld [vmem:[%s6827 + $0x11c] sm:$0xf]
        %v6886 = vld [vmem:[%s6827 + $0x120] sm:$0xf]
        %v6887 = vld [vmem:[%s6827 + $0x124] sm:$0xf]
        %v6888 = vld [vmem:[%s6827 + $0x12c] sm:$0xf]
        %v6889 = vld [vmem:[%s6827 + $0x130] sm:$0xf]
        %v6890 = vld [vmem:[%s6827 + $0x134] sm:$0xf]
        %v6891 = vld [vmem:[%s6827 + $0x138] sm:$0xf]
        %v6892 = vld [vmem:[%s6827 + $0x10] sm:$0x1]
        %v6893 = vld [vmem:[%s6827 + $0x24] sm:$0x1]
        %v6894 = vld [vmem:[%s6827 + $0x38] sm:$0x1]
        %v6895 = vld [vmem:[%s6827 + $0x4c] sm:$0x1]
        %v6896 = vld [vmem:[%s6827 + $0x60] sm:$0x1]
        %v6897 = vld [vmem:[%s6827 + $0x74] sm:$0x1]
        %v6898 = vld [vmem:[%s6827 + $0x88] sm:$0x1]
        %v6899 = vld [vmem:[%s6827 + $0x9c] sm:$0x1]
        %v6900 = vld [vmem:[%s6827 + $0xb0] sm:$0x1]
        %v6901 = vld [vmem:[%s6827 + $0xc4] sm:$0x1]
        %v6902 = vld [vmem:[%s6827 + $0xd8] sm:$0x1]
        %v6903 = vld [vmem:[%s6827 + $0xec] sm:$0x1]
        %v6904 = vld [vmem:[%s6827 + $0x100] sm:$0x1]
        %v6905 = vld [vmem:[%s6827 + $0x114] sm:$0x1]
        %v6906 = vld [vmem:[%s6827 + $0x128] sm:$0x1]
        %v6907 = vld [vmem:[%s6827 + $0x13c] sm:$0x1]
        %v6908 = vld [vmem:[%s6827] sm:$0xe]
        %v6909 = vld [vmem:[%s6827 + $0x14] sm:$0xe]
        %v6910 = vld [vmem:[%s6827 + $0x28] sm:$0xe]
        %v6911 = vld [vmem:[%s6827 + $0x3c] sm:$0xe]
        %v6912 = vld [vmem:[%s6827 + $0x50] sm:$0xe]
        %v6913 = vld [vmem:[%s6827 + $0x64] sm:$0xe]
        %v6914 = vld [vmem:[%s6827 + $0x78] sm:$0xe]
        %v6915 = vld [vmem:[%s6827 + $0x8c] sm:$0xe]
        %v6916 = vld [vmem:[%s6827 + $0xa0] sm:$0xe]
        %v6917 = vld [vmem:[%s6827 + $0xb4] sm:$0xe]
        %v6918 = vld [vmem:[%s6827 + $0xc8] sm:$0xe]
        %v6919 = vld [vmem:[%s6827 + $0xdc] sm:$0xe]
        %v6920 = vld [vmem:[%s6827 + $0xf0] sm:$0xe]
        %v6921 = vld [vmem:[%s6827 + $0x104] sm:$0xe]
        %v6922 = vld [vmem:[%s6827 + $0x118] sm:$0xe]
        %v6923 = vld [vmem:[%s6827 + $0x12c] sm:$0xe]
        %s6924 = scalar_lea.vmem [#allocation2], 40
        %v6925 = vld [vmem:[%s6924] sm:$0xf]
        %v6926 = vld [vmem:[%s6924 + $0x4] sm:$0xf]
        %v6927 = vld [vmem:[%s6924 + $0x8] sm:$0xf]
        %v6928 = vld [vmem:[%s6924 + $0xc] sm:$0xf]
        %v6929 = vld [vmem:[%s6924 + $0x14] sm:$0xf]
        %v6930 = vld [vmem:[%s6924 + $0x18] sm:$0xf]
        %v6931 = vld [vmem:[%s6924 + $0x1c] sm:$0xf]
        %v6932 = vld [vmem:[%s6924 + $0x20] sm:$0xf]
        %v6933 = vld [vmem:[%s6924 + $0x28] sm:$0xf]
        %v6934 = vld [vmem:[%s6924 + $0x2c] sm:$0xf]
        %v6935 = vld [vmem:[%s6924 + $0x30] sm:$0xf]
        %v6936 = vld [vmem:[%s6924 + $0x34] sm:$0xf]
        %v6937 = vld [vmem:[%s6924 + $0x3c] sm:$0xf]
        %v6938 = vld [vmem:[%s6924 + $0x40] sm:$0xf]
        %v6939 = vld [vmem:[%s6924 + $0x44] sm:$0xf]
        %v6940 = vld [vmem:[%s6924 + $0x48] sm:$0xf]
        %v6941 = vld [vmem:[%s6924 + $0x50] sm:$0xf]
        %v6942 = vld [vmem:[%s6924 + $0x54] sm:$0xf]
        %v6943 = vld [vmem:[%s6924 + $0x58] sm:$0xf]
        %v6944 = vld [vmem:[%s6924 + $0x5c] sm:$0xf]
        %v6945 = vld [vmem:[%s6924 + $0x64] sm:$0xf]
        %v6946 = vld [vmem:[%s6924 + $0x68] sm:$0xf]
        %v6947 = vld [vmem:[%s6924 + $0x6c] sm:$0xf]
        %v6948 = vld [vmem:[%s6924 + $0x70] sm:$0xf]
        %v6949 = vld [vmem:[%s6924 + $0x78] sm:$0xf]
        %v6950 = vld [vmem:[%s6924 + $0x7c] sm:$0xf]
        %v6951 = vld [vmem:[%s6924 + $0x80] sm:$0xf]
        %v6952 = vld [vmem:[%s6924 + $0x84] sm:$0xf]
        %v6953 = vld [vmem:[%s6924 + $0x8c] sm:$0xf]
        %v6954 = vld [vmem:[%s6924 + $0x90] sm:$0xf]
        %v6955 = vld [vmem:[%s6924 + $0x94] sm:$0xf]
        %v6956 = vld [vmem:[%s6924 + $0x98] sm:$0xf]
        %v6957 = vld [vmem:[%s6924 + $0xa0] sm:$0xf]
        %v6958 = vld [vmem:[%s6924 + $0xa4] sm:$0xf]
        %v6959 = vld [vmem:[%s6924 + $0xa8] sm:$0xf]
        %v6960 = vld [vmem:[%s6924 + $0xac] sm:$0xf]
        %v6961 = vld [vmem:[%s6924 + $0xb4] sm:$0xf]
        %v6962 = vld [vmem:[%s6924 + $0xb8] sm:$0xf]
        %v6963 = vld [vmem:[%s6924 + $0xbc] sm:$0xf]
        %v6964 = vld [vmem:[%s6924 + $0xc0] sm:$0xf]
        %v6965 = vld [vmem:[%s6924 + $0xc8] sm:$0xf]
        %v6966 = vld [vmem:[%s6924 + $0xcc] sm:$0xf]
        %v6967 = vld [vmem:[%s6924 + $0xd0] sm:$0xf]
        %v6968 = vld [vmem:[%s6924 + $0xd4] sm:$0xf]
        %v6969 = vld [vmem:[%s6924 + $0xdc] sm:$0xf]
        %v6970 = vld [vmem:[%s6924 + $0xe0] sm:$0xf]
        %v6971 = vld [vmem:[%s6924 + $0xe4] sm:$0xf]
        %v6972 = vld [vmem:[%s6924 + $0xe8] sm:$0xf]
        %v6973 = vld [vmem:[%s6924 + $0xf0] sm:$0xf]
        %v6974 = vld [vmem:[%s6924 + $0xf4] sm:$0xf]
        %v6975 = vld [vmem:[%s6924 + $0xf8] sm:$0xf]
        %v6976 = vld [vmem:[%s6924 + $0xfc] sm:$0xf]
        %v6977 = vld [vmem:[%s6924 + $0x104] sm:$0xf]
        %v6978 = vld [vmem:[%s6924 + $0x108] sm:$0xf]
        %v6979 = vld [vmem:[%s6924 + $0x10c] sm:$0xf]
        %v6980 = vld [vmem:[%s6924 + $0x110] sm:$0xf]
        %v6981 = vld [vmem:[%s6924 + $0x118] sm:$0xf]
        %v6982 = vld [vmem:[%s6924 + $0x11c] sm:$0xf]
        %v6983 = vld [vmem:[%s6924 + $0x120] sm:$0xf]
        %v6984 = vld [vmem:[%s6924 + $0x124] sm:$0xf]
        %v6985 = vld [vmem:[%s6924 + $0x12c] sm:$0xf]
        %v6986 = vld [vmem:[%s6924 + $0x130] sm:$0xf]
        %v6987 = vld [vmem:[%s6924 + $0x134] sm:$0xf]
        %v6988 = vld [vmem:[%s6924 + $0x138] sm:$0xf]
        %v6989 = vld [vmem:[%s6924 + $0x10] sm:$0x1]
        %v6990 = vld [vmem:[%s6924 + $0x24] sm:$0x1]
        %v6991 = vld [vmem:[%s6924 + $0x38] sm:$0x1]
        %v6992 = vld [vmem:[%s6924 + $0x4c] sm:$0x1]
        %v6993 = vld [vmem:[%s6924 + $0x60] sm:$0x1]
        %v6994 = vld [vmem:[%s6924 + $0x74] sm:$0x1]
        %v6995 = vld [vmem:[%s6924 + $0x88] sm:$0x1]
        %v6996 = vld [vmem:[%s6924 + $0x9c] sm:$0x1]
        %v6997 = vld [vmem:[%s6924 + $0xb0] sm:$0x1]
        %v6998 = vld [vmem:[%s6924 + $0xc4] sm:$0x1]
        %v6999 = vld [vmem:[%s6924 + $0xd8] sm:$0x1]
        %v7000 = vld [vmem:[%s6924 + $0xec] sm:$0x1]
        %v7001 = vld [vmem:[%s6924 + $0x100] sm:$0x1]
        %v7002 = vld [vmem:[%s6924 + $0x114] sm:$0x1]
        %v7003 = vld [vmem:[%s6924 + $0x128] sm:$0x1]
        %v7004 = vld [vmem:[%s6924 + $0x13c] sm:$0x1]
        %v7005 = vld [vmem:[%s6924] sm:$0xe]
        %v7006 = vld [vmem:[%s6924 + $0x14] sm:$0xe]
        %v7007 = vld [vmem:[%s6924 + $0x28] sm:$0xe]
        %v7008 = vld [vmem:[%s6924 + $0x3c] sm:$0xe]
        %v7009 = vld [vmem:[%s6924 + $0x50] sm:$0xe]
        %v7010 = vld [vmem:[%s6924 + $0x64] sm:$0xe]
        %v7011 = vld [vmem:[%s6924 + $0x78] sm:$0xe]
        %v7012 = vld [vmem:[%s6924 + $0x8c] sm:$0xe]
        %v7013 = vld [vmem:[%s6924 + $0xa0] sm:$0xe]
        %v7014 = vld [vmem:[%s6924 + $0xb4] sm:$0xe]
        %v7015 = vld [vmem:[%s6924 + $0xc8] sm:$0xe]
        %v7016 = vld [vmem:[%s6924 + $0xdc] sm:$0xe]
        %v7017 = vld [vmem:[%s6924 + $0xf0] sm:$0xe]
        %v7018 = vld [vmem:[%s6924 + $0x104] sm:$0xe]
        %v7019 = vld [vmem:[%s6924 + $0x118] sm:$0xe]
        %v7020 = vld [vmem:[%s6924 + $0x12c] sm:$0xe]
        %v7085 = vunpack.c.l.b16 %v6731
        %v7086 = vunpack.c.l.b16 %v6732
        %v7087 = vunpack.c.l.b16 %v6733
        %v7088 = vunpack.c.l.b16 %v6734
        %v7089 = vunpack.c.l.b16 %v6735
        %v7090 = vunpack.c.l.b16 %v6736
        %v7091 = vunpack.c.l.b16 %v6737
        %v7092 = vunpack.c.l.b16 %v6738
        %v7093 = vunpack.c.l.b16 %v6739
        %v7094 = vunpack.c.l.b16 %v6740
        %v7095 = vunpack.c.l.b16 %v6741
        %v7096 = vunpack.c.l.b16 %v6742
        %v7097 = vunpack.c.l.b16 %v6743
        %v7098 = vunpack.c.l.b16 %v6744
        %v7099 = vunpack.c.l.b16 %v6745
        %v7100 = vunpack.c.l.b16 %v6746
        %v7101 = vunpack.c.l.b16 %v6747
        %v7102 = vunpack.c.l.b16 %v6748
        %v7103 = vunpack.c.l.b16 %v6749
        %v7104 = vunpack.c.l.b16 %v6750
        %v7105 = vunpack.c.l.b16 %v6751
        %v7106 = vunpack.c.l.b16 %v6752
        %v7107 = vunpack.c.l.b16 %v6753
        %v7108 = vunpack.c.l.b16 %v6754
        %v7109 = vunpack.c.l.b16 %v6755
        %v7110 = vunpack.c.l.b16 %v6756
        %v7111 = vunpack.c.l.b16 %v6757
        %v7112 = vunpack.c.l.b16 %v6758
        %v7113 = vunpack.c.l.b16 %v6759
        %v7114 = vunpack.c.l.b16 %v6760
        %v7115 = vunpack.c.l.b16 %v6761
        %v7116 = vunpack.c.l.b16 %v6762
        %v7117 = vunpack.c.l.b16 %v6763
        %v7118 = vunpack.c.l.b16 %v6764
        %v7119 = vunpack.c.l.b16 %v6765
        %v7120 = vunpack.c.l.b16 %v6766
        %v7121 = vunpack.c.l.b16 %v6767
        %v7122 = vunpack.c.l.b16 %v6768
        %v7123 = vunpack.c.l.b16 %v6769
        %v7124 = vunpack.c.l.b16 %v6770
        %v7125 = vunpack.c.l.b16 %v6771
        %v7126 = vunpack.c.l.b16 %v6772
        %v7127 = vunpack.c.l.b16 %v6773
        %v7128 = vunpack.c.l.b16 %v6774
        %v7129 = vunpack.c.l.b16 %v6775
        %v7130 = vunpack.c.l.b16 %v6776
        %v7131 = vunpack.c.l.b16 %v6777
        %v7132 = vunpack.c.l.b16 %v6778
        %v7133 = vunpack.c.l.b16 %v6779
        %v7134 = vunpack.c.l.b16 %v6780
        %v7135 = vunpack.c.l.b16 %v6781
        %v7136 = vunpack.c.l.b16 %v6782
        %v7137 = vunpack.c.l.b16 %v6783
        %v7138 = vunpack.c.l.b16 %v6784
        %v7139 = vunpack.c.l.b16 %v6785
        %v7140 = vunpack.c.l.b16 %v6786
        %v7141 = vunpack.c.l.b16 %v6787
        %v7142 = vunpack.c.l.b16 %v6788
        %v7143 = vunpack.c.l.b16 %v6789
        %v7144 = vunpack.c.l.b16 %v6790
        %v7145 = vunpack.c.l.b16 %v6791
        %v7146 = vunpack.c.l.b16 %v6792
        %v7147 = vunpack.c.l.b16 %v6793
        %v7148 = vunpack.c.l.b16 %v6794
        %v7149 = vpack.c.b16 %v7086, %v7085
        %v7150 = vpack.c.b16 %v7088, %v7087
        %v7151 = vpack.c.b16 %v7090, %v7089
        %v7152 = vpack.c.b16 %v7092, %v7091
        %v7153 = vpack.c.b16 %v7094, %v7093
        %v7154 = vpack.c.b16 %v7096, %v7095
        %v7155 = vpack.c.b16 %v7098, %v7097
        %v7156 = vpack.c.b16 %v7100, %v7099
        %v7157 = vpack.c.b16 %v7102, %v7101
        %v7158 = vpack.c.b16 %v7104, %v7103
        %v7159 = vpack.c.b16 %v7106, %v7105
        %v7160 = vpack.c.b16 %v7108, %v7107
        %v7161 = vpack.c.b16 %v7110, %v7109
        %v7162 = vpack.c.b16 %v7112, %v7111
        %v7163 = vpack.c.b16 %v7114, %v7113
        %v7164 = vpack.c.b16 %v7116, %v7115
        %v7165 = vpack.c.b16 %v7118, %v7117
        %v7166 = vpack.c.b16 %v7120, %v7119
        %v7167 = vpack.c.b16 %v7122, %v7121
        %v7168 = vpack.c.b16 %v7124, %v7123
        %v7169 = vpack.c.b16 %v7126, %v7125
        %v7170 = vpack.c.b16 %v7128, %v7127
        %v7171 = vpack.c.b16 %v7130, %v7129
        %v7172 = vpack.c.b16 %v7132, %v7131
        %v7173 = vpack.c.b16 %v7134, %v7133
        %v7174 = vpack.c.b16 %v7136, %v7135
        %v7175 = vpack.c.b16 %v7138, %v7137
        %v7176 = vpack.c.b16 %v7140, %v7139
        %v7177 = vpack.c.b16 %v7142, %v7141
        %v7178 = vpack.c.b16 %v7144, %v7143
        %v7179 = vpack.c.b16 %v7146, %v7145
        %v7180 = vpack.c.b16 %v7148, %v7147
        %v7229 = vunpack.c.l.b16 %v6795
        %v7230 = vunpack.c.l.b16 %v6796
        %v7231 = vunpack.c.l.b16 %v6797
        %v7232 = vunpack.c.l.b16 %v6798
        %v7233 = vunpack.c.l.b16 %v6799
        %v7234 = vunpack.c.l.b16 %v6800
        %v7235 = vunpack.c.l.b16 %v6801
        %v7236 = vunpack.c.l.b16 %v6802
        %v7237 = vunpack.c.l.b16 %v6803
        %v7238 = vunpack.c.l.b16 %v6804
        %v7239 = vunpack.c.l.b16 %v6805
        %v7240 = vunpack.c.l.b16 %v6806
        %v7241 = vunpack.c.l.b16 %v6807
        %v7242 = vunpack.c.l.b16 %v6808
        %v7243 = vunpack.c.l.b16 %v6809
        %v7244 = vunpack.c.l.b16 %v6810
        %v7245 = vpack.c.b16 %v7229, %v7229
        %v7246 = vpack.c.b16 %v7230, %v7230
        %v7247 = vpack.c.b16 %v7231, %v7231
        %v7248 = vpack.c.b16 %v7232, %v7232
        %v7249 = vpack.c.b16 %v7233, %v7233
        %v7250 = vpack.c.b16 %v7234, %v7234
        %v7251 = vpack.c.b16 %v7235, %v7235
        %v7252 = vpack.c.b16 %v7236, %v7236
        %v7253 = vpack.c.b16 %v7237, %v7237
        %v7254 = vpack.c.b16 %v7238, %v7238
        %v7255 = vpack.c.b16 %v7239, %v7239
        %v7256 = vpack.c.b16 %v7240, %v7240
        %v7257 = vpack.c.b16 %v7241, %v7241
        %v7258 = vpack.c.b16 %v7242, %v7242
        %v7259 = vpack.c.b16 %v7243, %v7243
        %v7260 = vpack.c.b16 %v7244, %v7244
        %v7262 = vshrl.u32 %v7149, 16
        %v7264 = vshll.u32 %v7149, 16
        %v7266 = vrot.slane %v7264, 1
        %v7267 = vor.u32 %v7262, %v7266
        %v7269 = vshll.u32 %v7150, 16
        %v7271 = vrot.slane %v7269, 1
        %v7272 = vsel %vm863, %v7267, %v7271
        %v7273 = vshrl.u32 %v7150, 16
        %v7275 = vor.u32 %v7273, %v7271
        %v7277 = vshll.u32 %v7245, 16
        %v7279 = vrot.slane %v7277, 1
        %v7280 = vsel %vm863, %v7275, %v7279
        %v7282 = vshrl.u32 %v7151, 16
        %v7284 = vshll.u32 %v7151, 16
        %v7286 = vrot.slane %v7284, 1
        %v7287 = vor.u32 %v7282, %v7286
        %v7289 = vshll.u32 %v7152, 16
        %v7291 = vrot.slane %v7289, 1
        %v7292 = vsel %vm863, %v7287, %v7291
        %v7293 = vshrl.u32 %v7152, 16
        %v7295 = vor.u32 %v7293, %v7291
        %v7297 = vshll.u32 %v7246, 16
        %v7299 = vrot.slane %v7297, 1
        %v7300 = vsel %vm863, %v7295, %v7299
        %v7302 = vshrl.u32 %v7153, 16
        %v7304 = vshll.u32 %v7153, 16
        %v7306 = vrot.slane %v7304, 1
        %v7307 = vor.u32 %v7302, %v7306
        %v7309 = vshll.u32 %v7154, 16
        %v7311 = vrot.slane %v7309, 1
        %v7312 = vsel %vm863, %v7307, %v7311
        %v7313 = vshrl.u32 %v7154, 16
        %v7315 = vor.u32 %v7313, %v7311
        %v7317 = vshll.u32 %v7247, 16
        %v7319 = vrot.slane %v7317, 1
        %v7320 = vsel %vm863, %v7315, %v7319
        %v7322 = vshrl.u32 %v7155, 16
        %v7324 = vshll.u32 %v7155, 16
        %v7326 = vrot.slane %v7324, 1
        %v7327 = vor.u32 %v7322, %v7326
        %v7329 = vshll.u32 %v7156, 16
        %v7331 = vrot.slane %v7329, 1
        %v7332 = vsel %vm863, %v7327, %v7331
        %v7333 = vshrl.u32 %v7156, 16
        %v7335 = vor.u32 %v7333, %v7331
        %v7337 = vshll.u32 %v7248, 16
        %v7339 = vrot.slane %v7337, 1
        %v7340 = vsel %vm863, %v7335, %v7339
        %v7342 = vshrl.u32 %v7157, 16
        %v7344 = vshll.u32 %v7157, 16
        %v7346 = vrot.slane %v7344, 1
        %v7347 = vor.u32 %v7342, %v7346
        %v7349 = vshll.u32 %v7158, 16
        %v7351 = vrot.slane %v7349, 1
        %v7352 = vsel %vm863, %v7347, %v7351
        %v7353 = vshrl.u32 %v7158, 16
        %v7355 = vor.u32 %v7353, %v7351
        %v7357 = vshll.u32 %v7249, 16
        %v7359 = vrot.slane %v7357, 1
        %v7360 = vsel %vm863, %v7355, %v7359
        %v7362 = vshrl.u32 %v7159, 16
        %v7364 = vshll.u32 %v7159, 16
        %v7366 = vrot.slane %v7364, 1
        %v7367 = vor.u32 %v7362, %v7366
        %v7369 = vshll.u32 %v7160, 16
        %v7371 = vrot.slane %v7369, 1
        %v7372 = vsel %vm863, %v7367, %v7371
        %v7373 = vshrl.u32 %v7160, 16
        %v7375 = vor.u32 %v7373, %v7371
        %v7377 = vshll.u32 %v7250, 16
        %v7379 = vrot.slane %v7377, 1
        %v7380 = vsel %vm863, %v7375, %v7379
        %v7382 = vshrl.u32 %v7161, 16
        %v7384 = vshll.u32 %v7161, 16
        %v7386 = vrot.slane %v7384, 1
        %v7387 = vor.u32 %v7382, %v7386
        %v7389 = vshll.u32 %v7162, 16
        %v7391 = vrot.slane %v7389, 1
        %v7392 = vsel %vm863, %v7387, %v7391
        %v7393 = vshrl.u32 %v7162, 16
        %v7395 = vor.u32 %v7393, %v7391
        %v7397 = vshll.u32 %v7251, 16
        %v7399 = vrot.slane %v7397, 1
        %v7400 = vsel %vm863, %v7395, %v7399
        %v7402 = vshrl.u32 %v7163, 16
        %v7404 = vshll.u32 %v7163, 16
        %v7406 = vrot.slane %v7404, 1
        %v7407 = vor.u32 %v7402, %v7406
        %v7409 = vshll.u32 %v7164, 16
        %v7411 = vrot.slane %v7409, 1
        %v7412 = vsel %vm863, %v7407, %v7411
        %v7413 = vshrl.u32 %v7164, 16
        %v7415 = vor.u32 %v7413, %v7411
        %v7417 = vshll.u32 %v7252, 16
        %v7419 = vrot.slane %v7417, 1
        %v7420 = vsel %vm863, %v7415, %v7419
        %v7422 = vshrl.u32 %v7165, 16
        %v7424 = vshll.u32 %v7165, 16
        %v7426 = vrot.slane %v7424, 1
        %v7427 = vor.u32 %v7422, %v7426
        %v7429 = vshll.u32 %v7166, 16
        %v7431 = vrot.slane %v7429, 1
        %v7432 = vsel %vm863, %v7427, %v7431
        %v7433 = vshrl.u32 %v7166, 16
        %v7435 = vor.u32 %v7433, %v7431
        %v7437 = vshll.u32 %v7253, 16
        %v7439 = vrot.slane %v7437, 1
        %v7440 = vsel %vm863, %v7435, %v7439
        %v7442 = vshrl.u32 %v7167, 16
        %v7444 = vshll.u32 %v7167, 16
        %v7446 = vrot.slane %v7444, 1
        %v7447 = vor.u32 %v7442, %v7446
        %v7449 = vshll.u32 %v7168, 16
        %v7451 = vrot.slane %v7449, 1
        %v7452 = vsel %vm863, %v7447, %v7451
        %v7453 = vshrl.u32 %v7168, 16
        %v7455 = vor.u32 %v7453, %v7451
        %v7457 = vshll.u32 %v7254, 16
        %v7459 = vrot.slane %v7457, 1
        %v7460 = vsel %vm863, %v7455, %v7459
        %v7462 = vshrl.u32 %v7169, 16
        %v7464 = vshll.u32 %v7169, 16
        %v7466 = vrot.slane %v7464, 1
        %v7467 = vor.u32 %v7462, %v7466
        %v7469 = vshll.u32 %v7170, 16
        %v7471 = vrot.slane %v7469, 1
        %v7472 = vsel %vm863, %v7467, %v7471
        %v7473 = vshrl.u32 %v7170, 16
        %v7475 = vor.u32 %v7473, %v7471
        %v7477 = vshll.u32 %v7255, 16
        %v7479 = vrot.slane %v7477, 1
        %v7480 = vsel %vm863, %v7475, %v7479
        %v7482 = vshrl.u32 %v7171, 16
        %v7484 = vshll.u32 %v7171, 16
        %v7486 = vrot.slane %v7484, 1
        %v7487 = vor.u32 %v7482, %v7486
        %v7489 = vshll.u32 %v7172, 16
        %v7491 = vrot.slane %v7489, 1
        %v7492 = vsel %vm863, %v7487, %v7491
        %v7493 = vshrl.u32 %v7172, 16
        %v7495 = vor.u32 %v7493, %v7491
        %v7497 = vshll.u32 %v7256, 16
        %v7499 = vrot.slane %v7497, 1
        %v7500 = vsel %vm863, %v7495, %v7499
        %v7502 = vshrl.u32 %v7173, 16
        %v7504 = vshll.u32 %v7173, 16
        %v7506 = vrot.slane %v7504, 1
        %v7507 = vor.u32 %v7502, %v7506
        %v7509 = vshll.u32 %v7174, 16
        %v7511 = vrot.slane %v7509, 1
        %v7512 = vsel %vm863, %v7507, %v7511
        %v7513 = vshrl.u32 %v7174, 16
        %v7515 = vor.u32 %v7513, %v7511
        %v7517 = vshll.u32 %v7257, 16
        %v7519 = vrot.slane %v7517, 1
        %v7520 = vsel %vm863, %v7515, %v7519
        %v7522 = vshrl.u32 %v7175, 16
        %v7524 = vshll.u32 %v7175, 16
        %v7526 = vrot.slane %v7524, 1
        %v7527 = vor.u32 %v7522, %v7526
        %v7529 = vshll.u32 %v7176, 16
        %v7531 = vrot.slane %v7529, 1
        %v7532 = vsel %vm863, %v7527, %v7531
        %v7533 = vshrl.u32 %v7176, 16
        %v7535 = vor.u32 %v7533, %v7531
        %v7537 = vshll.u32 %v7258, 16
        %v7539 = vrot.slane %v7537, 1
        %v7540 = vsel %vm863, %v7535, %v7539
        %v7542 = vshrl.u32 %v7177, 16
        %v7544 = vshll.u32 %v7177, 16
        %v7546 = vrot.slane %v7544, 1
        %v7547 = vor.u32 %v7542, %v7546
        %v7549 = vshll.u32 %v7178, 16
        %v7551 = vrot.slane %v7549, 1
        %v7552 = vsel %vm863, %v7547, %v7551
        %v7553 = vshrl.u32 %v7178, 16
        %v7555 = vor.u32 %v7553, %v7551
        %v7557 = vshll.u32 %v7259, 16
        %v7559 = vrot.slane %v7557, 1
        %v7560 = vsel %vm863, %v7555, %v7559
        %v7562 = vshrl.u32 %v7179, 16
        %v7564 = vshll.u32 %v7179, 16
        %v7566 = vrot.slane %v7564, 1
        %v7567 = vor.u32 %v7562, %v7566
        %v7569 = vshll.u32 %v7180, 16
        %v7571 = vrot.slane %v7569, 1
        %v7572 = vsel %vm863, %v7567, %v7571
        %v7573 = vshrl.u32 %v7180, 16
        %v7575 = vor.u32 %v7573, %v7571
        %v7577 = vshll.u32 %v7260, 16
        %v7579 = vrot.slane %v7577, 1
        %v7580 = vsel %vm863, %v7575, %v7579
        %v7629 = vunpack.c.l.b16 %v6811
        %v7630 = vunpack.c.l.b16 %v6812
        %v7631 = vunpack.c.l.b16 %v6813
        %v7632 = vunpack.c.l.b16 %v6814
        %v7633 = vunpack.c.l.b16 %v6815
        %v7634 = vunpack.c.l.b16 %v6816
        %v7635 = vunpack.c.l.b16 %v6817
        %v7636 = vunpack.c.l.b16 %v6818
        %v7637 = vunpack.c.l.b16 %v6819
        %v7638 = vunpack.c.l.b16 %v6820
        %v7639 = vunpack.c.l.b16 %v6821
        %v7640 = vunpack.c.l.b16 %v6822
        %v7641 = vunpack.c.l.b16 %v6823
        %v7642 = vunpack.c.l.b16 %v6824
        %v7643 = vunpack.c.l.b16 %v6825
        %v7644 = vunpack.c.l.b16 %v6826
        %v7645 = vpack.c.b16 %v7086, %v7629
        %v7646 = vpack.c.b16 %v7090, %v7630
        %v7647 = vpack.c.b16 %v7094, %v7631
        %v7648 = vpack.c.b16 %v7098, %v7632
        %v7649 = vpack.c.b16 %v7102, %v7633
        %v7650 = vpack.c.b16 %v7106, %v7634
        %v7651 = vpack.c.b16 %v7110, %v7635
        %v7652 = vpack.c.b16 %v7114, %v7636
        %v7653 = vpack.c.b16 %v7118, %v7637
        %v7654 = vpack.c.b16 %v7122, %v7638
        %v7655 = vpack.c.b16 %v7126, %v7639
        %v7656 = vpack.c.b16 %v7130, %v7640
        %v7657 = vpack.c.b16 %v7134, %v7641
        %v7658 = vpack.c.b16 %v7138, %v7642
        %v7659 = vpack.c.b16 %v7142, %v7643
        %v7660 = vpack.c.b16 %v7146, %v7644
        %v7661 = vrot.slane %v7645, 1
        %v7662 = vrot.slane %v7150, 1
        %v7663 = vsel %vm1350, %v7661, %v7662
        %v7664 = vrot.slane %v7245, 1
        %v7665 = vsel %vm1350, %v7662, %v7664
        %v7666 = vrot.slane %v7646, 1
        %v7667 = vrot.slane %v7152, 1
        %v7668 = vsel %vm1350, %v7666, %v7667
        %v7669 = vrot.slane %v7246, 1
        %v7670 = vsel %vm1350, %v7667, %v7669
        %v7671 = vrot.slane %v7647, 1
        %v7672 = vrot.slane %v7154, 1
        %v7673 = vsel %vm1350, %v7671, %v7672
        %v7674 = vrot.slane %v7247, 1
        %v7675 = vsel %vm1350, %v7672, %v7674
        %v7676 = vrot.slane %v7648, 1
        %v7677 = vrot.slane %v7156, 1
        %v7678 = vsel %vm1350, %v7676, %v7677
        %v7679 = vrot.slane %v7248, 1
        %v7680 = vsel %vm1350, %v7677, %v7679
        %v7681 = vrot.slane %v7649, 1
        %v7682 = vrot.slane %v7158, 1
        %v7683 = vsel %vm1350, %v7681, %v7682
        %v7684 = vrot.slane %v7249, 1
        %v7685 = vsel %vm1350, %v7682, %v7684
        %v7686 = vrot.slane %v7650, 1
        %v7687 = vrot.slane %v7160, 1
        %v7688 = vsel %vm1350, %v7686, %v7687
        %v7689 = vrot.slane %v7250, 1
        %v7690 = vsel %vm1350, %v7687, %v7689
        %v7691 = vrot.slane %v7651, 1
        %v7692 = vrot.slane %v7162, 1
        %v7693 = vsel %vm1350, %v7691, %v7692
        %v7694 = vrot.slane %v7251, 1
        %v7695 = vsel %vm1350, %v7692, %v7694
        %v7696 = vrot.slane %v7652, 1
        %v7697 = vrot.slane %v7164, 1
        %v7698 = vsel %vm1350, %v7696, %v7697
        %v7699 = vrot.slane %v7252, 1
        %v7700 = vsel %vm1350, %v7697, %v7699
        %v7701 = vrot.slane %v7653, 1
        %v7702 = vrot.slane %v7166, 1
        %v7703 = vsel %vm1350, %v7701, %v7702
        %v7704 = vrot.slane %v7253, 1
        %v7705 = vsel %vm1350, %v7702, %v7704
        %v7706 = vrot.slane %v7654, 1
        %v7707 = vrot.slane %v7168, 1
        %v7708 = vsel %vm1350, %v7706, %v7707
        %v7709 = vrot.slane %v7254, 1
        %v7710 = vsel %vm1350, %v7707, %v7709
        %v7711 = vrot.slane %v7655, 1
        %v7712 = vrot.slane %v7170, 1
        %v7713 = vsel %vm1350, %v7711, %v7712
        %v7714 = vrot.slane %v7255, 1
        %v7715 = vsel %vm1350, %v7712, %v7714
        %v7716 = vrot.slane %v7656, 1
        %v7717 = vrot.slane %v7172, 1
        %v7718 = vsel %vm1350, %v7716, %v7717
        %v7719 = vrot.slane %v7256, 1
        %v7720 = vsel %vm1350, %v7717, %v7719
        %v7721 = vrot.slane %v7657, 1
        %v7722 = vrot.slane %v7174, 1
        %v7723 = vsel %vm1350, %v7721, %v7722
        %v7724 = vrot.slane %v7257, 1
        %v7725 = vsel %vm1350, %v7722, %v7724
        %v7726 = vrot.slane %v7658, 1
        %v7727 = vrot.slane %v7176, 1
        %v7728 = vsel %vm1350, %v7726, %v7727
        %v7729 = vrot.slane %v7258, 1
        %v7730 = vsel %vm1350, %v7727, %v7729
        %v7731 = vrot.slane %v7659, 1
        %v7732 = vrot.slane %v7178, 1
        %v7733 = vsel %vm1350, %v7731, %v7732
        %v7734 = vrot.slane %v7259, 1
        %v7735 = vsel %vm1350, %v7732, %v7734
        %v7736 = vrot.slane %v7660, 1
        %v7737 = vrot.slane %v7180, 1
        %v7738 = vsel %vm1350, %v7736, %v7737
        %v7739 = vrot.slane %v7260, 1
        %v7740 = vsel %vm1350, %v7737, %v7739
        %v7837 = vunpack.c.l.b16 %v6828
        %v7838 = vunpack.c.l.b16 %v6829
        %v7839 = vunpack.c.l.b16 %v6830
        %v7840 = vunpack.c.l.b16 %v6831
        %v7841 = vunpack.c.l.b16 %v6832
        %v7842 = vunpack.c.l.b16 %v6833
        %v7843 = vunpack.c.l.b16 %v6834
        %v7844 = vunpack.c.l.b16 %v6835
        %v7845 = vunpack.c.l.b16 %v6836
        %v7846 = vunpack.c.l.b16 %v6837
        %v7847 = vunpack.c.l.b16 %v6838
        %v7848 = vunpack.c.l.b16 %v6839
        %v7849 = vunpack.c.l.b16 %v6840
        %v7850 = vunpack.c.l.b16 %v6841
        %v7851 = vunpack.c.l.b16 %v6842
        %v7852 = vunpack.c.l.b16 %v6843
        %v7853 = vunpack.c.l.b16 %v6844
        %v7854 = vunpack.c.l.b16 %v6845
        %v7855 = vunpack.c.l.b16 %v6846
        %v7856 = vunpack.c.l.b16 %v6847
        %v7857 = vunpack.c.l.b16 %v6848
        %v7858 = vunpack.c.l.b16 %v6849
        %v7859 = vunpack.c.l.b16 %v6850
        %v7860 = vunpack.c.l.b16 %v6851
        %v7861 = vunpack.c.l.b16 %v6852
        %v7862 = vunpack.c.l.b16 %v6853
        %v7863 = vunpack.c.l.b16 %v6854
        %v7864 = vunpack.c.l.b16 %v6855
        %v7865 = vunpack.c.l.b16 %v6856
        %v7866 = vunpack.c.l.b16 %v6857
        %v7867 = vunpack.c.l.b16 %v6858
        %v7868 = vunpack.c.l.b16 %v6859
        %v7869 = vunpack.c.l.b16 %v6860
        %v7870 = vunpack.c.l.b16 %v6861
        %v7871 = vunpack.c.l.b16 %v6862
        %v7872 = vunpack.c.l.b16 %v6863
        %v7873 = vunpack.c.l.b16 %v6864
        %v7874 = vunpack.c.l.b16 %v6865
        %v7875 = vunpack.c.l.b16 %v6866
        %v7876 = vunpack.c.l.b16 %v6867
        %v7877 = vunpack.c.l.b16 %v6868
        %v7878 = vunpack.c.l.b16 %v6869
        %v7879 = vunpack.c.l.b16 %v6870
        %v7880 = vunpack.c.l.b16 %v6871
        %v7881 = vunpack.c.l.b16 %v6872
        %v7882 = vunpack.c.l.b16 %v6873
        %v7883 = vunpack.c.l.b16 %v6874
        %v7884 = vunpack.c.l.b16 %v6875
        %v7885 = vunpack.c.l.b16 %v6876
        %v7886 = vunpack.c.l.b16 %v6877
        %v7887 = vunpack.c.l.b16 %v6878
        %v7888 = vunpack.c.l.b16 %v6879
        %v7889 = vunpack.c.l.b16 %v6880
        %v7890 = vunpack.c.l.b16 %v6881
        %v7891 = vunpack.c.l.b16 %v6882
        %v7892 = vunpack.c.l.b16 %v6883
        %v7893 = vunpack.c.l.b16 %v6884
        %v7894 = vunpack.c.l.b16 %v6885
        %v7895 = vunpack.c.l.b16 %v6886
        %v7896 = vunpack.c.l.b16 %v6887
        %v7897 = vunpack.c.l.b16 %v6888
        %v7898 = vunpack.c.l.b16 %v6889
        %v7899 = vunpack.c.l.b16 %v6890
        %v7900 = vunpack.c.l.b16 %v6891
        %v7901 = vpack.c.b16 %v7838, %v7837
        %v7902 = vpack.c.b16 %v7840, %v7839
        %v7903 = vpack.c.b16 %v7842, %v7841
        %v7904 = vpack.c.b16 %v7844, %v7843
        %v7905 = vpack.c.b16 %v7846, %v7845
        %v7906 = vpack.c.b16 %v7848, %v7847
        %v7907 = vpack.c.b16 %v7850, %v7849
        %v7908 = vpack.c.b16 %v7852, %v7851
        %v7909 = vpack.c.b16 %v7854, %v7853
        %v7910 = vpack.c.b16 %v7856, %v7855
        %v7911 = vpack.c.b16 %v7858, %v7857
        %v7912 = vpack.c.b16 %v7860, %v7859
        %v7913 = vpack.c.b16 %v7862, %v7861
        %v7914 = vpack.c.b16 %v7864, %v7863
        %v7915 = vpack.c.b16 %v7866, %v7865
        %v7916 = vpack.c.b16 %v7868, %v7867
        %v7917 = vpack.c.b16 %v7870, %v7869
        %v7918 = vpack.c.b16 %v7872, %v7871
        %v7919 = vpack.c.b16 %v7874, %v7873
        %v7920 = vpack.c.b16 %v7876, %v7875
        %v7921 = vpack.c.b16 %v7878, %v7877
        %v7922 = vpack.c.b16 %v7880, %v7879
        %v7923 = vpack.c.b16 %v7882, %v7881
        %v7924 = vpack.c.b16 %v7884, %v7883
        %v7925 = vpack.c.b16 %v7886, %v7885
        %v7926 = vpack.c.b16 %v7888, %v7887
        %v7927 = vpack.c.b16 %v7890, %v7889
        %v7928 = vpack.c.b16 %v7892, %v7891
        %v7929 = vpack.c.b16 %v7894, %v7893
        %v7930 = vpack.c.b16 %v7896, %v7895
        %v7931 = vpack.c.b16 %v7898, %v7897
        %v7932 = vpack.c.b16 %v7900, %v7899
        %v7981 = vunpack.c.l.b16 %v6892
        %v7982 = vunpack.c.l.b16 %v6893
        %v7983 = vunpack.c.l.b16 %v6894
        %v7984 = vunpack.c.l.b16 %v6895
        %v7985 = vunpack.c.l.b16 %v6896
        %v7986 = vunpack.c.l.b16 %v6897
        %v7987 = vunpack.c.l.b16 %v6898
        %v7988 = vunpack.c.l.b16 %v6899
        %v7989 = vunpack.c.l.b16 %v6900
        %v7990 = vunpack.c.l.b16 %v6901
        %v7991 = vunpack.c.l.b16 %v6902
        %v7992 = vunpack.c.l.b16 %v6903
        %v7993 = vunpack.c.l.b16 %v6904
        %v7994 = vunpack.c.l.b16 %v6905
        %v7995 = vunpack.c.l.b16 %v6906
        %v7996 = vunpack.c.l.b16 %v6907
        %v7997 = vpack.c.b16 %v7981, %v7981
        %v7998 = vpack.c.b16 %v7982, %v7982
        %v7999 = vpack.c.b16 %v7983, %v7983
        %v8000 = vpack.c.b16 %v7984, %v7984
        %v8001 = vpack.c.b16 %v7985, %v7985
        %v8002 = vpack.c.b16 %v7986, %v7986
        %v8003 = vpack.c.b16 %v7987, %v7987
        %v8004 = vpack.c.b16 %v7988, %v7988
        %v8005 = vpack.c.b16 %v7989, %v7989
        %v8006 = vpack.c.b16 %v7990, %v7990
        %v8007 = vpack.c.b16 %v7991, %v7991
        %v8008 = vpack.c.b16 %v7992, %v7992
        %v8009 = vpack.c.b16 %v7993, %v7993
        %v8010 = vpack.c.b16 %v7994, %v7994
        %v8011 = vpack.c.b16 %v7995, %v7995
        %v8012 = vpack.c.b16 %v7996, %v7996
        %v8014 = vshrl.u32 %v7901, 16
        %v8016 = vshll.u32 %v7901, 16
        %v8018 = vrot.slane %v8016, 1
        %v8019 = vor.u32 %v8014, %v8018
        %v8021 = vshll.u32 %v7902, 16
        %v8023 = vrot.slane %v8021, 1
        %v8024 = vsel %vm863, %v8019, %v8023
        %v8025 = vshrl.u32 %v7902, 16
        %v8027 = vor.u32 %v8025, %v8023
        %v8029 = vshll.u32 %v7997, 16
        %v8031 = vrot.slane %v8029, 1
        %v8032 = vsel %vm863, %v8027, %v8031
        %v8034 = vshrl.u32 %v7903, 16
        %v8036 = vshll.u32 %v7903, 16
        %v8038 = vrot.slane %v8036, 1
        %v8039 = vor.u32 %v8034, %v8038
        %v8041 = vshll.u32 %v7904, 16
        %v8043 = vrot.slane %v8041, 1
        %v8044 = vsel %vm863, %v8039, %v8043
        %v8045 = vshrl.u32 %v7904, 16
        %v8047 = vor.u32 %v8045, %v8043
        %v8049 = vshll.u32 %v7998, 16
        %v8051 = vrot.slane %v8049, 1
        %v8052 = vsel %vm863, %v8047, %v8051
        %v8054 = vshrl.u32 %v7905, 16
        %v8056 = vshll.u32 %v7905, 16
        %v8058 = vrot.slane %v8056, 1
        %v8059 = vor.u32 %v8054, %v8058
        %v8061 = vshll.u32 %v7906, 16
        %v8063 = vrot.slane %v8061, 1
        %v8064 = vsel %vm863, %v8059, %v8063
        %v8065 = vshrl.u32 %v7906, 16
        %v8067 = vor.u32 %v8065, %v8063
        %v8069 = vshll.u32 %v7999, 16
        %v8071 = vrot.slane %v8069, 1
        %v8072 = vsel %vm863, %v8067, %v8071
        %v8074 = vshrl.u32 %v7907, 16
        %v8076 = vshll.u32 %v7907, 16
        %v8078 = vrot.slane %v8076, 1
        %v8079 = vor.u32 %v8074, %v8078
        %v8081 = vshll.u32 %v7908, 16
        %v8083 = vrot.slane %v8081, 1
        %v8084 = vsel %vm863, %v8079, %v8083
        %v8085 = vshrl.u32 %v7908, 16
        %v8087 = vor.u32 %v8085, %v8083
        %v8089 = vshll.u32 %v8000, 16
        %v8091 = vrot.slane %v8089, 1
        %v8092 = vsel %vm863, %v8087, %v8091
        %v8094 = vshrl.u32 %v7909, 16
        %v8096 = vshll.u32 %v7909, 16
        %v8098 = vrot.slane %v8096, 1
        %v8099 = vor.u32 %v8094, %v8098
        %v8101 = vshll.u32 %v7910, 16
        %v8103 = vrot.slane %v8101, 1
        %v8104 = vsel %vm863, %v8099, %v8103
        %v8105 = vshrl.u32 %v7910, 16
        %v8107 = vor.u32 %v8105, %v8103
        %v8109 = vshll.u32 %v8001, 16
        %v8111 = vrot.slane %v8109, 1
        %v8112 = vsel %vm863, %v8107, %v8111
        %v8114 = vshrl.u32 %v7911, 16
        %v8116 = vshll.u32 %v7911, 16
        %v8118 = vrot.slane %v8116, 1
        %v8119 = vor.u32 %v8114, %v8118
        %v8121 = vshll.u32 %v7912, 16
        %v8123 = vrot.slane %v8121, 1
        %v8124 = vsel %vm863, %v8119, %v8123
        %v8125 = vshrl.u32 %v7912, 16
        %v8127 = vor.u32 %v8125, %v8123
        %v8129 = vshll.u32 %v8002, 16
        %v8131 = vrot.slane %v8129, 1
        %v8132 = vsel %vm863, %v8127, %v8131
        %v8134 = vshrl.u32 %v7913, 16
        %v8136 = vshll.u32 %v7913, 16
        %v8138 = vrot.slane %v8136, 1
        %v8139 = vor.u32 %v8134, %v8138
        %v8141 = vshll.u32 %v7914, 16
        %v8143 = vrot.slane %v8141, 1
        %v8144 = vsel %vm863, %v8139, %v8143
        %v8145 = vshrl.u32 %v7914, 16
        %v8147 = vor.u32 %v8145, %v8143
        %v8149 = vshll.u32 %v8003, 16
        %v8151 = vrot.slane %v8149, 1
        %v8152 = vsel %vm863, %v8147, %v8151
        %v8154 = vshrl.u32 %v7915, 16
        %v8156 = vshll.u32 %v7915, 16
        %v8158 = vrot.slane %v8156, 1
        %v8159 = vor.u32 %v8154, %v8158
        %v8161 = vshll.u32 %v7916, 16
        %v8163 = vrot.slane %v8161, 1
        %v8164 = vsel %vm863, %v8159, %v8163
        %v8165 = vshrl.u32 %v7916, 16
        %v8167 = vor.u32 %v8165, %v8163
        %v8169 = vshll.u32 %v8004, 16
        %v8171 = vrot.slane %v8169, 1
        %v8172 = vsel %vm863, %v8167, %v8171
        %v8174 = vshrl.u32 %v7917, 16
        %v8176 = vshll.u32 %v7917, 16
        %v8178 = vrot.slane %v8176, 1
        %v8179 = vor.u32 %v8174, %v8178
        %v8181 = vshll.u32 %v7918, 16
        %v8183 = vrot.slane %v8181, 1
        %v8184 = vsel %vm863, %v8179, %v8183
        %v8185 = vshrl.u32 %v7918, 16
        %v8187 = vor.u32 %v8185, %v8183
        %v8189 = vshll.u32 %v8005, 16
        %v8191 = vrot.slane %v8189, 1
        %v8192 = vsel %vm863, %v8187, %v8191
        %v8194 = vshrl.u32 %v7919, 16
        %v8196 = vshll.u32 %v7919, 16
        %v8198 = vrot.slane %v8196, 1
        %v8199 = vor.u32 %v8194, %v8198
        %v8201 = vshll.u32 %v7920, 16
        %v8203 = vrot.slane %v8201, 1
        %v8204 = vsel %vm863, %v8199, %v8203
        %v8205 = vshrl.u32 %v7920, 16
        %v8207 = vor.u32 %v8205, %v8203
        %v8209 = vshll.u32 %v8006, 16
        %v8211 = vrot.slane %v8209, 1
        %v8212 = vsel %vm863, %v8207, %v8211
        %v8214 = vshrl.u32 %v7921, 16
        %v8216 = vshll.u32 %v7921, 16
        %v8218 = vrot.slane %v8216, 1
        %v8219 = vor.u32 %v8214, %v8218
        %v8221 = vshll.u32 %v7922, 16
        %v8223 = vrot.slane %v8221, 1
        %v8224 = vsel %vm863, %v8219, %v8223
        %v8225 = vshrl.u32 %v7922, 16
        %v8227 = vor.u32 %v8225, %v8223
        %v8229 = vshll.u32 %v8007, 16
        %v8231 = vrot.slane %v8229, 1
        %v8232 = vsel %vm863, %v8227, %v8231
        %v8234 = vshrl.u32 %v7923, 16
        %v8236 = vshll.u32 %v7923, 16
        %v8238 = vrot.slane %v8236, 1
        %v8239 = vor.u32 %v8234, %v8238
        %v8241 = vshll.u32 %v7924, 16
        %v8243 = vrot.slane %v8241, 1
        %v8244 = vsel %vm863, %v8239, %v8243
        %v8245 = vshrl.u32 %v7924, 16
        %v8247 = vor.u32 %v8245, %v8243
        %v8249 = vshll.u32 %v8008, 16
        %v8251 = vrot.slane %v8249, 1
        %v8252 = vsel %vm863, %v8247, %v8251
        %v8254 = vshrl.u32 %v7925, 16
        %v8256 = vshll.u32 %v7925, 16
        %v8258 = vrot.slane %v8256, 1
        %v8259 = vor.u32 %v8254, %v8258
        %v8261 = vshll.u32 %v7926, 16
        %v8263 = vrot.slane %v8261, 1
        %v8264 = vsel %vm863, %v8259, %v8263
        %v8265 = vshrl.u32 %v7926, 16
        %v8267 = vor.u32 %v8265, %v8263
        %v8269 = vshll.u32 %v8009, 16
        %v8271 = vrot.slane %v8269, 1
        %v8272 = vsel %vm863, %v8267, %v8271
        %v8274 = vshrl.u32 %v7927, 16
        %v8276 = vshll.u32 %v7927, 16
        %v8278 = vrot.slane %v8276, 1
        %v8279 = vor.u32 %v8274, %v8278
        %v8281 = vshll.u32 %v7928, 16
        %v8283 = vrot.slane %v8281, 1
        %v8284 = vsel %vm863, %v8279, %v8283
        %v8285 = vshrl.u32 %v7928, 16
        %v8287 = vor.u32 %v8285, %v8283
        %v8289 = vshll.u32 %v8010, 16
        %v8291 = vrot.slane %v8289, 1
        %v8292 = vsel %vm863, %v8287, %v8291
        %v8294 = vshrl.u32 %v7929, 16
        %v8296 = vshll.u32 %v7929, 16
        %v8298 = vrot.slane %v8296, 1
        %v8299 = vor.u32 %v8294, %v8298
        %v8301 = vshll.u32 %v7930, 16
        %v8303 = vrot.slane %v8301, 1
        %v8304 = vsel %vm863, %v8299, %v8303
        %v8305 = vshrl.u32 %v7930, 16
        %v8307 = vor.u32 %v8305, %v8303
        %v8309 = vshll.u32 %v8011, 16
        %v8311 = vrot.slane %v8309, 1
        %v8312 = vsel %vm863, %v8307, %v8311
        %v8314 = vshrl.u32 %v7931, 16
        %v8316 = vshll.u32 %v7931, 16
        %v8318 = vrot.slane %v8316, 1
        %v8319 = vor.u32 %v8314, %v8318
        %v8321 = vshll.u32 %v7932, 16
        %v8323 = vrot.slane %v8321, 1
        %v8324 = vsel %vm863, %v8319, %v8323
        %v8325 = vshrl.u32 %v7932, 16
        %v8327 = vor.u32 %v8325, %v8323
        %v8329 = vshll.u32 %v8012, 16
        %v8331 = vrot.slane %v8329, 1
        %v8332 = vsel %vm863, %v8327, %v8331
        %v8381 = vunpack.c.l.b16 %v6908
        %v8382 = vunpack.c.l.b16 %v6909
        %v8383 = vunpack.c.l.b16 %v6910
        %v8384 = vunpack.c.l.b16 %v6911
        %v8385 = vunpack.c.l.b16 %v6912
        %v8386 = vunpack.c.l.b16 %v6913
        %v8387 = vunpack.c.l.b16 %v6914
        %v8388 = vunpack.c.l.b16 %v6915
        %v8389 = vunpack.c.l.b16 %v6916
        %v8390 = vunpack.c.l.b16 %v6917
        %v8391 = vunpack.c.l.b16 %v6918
        %v8392 = vunpack.c.l.b16 %v6919
        %v8393 = vunpack.c.l.b16 %v6920
        %v8394 = vunpack.c.l.b16 %v6921
        %v8395 = vunpack.c.l.b16 %v6922
        %v8396 = vunpack.c.l.b16 %v6923
        %v8397 = vpack.c.b16 %v7838, %v8381
        %v8398 = vpack.c.b16 %v7842, %v8382
        %v8399 = vpack.c.b16 %v7846, %v8383
        %v8400 = vpack.c.b16 %v7850, %v8384
        %v8401 = vpack.c.b16 %v7854, %v8385
        %v8402 = vpack.c.b16 %v7858, %v8386
        %v8403 = vpack.c.b16 %v7862, %v8387
        %v8404 = vpack.c.b16 %v7866, %v8388
        %v8405 = vpack.c.b16 %v7870, %v8389
        %v8406 = vpack.c.b16 %v7874, %v8390
        %v8407 = vpack.c.b16 %v7878, %v8391
        %v8408 = vpack.c.b16 %v7882, %v8392
        %v8409 = vpack.c.b16 %v7886, %v8393
        %v8410 = vpack.c.b16 %v7890, %v8394
        %v8411 = vpack.c.b16 %v7894, %v8395
        %v8412 = vpack.c.b16 %v7898, %v8396
        %v8413 = vrot.slane %v8397, 1
        %v8414 = vrot.slane %v7902, 1
        %v8415 = vsel %vm1350, %v8413, %v8414
        %v8416 = vrot.slane %v7997, 1
        %v8417 = vsel %vm1350, %v8414, %v8416
        %v8418 = vrot.slane %v8398, 1
        %v8419 = vrot.slane %v7904, 1
        %v8420 = vsel %vm1350, %v8418, %v8419
        %v8421 = vrot.slane %v7998, 1
        %v8422 = vsel %vm1350, %v8419, %v8421
        %v8423 = vrot.slane %v8399, 1
        %v8424 = vrot.slane %v7906, 1
        %v8425 = vsel %vm1350, %v8423, %v8424
        %v8426 = vrot.slane %v7999, 1
        %v8427 = vsel %vm1350, %v8424, %v8426
        %v8428 = vrot.slane %v8400, 1
        %v8429 = vrot.slane %v7908, 1
        %v8430 = vsel %vm1350, %v8428, %v8429
        %v8431 = vrot.slane %v8000, 1
        %v8432 = vsel %vm1350, %v8429, %v8431
        %v8433 = vrot.slane %v8401, 1
        %v8434 = vrot.slane %v7910, 1
        %v8435 = vsel %vm1350, %v8433, %v8434
        %v8436 = vrot.slane %v8001, 1
        %v8437 = vsel %vm1350, %v8434, %v8436
        %v8438 = vrot.slane %v8402, 1
        %v8439 = vrot.slane %v7912, 1
        %v8440 = vsel %vm1350, %v8438, %v8439
        %v8441 = vrot.slane %v8002, 1
        %v8442 = vsel %vm1350, %v8439, %v8441
        %v8443 = vrot.slane %v8403, 1
        %v8444 = vrot.slane %v7914, 1
        %v8445 = vsel %vm1350, %v8443, %v8444
        %v8446 = vrot.slane %v8003, 1
        %v8447 = vsel %vm1350, %v8444, %v8446
        %v8448 = vrot.slane %v8404, 1
        %v8449 = vrot.slane %v7916, 1
        %v8450 = vsel %vm1350, %v8448, %v8449
        %v8451 = vrot.slane %v8004, 1
        %v8452 = vsel %vm1350, %v8449, %v8451
        %v8453 = vrot.slane %v8405, 1
        %v8454 = vrot.slane %v7918, 1
        %v8455 = vsel %vm1350, %v8453, %v8454
        %v8456 = vrot.slane %v8005, 1
        %v8457 = vsel %vm1350, %v8454, %v8456
        %v8458 = vrot.slane %v8406, 1
        %v8459 = vrot.slane %v7920, 1
        %v8460 = vsel %vm1350, %v8458, %v8459
        %v8461 = vrot.slane %v8006, 1
        %v8462 = vsel %vm1350, %v8459, %v8461
        %v8463 = vrot.slane %v8407, 1
        %v8464 = vrot.slane %v7922, 1
        %v8465 = vsel %vm1350, %v8463, %v8464
        %v8466 = vrot.slane %v8007, 1
        %v8467 = vsel %vm1350, %v8464, %v8466
        %v8468 = vrot.slane %v8408, 1
        %v8469 = vrot.slane %v7924, 1
        %v8470 = vsel %vm1350, %v8468, %v8469
        %v8471 = vrot.slane %v8008, 1
        %v8472 = vsel %vm1350, %v8469, %v8471
        %v8473 = vrot.slane %v8409, 1
        %v8474 = vrot.slane %v7926, 1
        %v8475 = vsel %vm1350, %v8473, %v8474
        %v8476 = vrot.slane %v8009, 1
        %v8477 = vsel %vm1350, %v8474, %v8476
        %v8478 = vrot.slane %v8410, 1
        %v8479 = vrot.slane %v7928, 1
        %v8480 = vsel %vm1350, %v8478, %v8479
        %v8481 = vrot.slane %v8010, 1
        %v8482 = vsel %vm1350, %v8479, %v8481
        %v8483 = vrot.slane %v8411, 1
        %v8484 = vrot.slane %v7930, 1
        %v8485 = vsel %vm1350, %v8483, %v8484
        %v8486 = vrot.slane %v8011, 1
        %v8487 = vsel %vm1350, %v8484, %v8486
        %v8488 = vrot.slane %v8412, 1
        %v8489 = vrot.slane %v7932, 1
        %v8490 = vsel %vm1350, %v8488, %v8489
        %v8491 = vrot.slane %v8012, 1
        %v8492 = vsel %vm1350, %v8489, %v8491
        %v8589 = vunpack.c.l.b16 %v6925
        %v8590 = vunpack.c.l.b16 %v6926
        %v8591 = vunpack.c.l.b16 %v6927
        %v8592 = vunpack.c.l.b16 %v6928
        %v8593 = vunpack.c.l.b16 %v6929
        %v8594 = vunpack.c.l.b16 %v6930
        %v8595 = vunpack.c.l.b16 %v6931
        %v8596 = vunpack.c.l.b16 %v6932
        %v8597 = vunpack.c.l.b16 %v6933
        %v8598 = vunpack.c.l.b16 %v6934
        %v8599 = vunpack.c.l.b16 %v6935
        %v8600 = vunpack.c.l.b16 %v6936
        %v8601 = vunpack.c.l.b16 %v6937
        %v8602 = vunpack.c.l.b16 %v6938
        %v8603 = vunpack.c.l.b16 %v6939
        %v8604 = vunpack.c.l.b16 %v6940
        %v8605 = vunpack.c.l.b16 %v6941
        %v8606 = vunpack.c.l.b16 %v6942
        %v8607 = vunpack.c.l.b16 %v6943
        %v8608 = vunpack.c.l.b16 %v6944
        %v8609 = vunpack.c.l.b16 %v6945
        %v8610 = vunpack.c.l.b16 %v6946
        %v8611 = vunpack.c.l.b16 %v6947
        %v8612 = vunpack.c.l.b16 %v6948
        %v8613 = vunpack.c.l.b16 %v6949
        %v8614 = vunpack.c.l.b16 %v6950
        %v8615 = vunpack.c.l.b16 %v6951
        %v8616 = vunpack.c.l.b16 %v6952
        %v8617 = vunpack.c.l.b16 %v6953
        %v8618 = vunpack.c.l.b16 %v6954
        %v8619 = vunpack.c.l.b16 %v6955
        %v8620 = vunpack.c.l.b16 %v6956
        %v8621 = vunpack.c.l.b16 %v6957
        %v8622 = vunpack.c.l.b16 %v6958
        %v8623 = vunpack.c.l.b16 %v6959
        %v8624 = vunpack.c.l.b16 %v6960
        %v8625 = vunpack.c.l.b16 %v6961
        %v8626 = vunpack.c.l.b16 %v6962
        %v8627 = vunpack.c.l.b16 %v6963
        %v8628 = vunpack.c.l.b16 %v6964
        %v8629 = vunpack.c.l.b16 %v6965
        %v8630 = vunpack.c.l.b16 %v6966
        %v8631 = vunpack.c.l.b16 %v6967
        %v8632 = vunpack.c.l.b16 %v6968
        %v8633 = vunpack.c.l.b16 %v6969
        %v8634 = vunpack.c.l.b16 %v6970
        %v8635 = vunpack.c.l.b16 %v6971
        %v8636 = vunpack.c.l.b16 %v6972
        %v8637 = vunpack.c.l.b16 %v6973
        %v8638 = vunpack.c.l.b16 %v6974
        %v8639 = vunpack.c.l.b16 %v6975
        %v8640 = vunpack.c.l.b16 %v6976
        %v8641 = vunpack.c.l.b16 %v6977
        %v8642 = vunpack.c.l.b16 %v6978
        %v8643 = vunpack.c.l.b16 %v6979
        %v8644 = vunpack.c.l.b16 %v6980
        %v8645 = vunpack.c.l.b16 %v6981
        %v8646 = vunpack.c.l.b16 %v6982
        %v8647 = vunpack.c.l.b16 %v6983
        %v8648 = vunpack.c.l.b16 %v6984
        %v8649 = vunpack.c.l.b16 %v6985
        %v8650 = vunpack.c.l.b16 %v6986
        %v8651 = vunpack.c.l.b16 %v6987
        %v8652 = vunpack.c.l.b16 %v6988
        %v8653 = vpack.c.b16 %v8590, %v8589
        %v8654 = vpack.c.b16 %v8592, %v8591
        %v8655 = vpack.c.b16 %v8594, %v8593
        %v8656 = vpack.c.b16 %v8596, %v8595
        %v8657 = vpack.c.b16 %v8598, %v8597
        %v8658 = vpack.c.b16 %v8600, %v8599
        %v8659 = vpack.c.b16 %v8602, %v8601
        %v8660 = vpack.c.b16 %v8604, %v8603
        %v8661 = vpack.c.b16 %v8606, %v8605
        %v8662 = vpack.c.b16 %v8608, %v8607
        %v8663 = vpack.c.b16 %v8610, %v8609
        %v8664 = vpack.c.b16 %v8612, %v8611
        %v8665 = vpack.c.b16 %v8614, %v8613
        %v8666 = vpack.c.b16 %v8616, %v8615
        %v8667 = vpack.c.b16 %v8618, %v8617
        %v8668 = vpack.c.b16 %v8620, %v8619
        %v8669 = vpack.c.b16 %v8622, %v8621
        %v8670 = vpack.c.b16 %v8624, %v8623
        %v8671 = vpack.c.b16 %v8626, %v8625
        %v8672 = vpack.c.b16 %v8628, %v8627
        %v8673 = vpack.c.b16 %v8630, %v8629
        %v8674 = vpack.c.b16 %v8632, %v8631
        %v8675 = vpack.c.b16 %v8634, %v8633
        %v8676 = vpack.c.b16 %v8636, %v8635
        %v8677 = vpack.c.b16 %v8638, %v8637
        %v8678 = vpack.c.b16 %v8640, %v8639
        %v8679 = vpack.c.b16 %v8642, %v8641
        %v8680 = vpack.c.b16 %v8644, %v8643
        %v8681 = vpack.c.b16 %v8646, %v8645
        %v8682 = vpack.c.b16 %v8648, %v8647
        %v8683 = vpack.c.b16 %v8650, %v8649
        %v8684 = vpack.c.b16 %v8652, %v8651
        %v8733 = vunpack.c.l.b16 %v6989
        %v8734 = vunpack.c.l.b16 %v6990
        %v8735 = vunpack.c.l.b16 %v6991
        %v8736 = vunpack.c.l.b16 %v6992
        %v8737 = vunpack.c.l.b16 %v6993
        %v8738 = vunpack.c.l.b16 %v6994
        %v8739 = vunpack.c.l.b16 %v6995
        %v8740 = vunpack.c.l.b16 %v6996
        %v8741 = vunpack.c.l.b16 %v6997
        %v8742 = vunpack.c.l.b16 %v6998
        %v8743 = vunpack.c.l.b16 %v6999
        %v8744 = vunpack.c.l.b16 %v7000
        %v8745 = vunpack.c.l.b16 %v7001
        %v8746 = vunpack.c.l.b16 %v7002
        %v8747 = vunpack.c.l.b16 %v7003
        %v8748 = vunpack.c.l.b16 %v7004
        %v8749 = vpack.c.b16 %v8733, %v8733
        %v8750 = vpack.c.b16 %v8734, %v8734
        %v8751 = vpack.c.b16 %v8735, %v8735
        %v8752 = vpack.c.b16 %v8736, %v8736
        %v8753 = vpack.c.b16 %v8737, %v8737
        %v8754 = vpack.c.b16 %v8738, %v8738
        %v8755 = vpack.c.b16 %v8739, %v8739
        %v8756 = vpack.c.b16 %v8740, %v8740
        %v8757 = vpack.c.b16 %v8741, %v8741
        %v8758 = vpack.c.b16 %v8742, %v8742
        %v8759 = vpack.c.b16 %v8743, %v8743
        %v8760 = vpack.c.b16 %v8744, %v8744
        %v8761 = vpack.c.b16 %v8745, %v8745
        %v8762 = vpack.c.b16 %v8746, %v8746
        %v8763 = vpack.c.b16 %v8747, %v8747
        %v8764 = vpack.c.b16 %v8748, %v8748
        %v8766 = vshrl.u32 %v8653, 16
        %v8768 = vshll.u32 %v8653, 16
        %v8770 = vrot.slane %v8768, 1
        %v8771 = vor.u32 %v8766, %v8770
        %v8773 = vshll.u32 %v8654, 16
        %v8775 = vrot.slane %v8773, 1
        %v8776 = vsel %vm863, %v8771, %v8775
        %v8777 = vshrl.u32 %v8654, 16
        %v8779 = vor.u32 %v8777, %v8775
        %v8781 = vshll.u32 %v8749, 16
        %v8783 = vrot.slane %v8781, 1
        %v8784 = vsel %vm863, %v8779, %v8783
        %v8786 = vshrl.u32 %v8655, 16
        %v8788 = vshll.u32 %v8655, 16
        %v8790 = vrot.slane %v8788, 1
        %v8791 = vor.u32 %v8786, %v8790
        %v8793 = vshll.u32 %v8656, 16
        %v8795 = vrot.slane %v8793, 1
        %v8796 = vsel %vm863, %v8791, %v8795
        %v8797 = vshrl.u32 %v8656, 16
        %v8799 = vor.u32 %v8797, %v8795
        %v8801 = vshll.u32 %v8750, 16
        %v8803 = vrot.slane %v8801, 1
        %v8804 = vsel %vm863, %v8799, %v8803
        %v8806 = vshrl.u32 %v8657, 16
        %v8808 = vshll.u32 %v8657, 16
        %v8810 = vrot.slane %v8808, 1
        %v8811 = vor.u32 %v8806, %v8810
        %v8813 = vshll.u32 %v8658, 16
        %v8815 = vrot.slane %v8813, 1
        %v8816 = vsel %vm863, %v8811, %v8815
        %v8817 = vshrl.u32 %v8658, 16
        %v8819 = vor.u32 %v8817, %v8815
        %v8821 = vshll.u32 %v8751, 16
        %v8823 = vrot.slane %v8821, 1
        %v8824 = vsel %vm863, %v8819, %v8823
        %v8826 = vshrl.u32 %v8659, 16
        %v8828 = vshll.u32 %v8659, 16
        %v8830 = vrot.slane %v8828, 1
        %v8831 = vor.u32 %v8826, %v8830
        %v8833 = vshll.u32 %v8660, 16
        %v8835 = vrot.slane %v8833, 1
        %v8836 = vsel %vm863, %v8831, %v8835
        %v8837 = vshrl.u32 %v8660, 16
        %v8839 = vor.u32 %v8837, %v8835
        %v8841 = vshll.u32 %v8752, 16
        %v8843 = vrot.slane %v8841, 1
        %v8844 = vsel %vm863, %v8839, %v8843
        %v8846 = vshrl.u32 %v8661, 16
        %v8848 = vshll.u32 %v8661, 16
        %v8850 = vrot.slane %v8848, 1
        %v8851 = vor.u32 %v8846, %v8850
        %v8853 = vshll.u32 %v8662, 16
        %v8855 = vrot.slane %v8853, 1
        %v8856 = vsel %vm863, %v8851, %v8855
        %v8857 = vshrl.u32 %v8662, 16
        %v8859 = vor.u32 %v8857, %v8855
        %v8861 = vshll.u32 %v8753, 16
        %v8863 = vrot.slane %v8861, 1
        %v8864 = vsel %vm863, %v8859, %v8863
        %v8866 = vshrl.u32 %v8663, 16
        %v8868 = vshll.u32 %v8663, 16
        %v8870 = vrot.slane %v8868, 1
        %v8871 = vor.u32 %v8866, %v8870
        %v8873 = vshll.u32 %v8664, 16
        %v8875 = vrot.slane %v8873, 1
        %v8876 = vsel %vm863, %v8871, %v8875
        %v8877 = vshrl.u32 %v8664, 16
        %v8879 = vor.u32 %v8877, %v8875
        %v8881 = vshll.u32 %v8754, 16
        %v8883 = vrot.slane %v8881, 1
        %v8884 = vsel %vm863, %v8879, %v8883
        %v8886 = vshrl.u32 %v8665, 16
        %v8888 = vshll.u32 %v8665, 16
        %v8890 = vrot.slane %v8888, 1
        %v8891 = vor.u32 %v8886, %v8890
        %v8893 = vshll.u32 %v8666, 16
        %v8895 = vrot.slane %v8893, 1
        %v8896 = vsel %vm863, %v8891, %v8895
        %v8897 = vshrl.u32 %v8666, 16
        %v8899 = vor.u32 %v8897, %v8895
        %v8901 = vshll.u32 %v8755, 16
        %v8903 = vrot.slane %v8901, 1
        %v8904 = vsel %vm863, %v8899, %v8903
        %v8906 = vshrl.u32 %v8667, 16
        %v8908 = vshll.u32 %v8667, 16
        %v8910 = vrot.slane %v8908, 1
        %v8911 = vor.u32 %v8906, %v8910
        %v8913 = vshll.u32 %v8668, 16
        %v8915 = vrot.slane %v8913, 1
        %v8916 = vsel %vm863, %v8911, %v8915
        %v8917 = vshrl.u32 %v8668, 16
        %v8919 = vor.u32 %v8917, %v8915
        %v8921 = vshll.u32 %v8756, 16
        %v8923 = vrot.slane %v8921, 1
        %v8924 = vsel %vm863, %v8919, %v8923
        %v8926 = vshrl.u32 %v8669, 16
        %v8928 = vshll.u32 %v8669, 16
        %v8930 = vrot.slane %v8928, 1
        %v8931 = vor.u32 %v8926, %v8930
        %v8933 = vshll.u32 %v8670, 16
        %v8935 = vrot.slane %v8933, 1
        %v8936 = vsel %vm863, %v8931, %v8935
        %v8937 = vshrl.u32 %v8670, 16
        %v8939 = vor.u32 %v8937, %v8935
        %v8941 = vshll.u32 %v8757, 16
        %v8943 = vrot.slane %v8941, 1
        %v8944 = vsel %vm863, %v8939, %v8943
        %v8946 = vshrl.u32 %v8671, 16
        %v8948 = vshll.u32 %v8671, 16
        %v8950 = vrot.slane %v8948, 1
        %v8951 = vor.u32 %v8946, %v8950
        %v8953 = vshll.u32 %v8672, 16
        %v8955 = vrot.slane %v8953, 1
        %v8956 = vsel %vm863, %v8951, %v8955
        %v8957 = vshrl.u32 %v8672, 16
        %v8959 = vor.u32 %v8957, %v8955
        %v8961 = vshll.u32 %v8758, 16
        %v8963 = vrot.slane %v8961, 1
        %v8964 = vsel %vm863, %v8959, %v8963
        %v8966 = vshrl.u32 %v8673, 16
        %v8968 = vshll.u32 %v8673, 16
        %v8970 = vrot.slane %v8968, 1
        %v8971 = vor.u32 %v8966, %v8970
        %v8973 = vshll.u32 %v8674, 16
        %v8975 = vrot.slane %v8973, 1
        %v8976 = vsel %vm863, %v8971, %v8975
        %v8977 = vshrl.u32 %v8674, 16
        %v8979 = vor.u32 %v8977, %v8975
        %v8981 = vshll.u32 %v8759, 16
        %v8983 = vrot.slane %v8981, 1
        %v8984 = vsel %vm863, %v8979, %v8983
        %v8986 = vshrl.u32 %v8675, 16
        %v8988 = vshll.u32 %v8675, 16
        %v8990 = vrot.slane %v8988, 1
        %v8991 = vor.u32 %v8986, %v8990
        %v8993 = vshll.u32 %v8676, 16
        %v8995 = vrot.slane %v8993, 1
        %v8996 = vsel %vm863, %v8991, %v8995
        %v8997 = vshrl.u32 %v8676, 16
        %v8999 = vor.u32 %v8997, %v8995
        %v9001 = vshll.u32 %v8760, 16
        %v9003 = vrot.slane %v9001, 1
        %v9004 = vsel %vm863, %v8999, %v9003
        %v9006 = vshrl.u32 %v8677, 16
        %v9008 = vshll.u32 %v8677, 16
        %v9010 = vrot.slane %v9008, 1
        %v9011 = vor.u32 %v9006, %v9010
        %v9013 = vshll.u32 %v8678, 16
        %v9015 = vrot.slane %v9013, 1
        %v9016 = vsel %vm863, %v9011, %v9015
        %v9017 = vshrl.u32 %v8678, 16
        %v9019 = vor.u32 %v9017, %v9015
        %v9021 = vshll.u32 %v8761, 16
        %v9023 = vrot.slane %v9021, 1
        %v9024 = vsel %vm863, %v9019, %v9023
        %v9026 = vshrl.u32 %v8679, 16
        %v9028 = vshll.u32 %v8679, 16
        %v9030 = vrot.slane %v9028, 1
        %v9031 = vor.u32 %v9026, %v9030
        %v9033 = vshll.u32 %v8680, 16
        %v9035 = vrot.slane %v9033, 1
        %v9036 = vsel %vm863, %v9031, %v9035
        %v9037 = vshrl.u32 %v8680, 16
        %v9039 = vor.u32 %v9037, %v9035
        %v9041 = vshll.u32 %v8762, 16
        %v9043 = vrot.slane %v9041, 1
        %v9044 = vsel %vm863, %v9039, %v9043
        %v9046 = vshrl.u32 %v8681, 16
        %v9048 = vshll.u32 %v8681, 16
        %v9050 = vrot.slane %v9048, 1
        %v9051 = vor.u32 %v9046, %v9050
        %v9053 = vshll.u32 %v8682, 16
        %v9055 = vrot.slane %v9053, 1
        %v9056 = vsel %vm863, %v9051, %v9055
        %v9057 = vshrl.u32 %v8682, 16
        %v9059 = vor.u32 %v9057, %v9055
        %v9061 = vshll.u32 %v8763, 16
        %v9063 = vrot.slane %v9061, 1
        %v9064 = vsel %vm863, %v9059, %v9063
        %v9066 = vshrl.u32 %v8683, 16
        %v9068 = vshll.u32 %v8683, 16
        %v9070 = vrot.slane %v9068, 1
        %v9071 = vor.u32 %v9066, %v9070
        %v9073 = vshll.u32 %v8684, 16
        %v9075 = vrot.slane %v9073, 1
        %v9076 = vsel %vm863, %v9071, %v9075
        %v9077 = vshrl.u32 %v8684, 16
        %v9079 = vor.u32 %v9077, %v9075
        %v9081 = vshll.u32 %v8764, 16
        %v9083 = vrot.slane %v9081, 1
        %v9084 = vsel %vm863, %v9079, %v9083
        %v9133 = vunpack.c.l.b16 %v7005
        %v9134 = vunpack.c.l.b16 %v7006
        %v9135 = vunpack.c.l.b16 %v7007
        %v9136 = vunpack.c.l.b16 %v7008
        %v9137 = vunpack.c.l.b16 %v7009
        %v9138 = vunpack.c.l.b16 %v7010
        %v9139 = vunpack.c.l.b16 %v7011
        %v9140 = vunpack.c.l.b16 %v7012
        %v9141 = vunpack.c.l.b16 %v7013
        %v9142 = vunpack.c.l.b16 %v7014
        %v9143 = vunpack.c.l.b16 %v7015
        %v9144 = vunpack.c.l.b16 %v7016
        %v9145 = vunpack.c.l.b16 %v7017
        %v9146 = vunpack.c.l.b16 %v7018
        %v9147 = vunpack.c.l.b16 %v7019
        %v9148 = vunpack.c.l.b16 %v7020
        %v9149 = vpack.c.b16 %v8590, %v9133
        %v9150 = vpack.c.b16 %v8594, %v9134
        %v9151 = vpack.c.b16 %v8598, %v9135
        %v9152 = vpack.c.b16 %v8602, %v9136
        %v9153 = vpack.c.b16 %v8606, %v9137
        %v9154 = vpack.c.b16 %v8610, %v9138
        %v9155 = vpack.c.b16 %v8614, %v9139
        %v9156 = vpack.c.b16 %v8618, %v9140
        %v9157 = vpack.c.b16 %v8622, %v9141
        %v9158 = vpack.c.b16 %v8626, %v9142
        %v9159 = vpack.c.b16 %v8630, %v9143
        %v9160 = vpack.c.b16 %v8634, %v9144
        %v9161 = vpack.c.b16 %v8638, %v9145
        %v9162 = vpack.c.b16 %v8642, %v9146
        %v9163 = vpack.c.b16 %v8646, %v9147
        %v9164 = vpack.c.b16 %v8650, %v9148
        %v9165 = vrot.slane %v9149, 1
        %v9166 = vrot.slane %v8654, 1
        %v9167 = vsel %vm1350, %v9165, %v9166
        %v9168 = vrot.slane %v8749, 1
        %v9169 = vsel %vm1350, %v9166, %v9168
        %v9170 = vrot.slane %v9150, 1
        %v9171 = vrot.slane %v8656, 1
        %v9172 = vsel %vm1350, %v9170, %v9171
        %v9173 = vrot.slane %v8750, 1
        %v9174 = vsel %vm1350, %v9171, %v9173
        %v9175 = vrot.slane %v9151, 1
        %v9176 = vrot.slane %v8658, 1
        %v9177 = vsel %vm1350, %v9175, %v9176
        %v9178 = vrot.slane %v8751, 1
        %v9179 = vsel %vm1350, %v9176, %v9178
        %v9180 = vrot.slane %v9152, 1
        %v9181 = vrot.slane %v8660, 1
        %v9182 = vsel %vm1350, %v9180, %v9181
        %v9183 = vrot.slane %v8752, 1
        %v9184 = vsel %vm1350, %v9181, %v9183
        %v9185 = vrot.slane %v9153, 1
        %v9186 = vrot.slane %v8662, 1
        %v9187 = vsel %vm1350, %v9185, %v9186
        %v9188 = vrot.slane %v8753, 1
        %v9189 = vsel %vm1350, %v9186, %v9188
        %v9190 = vrot.slane %v9154, 1
        %v9191 = vrot.slane %v8664, 1
        %v9192 = vsel %vm1350, %v9190, %v9191
        %v9193 = vrot.slane %v8754, 1
        %v9194 = vsel %vm1350, %v9191, %v9193
        %v9195 = vrot.slane %v9155, 1
        %v9196 = vrot.slane %v8666, 1
        %v9197 = vsel %vm1350, %v9195, %v9196
        %v9198 = vrot.slane %v8755, 1
        %v9199 = vsel %vm1350, %v9196, %v9198
        %v9200 = vrot.slane %v9156, 1
        %v9201 = vrot.slane %v8668, 1
        %v9202 = vsel %vm1350, %v9200, %v9201
        %v9203 = vrot.slane %v8756, 1
        %v9204 = vsel %vm1350, %v9201, %v9203
        %v9205 = vrot.slane %v9157, 1
        %v9206 = vrot.slane %v8670, 1
        %v9207 = vsel %vm1350, %v9205, %v9206
        %v9208 = vrot.slane %v8757, 1
        %v9209 = vsel %vm1350, %v9206, %v9208
        %v9210 = vrot.slane %v9158, 1
        %v9211 = vrot.slane %v8672, 1
        %v9212 = vsel %vm1350, %v9210, %v9211
        %v9213 = vrot.slane %v8758, 1
        %v9214 = vsel %vm1350, %v9211, %v9213
        %v9215 = vrot.slane %v9159, 1
        %v9216 = vrot.slane %v8674, 1
        %v9217 = vsel %vm1350, %v9215, %v9216
        %v9218 = vrot.slane %v8759, 1
        %v9219 = vsel %vm1350, %v9216, %v9218
        %v9220 = vrot.slane %v9160, 1
        %v9221 = vrot.slane %v8676, 1
        %v9222 = vsel %vm1350, %v9220, %v9221
        %v9223 = vrot.slane %v8760, 1
        %v9224 = vsel %vm1350, %v9221, %v9223
        %v9225 = vrot.slane %v9161, 1
        %v9226 = vrot.slane %v8678, 1
        %v9227 = vsel %vm1350, %v9225, %v9226
        %v9228 = vrot.slane %v8761, 1
        %v9229 = vsel %vm1350, %v9226, %v9228
        %v9230 = vrot.slane %v9162, 1
        %v9231 = vrot.slane %v8680, 1
        %v9232 = vsel %vm1350, %v9230, %v9231
        %v9233 = vrot.slane %v8762, 1
        %v9234 = vsel %vm1350, %v9231, %v9233
        %v9235 = vrot.slane %v9163, 1
        %v9236 = vrot.slane %v8682, 1
        %v9237 = vsel %vm1350, %v9235, %v9236
        %v9238 = vrot.slane %v8763, 1
        %v9239 = vsel %vm1350, %v9236, %v9238
        %v9240 = vrot.slane %v9164, 1
        %v9241 = vrot.slane %v8684, 1
        %v9242 = vsel %vm1350, %v9240, %v9241
        %v9243 = vrot.slane %v8764, 1
        %v9244 = vsel %vm1350, %v9241, %v9243
        %v9277 = vld [vmem:[%s4] sm:$0xf]
        %v9278 = vld [vmem:[%s4 + $0x4] sm:$0xf]
        %v9279 = vld [vmem:[%s4 + $0x8] sm:$0xf]
        %v9280 = vld [vmem:[%s4 + $0xc] sm:$0xf]
        %v9281 = vld [vmem:[%s4 + $0x10] sm:$0xf]
        %v9282 = vld [vmem:[%s4 + $0x14] sm:$0xf]
        %v9283 = vld [vmem:[%s4 + $0x18] sm:$0xf]
        %v9284 = vld [vmem:[%s4 + $0x1c] sm:$0xf]
        %v9285 = vld [vmem:[%s4 + $0x20] sm:$0xf]
        %v9286 = vld [vmem:[%s4 + $0x24] sm:$0xf]
        %v9287 = vld [vmem:[%s4 + $0x28] sm:$0xf]
        %v9288 = vld [vmem:[%s4 + $0x2c] sm:$0xf]
        %v9289 = vld [vmem:[%s4 + $0x30] sm:$0xf]
        %v9290 = vld [vmem:[%s4 + $0x34] sm:$0xf]
        %v9291 = vld [vmem:[%s4 + $0x38] sm:$0xf]
        %v9292 = vld [vmem:[%s4 + $0x3c] sm:$0xf]
        %v9293 = vld [vmem:[%s4 + $0x40] sm:$0xf]
        %v9294 = vld [vmem:[%s4 + $0x44] sm:$0xf]
        %v9295 = vld [vmem:[%s4 + $0x48] sm:$0xf]
        %v9296 = vld [vmem:[%s4 + $0x4c] sm:$0xf]
        %v9297 = vld [vmem:[%s4 + $0x50] sm:$0xf]
        %v9298 = vld [vmem:[%s4 + $0x54] sm:$0xf]
        %v9299 = vld [vmem:[%s4 + $0x58] sm:$0xf]
        %v9300 = vld [vmem:[%s4 + $0x5c] sm:$0xf]
        %v9301 = vld [vmem:[%s4 + $0x60] sm:$0xf]
        %v9302 = vld [vmem:[%s4 + $0x64] sm:$0xf]
        %v9303 = vld [vmem:[%s4 + $0x68] sm:$0xf]
        %v9304 = vld [vmem:[%s4 + $0x6c] sm:$0xf]
        %v9305 = vld [vmem:[%s4 + $0x70] sm:$0xf]
        %v9306 = vld [vmem:[%s4 + $0x74] sm:$0xf]
        %v9307 = vld [vmem:[%s4 + $0x78] sm:$0xf]
        %v9308 = vld [vmem:[%s4 + $0x7c] sm:$0xf]
        %v9309 = vld [vmem:[%s4 + $0x80] sm:$0xf]
        %v9310 = vld [vmem:[%s4 + $0x84] sm:$0xf]
        %v9311 = vld [vmem:[%s4 + $0x88] sm:$0xf]
        %v9312 = vld [vmem:[%s4 + $0x8c] sm:$0xf]
        %v9313 = vld [vmem:[%s4 + $0x90] sm:$0xf]
        %v9314 = vld [vmem:[%s4 + $0x94] sm:$0xf]
        %v9315 = vld [vmem:[%s4 + $0x98] sm:$0xf]
        %v9316 = vld [vmem:[%s4 + $0x9c] sm:$0xf]
        %v9317 = vld [vmem:[%s4 + $0xa0] sm:$0xf]
        %v9318 = vld [vmem:[%s4 + $0xa4] sm:$0xf]
        %v9319 = vld [vmem:[%s4 + $0xa8] sm:$0xf]
        %v9320 = vld [vmem:[%s4 + $0xac] sm:$0xf]
        %v9321 = vld [vmem:[%s4 + $0xb0] sm:$0xf]
        %v9322 = vld [vmem:[%s4 + $0xb4] sm:$0xf]
        %v9323 = vld [vmem:[%s4 + $0xb8] sm:$0xf]
        %v9324 = vld [vmem:[%s4 + $0xbc] sm:$0xf]
        %v9325 = vld [vmem:[%s4 + $0xc0] sm:$0xf]
        %v9326 = vld [vmem:[%s4 + $0xc4] sm:$0xf]
        %v9327 = vld [vmem:[%s4 + $0xc8] sm:$0xf]
        %v9328 = vld [vmem:[%s4 + $0xcc] sm:$0xf]
        %v9329 = vld [vmem:[%s4 + $0xd0] sm:$0xf]
        %v9330 = vld [vmem:[%s4 + $0xd4] sm:$0xf]
        %v9331 = vld [vmem:[%s4 + $0xd8] sm:$0xf]
        %v9332 = vld [vmem:[%s4 + $0xdc] sm:$0xf]
        %v9333 = vld [vmem:[%s4 + $0xe0] sm:$0xf]
        %v9334 = vld [vmem:[%s4 + $0xe4] sm:$0xf]
        %v9335 = vld [vmem:[%s4 + $0xe8] sm:$0xf]
        %v9336 = vld [vmem:[%s4 + $0xec] sm:$0xf]
        %v9337 = vld [vmem:[%s4 + $0xf0] sm:$0xf]
        %v9338 = vld [vmem:[%s4 + $0xf4] sm:$0xf]
        %v9339 = vld [vmem:[%s4 + $0xf8] sm:$0xf]
        %v9340 = vld [vmem:[%s4 + $0xfc] sm:$0xf]
        %v9341 = vld [vmem:[%s4 + $0x100] sm:$0xf]
        %v9342 = vld [vmem:[%s4 + $0x104] sm:$0xf]
        %v9343 = vld [vmem:[%s4 + $0x108] sm:$0xf]
        %v9344 = vld [vmem:[%s4 + $0x10c] sm:$0xf]
        %v9345 = vld [vmem:[%s4 + $0x110] sm:$0xf]
        %v9346 = vld [vmem:[%s4 + $0x114] sm:$0xf]
        %v9347 = vld [vmem:[%s4 + $0x118] sm:$0xf]
        %v9348 = vld [vmem:[%s4 + $0x11c] sm:$0xf]
        %v9349 = vld [vmem:[%s4 + $0x120] sm:$0xf]
        %v9350 = vld [vmem:[%s4 + $0x124] sm:$0xf]
        %v9351 = vld [vmem:[%s4 + $0x128] sm:$0xf]
        %v9352 = vld [vmem:[%s4 + $0x12c] sm:$0xf]
        %v9353 = vld [vmem:[%s4 + $0x130] sm:$0xf]
        %v9354 = vld [vmem:[%s4 + $0x134] sm:$0xf]
        %v9355 = vld [vmem:[%s4 + $0x138] sm:$0xf]
        %v9356 = vld [vmem:[%s4 + $0x13c] sm:$0xf]
        %v9357 = vld [vmem:[%s4 + $0x140] sm:$0xf]
        %v9358 = vld [vmem:[%s4 + $0x144] sm:$0xf]
        %v9359 = vld [vmem:[%s4 + $0x148] sm:$0xf]
        %v9360 = vld [vmem:[%s4 + $0x14c] sm:$0xf]
        %v9361 = vld [vmem:[%s4 + $0x150] sm:$0xf]
        %v9362 = vld [vmem:[%s4 + $0x154] sm:$0xf]
        %v9363 = vld [vmem:[%s4 + $0x158] sm:$0xf]
        %v9364 = vld [vmem:[%s4 + $0x15c] sm:$0xf]
        %v9365 = vld [vmem:[%s4 + $0x160] sm:$0xf]
        %v9366 = vld [vmem:[%s4 + $0x164] sm:$0xf]
        %v9367 = vld [vmem:[%s4 + $0x168] sm:$0xf]
        %v9368 = vld [vmem:[%s4 + $0x16c] sm:$0xf]
        %v9369 = vld [vmem:[%s4 + $0x170] sm:$0xf]
        %v9370 = vld [vmem:[%s4 + $0x174] sm:$0xf]
        %v9371 = vld [vmem:[%s4 + $0x178] sm:$0xf]
        %v9372 = vld [vmem:[%s4 + $0x17c] sm:$0xf]
        %v9373 = vld [vmem:[%s4 + $0x180] sm:$0xf]
        %v9374 = vld [vmem:[%s4 + $0x184] sm:$0xf]
        %v9375 = vld [vmem:[%s4 + $0x188] sm:$0xf]
        %v9376 = vld [vmem:[%s4 + $0x18c] sm:$0xf]
        %v9377 = vld [vmem:[%s4 + $0x190] sm:$0xf]
        %v9378 = vld [vmem:[%s4 + $0x194] sm:$0xf]
        %v9379 = vld [vmem:[%s4 + $0x198] sm:$0xf]
        %v9380 = vld [vmem:[%s4 + $0x19c] sm:$0xf]
        %v9381 = vld [vmem:[%s4 + $0x1a0] sm:$0xf]
        %v9382 = vld [vmem:[%s4 + $0x1a4] sm:$0xf]
        %v9383 = vld [vmem:[%s4 + $0x1a8] sm:$0xf]
        %v9384 = vld [vmem:[%s4 + $0x1ac] sm:$0xf]
        %v9385 = vld [vmem:[%s4 + $0x1b0] sm:$0xf]
        %v9386 = vld [vmem:[%s4 + $0x1b4] sm:$0xf]
        %v9387 = vld [vmem:[%s4 + $0x1b8] sm:$0xf]
        %v9388 = vld [vmem:[%s4 + $0x1bc] sm:$0xf]
        %v9389 = vld [vmem:[%s4 + $0x1c0] sm:$0xf]
        %v9390 = vld [vmem:[%s4 + $0x1c4] sm:$0xf]
        %v9391 = vld [vmem:[%s4 + $0x1c8] sm:$0xf]
        %v9392 = vld [vmem:[%s4 + $0x1cc] sm:$0xf]
        %v9393 = vld [vmem:[%s4 + $0x1d0] sm:$0xf]
        %v9394 = vld [vmem:[%s4 + $0x1d4] sm:$0xf]
        %v9395 = vld [vmem:[%s4 + $0x1d8] sm:$0xf]
        %v9396 = vld [vmem:[%s4 + $0x1dc] sm:$0xf]
        %v9397 = vld [vmem:[%s4 + $0x1e0] sm:$0xf]
        %v9398 = vld [vmem:[%s4 + $0x1e4] sm:$0xf]
        %v9399 = vld [vmem:[%s4 + $0x1e8] sm:$0xf]
        %v9400 = vld [vmem:[%s4 + $0x1ec] sm:$0xf]
        %v9401 = vld [vmem:[%s4 + $0x1f0] sm:$0xf]
        %v9402 = vld [vmem:[%s4 + $0x1f4] sm:$0xf]
        %v9403 = vld [vmem:[%s4 + $0x1f8] sm:$0xf]
        %v9404 = vld [vmem:[%s4 + $0x1fc] sm:$0xf]
        %v9405 = vld [vmem:[%s4 + $0x200] sm:$0xf]
        %v9406 = vld [vmem:[%s4 + $0x204] sm:$0xf]
        %v9407 = vld [vmem:[%s4 + $0x208] sm:$0xf]
        %v9408 = vld [vmem:[%s4 + $0x20c] sm:$0xf]
        %v9409 = vld [vmem:[%s4 + $0x210] sm:$0xf]
        %v9410 = vld [vmem:[%s4 + $0x214] sm:$0xf]
        %v9411 = vld [vmem:[%s4 + $0x218] sm:$0xf]
        %v9412 = vld [vmem:[%s4 + $0x21c] sm:$0xf]
        %v9413 = vld [vmem:[%s4 + $0x220] sm:$0xf]
        %v9414 = vld [vmem:[%s4 + $0x224] sm:$0xf]
        %v9415 = vld [vmem:[%s4 + $0x228] sm:$0xf]
        %v9416 = vld [vmem:[%s4 + $0x22c] sm:$0xf]
        %v9417 = vld [vmem:[%s4 + $0x230] sm:$0xf]
        %v9418 = vld [vmem:[%s4 + $0x234] sm:$0xf]
        %v9419 = vld [vmem:[%s4 + $0x238] sm:$0xf]
        %v9420 = vld [vmem:[%s4 + $0x23c] sm:$0xf]
        %v9565 = vunpack.c.l.b16 %v9277
        %v9566 = vunpack.c.l.b16 %v9278
        %v9567 = vunpack.c.l.b16 %v9279
        %v9568 = vunpack.c.l.b16 %v9280
        %v9569 = vunpack.c.l.b16 %v9281
        %v9570 = vunpack.c.l.b16 %v9282
        %v9571 = vunpack.c.l.b16 %v9283
        %v9572 = vunpack.c.l.b16 %v9284
        %v9573 = vunpack.c.l.b16 %v9285
        %v9574 = vunpack.c.l.b16 %v9286
        %v9575 = vunpack.c.l.b16 %v9287
        %v9576 = vunpack.c.l.b16 %v9288
        %v9577 = vunpack.c.l.b16 %v9289
        %v9578 = vunpack.c.l.b16 %v9290
        %v9579 = vunpack.c.l.b16 %v9291
        %v9580 = vunpack.c.l.b16 %v9292
        %v9581 = vunpack.c.l.b16 %v9293
        %v9582 = vunpack.c.l.b16 %v9294
        %v9583 = vunpack.c.l.b16 %v9295
        %v9584 = vunpack.c.l.b16 %v9296
        %v9585 = vunpack.c.l.b16 %v9297
        %v9586 = vunpack.c.l.b16 %v9298
        %v9587 = vunpack.c.l.b16 %v9299
        %v9588 = vunpack.c.l.b16 %v9300
        %v9589 = vunpack.c.l.b16 %v9301
        %v9590 = vunpack.c.l.b16 %v9302
        %v9591 = vunpack.c.l.b16 %v9303
        %v9592 = vunpack.c.l.b16 %v9304
        %v9593 = vunpack.c.l.b16 %v9305
        %v9594 = vunpack.c.l.b16 %v9306
        %v9595 = vunpack.c.l.b16 %v9307
        %v9596 = vunpack.c.l.b16 %v9308
        %v9597 = vunpack.c.l.b16 %v9309
        %v9598 = vunpack.c.l.b16 %v9310
        %v9599 = vunpack.c.l.b16 %v9311
        %v9600 = vunpack.c.l.b16 %v9312
        %v9601 = vunpack.c.l.b16 %v9313
        %v9602 = vunpack.c.l.b16 %v9314
        %v9603 = vunpack.c.l.b16 %v9315
        %v9604 = vunpack.c.l.b16 %v9316
        %v9605 = vunpack.c.l.b16 %v9317
        %v9606 = vunpack.c.l.b16 %v9318
        %v9607 = vunpack.c.l.b16 %v9319
        %v9608 = vunpack.c.l.b16 %v9320
        %v9609 = vunpack.c.l.b16 %v9321
        %v9610 = vunpack.c.l.b16 %v9322
        %v9611 = vunpack.c.l.b16 %v9323
        %v9612 = vunpack.c.l.b16 %v9324
        %v9613 = vunpack.c.l.b16 %v9325
        %v9614 = vunpack.c.l.b16 %v9326
        %v9615 = vunpack.c.l.b16 %v9327
        %v9616 = vunpack.c.l.b16 %v9328
        %v9617 = vunpack.c.l.b16 %v9329
        %v9618 = vunpack.c.l.b16 %v9330
        %v9619 = vunpack.c.l.b16 %v9331
        %v9620 = vunpack.c.l.b16 %v9332
        %v9621 = vunpack.c.l.b16 %v9333
        %v9622 = vunpack.c.l.b16 %v9334
        %v9623 = vunpack.c.l.b16 %v9335
        %v9624 = vunpack.c.l.b16 %v9336
        %v9625 = vunpack.c.l.b16 %v9337
        %v9626 = vunpack.c.l.b16 %v9338
        %v9627 = vunpack.c.l.b16 %v9339
        %v9628 = vunpack.c.l.b16 %v9340
        %v9629 = vunpack.c.l.b16 %v9341
        %v9630 = vunpack.c.l.b16 %v9342
        %v9631 = vunpack.c.l.b16 %v9343
        %v9632 = vunpack.c.l.b16 %v9344
        %v9633 = vunpack.c.l.b16 %v9345
        %v9634 = vunpack.c.l.b16 %v9346
        %v9635 = vunpack.c.l.b16 %v9347
        %v9636 = vunpack.c.l.b16 %v9348
        %v9637 = vunpack.c.l.b16 %v9349
        %v9638 = vunpack.c.l.b16 %v9350
        %v9639 = vunpack.c.l.b16 %v9351
        %v9640 = vunpack.c.l.b16 %v9352
        %v9641 = vunpack.c.l.b16 %v9353
        %v9642 = vunpack.c.l.b16 %v9354
        %v9643 = vunpack.c.l.b16 %v9355
        %v9644 = vunpack.c.l.b16 %v9356
        %v9645 = vunpack.c.l.b16 %v9357
        %v9646 = vunpack.c.l.b16 %v9358
        %v9647 = vunpack.c.l.b16 %v9359
        %v9648 = vunpack.c.l.b16 %v9360
        %v9649 = vunpack.c.l.b16 %v9361
        %v9650 = vunpack.c.l.b16 %v9362
        %v9651 = vunpack.c.l.b16 %v9363
        %v9652 = vunpack.c.l.b16 %v9364
        %v9653 = vunpack.c.l.b16 %v9365
        %v9654 = vunpack.c.l.b16 %v9366
        %v9655 = vunpack.c.l.b16 %v9367
        %v9656 = vunpack.c.l.b16 %v9368
        %v9657 = vunpack.c.l.b16 %v9369
        %v9658 = vunpack.c.l.b16 %v9370
        %v9659 = vunpack.c.l.b16 %v9371
        %v9660 = vunpack.c.l.b16 %v9372
        %v9661 = vunpack.c.l.b16 %v9373
        %v9662 = vunpack.c.l.b16 %v9374
        %v9663 = vunpack.c.l.b16 %v9375
        %v9664 = vunpack.c.l.b16 %v9376
        %v9665 = vunpack.c.l.b16 %v9377
        %v9666 = vunpack.c.l.b16 %v9378
        %v9667 = vunpack.c.l.b16 %v9379
        %v9668 = vunpack.c.l.b16 %v9380
        %v9669 = vunpack.c.l.b16 %v9381
        %v9670 = vunpack.c.l.b16 %v9382
        %v9671 = vunpack.c.l.b16 %v9383
        %v9672 = vunpack.c.l.b16 %v9384
        %v9673 = vunpack.c.l.b16 %v9385
        %v9674 = vunpack.c.l.b16 %v9386
        %v9675 = vunpack.c.l.b16 %v9387
        %v9676 = vunpack.c.l.b16 %v9388
        %v9677 = vunpack.c.l.b16 %v9389
        %v9678 = vunpack.c.l.b16 %v9390
        %v9679 = vunpack.c.l.b16 %v9391
        %v9680 = vunpack.c.l.b16 %v9392
        %v9681 = vunpack.c.l.b16 %v9393
        %v9682 = vunpack.c.l.b16 %v9394
        %v9683 = vunpack.c.l.b16 %v9395
        %v9684 = vunpack.c.l.b16 %v9396
        %v9685 = vunpack.c.l.b16 %v9397
        %v9686 = vunpack.c.l.b16 %v9398
        %v9687 = vunpack.c.l.b16 %v9399
        %v9688 = vunpack.c.l.b16 %v9400
        %v9689 = vunpack.c.l.b16 %v9401
        %v9690 = vunpack.c.l.b16 %v9402
        %v9691 = vunpack.c.l.b16 %v9403
        %v9692 = vunpack.c.l.b16 %v9404
        %v9693 = vunpack.c.l.b16 %v9405
        %v9694 = vunpack.c.l.b16 %v9406
        %v9695 = vunpack.c.l.b16 %v9407
        %v9696 = vunpack.c.l.b16 %v9408
        %v9697 = vunpack.c.l.b16 %v9409
        %v9698 = vunpack.c.l.b16 %v9410
        %v9699 = vunpack.c.l.b16 %v9411
        %v9700 = vunpack.c.l.b16 %v9412
        %v9701 = vunpack.c.l.b16 %v9413
        %v9702 = vunpack.c.l.b16 %v9414
        %v9703 = vunpack.c.l.b16 %v9415
        %v9704 = vunpack.c.l.b16 %v9416
        %v9705 = vunpack.c.l.b16 %v9417
        %v9706 = vunpack.c.l.b16 %v9418
        %v9707 = vunpack.c.l.b16 %v9419
        %v9708 = vunpack.c.l.b16 %v9420
        %v9709 = vpack.c.b16 %v9566, %v9565
        %v9710 = vpack.c.b16 %v9568, %v9567
        %v9711 = vpack.c.b16 %v9570, %v9569
        %v9712 = vpack.c.b16 %v9572, %v9571
        %v9713 = vpack.c.b16 %v9574, %v9573
        %v9714 = vpack.c.b16 %v9576, %v9575
        %v9715 = vpack.c.b16 %v9578, %v9577
        %v9716 = vpack.c.b16 %v9580, %v9579
        %v9717 = vpack.c.b16 %v9582, %v9581
        %v9718 = vpack.c.b16 %v9584, %v9583
        %v9719 = vpack.c.b16 %v9586, %v9585
        %v9720 = vpack.c.b16 %v9588, %v9587
        %v9721 = vpack.c.b16 %v9590, %v9589
        %v9722 = vpack.c.b16 %v9592, %v9591
        %v9723 = vpack.c.b16 %v9594, %v9593
        %v9724 = vpack.c.b16 %v9596, %v9595
        %v9725 = vpack.c.b16 %v9598, %v9597
        %v9726 = vpack.c.b16 %v9600, %v9599
        %v9727 = vpack.c.b16 %v9602, %v9601
        %v9728 = vpack.c.b16 %v9604, %v9603
        %v9729 = vpack.c.b16 %v9606, %v9605
        %v9730 = vpack.c.b16 %v9608, %v9607
        %v9731 = vpack.c.b16 %v9610, %v9609
        %v9732 = vpack.c.b16 %v9612, %v9611
        %v9733 = vpack.c.b16 %v9614, %v9613
        %v9734 = vpack.c.b16 %v9616, %v9615
        %v9735 = vpack.c.b16 %v9618, %v9617
        %v9736 = vpack.c.b16 %v9620, %v9619
        %v9737 = vpack.c.b16 %v9622, %v9621
        %v9738 = vpack.c.b16 %v9624, %v9623
        %v9739 = vpack.c.b16 %v9626, %v9625
        %v9740 = vpack.c.b16 %v9628, %v9627
        %v9741 = vpack.c.b16 %v9630, %v9629
        %v9742 = vpack.c.b16 %v9632, %v9631
        %v9743 = vpack.c.b16 %v9634, %v9633
        %v9744 = vpack.c.b16 %v9636, %v9635
        %v9745 = vpack.c.b16 %v9638, %v9637
        %v9746 = vpack.c.b16 %v9640, %v9639
        %v9747 = vpack.c.b16 %v9642, %v9641
        %v9748 = vpack.c.b16 %v9644, %v9643
        %v9749 = vpack.c.b16 %v9646, %v9645
        %v9750 = vpack.c.b16 %v9648, %v9647
        %v9751 = vpack.c.b16 %v9650, %v9649
        %v9752 = vpack.c.b16 %v9652, %v9651
        %v9753 = vpack.c.b16 %v9654, %v9653
        %v9754 = vpack.c.b16 %v9656, %v9655
        %v9755 = vpack.c.b16 %v9658, %v9657
        %v9756 = vpack.c.b16 %v9660, %v9659
        %v9757 = vpack.c.b16 %v9662, %v9661
        %v9758 = vpack.c.b16 %v9664, %v9663
        %v9759 = vpack.c.b16 %v9666, %v9665
        %v9760 = vpack.c.b16 %v9668, %v9667
        %v9761 = vpack.c.b16 %v9670, %v9669
        %v9762 = vpack.c.b16 %v9672, %v9671
        %v9763 = vpack.c.b16 %v9674, %v9673
        %v9764 = vpack.c.b16 %v9676, %v9675
        %v9765 = vpack.c.b16 %v9678, %v9677
        %v9766 = vpack.c.b16 %v9680, %v9679
        %v9767 = vpack.c.b16 %v9682, %v9681
        %v9768 = vpack.c.b16 %v9684, %v9683
        %v9769 = vpack.c.b16 %v9686, %v9685
        %v9770 = vpack.c.b16 %v9688, %v9687
        %v9771 = vpack.c.b16 %v9690, %v9689
        %v9772 = vpack.c.b16 %v9692, %v9691
        %v9773 = vpack.c.b16 %v9694, %v9693
        %v9774 = vpack.c.b16 %v9696, %v9695
        %v9775 = vpack.c.b16 %v9698, %v9697
        %v9776 = vpack.c.b16 %v9700, %v9699
        %v9777 = vpack.c.b16 %v9702, %v9701
        %v9778 = vpack.c.b16 %v9704, %v9703
        %v9779 = vpack.c.b16 %v9706, %v9705
        %v9780 = vpack.c.b16 %v9708, %v9707
        %9853 = vmatprep.subr.bf16.mxu0 0
        %9854 = vmatpush1.bf16.msra.mxu0 %v9709
        %9855 = vmatprep.subr.bf16.mxu0 0
        %9856 = vmatpush1.bf16.msra.mxu0 %v9710
        %9857 = vmatprep.subr.bf16.mxu0 0
        %9858 = vmatpush1.bf16.msra.mxu0 %v9711
        %9859 = vmatprep.subr.bf16.mxu0 0
        %9860 = vmatpush1.bf16.msra.mxu0 %v9712
        %9861 = vmatprep.subr.bf16.mxu0 0
        %9862 = vmatpush1.bf16.msra.mxu0 %v9713
        %9863 = vmatprep.subr.bf16.mxu0 0
        %9864 = vmatpush1.bf16.msra.mxu0 %v9714
        %9865 = vmatprep.subr.bf16.mxu0 0
        %9866 = vmatpush1.bf16.msra.mxu0 %v9715
        %9867 = vmatprep.subr.bf16.mxu0 0
        %9868 = vmatpush1.bf16.msra.mxu0 %v9716
        %9869 = vmatprep.subr.bf16.mxu0 0
        %9870 = vmatpush1.bf16.msra.mxu0 %v9717
        %9871 = vmatprep.subr.bf16.mxu0 0
        %9872 = vmatpush1.bf16.msra.mxu0 %v9718
        %9873 = vmatprep.subr.bf16.mxu0 0
        %9874 = vmatpush1.bf16.msra.mxu0 %v9719
        %9875 = vmatprep.subr.bf16.mxu0 0
        %9876 = vmatpush1.bf16.msra.mxu0 %v9720
        %9877 = vmatprep.subr.bf16.mxu0 0
        %9878 = vmatpush1.bf16.msra.mxu0 %v9721
        %9879 = vmatprep.subr.bf16.mxu0 0
        %9880 = vmatpush1.bf16.msra.mxu0 %v9722
        %9881 = vmatprep.subr.bf16.mxu0 0
        %9882 = vmatpush1.bf16.msra.mxu0 %v9723
        %9883 = vmatprep.subr.bf16.mxu0 0
        %9884 = vmatpush1.bf16.msra.mxu0 %v9724
        %9885 = vmatprep.mubr.bf16.mxu0 %v7272
        %9886 = vmatmul.mubr.bf16.gmra.mrb[0].mxu0 %v7149
        %v9887 = vpop.f32.mrb[0].mxu0
        %v9888 = vadd.f32 0.0, %v9887
        %v9889 = vpop.f32.mrb[0].mxu0
        %v9890 = vpop.f32.mrb[0].mxu0
        %v9891 = vadd.f32 0.0, %v9890
        %v9892 = vpop.f32.mrb[0].mxu0
        %9893 = vmatprep.mubr.bf16.mxu0 %v7280
        %9894 = vmatmul.mubr.bf16.gmra.mrb[0].mxu0 %v7150
        %v9895 = vpop.f32.mrb[0].mxu0
        %v9896 = vadd.f32 0.0, %v9895
        %v9897 = vpop.f32.mrb[0].mxu0
        %v9898 = vpop.f32.mrb[0].mxu0
        %v9899 = vadd.f32 0.0, %v9898
        %v9900 = vpop.f32.mrb[0].mxu0
        %9901 = vmatprep.mubr.bf16.mxu0 %v7292
        %9902 = vmatmul.mubr.bf16.gmra.mrb[0].mxu0 %v7151
        %v9903 = vpop.f32.mrb[0].mxu0
        %v9904 = vadd.f32 0.0, %v9903
        %v9905 = vpop.f32.mrb[0].mxu0
        %v9906 = vpop.f32.mrb[0].mxu0
        %v9907 = vadd.f32 0.0, %v9906
        %v9908 = vpop.f32.mrb[0].mxu0
        %9909 = vmatprep.mubr.bf16.mxu0 %v7300
        %9910 = vmatmul.mubr.bf16.gmra.mrb[0].mxu0 %v7152
        %v9911 = vpop.f32.mrb[0].mxu0
        %v9912 = vadd.f32 0.0, %v9911
        %v9913 = vpop.f32.mrb[0].mxu0
        %v9914 = vpop.f32.mrb[0].mxu0
        %v9915 = vadd.f32 0.0, %v9914
        %v9916 = vpop.f32.mrb[0].mxu0
        %9917 = vmatprep.mubr.bf16.mxu0 %v7312
        %9918 = vmatmul.mubr.bf16.gmra.mrb[0].mxu0 %v7153
        %v9919 = vpop.f32.mrb[0].mxu0
        %v9920 = vadd.f32 0.0, %v9919
        %v9921 = vpop.f32.mrb[0].mxu0
        %v9922 = vpop.f32.mrb[0].mxu0
        %v9923 = vadd.f32 0.0, %v9922
        %v9924 = vpop.f32.mrb[0].mxu0
        %9925 = vmatprep.mubr.bf16.mxu0 %v7320
        %9926 = vmatmul.mubr.bf16.gmra.mrb[0].mxu0 %v7154
        %v9927 = vpop.f32.mrb[0].mxu0
        %v9928 = vadd.f32 0.0, %v9927
        %v9929 = vpop.f32.mrb[0].mxu0
        %v9930 = vpop.f32.mrb[0].mxu0
        %v9931 = vadd.f32 0.0, %v9930
        %v9932 = vpop.f32.mrb[0].mxu0
        %9933 = vmatprep.mubr.bf16.mxu0 %v7332
        %9934 = vmatmul.mubr.bf16.gmra.mrb[0].mxu0 %v7155
        %v9935 = vpop.f32.mrb[0].mxu0
        %v9936 = vadd.f32 0.0, %v9935
        %v9937 = vpop.f32.mrb[0].mxu0
        %v9938 = vpop.f32.mrb[0].mxu0
        %v9939 = vadd.f32 0.0, %v9938
        %v9940 = vpop.f32.mrb[0].mxu0
        %9941 = vmatprep.mubr.bf16.mxu0 %v7340
        %9942 = vmatmul.mubr.bf16.gmra.mrb[0].mxu0 %v7156
        %v9943 = vpop.f32.mrb[0].mxu0
        %v9944 = vadd.f32 0.0, %v9943
        %v9945 = vpop.f32.mrb[0].mxu0
        %v9946 = vpop.f32.mrb[0].mxu0
        %v9947 = vadd.f32 0.0, %v9946
        %v9948 = vpop.f32.mrb[0].mxu0
        %9949 = vmatprep.mubr.bf16.mxu0 %v7352
        %9950 = vmatmul.mubr.bf16.gmra.mrb[0].mxu0 %v7157
        %v9951 = vpop.f32.mrb[0].mxu0
        %v9952 = vadd.f32 0.0, %v9951
        %v9953 = vpop.f32.mrb[0].mxu0
        %v9954 = vpop.f32.mrb[0].mxu0
        %v9955 = vadd.f32 0.0, %v9954
        %v9956 = vpop.f32.mrb[0].mxu0
        %9957 = vmatprep.mubr.bf16.mxu0 %v7360
        %9958 = vmatmul.mubr.bf16.gmra.mrb[0].mxu0 %v7158
        %v9959 = vpop.f32.mrb[0].mxu0
        %v9960 = vadd.f32 0.0, %v9959
        %v9961 = vpop.f32.mrb[0].mxu0
        %v9962 = vpop.f32.mrb[0].mxu0
        %v9963 = vadd.f32 0.0, %v9962
        %v9964 = vpop.f32.mrb[0].mxu0
        %9965 = vmatprep.mubr.bf16.mxu0 %v7372
        %9966 = vmatmul.mubr.bf16.gmra.mrb[0].mxu0 %v7159
        %v9967 = vpop.f32.mrb[0].mxu0
        %v9968 = vadd.f32 0.0, %v9967
        %v9969 = vpop.f32.mrb[0].mxu0
        %v9970 = vpop.f32.mrb[0].mxu0
        %v9971 = vadd.f32 0.0, %v9970
        %v9972 = vpop.f32.mrb[0].mxu0
        %9973 = vmatprep.mubr.bf16.mxu0 %v7380
        %9974 = vmatmul.mubr.bf16.gmra.mrb[0].mxu0 %v7160
        %v9975 = vpop.f32.mrb[0].mxu0
        %v9976 = vadd.f32 0.0, %v9975
        %v9977 = vpop.f32.mrb[0].mxu0
        %v9978 = vpop.f32.mrb[0].mxu0
        %v9979 = vadd.f32 0.0, %v9978
        %v9980 = vpop.f32.mrb[0].mxu0
        %9981 = vmatprep.mubr.bf16.mxu0 %v7392
        %9982 = vmatmul.mubr.bf16.gmra.mrb[0].mxu0 %v7161
        %v9983 = vpop.f32.mrb[0].mxu0
        %v9984 = vadd.f32 0.0, %v9983
        %v9985 = vpop.f32.mrb[0].mxu0
        %v9986 = vpop.f32.mrb[0].mxu0
        %v9987 = vadd.f32 0.0, %v9986
        %v9988 = vpop.f32.mrb[0].mxu0
        %9989 = vmatprep.mubr.bf16.mxu0 %v7400
        %9990 = vmatmul.mubr.bf16.gmra.mrb[0].mxu0 %v7162
        %v9991 = vpop.f32.mrb[0].mxu0
        %v9992 = vadd.f32 0.0, %v9991
        %v9993 = vpop.f32.mrb[0].mxu0
        %v9994 = vpop.f32.mrb[0].mxu0
        %v9995 = vadd.f32 0.0, %v9994
        %v9996 = vpop.f32.mrb[0].mxu0
        %9997 = vmatprep.mubr.bf16.mxu0 %v7412
        %9998 = vmatmul.mubr.bf16.gmra.mrb[0].mxu0 %v7163
        %v9999 = vpop.f32.mrb[0].mxu0
        %v10000 = vadd.f32 0.0, %v9999
        %v10001 = vpop.f32.mrb[0].mxu0
        %v10002 = vpop.f32.mrb[0].mxu0
        %v10003 = vadd.f32 0.0, %v10002
        %v10004 = vpop.f32.mrb[0].mxu0
        %10005 = vmatprep.mubr.bf16.mxu0 %v7420
        %10006 = vmatmul.mubr.bf16.gmra.mrb[0].mxu0 %v7164
        %v10007 = vpop.f32.mrb[0].mxu0
        %v10008 = vadd.f32 0.0, %v10007
        %v10009 = vpop.f32.mrb[0].mxu0
        %v10010 = vpop.f32.mrb[0].mxu0
        %v10011 = vadd.f32 0.0, %v10010
        %v10012 = vpop.f32.mrb[0].mxu0
        %10013 = vmatprep.mubr.bf16.mxu0 %v7432
        %10014 = vmatmul.mubr.bf16.gmra.mrb[0].mxu0 %v7165
        %v10015 = vpop.f32.mrb[0].mxu0
        %v10016 = vadd.f32 0.0, %v10015
        %v10017 = vpop.f32.mrb[0].mxu0
        %v10018 = vpop.f32.mrb[0].mxu0
        %v10019 = vadd.f32 0.0, %v10018
        %v10020 = vpop.f32.mrb[0].mxu0
        %10021 = vmatprep.mubr.bf16.mxu0 %v7440
        %10022 = vmatmul.mubr.bf16.gmra.mrb[0].mxu0 %v7166
        %v10023 = vpop.f32.mrb[0].mxu0
        %v10024 = vadd.f32 0.0, %v10023
        %v10025 = vpop.f32.mrb[0].mxu0
        %v10026 = vpop.f32.mrb[0].mxu0
        %v10027 = vadd.f32 0.0, %v10026
        %v10028 = vpop.f32.mrb[0].mxu0
        %10029 = vmatprep.mubr.bf16.mxu0 %v7452
        %10030 = vmatmul.mubr.bf16.gmra.mrb[0].mxu0 %v7167
        %v10031 = vpop.f32.mrb[0].mxu0
        %v10032 = vadd.f32 0.0, %v10031
        %v10033 = vpop.f32.mrb[0].mxu0
        %v10034 = vpop.f32.mrb[0].mxu0
        %v10035 = vadd.f32 0.0, %v10034
        %v10036 = vpop.f32.mrb[0].mxu0
        %10037 = vmatprep.mubr.bf16.mxu0 %v7460
        %10038 = vmatmul.mubr.bf16.gmra.mrb[0].mxu0 %v7168
        %v10039 = vpop.f32.mrb[0].mxu0
        %v10040 = vadd.f32 0.0, %v10039
        %v10041 = vpop.f32.mrb[0].mxu0
        %v10042 = vpop.f32.mrb[0].mxu0
        %v10043 = vadd.f32 0.0, %v10042
        %v10044 = vpop.f32.mrb[0].mxu0
        %10045 = vmatprep.mubr.bf16.mxu0 %v7472
        %10046 = vmatmul.mubr.bf16.gmra.mrb[0].mxu0 %v7169
        %v10047 = vpop.f32.mrb[0].mxu0
        %v10048 = vadd.f32 0.0, %v10047
        %v10049 = vpop.f32.mrb[0].mxu0
        %v10050 = vpop.f32.mrb[0].mxu0
        %v10051 = vadd.f32 0.0, %v10050
        %v10052 = vpop.f32.mrb[0].mxu0
        %10053 = vmatprep.mubr.bf16.mxu0 %v7480
        %10054 = vmatmul.mubr.bf16.gmra.mrb[0].mxu0 %v7170
        %v10055 = vpop.f32.mrb[0].mxu0
        %v10056 = vadd.f32 0.0, %v10055
        %v10057 = vpop.f32.mrb[0].mxu0
        %v10058 = vpop.f32.mrb[0].mxu0
        %v10059 = vadd.f32 0.0, %v10058
        %v10060 = vpop.f32.mrb[0].mxu0
        %10061 = vmatprep.mubr.bf16.mxu0 %v7492
        %10062 = vmatmul.mubr.bf16.gmra.mrb[0].mxu0 %v7171
        %v10063 = vpop.f32.mrb[0].mxu0
        %v10064 = vadd.f32 0.0, %v10063
        %v10065 = vpop.f32.mrb[0].mxu0
        %v10066 = vpop.f32.mrb[0].mxu0
        %v10067 = vadd.f32 0.0, %v10066
        %v10068 = vpop.f32.mrb[0].mxu0
        %10069 = vmatprep.mubr.bf16.mxu0 %v7500
        %10070 = vmatmul.mubr.bf16.gmra.mrb[0].mxu0 %v7172
        %v10071 = vpop.f32.mrb[0].mxu0
        %v10072 = vadd.f32 0.0, %v10071
        %v10073 = vpop.f32.mrb[0].mxu0
        %v10074 = vpop.f32.mrb[0].mxu0
        %v10075 = vadd.f32 0.0, %v10074
        %v10076 = vpop.f32.mrb[0].mxu0
        %10077 = vmatprep.mubr.bf16.mxu0 %v7512
        %10078 = vmatmul.mubr.bf16.gmra.mrb[0].mxu0 %v7173
        %v10079 = vpop.f32.mrb[0].mxu0
        %v10080 = vadd.f32 0.0, %v10079
        %v10081 = vpop.f32.mrb[0].mxu0
        %v10082 = vpop.f32.mrb[0].mxu0
        %v10083 = vadd.f32 0.0, %v10082
        %v10084 = vpop.f32.mrb[0].mxu0
        %10085 = vmatprep.mubr.bf16.mxu0 %v7520
        %10086 = vmatmul.mubr.bf16.gmra.mrb[0].mxu0 %v7174
        %v10087 = vpop.f32.mrb[0].mxu0
        %v10088 = vadd.f32 0.0, %v10087
        %v10089 = vpop.f32.mrb[0].mxu0
        %v10090 = vpop.f32.mrb[0].mxu0
        %v10091 = vadd.f32 0.0, %v10090
        %v10092 = vpop.f32.mrb[0].mxu0
        %10093 = vmatprep.mubr.bf16.mxu0 %v7532
        %10094 = vmatmul.mubr.bf16.gmra.mrb[0].mxu0 %v7175
        %v10095 = vpop.f32.mrb[0].mxu0
        %v10096 = vadd.f32 0.0, %v10095
        %v10097 = vpop.f32.mrb[0].mxu0
        %v10098 = vpop.f32.mrb[0].mxu0
        %v10099 = vadd.f32 0.0, %v10098
        %v10100 = vpop.f32.mrb[0].mxu0
        %10101 = vmatprep.mubr.bf16.mxu0 %v7540
        %10102 = vmatmul.mubr.bf16.gmra.mrb[0].mxu0 %v7176
        %v10103 = vpop.f32.mrb[0].mxu0
        %v10104 = vadd.f32 0.0, %v10103
        %v10105 = vpop.f32.mrb[0].mxu0
        %v10106 = vpop.f32.mrb[0].mxu0
        %v10107 = vadd.f32 0.0, %v10106
        %v10108 = vpop.f32.mrb[0].mxu0
        %10109 = vmatprep.mubr.bf16.mxu0 %v7552
        %10110 = vmatmul.mubr.bf16.gmra.mrb[0].mxu0 %v7177
        %v10111 = vpop.f32.mrb[0].mxu0
        %v10112 = vadd.f32 0.0, %v10111
        %v10113 = vpop.f32.mrb[0].mxu0
        %v10114 = vpop.f32.mrb[0].mxu0
        %v10115 = vadd.f32 0.0, %v10114
        %v10116 = vpop.f32.mrb[0].mxu0
        %10117 = vmatprep.mubr.bf16.mxu0 %v7560
        %10118 = vmatmul.mubr.bf16.gmra.mrb[0].mxu0 %v7178
        %v10119 = vpop.f32.mrb[0].mxu0
        %v10120 = vadd.f32 0.0, %v10119
        %v10121 = vpop.f32.mrb[0].mxu0
        %v10122 = vpop.f32.mrb[0].mxu0
        %v10123 = vadd.f32 0.0, %v10122
        %v10124 = vpop.f32.mrb[0].mxu0
        %10125 = vmatprep.mubr.bf16.mxu0 %v7572
        %10126 = vmatmul.mubr.bf16.gmra.mrb[0].mxu0 %v7179
        %v10127 = vpop.f32.mrb[0].mxu0
        %v10128 = vadd.f32 0.0, %v10127
        %v10129 = vpop.f32.mrb[0].mxu0
        %v10130 = vpop.f32.mrb[0].mxu0
        %v10131 = vadd.f32 0.0, %v10130
        %v10132 = vpop.f32.mrb[0].mxu0
        %10133 = vmatprep.mubr.bf16.mxu0 %v7580
        %10134 = vmatmul.mubr.bf16.gmra.mrb[0].mxu0 %v7180
        %v10135 = vpop.f32.mrb[0].mxu0
        %v10136 = vadd.f32 0.0, %v10135
        %v10137 = vpop.f32.mrb[0].mxu0
        %v10138 = vpop.f32.mrb[0].mxu0
        %v10139 = vadd.f32 0.0, %v10138
        %v10140 = vpop.f32.mrb[0].mxu0
        %10141 = vdwg.mxu0
        %10142 = vmatprep.subr.bf16.mxu0 0
        %10143 = vmatpush1.bf16.msra.mxu0 %v9725
        %10144 = vmatprep.subr.bf16.mxu0 0
        %10145 = vmatpush1.bf16.msra.mxu0 %v9726
        %10146 = vmatprep.subr.bf16.mxu0 0
        %10147 = vmatpush1.bf16.msra.mxu0 %v9727
        %10148 = vmatprep.subr.bf16.mxu0 0
        %10149 = vmatpush1.bf16.msra.mxu0 %v9728
        %10150 = vmatprep.subr.bf16.mxu0 0
        %10151 = vmatpush1.bf16.msra.mxu0 %v9729
        %10152 = vmatprep.subr.bf16.mxu0 0
        %10153 = vmatpush1.bf16.msra.mxu0 %v9730
        %10154 = vmatprep.subr.bf16.mxu0 0
        %10155 = vmatpush1.bf16.msra.mxu0 %v9731
        %10156 = vmatprep.subr.bf16.mxu0 0
        %10157 = vmatpush1.bf16.msra.mxu0 %v9732
        %10158 = vmatprep.subr.bf16.mxu0 0
        %10159 = vmatpush1.bf16.msra.mxu0 %v9733
        %10160 = vmatprep.subr.bf16.mxu0 0
        %10161 = vmatpush1.bf16.msra.mxu0 %v9734
        %10162 = vmatprep.subr.bf16.mxu0 0
        %10163 = vmatpush1.bf16.msra.mxu0 %v9735
        %10164 = vmatprep.subr.bf16.mxu0 0
        %10165 = vmatpush1.bf16.msra.mxu0 %v9736
        %10166 = vmatprep.subr.bf16.mxu0 0
        %10167 = vmatpush1.bf16.msra.mxu0 %v9737
        %10168 = vmatprep.subr.bf16.mxu0 0
        %10169 = vmatpush1.bf16.msra.mxu0 %v9738
        %10170 = vmatprep.subr.bf16.mxu0 0
        %10171 = vmatpush1.bf16.msra.mxu0 %v9739
        %10172 = vmatprep.subr.bf16.mxu0 0
        %10173 = vmatpush1.bf16.msra.mxu0 %v9740
        %10174 = vmatprep.mubr.bf16.mxu0 %v7901
        %10175 = vmatmul.mubr.bf16.gmra.mrb[0].mxu0 %v7663
        %v10176 = vpop.f32.mrb[0].mxu0
        %v10177 = vadd.f32 %v9888, %v10176
        %v10178 = vpop.f32.mrb[0].mxu0
        %v10179 = vpop.f32.mrb[0].mxu0
        %v10180 = vadd.f32 %v9891, %v10179
        %v10181 = vpop.f32.mrb[0].mxu0
        %10182 = vmatprep.mubr.bf16.mxu0 %v7902
        %10183 = vmatmul.mubr.bf16.gmra.mrb[0].mxu0 %v7665
        %v10184 = vpop.f32.mrb[0].mxu0
        %v10185 = vadd.f32 %v9896, %v10184
        %v10186 = vpop.f32.mrb[0].mxu0
        %v10187 = vpop.f32.mrb[0].mxu0
        %v10188 = vadd.f32 %v9899, %v10187
        %v10189 = vpop.f32.mrb[0].mxu0
        %10190 = vmatprep.mubr.bf16.mxu0 %v7903
        %10191 = vmatmul.mubr.bf16.gmra.mrb[0].mxu0 %v7668
        %v10192 = vpop.f32.mrb[0].mxu0
        %v10193 = vadd.f32 %v9904, %v10192
        %v10194 = vpop.f32.mrb[0].mxu0
        %v10195 = vpop.f32.mrb[0].mxu0
        %v10196 = vadd.f32 %v9907, %v10195
        %v10197 = vpop.f32.mrb[0].mxu0
        %10198 = vmatprep.mubr.bf16.mxu0 %v7904
        %10199 = vmatmul.mubr.bf16.gmra.mrb[0].mxu0 %v7670
        %v10200 = vpop.f32.mrb[0].mxu0
        %v10201 = vadd.f32 %v9912, %v10200
        %v10202 = vpop.f32.mrb[0].mxu0
        %v10203 = vpop.f32.mrb[0].mxu0
        %v10204 = vadd.f32 %v9915, %v10203
        %v10205 = vpop.f32.mrb[0].mxu0
        %10206 = vmatprep.mubr.bf16.mxu0 %v7905
        %10207 = vmatmul.mubr.bf16.gmra.mrb[0].mxu0 %v7673
        %v10208 = vpop.f32.mrb[0].mxu0
        %v10209 = vadd.f32 %v9920, %v10208
        %v10210 = vpop.f32.mrb[0].mxu0
        %v10211 = vpop.f32.mrb[0].mxu0
        %v10212 = vadd.f32 %v9923, %v10211
        %v10213 = vpop.f32.mrb[0].mxu0
        %10214 = vmatprep.mubr.bf16.mxu0 %v7906
        %10215 = vmatmul.mubr.bf16.gmra.mrb[0].mxu0 %v7675
        %v10216 = vpop.f32.mrb[0].mxu0
        %v10217 = vadd.f32 %v9928, %v10216
        %v10218 = vpop.f32.mrb[0].mxu0
        %v10219 = vpop.f32.mrb[0].mxu0
        %v10220 = vadd.f32 %v9931, %v10219
        %v10221 = vpop.f32.mrb[0].mxu0
        %10222 = vmatprep.mubr.bf16.mxu0 %v7907
        %10223 = vmatmul.mubr.bf16.gmra.mrb[0].mxu0 %v7678
        %v10224 = vpop.f32.mrb[0].mxu0
        %v10225 = vadd.f32 %v9936, %v10224
        %v10226 = vpop.f32.mrb[0].mxu0
        %v10227 = vpop.f32.mrb[0].mxu0
        %v10228 = vadd.f32 %v9939, %v10227
        %v10229 = vpop.f32.mrb[0].mxu0
        %10230 = vmatprep.mubr.bf16.mxu0 %v7908
        %10231 = vmatmul.mubr.bf16.gmra.mrb[0].mxu0 %v7680
        %v10232 = vpop.f32.mrb[0].mxu0
        %v10233 = vadd.f32 %v9944, %v10232
        %v10234 = vpop.f32.mrb[0].mxu0
        %v10235 = vpop.f32.mrb[0].mxu0
        %v10236 = vadd.f32 %v9947, %v10235
        %v10237 = vpop.f32.mrb[0].mxu0
        %10238 = vmatprep.mubr.bf16.mxu0 %v7909
        %10239 = vmatmul.mubr.bf16.gmra.mrb[0].mxu0 %v7683
        %v10240 = vpop.f32.mrb[0].mxu0
        %v10241 = vadd.f32 %v9952, %v10240
        %v10242 = vpop.f32.mrb[0].mxu0
        %v10243 = vpop.f32.mrb[0].mxu0
        %v10244 = vadd.f32 %v9955, %v10243
        %v10245 = vpop.f32.mrb[0].mxu0
        %10246 = vmatprep.mubr.bf16.mxu0 %v7910
        %10247 = vmatmul.mubr.bf16.gmra.mrb[0].mxu0 %v7685
        %v10248 = vpop.f32.mrb[0].mxu0
        %v10249 = vadd.f32 %v9960, %v10248
        %v10250 = vpop.f32.mrb[0].mxu0
        %v10251 = vpop.f32.mrb[0].mxu0
        %v10252 = vadd.f32 %v9963, %v10251
        %v10253 = vpop.f32.mrb[0].mxu0
        %10254 = vmatprep.mubr.bf16.mxu0 %v7911
        %10255 = vmatmul.mubr.bf16.gmra.mrb[0].mxu0 %v7688
        %v10256 = vpop.f32.mrb[0].mxu0
        %v10257 = vadd.f32 %v9968, %v10256
        %v10258 = vpop.f32.mrb[0].mxu0
        %v10259 = vpop.f32.mrb[0].mxu0
        %v10260 = vadd.f32 %v9971, %v10259
        %v10261 = vpop.f32.mrb[0].mxu0
        %10262 = vmatprep.mubr.bf16.mxu0 %v7912
        %10263 = vmatmul.mubr.bf16.gmra.mrb[0].mxu0 %v7690
        %v10264 = vpop.f32.mrb[0].mxu0
        %v10265 = vadd.f32 %v9976, %v10264
        %v10266 = vpop.f32.mrb[0].mxu0
        %v10267 = vpop.f32.mrb[0].mxu0
        %v10268 = vadd.f32 %v9979, %v10267
        %v10269 = vpop.f32.mrb[0].mxu0
        %10270 = vmatprep.mubr.bf16.mxu0 %v7913
        %10271 = vmatmul.mubr.bf16.gmra.mrb[0].mxu0 %v7693
        %v10272 = vpop.f32.mrb[0].mxu0
        %v10273 = vadd.f32 %v9984, %v10272
        %v10274 = vpop.f32.mrb[0].mxu0
        %v10275 = vpop.f32.mrb[0].mxu0
        %v10276 = vadd.f32 %v9987, %v10275
        %v10277 = vpop.f32.mrb[0].mxu0
        %10278 = vmatprep.mubr.bf16.mxu0 %v7914
        %10279 = vmatmul.mubr.bf16.gmra.mrb[0].mxu0 %v7695
        %v10280 = vpop.f32.mrb[0].mxu0
        %v10281 = vadd.f32 %v9992, %v10280
        %v10282 = vpop.f32.mrb[0].mxu0
        %v10283 = vpop.f32.mrb[0].mxu0
        %v10284 = vadd.f32 %v9995, %v10283
        %v10285 = vpop.f32.mrb[0].mxu0
        %10286 = vmatprep.mubr.bf16.mxu0 %v7915
        %10287 = vmatmul.mubr.bf16.gmra.mrb[0].mxu0 %v7698
        %v10288 = vpop.f32.mrb[0].mxu0
        %v10289 = vadd.f32 %v10000, %v10288
        %v10290 = vpop.f32.mrb[0].mxu0
        %v10291 = vpop.f32.mrb[0].mxu0
        %v10292 = vadd.f32 %v10003, %v10291
        %v10293 = vpop.f32.mrb[0].mxu0
        %10294 = vmatprep.mubr.bf16.mxu0 %v7916
        %10295 = vmatmul.mubr.bf16.gmra.mrb[0].mxu0 %v7700
        %v10296 = vpop.f32.mrb[0].mxu0
        %v10297 = vadd.f32 %v10008, %v10296
        %v10298 = vpop.f32.mrb[0].mxu0
        %v10299 = vpop.f32.mrb[0].mxu0
        %v10300 = vadd.f32 %v10011, %v10299
        %v10301 = vpop.f32.mrb[0].mxu0
        %10302 = vmatprep.mubr.bf16.mxu0 %v7917
        %10303 = vmatmul.mubr.bf16.gmra.mrb[0].mxu0 %v7703
        %v10304 = vpop.f32.mrb[0].mxu0
        %v10305 = vadd.f32 %v10016, %v10304
        %v10306 = vpop.f32.mrb[0].mxu0
        %v10307 = vpop.f32.mrb[0].mxu0
        %v10308 = vadd.f32 %v10019, %v10307
        %v10309 = vpop.f32.mrb[0].mxu0
        %10310 = vmatprep.mubr.bf16.mxu0 %v7918
        %10311 = vmatmul.mubr.bf16.gmra.mrb[0].mxu0 %v7705
        %v10312 = vpop.f32.mrb[0].mxu0
        %v10313 = vadd.f32 %v10024, %v10312
        %v10314 = vpop.f32.mrb[0].mxu0
        %v10315 = vpop.f32.mrb[0].mxu0
        %v10316 = vadd.f32 %v10027, %v10315
        %v10317 = vpop.f32.mrb[0].mxu0
        %10318 = vmatprep.mubr.bf16.mxu0 %v7919
        %10319 = vmatmul.mubr.bf16.gmra.mrb[0].mxu0 %v7708
        %v10320 = vpop.f32.mrb[0].mxu0
        %v10321 = vadd.f32 %v10032, %v10320
        %v10322 = vpop.f32.mrb[0].mxu0
        %v10323 = vpop.f32.mrb[0].mxu0
        %v10324 = vadd.f32 %v10035, %v10323
        %v10325 = vpop.f32.mrb[0].mxu0
        %10326 = vmatprep.mubr.bf16.mxu0 %v7920
        %10327 = vmatmul.mubr.bf16.gmra.mrb[0].mxu0 %v7710
        %v10328 = vpop.f32.mrb[0].mxu0
        %v10329 = vadd.f32 %v10040, %v10328
        %v10330 = vpop.f32.mrb[0].mxu0
        %v10331 = vpop.f32.mrb[0].mxu0
        %v10332 = vadd.f32 %v10043, %v10331
        %v10333 = vpop.f32.mrb[0].mxu0
        %10334 = vmatprep.mubr.bf16.mxu0 %v7921
        %10335 = vmatmul.mubr.bf16.gmra.mrb[0].mxu0 %v7713
        %v10336 = vpop.f32.mrb[0].mxu0
        %v10337 = vadd.f32 %v10048, %v10336
        %v10338 = vpop.f32.mrb[0].mxu0
        %v10339 = vpop.f32.mrb[0].mxu0
        %v10340 = vadd.f32 %v10051, %v10339
        %v10341 = vpop.f32.mrb[0].mxu0
        %10342 = vmatprep.mubr.bf16.mxu0 %v7922
        %10343 = vmatmul.mubr.bf16.gmra.mrb[0].mxu0 %v7715
        %v10344 = vpop.f32.mrb[0].mxu0
        %v10345 = vadd.f32 %v10056, %v10344
        %v10346 = vpop.f32.mrb[0].mxu0
        %v10347 = vpop.f32.mrb[0].mxu0
        %v10348 = vadd.f32 %v10059, %v10347
        %v10349 = vpop.f32.mrb[0].mxu0
        %10350 = vmatprep.mubr.bf16.mxu0 %v7923
        %10351 = vmatmul.mubr.bf16.gmra.mrb[0].mxu0 %v7718
        %v10352 = vpop.f32.mrb[0].mxu0
        %v10353 = vadd.f32 %v10064, %v10352
        %v10354 = vpop.f32.mrb[0].mxu0
        %v10355 = vpop.f32.mrb[0].mxu0
        %v10356 = vadd.f32 %v10067, %v10355
        %v10357 = vpop.f32.mrb[0].mxu0
        %10358 = vmatprep.mubr.bf16.mxu0 %v7924
        %10359 = vmatmul.mubr.bf16.gmra.mrb[0].mxu0 %v7720
        %v10360 = vpop.f32.mrb[0].mxu0
        %v10361 = vadd.f32 %v10072, %v10360
        %v10362 = vpop.f32.mrb[0].mxu0
        %v10363 = vpop.f32.mrb[0].mxu0
        %v10364 = vadd.f32 %v10075, %v10363
        %v10365 = vpop.f32.mrb[0].mxu0
        %10366 = vmatprep.mubr.bf16.mxu0 %v7925
        %10367 = vmatmul.mubr.bf16.gmra.mrb[0].mxu0 %v7723
        %v10368 = vpop.f32.mrb[0].mxu0
        %v10369 = vadd.f32 %v10080, %v10368
        %v10370 = vpop.f32.mrb[0].mxu0
        %v10371 = vpop.f32.mrb[0].mxu0
        %v10372 = vadd.f32 %v10083, %v10371
        %v10373 = vpop.f32.mrb[0].mxu0
        %10374 = vmatprep.mubr.bf16.mxu0 %v7926
        %10375 = vmatmul.mubr.bf16.gmra.mrb[0].mxu0 %v7725
        %v10376 = vpop.f32.mrb[0].mxu0
        %v10377 = vadd.f32 %v10088, %v10376
        %v10378 = vpop.f32.mrb[0].mxu0
        %v10379 = vpop.f32.mrb[0].mxu0
        %v10380 = vadd.f32 %v10091, %v10379
        %v10381 = vpop.f32.mrb[0].mxu0
        %10382 = vmatprep.mubr.bf16.mxu0 %v7927
        %10383 = vmatmul.mubr.bf16.gmra.mrb[0].mxu0 %v7728
        %v10384 = vpop.f32.mrb[0].mxu0
        %v10385 = vadd.f32 %v10096, %v10384
        %v10386 = vpop.f32.mrb[0].mxu0
        %v10387 = vpop.f32.mrb[0].mxu0
        %v10388 = vadd.f32 %v10099, %v10387
        %v10389 = vpop.f32.mrb[0].mxu0
        %10390 = vmatprep.mubr.bf16.mxu0 %v7928
        %10391 = vmatmul.mubr.bf16.gmra.mrb[0].mxu0 %v7730
        %v10392 = vpop.f32.mrb[0].mxu0
        %v10393 = vadd.f32 %v10104, %v10392
        %v10394 = vpop.f32.mrb[0].mxu0
        %v10395 = vpop.f32.mrb[0].mxu0
        %v10396 = vadd.f32 %v10107, %v10395
        %v10397 = vpop.f32.mrb[0].mxu0
        %10398 = vmatprep.mubr.bf16.mxu0 %v7929
        %10399 = vmatmul.mubr.bf16.gmra.mrb[0].mxu0 %v7733
        %v10400 = vpop.f32.mrb[0].mxu0
        %v10401 = vadd.f32 %v10112, %v10400
        %v10402 = vpop.f32.mrb[0].mxu0
        %v10403 = vpop.f32.mrb[0].mxu0
        %v10404 = vadd.f32 %v10115, %v10403
        %v10405 = vpop.f32.mrb[0].mxu0
        %10406 = vmatprep.mubr.bf16.mxu0 %v7930
        %10407 = vmatmul.mubr.bf16.gmra.mrb[0].mxu0 %v7735
        %v10408 = vpop.f32.mrb[0].mxu0
        %v10409 = vadd.f32 %v10120, %v10408
        %v10410 = vpop.f32.mrb[0].mxu0
        %v10411 = vpop.f32.mrb[0].mxu0
        %v10412 = vadd.f32 %v10123, %v10411
        %v10413 = vpop.f32.mrb[0].mxu0
        %10414 = vmatprep.mubr.bf16.mxu0 %v7931
        %10415 = vmatmul.mubr.bf16.gmra.mrb[0].mxu0 %v7738
        %v10416 = vpop.f32.mrb[0].mxu0
        %v10417 = vadd.f32 %v10128, %v10416
        %v10418 = vpop.f32.mrb[0].mxu0
        %v10419 = vpop.f32.mrb[0].mxu0
        %v10420 = vadd.f32 %v10131, %v10419
        %v10421 = vpop.f32.mrb[0].mxu0
        %10422 = vmatprep.mubr.bf16.mxu0 %v7932
        %10423 = vmatmul.mubr.bf16.gmra.mrb[0].mxu0 %v7740
        %v10424 = vpop.f32.mrb[0].mxu0
        %v10425 = vadd.f32 %v10136, %v10424
        %v10426 = vpop.f32.mrb[0].mxu0
        %v10427 = vpop.f32.mrb[0].mxu0
        %v10428 = vadd.f32 %v10139, %v10427
        %v10429 = vpop.f32.mrb[0].mxu0
        %10430 = vdwg.mxu0
        %10431 = vmatprep.subr.bf16.mxu0 0
        %10432 = vmatpush1.bf16.msra.mxu0 %v9741
        %10433 = vmatprep.subr.bf16.mxu0 0
        %10434 = vmatpush1.bf16.msra.mxu0 %v9742
        %10435 = vmatprep.subr.bf16.mxu0 0
        %10436 = vmatpush1.bf16.msra.mxu0 %v9743
        %10437 = vmatprep.subr.bf16.mxu0 0
        %10438 = vmatpush1.bf16.msra.mxu0 %v9744
        %10439 = vmatprep.subr.bf16.mxu0 0
        %10440 = vmatpush1.bf16.msra.mxu0 %v9745
        %10441 = vmatprep.subr.bf16.mxu0 0
        %10442 = vmatpush1.bf16.msra.mxu0 %v9746
        %10443 = vmatprep.subr.bf16.mxu0 0
        %10444 = vmatpush1.bf16.msra.mxu0 %v9747
        %10445 = vmatprep.subr.bf16.mxu0 0
        %10446 = vmatpush1.bf16.msra.mxu0 %v9748
        %10447 = vmatprep.subr.bf16.mxu0 0
        %10448 = vmatpush1.bf16.msra.mxu0 %v9749
        %10449 = vmatprep.subr.bf16.mxu0 0
        %10450 = vmatpush1.bf16.msra.mxu0 %v9750
        %10451 = vmatprep.subr.bf16.mxu0 0
        %10452 = vmatpush1.bf16.msra.mxu0 %v9751
        %10453 = vmatprep.subr.bf16.mxu0 0
        %10454 = vmatpush1.bf16.msra.mxu0 %v9752
        %10455 = vmatprep.subr.bf16.mxu0 0
        %10456 = vmatpush1.bf16.msra.mxu0 %v9753
        %10457 = vmatprep.subr.bf16.mxu0 0
        %10458 = vmatpush1.bf16.msra.mxu0 %v9754
        %10459 = vmatprep.subr.bf16.mxu0 0
        %10460 = vmatpush1.bf16.msra.mxu0 %v9755
        %10461 = vmatprep.subr.bf16.mxu0 0
        %10462 = vmatpush1.bf16.msra.mxu0 %v9756
        %10463 = vmatprep.mubr.bf16.mxu0 %v8415
        %10464 = vmatmul.mubr.bf16.gmra.mrb[0].mxu0 %v8024
        %v10465 = vpop.f32.mrb[0].mxu0
        %v10466 = vadd.f32 %v10177, %v10465
        %v10467 = vpop.f32.mrb[0].mxu0
        %v10468 = vpop.f32.mrb[0].mxu0
        %v10469 = vadd.f32 %v10180, %v10468
        %v10470 = vpop.f32.mrb[0].mxu0
        %10471 = vmatprep.mubr.bf16.mxu0 %v8417
        %10472 = vmatmul.mubr.bf16.gmra.mrb[0].mxu0 %v8032
        %v10473 = vpop.f32.mrb[0].mxu0
        %v10474 = vadd.f32 %v10185, %v10473
        %v10475 = vpop.f32.mrb[0].mxu0
        %v10476 = vpop.f32.mrb[0].mxu0
        %v10477 = vadd.f32 %v10188, %v10476
        %v10478 = vpop.f32.mrb[0].mxu0
        %10479 = vmatprep.mubr.bf16.mxu0 %v8420
        %10480 = vmatmul.mubr.bf16.gmra.mrb[0].mxu0 %v8044
        %v10481 = vpop.f32.mrb[0].mxu0
        %v10482 = vadd.f32 %v10193, %v10481
        %v10483 = vpop.f32.mrb[0].mxu0
        %v10484 = vpop.f32.mrb[0].mxu0
        %v10485 = vadd.f32 %v10196, %v10484
        %v10486 = vpop.f32.mrb[0].mxu0
        %10487 = vmatprep.mubr.bf16.mxu0 %v8422
        %10488 = vmatmul.mubr.bf16.gmra.mrb[0].mxu0 %v8052
        %v10489 = vpop.f32.mrb[0].mxu0
        %v10490 = vadd.f32 %v10201, %v10489
        %v10491 = vpop.f32.mrb[0].mxu0
        %v10492 = vpop.f32.mrb[0].mxu0
        %v10493 = vadd.f32 %v10204, %v10492
        %v10494 = vpop.f32.mrb[0].mxu0
        %10495 = vmatprep.mubr.bf16.mxu0 %v8425
        %10496 = vmatmul.mubr.bf16.gmra.mrb[0].mxu0 %v8064
        %v10497 = vpop.f32.mrb[0].mxu0
        %v10498 = vadd.f32 %v10209, %v10497
        %v10499 = vpop.f32.mrb[0].mxu0
        %v10500 = vpop.f32.mrb[0].mxu0
        %v10501 = vadd.f32 %v10212, %v10500
        %v10502 = vpop.f32.mrb[0].mxu0
        %10503 = vmatprep.mubr.bf16.mxu0 %v8427
        %10504 = vmatmul.mubr.bf16.gmra.mrb[0].mxu0 %v8072
        %v10505 = vpop.f32.mrb[0].mxu0
        %v10506 = vadd.f32 %v10217, %v10505
        %v10507 = vpop.f32.mrb[0].mxu0
        %v10508 = vpop.f32.mrb[0].mxu0
        %v10509 = vadd.f32 %v10220, %v10508
        %v10510 = vpop.f32.mrb[0].mxu0
        %10511 = vmatprep.mubr.bf16.mxu0 %v8430
        %10512 = vmatmul.mubr.bf16.gmra.mrb[0].mxu0 %v8084
        %v10513 = vpop.f32.mrb[0].mxu0
        %v10514 = vadd.f32 %v10225, %v10513
        %v10515 = vpop.f32.mrb[0].mxu0
        %v10516 = vpop.f32.mrb[0].mxu0
        %v10517 = vadd.f32 %v10228, %v10516
        %v10518 = vpop.f32.mrb[0].mxu0
        %10519 = vmatprep.mubr.bf16.mxu0 %v8432
        %10520 = vmatmul.mubr.bf16.gmra.mrb[0].mxu0 %v8092
        %v10521 = vpop.f32.mrb[0].mxu0
        %v10522 = vadd.f32 %v10233, %v10521
        %v10523 = vpop.f32.mrb[0].mxu0
        %v10524 = vpop.f32.mrb[0].mxu0
        %v10525 = vadd.f32 %v10236, %v10524
        %v10526 = vpop.f32.mrb[0].mxu0
        %10527 = vmatprep.mubr.bf16.mxu0 %v8435
        %10528 = vmatmul.mubr.bf16.gmra.mrb[0].mxu0 %v8104
        %v10529 = vpop.f32.mrb[0].mxu0
        %v10530 = vadd.f32 %v10241, %v10529
        %v10531 = vpop.f32.mrb[0].mxu0
        %v10532 = vpop.f32.mrb[0].mxu0
        %v10533 = vadd.f32 %v10244, %v10532
        %v10534 = vpop.f32.mrb[0].mxu0
        %10535 = vmatprep.mubr.bf16.mxu0 %v8437
        %10536 = vmatmul.mubr.bf16.gmra.mrb[0].mxu0 %v8112
        %v10537 = vpop.f32.mrb[0].mxu0
        %v10538 = vadd.f32 %v10249, %v10537
        %v10539 = vpop.f32.mrb[0].mxu0
        %v10540 = vpop.f32.mrb[0].mxu0
        %v10541 = vadd.f32 %v10252, %v10540
        %v10542 = vpop.f32.mrb[0].mxu0
        %10543 = vmatprep.mubr.bf16.mxu0 %v8440
        %10544 = vmatmul.mubr.bf16.gmra.mrb[0].mxu0 %v8124
        %v10545 = vpop.f32.mrb[0].mxu0
        %v10546 = vadd.f32 %v10257, %v10545
        %v10547 = vpop.f32.mrb[0].mxu0
        %v10548 = vpop.f32.mrb[0].mxu0
        %v10549 = vadd.f32 %v10260, %v10548
        %v10550 = vpop.f32.mrb[0].mxu0
        %10551 = vmatprep.mubr.bf16.mxu0 %v8442
        %10552 = vmatmul.mubr.bf16.gmra.mrb[0].mxu0 %v8132
        %v10553 = vpop.f32.mrb[0].mxu0
        %v10554 = vadd.f32 %v10265, %v10553
        %v10555 = vpop.f32.mrb[0].mxu0
        %v10556 = vpop.f32.mrb[0].mxu0
        %v10557 = vadd.f32 %v10268, %v10556
        %v10558 = vpop.f32.mrb[0].mxu0
        %10559 = vmatprep.mubr.bf16.mxu0 %v8445
        %10560 = vmatmul.mubr.bf16.gmra.mrb[0].mxu0 %v8144
        %v10561 = vpop.f32.mrb[0].mxu0
        %v10562 = vadd.f32 %v10273, %v10561
        %v10563 = vpop.f32.mrb[0].mxu0
        %v10564 = vpop.f32.mrb[0].mxu0
        %v10565 = vadd.f32 %v10276, %v10564
        %v10566 = vpop.f32.mrb[0].mxu0
        %10567 = vmatprep.mubr.bf16.mxu0 %v8447
        %10568 = vmatmul.mubr.bf16.gmra.mrb[0].mxu0 %v8152
        %v10569 = vpop.f32.mrb[0].mxu0
        %v10570 = vadd.f32 %v10281, %v10569
        %v10571 = vpop.f32.mrb[0].mxu0
        %v10572 = vpop.f32.mrb[0].mxu0
        %v10573 = vadd.f32 %v10284, %v10572
        %v10574 = vpop.f32.mrb[0].mxu0
        %10575 = vmatprep.mubr.bf16.mxu0 %v8450
        %10576 = vmatmul.mubr.bf16.gmra.mrb[0].mxu0 %v8164
        %v10577 = vpop.f32.mrb[0].mxu0
        %v10578 = vadd.f32 %v10289, %v10577
        %v10579 = vpop.f32.mrb[0].mxu0
        %v10580 = vpop.f32.mrb[0].mxu0
        %v10581 = vadd.f32 %v10292, %v10580
        %v10582 = vpop.f32.mrb[0].mxu0
        %10583 = vmatprep.mubr.bf16.mxu0 %v8452
        %10584 = vmatmul.mubr.bf16.gmra.mrb[0].mxu0 %v8172
        %v10585 = vpop.f32.mrb[0].mxu0
        %v10586 = vadd.f32 %v10297, %v10585
        %v10587 = vpop.f32.mrb[0].mxu0
        %v10588 = vpop.f32.mrb[0].mxu0
        %v10589 = vadd.f32 %v10300, %v10588
        %v10590 = vpop.f32.mrb[0].mxu0
        %10591 = vmatprep.mubr.bf16.mxu0 %v8455
        %10592 = vmatmul.mubr.bf16.gmra.mrb[0].mxu0 %v8184
        %v10593 = vpop.f32.mrb[0].mxu0
        %v10594 = vadd.f32 %v10305, %v10593
        %v10595 = vpop.f32.mrb[0].mxu0
        %v10596 = vpop.f32.mrb[0].mxu0
        %v10597 = vadd.f32 %v10308, %v10596
        %v10598 = vpop.f32.mrb[0].mxu0
        %10599 = vmatprep.mubr.bf16.mxu0 %v8457
        %10600 = vmatmul.mubr.bf16.gmra.mrb[0].mxu0 %v8192
        %v10601 = vpop.f32.mrb[0].mxu0
        %v10602 = vadd.f32 %v10313, %v10601
        %v10603 = vpop.f32.mrb[0].mxu0
        %v10604 = vpop.f32.mrb[0].mxu0
        %v10605 = vadd.f32 %v10316, %v10604
        %v10606 = vpop.f32.mrb[0].mxu0
        %10607 = vmatprep.mubr.bf16.mxu0 %v8460
        %10608 = vmatmul.mubr.bf16.gmra.mrb[0].mxu0 %v8204
        %v10609 = vpop.f32.mrb[0].mxu0
        %v10610 = vadd.f32 %v10321, %v10609
        %v10611 = vpop.f32.mrb[0].mxu0
        %v10612 = vpop.f32.mrb[0].mxu0
        %v10613 = vadd.f32 %v10324, %v10612
        %v10614 = vpop.f32.mrb[0].mxu0
        %10615 = vmatprep.mubr.bf16.mxu0 %v8462
        %10616 = vmatmul.mubr.bf16.gmra.mrb[0].mxu0 %v8212
        %v10617 = vpop.f32.mrb[0].mxu0
        %v10618 = vadd.f32 %v10329, %v10617
        %v10619 = vpop.f32.mrb[0].mxu0
        %v10620 = vpop.f32.mrb[0].mxu0
        %v10621 = vadd.f32 %v10332, %v10620
        %v10622 = vpop.f32.mrb[0].mxu0
        %10623 = vmatprep.mubr.bf16.mxu0 %v8465
        %10624 = vmatmul.mubr.bf16.gmra.mrb[0].mxu0 %v8224
        %v10625 = vpop.f32.mrb[0].mxu0
        %v10626 = vadd.f32 %v10337, %v10625
        %v10627 = vpop.f32.mrb[0].mxu0
        %v10628 = vpop.f32.mrb[0].mxu0
        %v10629 = vadd.f32 %v10340, %v10628
        %v10630 = vpop.f32.mrb[0].mxu0
        %10631 = vmatprep.mubr.bf16.mxu0 %v8467
        %10632 = vmatmul.mubr.bf16.gmra.mrb[0].mxu0 %v8232
        %v10633 = vpop.f32.mrb[0].mxu0
        %v10634 = vadd.f32 %v10345, %v10633
        %v10635 = vpop.f32.mrb[0].mxu0
        %v10636 = vpop.f32.mrb[0].mxu0
        %v10637 = vadd.f32 %v10348, %v10636
        %v10638 = vpop.f32.mrb[0].mxu0
        %10639 = vmatprep.mubr.bf16.mxu0 %v8470
        %10640 = vmatmul.mubr.bf16.gmra.mrb[0].mxu0 %v8244
        %v10641 = vpop.f32.mrb[0].mxu0
        %v10642 = vadd.f32 %v10353, %v10641
        %v10643 = vpop.f32.mrb[0].mxu0
        %v10644 = vpop.f32.mrb[0].mxu0
        %v10645 = vadd.f32 %v10356, %v10644
        %v10646 = vpop.f32.mrb[0].mxu0
        %10647 = vmatprep.mubr.bf16.mxu0 %v8472
        %10648 = vmatmul.mubr.bf16.gmra.mrb[0].mxu0 %v8252
        %v10649 = vpop.f32.mrb[0].mxu0
        %v10650 = vadd.f32 %v10361, %v10649
        %v10651 = vpop.f32.mrb[0].mxu0
        %v10652 = vpop.f32.mrb[0].mxu0
        %v10653 = vadd.f32 %v10364, %v10652
        %v10654 = vpop.f32.mrb[0].mxu0
        %10655 = vmatprep.mubr.bf16.mxu0 %v8475
        %10656 = vmatmul.mubr.bf16.gmra.mrb[0].mxu0 %v8264
        %v10657 = vpop.f32.mrb[0].mxu0
        %v10658 = vadd.f32 %v10369, %v10657
        %v10659 = vpop.f32.mrb[0].mxu0
        %v10660 = vpop.f32.mrb[0].mxu0
        %v10661 = vadd.f32 %v10372, %v10660
        %v10662 = vpop.f32.mrb[0].mxu0
        %10663 = vmatprep.mubr.bf16.mxu0 %v8477
        %10664 = vmatmul.mubr.bf16.gmra.mrb[0].mxu0 %v8272
        %v10665 = vpop.f32.mrb[0].mxu0
        %v10666 = vadd.f32 %v10377, %v10665
        %v10667 = vpop.f32.mrb[0].mxu0
        %v10668 = vpop.f32.mrb[0].mxu0
        %v10669 = vadd.f32 %v10380, %v10668
        %v10670 = vpop.f32.mrb[0].mxu0
        %10671 = vmatprep.mubr.bf16.mxu0 %v8480
        %10672 = vmatmul.mubr.bf16.gmra.mrb[0].mxu0 %v8284
        %v10673 = vpop.f32.mrb[0].mxu0
        %v10674 = vadd.f32 %v10385, %v10673
        %v10675 = vpop.f32.mrb[0].mxu0
        %v10676 = vpop.f32.mrb[0].mxu0
        %v10677 = vadd.f32 %v10388, %v10676
        %v10678 = vpop.f32.mrb[0].mxu0
        %10679 = vmatprep.mubr.bf16.mxu0 %v8482
        %10680 = vmatmul.mubr.bf16.gmra.mrb[0].mxu0 %v8292
        %v10681 = vpop.f32.mrb[0].mxu0
        %v10682 = vadd.f32 %v10393, %v10681
        %v10683 = vpop.f32.mrb[0].mxu0
        %v10684 = vpop.f32.mrb[0].mxu0
        %v10685 = vadd.f32 %v10396, %v10684
        %v10686 = vpop.f32.mrb[0].mxu0
        %10687 = vmatprep.mubr.bf16.mxu0 %v8485
        %10688 = vmatmul.mubr.bf16.gmra.mrb[0].mxu0 %v8304
        %v10689 = vpop.f32.mrb[0].mxu0
        %v10690 = vadd.f32 %v10401, %v10689
        %v10691 = vpop.f32.mrb[0].mxu0
        %v10692 = vpop.f32.mrb[0].mxu0
        %v10693 = vadd.f32 %v10404, %v10692
        %v10694 = vpop.f32.mrb[0].mxu0
        %10695 = vmatprep.mubr.bf16.mxu0 %v8487
        %10696 = vmatmul.mubr.bf16.gmra.mrb[0].mxu0 %v8312
        %v10697 = vpop.f32.mrb[0].mxu0
        %v10698 = vadd.f32 %v10409, %v10697
        %v10699 = vpop.f32.mrb[0].mxu0
        %v10700 = vpop.f32.mrb[0].mxu0
        %v10701 = vadd.f32 %v10412, %v10700
        %v10702 = vpop.f32.mrb[0].mxu0
        %10703 = vmatprep.mubr.bf16.mxu0 %v8490
        %10704 = vmatmul.mubr.bf16.gmra.mrb[0].mxu0 %v8324
        %v10705 = vpop.f32.mrb[0].mxu0
        %v10706 = vadd.f32 %v10417, %v10705
        %v10707 = vpop.f32.mrb[0].mxu0
        %v10708 = vpop.f32.mrb[0].mxu0
        %v10709 = vadd.f32 %v10420, %v10708
        %v10710 = vpop.f32.mrb[0].mxu0
        %10711 = vmatprep.mubr.bf16.mxu0 %v8492
        %10712 = vmatmul.mubr.bf16.gmra.mrb[0].mxu0 %v8332
        %v10713 = vpop.f32.mrb[0].mxu0
        %v10714 = vadd.f32 %v10425, %v10713
        %v10715 = vpop.f32.mrb[0].mxu0
        %v10716 = vpop.f32.mrb[0].mxu0
        %v10717 = vadd.f32 %v10428, %v10716
        %v10718 = vpop.f32.mrb[0].mxu0
        %10719 = vdwg.mxu0
        %10720 = vmatprep.subr.bf16.mxu0 0
        %10721 = vmatpush1.bf16.msra.mxu0 %v9757
        %10722 = vmatprep.subr.bf16.mxu0 0
        %10723 = vmatpush1.bf16.msra.mxu0 %v9758
        %10724 = vmatprep.subr.bf16.mxu0 0
        %10725 = vmatpush1.bf16.msra.mxu0 %v9759
        %10726 = vmatprep.subr.bf16.mxu0 0
        %10727 = vmatpush1.bf16.msra.mxu0 %v9760
        %10728 = vmatprep.subr.bf16.mxu0 0
        %10729 = vmatpush1.bf16.msra.mxu0 %v9761
        %10730 = vmatprep.subr.bf16.mxu0 0
        %10731 = vmatpush1.bf16.msra.mxu0 %v9762
        %10732 = vmatprep.subr.bf16.mxu0 0
        %10733 = vmatpush1.bf16.msra.mxu0 %v9763
        %10734 = vmatprep.subr.bf16.mxu0 0
        %10735 = vmatpush1.bf16.msra.mxu0 %v9764
        %10736 = vmatprep.subr.bf16.mxu0 0
        %10737 = vmatpush1.bf16.msra.mxu0 %v9765
        %10738 = vmatprep.subr.bf16.mxu0 0
        %10739 = vmatpush1.bf16.msra.mxu0 %v9766
        %10740 = vmatprep.subr.bf16.mxu0 0
        %10741 = vmatpush1.bf16.msra.mxu0 %v9767
        %10742 = vmatprep.subr.bf16.mxu0 0
        %10743 = vmatpush1.bf16.msra.mxu0 %v9768
        %10744 = vmatprep.subr.bf16.mxu0 0
        %10745 = vmatpush1.bf16.msra.mxu0 %v9769
        %10746 = vmatprep.subr.bf16.mxu0 0
        %10747 = vmatpush1.bf16.msra.mxu0 %v9770
        %10748 = vmatprep.subr.bf16.mxu0 0
        %10749 = vmatpush1.bf16.msra.mxu0 %v9771
        %10750 = vmatprep.subr.bf16.mxu0 0
        %10751 = vmatpush1.bf16.msra.mxu0 %v9772
        %10752 = vmatprep.mubr.bf16.mxu0 %v8776
        %10753 = vmatmul.mubr.bf16.gmra.mrb[0].mxu0 %v8653
        %v10754 = vpop.f32.mrb[0].mxu0
        %v10755 = vadd.f32 %v10466, %v10754
        %v10756 = vpop.f32.mrb[0].mxu0
        %v10757 = vpop.f32.mrb[0].mxu0
        %v10758 = vadd.f32 %v10469, %v10757
        %v10759 = vpop.f32.mrb[0].mxu0
        %10760 = vmatprep.mubr.bf16.mxu0 %v8784
        %10761 = vmatmul.mubr.bf16.gmra.mrb[0].mxu0 %v8654
        %v10762 = vpop.f32.mrb[0].mxu0
        %v10763 = vadd.f32 %v10474, %v10762
        %v10764 = vpop.f32.mrb[0].mxu0
        %v10765 = vpop.f32.mrb[0].mxu0
        %v10766 = vadd.f32 %v10477, %v10765
        %v10767 = vpop.f32.mrb[0].mxu0
        %10768 = vmatprep.mubr.bf16.mxu0 %v8796
        %10769 = vmatmul.mubr.bf16.gmra.mrb[0].mxu0 %v8655
        %v10770 = vpop.f32.mrb[0].mxu0
        %v10771 = vadd.f32 %v10482, %v10770
        %v10772 = vpop.f32.mrb[0].mxu0
        %v10773 = vpop.f32.mrb[0].mxu0
        %v10774 = vadd.f32 %v10485, %v10773
        %v10775 = vpop.f32.mrb[0].mxu0
        %10776 = vmatprep.mubr.bf16.mxu0 %v8804
        %10777 = vmatmul.mubr.bf16.gmra.mrb[0].mxu0 %v8656
        %v10778 = vpop.f32.mrb[0].mxu0
        %v10779 = vadd.f32 %v10490, %v10778
        %v10780 = vpop.f32.mrb[0].mxu0
        %v10781 = vpop.f32.mrb[0].mxu0
        %v10782 = vadd.f32 %v10493, %v10781
        %v10783 = vpop.f32.mrb[0].mxu0
        %10784 = vmatprep.mubr.bf16.mxu0 %v8816
        %10785 = vmatmul.mubr.bf16.gmra.mrb[0].mxu0 %v8657
        %v10786 = vpop.f32.mrb[0].mxu0
        %v10787 = vadd.f32 %v10498, %v10786
        %v10788 = vpop.f32.mrb[0].mxu0
        %v10789 = vpop.f32.mrb[0].mxu0
        %v10790 = vadd.f32 %v10501, %v10789
        %v10791 = vpop.f32.mrb[0].mxu0
        %10792 = vmatprep.mubr.bf16.mxu0 %v8824
        %10793 = vmatmul.mubr.bf16.gmra.mrb[0].mxu0 %v8658
        %v10794 = vpop.f32.mrb[0].mxu0
        %v10795 = vadd.f32 %v10506, %v10794
        %v10796 = vpop.f32.mrb[0].mxu0
        %v10797 = vpop.f32.mrb[0].mxu0
        %v10798 = vadd.f32 %v10509, %v10797
        %v10799 = vpop.f32.mrb[0].mxu0
        %10800 = vmatprep.mubr.bf16.mxu0 %v8836
        %10801 = vmatmul.mubr.bf16.gmra.mrb[0].mxu0 %v8659
        %v10802 = vpop.f32.mrb[0].mxu0
        %v10803 = vadd.f32 %v10514, %v10802
        %v10804 = vpop.f32.mrb[0].mxu0
        %v10805 = vpop.f32.mrb[0].mxu0
        %v10806 = vadd.f32 %v10517, %v10805
        %v10807 = vpop.f32.mrb[0].mxu0
        %10808 = vmatprep.mubr.bf16.mxu0 %v8844
        %10809 = vmatmul.mubr.bf16.gmra.mrb[0].mxu0 %v8660
        %v10810 = vpop.f32.mrb[0].mxu0
        %v10811 = vadd.f32 %v10522, %v10810
        %v10812 = vpop.f32.mrb[0].mxu0
        %v10813 = vpop.f32.mrb[0].mxu0
        %v10814 = vadd.f32 %v10525, %v10813
        %v10815 = vpop.f32.mrb[0].mxu0
        %10816 = vmatprep.mubr.bf16.mxu0 %v8856
        %10817 = vmatmul.mubr.bf16.gmra.mrb[0].mxu0 %v8661
        %v10818 = vpop.f32.mrb[0].mxu0
        %v10819 = vadd.f32 %v10530, %v10818
        %v10820 = vpop.f32.mrb[0].mxu0
        %v10821 = vpop.f32.mrb[0].mxu0
        %v10822 = vadd.f32 %v10533, %v10821
        %v10823 = vpop.f32.mrb[0].mxu0
        %10824 = vmatprep.mubr.bf16.mxu0 %v8864
        %10825 = vmatmul.mubr.bf16.gmra.mrb[0].mxu0 %v8662
        %v10826 = vpop.f32.mrb[0].mxu0
        %v10827 = vadd.f32 %v10538, %v10826
        %v10828 = vpop.f32.mrb[0].mxu0
        %v10829 = vpop.f32.mrb[0].mxu0
        %v10830 = vadd.f32 %v10541, %v10829
        %v10831 = vpop.f32.mrb[0].mxu0
        %10832 = vmatprep.mubr.bf16.mxu0 %v8876
        %10833 = vmatmul.mubr.bf16.gmra.mrb[0].mxu0 %v8663
        %v10834 = vpop.f32.mrb[0].mxu0
        %v10835 = vadd.f32 %v10546, %v10834
        %v10836 = vpop.f32.mrb[0].mxu0
        %v10837 = vpop.f32.mrb[0].mxu0
        %v10838 = vadd.f32 %v10549, %v10837
        %v10839 = vpop.f32.mrb[0].mxu0
        %10840 = vmatprep.mubr.bf16.mxu0 %v8884
        %10841 = vmatmul.mubr.bf16.gmra.mrb[0].mxu0 %v8664
        %v10842 = vpop.f32.mrb[0].mxu0
        %v10843 = vadd.f32 %v10554, %v10842
        %v10844 = vpop.f32.mrb[0].mxu0
        %v10845 = vpop.f32.mrb[0].mxu0
        %v10846 = vadd.f32 %v10557, %v10845
        %v10847 = vpop.f32.mrb[0].mxu0
        %10848 = vmatprep.mubr.bf16.mxu0 %v8896
        %10849 = vmatmul.mubr.bf16.gmra.mrb[0].mxu0 %v8665
        %v10850 = vpop.f32.mrb[0].mxu0
        %v10851 = vadd.f32 %v10562, %v10850
        %v10852 = vpop.f32.mrb[0].mxu0
        %v10853 = vpop.f32.mrb[0].mxu0
        %v10854 = vadd.f32 %v10565, %v10853
        %v10855 = vpop.f32.mrb[0].mxu0
        %10856 = vmatprep.mubr.bf16.mxu0 %v8904
        %10857 = vmatmul.mubr.bf16.gmra.mrb[0].mxu0 %v8666
        %v10858 = vpop.f32.mrb[0].mxu0
        %v10859 = vadd.f32 %v10570, %v10858
        %v10860 = vpop.f32.mrb[0].mxu0
        %v10861 = vpop.f32.mrb[0].mxu0
        %v10862 = vadd.f32 %v10573, %v10861
        %v10863 = vpop.f32.mrb[0].mxu0
        %10864 = vmatprep.mubr.bf16.mxu0 %v8916
        %10865 = vmatmul.mubr.bf16.gmra.mrb[0].mxu0 %v8667
        %v10866 = vpop.f32.mrb[0].mxu0
        %v10867 = vadd.f32 %v10578, %v10866
        %v10868 = vpop.f32.mrb[0].mxu0
        %v10869 = vpop.f32.mrb[0].mxu0
        %v10870 = vadd.f32 %v10581, %v10869
        %v10871 = vpop.f32.mrb[0].mxu0
        %10872 = vmatprep.mubr.bf16.mxu0 %v8924
        %10873 = vmatmul.mubr.bf16.gmra.mrb[0].mxu0 %v8668
        %v10874 = vpop.f32.mrb[0].mxu0
        %v10875 = vadd.f32 %v10586, %v10874
        %v10876 = vpop.f32.mrb[0].mxu0
        %v10877 = vpop.f32.mrb[0].mxu0
        %v10878 = vadd.f32 %v10589, %v10877
        %v10879 = vpop.f32.mrb[0].mxu0
        %10880 = vmatprep.mubr.bf16.mxu0 %v8936
        %10881 = vmatmul.mubr.bf16.gmra.mrb[0].mxu0 %v8669
        %v10882 = vpop.f32.mrb[0].mxu0
        %v10883 = vadd.f32 %v10594, %v10882
        %v10884 = vpop.f32.mrb[0].mxu0
        %v10885 = vpop.f32.mrb[0].mxu0
        %v10886 = vadd.f32 %v10597, %v10885
        %v10887 = vpop.f32.mrb[0].mxu0
        %10888 = vmatprep.mubr.bf16.mxu0 %v8944
        %10889 = vmatmul.mubr.bf16.gmra.mrb[0].mxu0 %v8670
        %v10890 = vpop.f32.mrb[0].mxu0
        %v10891 = vadd.f32 %v10602, %v10890
        %v10892 = vpop.f32.mrb[0].mxu0
        %v10893 = vpop.f32.mrb[0].mxu0
        %v10894 = vadd.f32 %v10605, %v10893
        %v10895 = vpop.f32.mrb[0].mxu0
        %10896 = vmatprep.mubr.bf16.mxu0 %v8956
        %10897 = vmatmul.mubr.bf16.gmra.mrb[0].mxu0 %v8671
        %v10898 = vpop.f32.mrb[0].mxu0
        %v10899 = vadd.f32 %v10610, %v10898
        %v10900 = vpop.f32.mrb[0].mxu0
        %v10901 = vpop.f32.mrb[0].mxu0
        %v10902 = vadd.f32 %v10613, %v10901
        %v10903 = vpop.f32.mrb[0].mxu0
        %10904 = vmatprep.mubr.bf16.mxu0 %v8964
        %10905 = vmatmul.mubr.bf16.gmra.mrb[0].mxu0 %v8672
        %v10906 = vpop.f32.mrb[0].mxu0
        %v10907 = vadd.f32 %v10618, %v10906
        %v10908 = vpop.f32.mrb[0].mxu0
        %v10909 = vpop.f32.mrb[0].mxu0
        %v10910 = vadd.f32 %v10621, %v10909
        %v10911 = vpop.f32.mrb[0].mxu0
        %10912 = vmatprep.mubr.bf16.mxu0 %v8976
        %10913 = vmatmul.mubr.bf16.gmra.mrb[0].mxu0 %v8673
        %v10914 = vpop.f32.mrb[0].mxu0
        %v10915 = vadd.f32 %v10626, %v10914
        %v10916 = vpop.f32.mrb[0].mxu0
        %v10917 = vpop.f32.mrb[0].mxu0
        %v10918 = vadd.f32 %v10629, %v10917
        %v10919 = vpop.f32.mrb[0].mxu0
        %10920 = vmatprep.mubr.bf16.mxu0 %v8984
        %10921 = vmatmul.mubr.bf16.gmra.mrb[0].mxu0 %v8674
        %v10922 = vpop.f32.mrb[0].mxu0
        %v10923 = vadd.f32 %v10634, %v10922
        %v10924 = vpop.f32.mrb[0].mxu0
        %v10925 = vpop.f32.mrb[0].mxu0
        %v10926 = vadd.f32 %v10637, %v10925
        %v10927 = vpop.f32.mrb[0].mxu0
        %10928 = vmatprep.mubr.bf16.mxu0 %v8996
        %10929 = vmatmul.mubr.bf16.gmra.mrb[0].mxu0 %v8675
        %v10930 = vpop.f32.mrb[0].mxu0
        %v10931 = vadd.f32 %v10642, %v10930
        %v10932 = vpop.f32.mrb[0].mxu0
        %v10933 = vpop.f32.mrb[0].mxu0
        %v10934 = vadd.f32 %v10645, %v10933
        %v10935 = vpop.f32.mrb[0].mxu0
        %10936 = vmatprep.mubr.bf16.mxu0 %v9004
        %10937 = vmatmul.mubr.bf16.gmra.mrb[0].mxu0 %v8676
        %v10938 = vpop.f32.mrb[0].mxu0
        %v10939 = vadd.f32 %v10650, %v10938
        %v10940 = vpop.f32.mrb[0].mxu0
        %v10941 = vpop.f32.mrb[0].mxu0
        %v10942 = vadd.f32 %v10653, %v10941
        %v10943 = vpop.f32.mrb[0].mxu0
        %10944 = vmatprep.mubr.bf16.mxu0 %v9016
        %10945 = vmatmul.mubr.bf16.gmra.mrb[0].mxu0 %v8677
        %v10946 = vpop.f32.mrb[0].mxu0
        %v10947 = vadd.f32 %v10658, %v10946
        %v10948 = vpop.f32.mrb[0].mxu0
        %v10949 = vpop.f32.mrb[0].mxu0
        %v10950 = vadd.f32 %v10661, %v10949
        %v10951 = vpop.f32.mrb[0].mxu0
        %10952 = vmatprep.mubr.bf16.mxu0 %v9024
        %10953 = vmatmul.mubr.bf16.gmra.mrb[0].mxu0 %v8678
        %v10954 = vpop.f32.mrb[0].mxu0
        %v10955 = vadd.f32 %v10666, %v10954
        %v10956 = vpop.f32.mrb[0].mxu0
        %v10957 = vpop.f32.mrb[0].mxu0
        %v10958 = vadd.f32 %v10669, %v10957
        %v10959 = vpop.f32.mrb[0].mxu0
        %10960 = vmatprep.mubr.bf16.mxu0 %v9036
        %10961 = vmatmul.mubr.bf16.gmra.mrb[0].mxu0 %v8679
        %v10962 = vpop.f32.mrb[0].mxu0
        %v10963 = vadd.f32 %v10674, %v10962
        %v10964 = vpop.f32.mrb[0].mxu0
        %v10965 = vpop.f32.mrb[0].mxu0
        %v10966 = vadd.f32 %v10677, %v10965
        %v10967 = vpop.f32.mrb[0].mxu0
        %10968 = vmatprep.mubr.bf16.mxu0 %v9044
        %10969 = vmatmul.mubr.bf16.gmra.mrb[0].mxu0 %v8680
        %v10970 = vpop.f32.mrb[0].mxu0
        %v10971 = vadd.f32 %v10682, %v10970
        %v10972 = vpop.f32.mrb[0].mxu0
        %v10973 = vpop.f32.mrb[0].mxu0
        %v10974 = vadd.f32 %v10685, %v10973
        %v10975 = vpop.f32.mrb[0].mxu0
        %10976 = vmatprep.mubr.bf16.mxu0 %v9056
        %10977 = vmatmul.mubr.bf16.gmra.mrb[0].mxu0 %v8681
        %v10978 = vpop.f32.mrb[0].mxu0
        %v10979 = vadd.f32 %v10690, %v10978
        %v10980 = vpop.f32.mrb[0].mxu0
        %v10981 = vpop.f32.mrb[0].mxu0
        %v10982 = vadd.f32 %v10693, %v10981
        %v10983 = vpop.f32.mrb[0].mxu0
        %10984 = vmatprep.mubr.bf16.mxu0 %v9064
        %10985 = vmatmul.mubr.bf16.gmra.mrb[0].mxu0 %v8682
        %v10986 = vpop.f32.mrb[0].mxu0
        %v10987 = vadd.f32 %v10698, %v10986
        %v10988 = vpop.f32.mrb[0].mxu0
        %v10989 = vpop.f32.mrb[0].mxu0
        %v10990 = vadd.f32 %v10701, %v10989
        %v10991 = vpop.f32.mrb[0].mxu0
        %10992 = vmatprep.mubr.bf16.mxu0 %v9076
        %10993 = vmatmul.mubr.bf16.gmra.mrb[0].mxu0 %v8683
        %v10994 = vpop.f32.mrb[0].mxu0
        %v10995 = vadd.f32 %v10706, %v10994
        %v10996 = vpop.f32.mrb[0].mxu0
        %v10997 = vpop.f32.mrb[0].mxu0
        %v10998 = vadd.f32 %v10709, %v10997
        %v10999 = vpop.f32.mrb[0].mxu0
        %11000 = vmatprep.mubr.bf16.mxu0 %v9084
        %11001 = vmatmul.mubr.bf16.gmra.mrb[0].mxu0 %v8684
        %v11002 = vpop.f32.mrb[0].mxu0
        %v11003 = vadd.f32 %v10714, %v11002
        %v11004 = vpop.f32.mrb[0].mxu0
        %v11005 = vpop.f32.mrb[0].mxu0
        %v11006 = vadd.f32 %v10717, %v11005
        %v11007 = vpop.f32.mrb[0].mxu0
        %11008 = vdwg.mxu0
        %11009 = vmatprep.subr.bf16.mxu0 0
        %11010 = vmatpush1.bf16.msra.mxu0 %v9773
        %11011 = vmatprep.subr.bf16.mxu0 0
        %11012 = vmatpush1.bf16.msra.mxu0 %v9774
        %11013 = vmatprep.subr.bf16.mxu0 0
        %11014 = vmatpush1.bf16.msra.mxu0 %v9775
        %11015 = vmatprep.subr.bf16.mxu0 0
        %11016 = vmatpush1.bf16.msra.mxu0 %v9776
        %11017 = vmatprep.subr.bf16.mxu0 0
        %11018 = vmatpush1.bf16.msra.mxu0 %v9777
        %11019 = vmatprep.subr.bf16.mxu0 0
        %11020 = vmatpush1.bf16.msra.mxu0 %v9778
        %11021 = vmatprep.subr.bf16.mxu0 0
        %11022 = vmatpush1.bf16.msra.mxu0 %v9779
        %11023 = vmatprep.subr.bf16.mxu0 0
        %11024 = vmatpush1.bf16.msra.mxu0 %v9780
        %11025 = vmatprep.subr.bf16.mxu0 0
        %11026 = vmatpush1.bf16.msra.mxu0 0
        %11027 = vmatprep.subr.bf16.mxu0 0
        %11028 = vmatpush1.bf16.msra.mxu0 0
        %11029 = vmatprep.subr.bf16.mxu0 0
        %11030 = vmatpush1.bf16.msra.mxu0 0
        %11031 = vmatprep.subr.bf16.mxu0 0
        %11032 = vmatpush1.bf16.msra.mxu0 0
        %11033 = vmatprep.subr.bf16.mxu0 0
        %11034 = vmatpush1.bf16.msra.mxu0 0
        %11035 = vmatprep.subr.bf16.mxu0 0
        %11036 = vmatpush1.bf16.msra.mxu0 0
        %11037 = vmatprep.subr.bf16.mxu0 0
        %11038 = vmatpush1.bf16.msra.mxu0 0
        %11039 = vmatprep.subr.bf16.mxu0 0
        %11040 = vmatpush1.bf16.msra.mxu0 0
        %11041 = vmatprep.mubr.bf16.mxu0 0
        %11042 = vmatmul.mubr.bf16.gmra.mrb[0].mxu0 %v9167
        %v11043 = vpop.f32.mrb[0].mxu0
        %v11044 = vadd.f32 %v10755, %v11043
        %v11045 = vpop.f32.mrb[0].mxu0
        %v11046 = vpop.f32.mrb[0].mxu0
        %v11047 = vadd.f32 %v10758, %v11046
        %v11048 = vpop.f32.mrb[0].mxu0
        %11049 = vmatprep.mubr.bf16.mxu0 0
        %11050 = vmatmul.mubr.bf16.gmra.mrb[0].mxu0 %v9169
        %v11051 = vpop.f32.mrb[0].mxu0
        %v11052 = vadd.f32 %v10763, %v11051
        %v11053 = vpop.f32.mrb[0].mxu0
        %v11054 = vpop.f32.mrb[0].mxu0
        %v11055 = vadd.f32 %v10766, %v11054
        %v11056 = vpop.f32.mrb[0].mxu0
        %11057 = vmatprep.mubr.bf16.mxu0 0
        %11058 = vmatmul.mubr.bf16.gmra.mrb[0].mxu0 %v9172
        %v11059 = vpop.f32.mrb[0].mxu0
        %v11060 = vadd.f32 %v10771, %v11059
        %v11061 = vpop.f32.mrb[0].mxu0
        %v11062 = vpop.f32.mrb[0].mxu0
        %v11063 = vadd.f32 %v10774, %v11062
        %v11064 = vpop.f32.mrb[0].mxu0
        %11065 = vmatprep.mubr.bf16.mxu0 0
        %11066 = vmatmul.mubr.bf16.gmra.mrb[0].mxu0 %v9174
        %v11067 = vpop.f32.mrb[0].mxu0
        %v11068 = vadd.f32 %v10779, %v11067
        %v11069 = vpop.f32.mrb[0].mxu0
        %v11070 = vpop.f32.mrb[0].mxu0
        %v11071 = vadd.f32 %v10782, %v11070
        %v11072 = vpop.f32.mrb[0].mxu0
        %11073 = vmatprep.mubr.bf16.mxu0 0
        %11074 = vmatmul.mubr.bf16.gmra.mrb[0].mxu0 %v9177
        %v11075 = vpop.f32.mrb[0].mxu0
        %v11076 = vadd.f32 %v10787, %v11075
        %v11077 = vpop.f32.mrb[0].mxu0
        %v11078 = vpop.f32.mrb[0].mxu0
        %v11079 = vadd.f32 %v10790, %v11078
        %v11080 = vpop.f32.mrb[0].mxu0
        %11081 = vmatprep.mubr.bf16.mxu0 0
        %11082 = vmatmul.mubr.bf16.gmra.mrb[0].mxu0 %v9179
        %v11083 = vpop.f32.mrb[0].mxu0
        %v11084 = vadd.f32 %v10795, %v11083
        %v11085 = vpop.f32.mrb[0].mxu0
        %v11086 = vpop.f32.mrb[0].mxu0
        %v11087 = vadd.f32 %v10798, %v11086
        %v11088 = vpop.f32.mrb[0].mxu0
        %11089 = vmatprep.mubr.bf16.mxu0 0
        %11090 = vmatmul.mubr.bf16.gmra.mrb[0].mxu0 %v9182
        %v11091 = vpop.f32.mrb[0].mxu0
        %v11092 = vadd.f32 %v10803, %v11091
        %v11093 = vpop.f32.mrb[0].mxu0
        %v11094 = vpop.f32.mrb[0].mxu0
        %v11095 = vadd.f32 %v10806, %v11094
        %v11096 = vpop.f32.mrb[0].mxu0
        %11097 = vmatprep.mubr.bf16.mxu0 0
        %11098 = vmatmul.mubr.bf16.gmra.mrb[0].mxu0 %v9184
        %v11099 = vpop.f32.mrb[0].mxu0
        %v11100 = vadd.f32 %v10811, %v11099
        %v11101 = vpop.f32.mrb[0].mxu0
        %v11102 = vpop.f32.mrb[0].mxu0
        %v11103 = vadd.f32 %v10814, %v11102
        %v11104 = vpop.f32.mrb[0].mxu0
        %11105 = vmatprep.mubr.bf16.mxu0 0
        %11106 = vmatmul.mubr.bf16.gmra.mrb[0].mxu0 %v9187
        %v11107 = vpop.f32.mrb[0].mxu0
        %v11108 = vadd.f32 %v10819, %v11107
        %v11109 = vpop.f32.mrb[0].mxu0
        %v11110 = vpop.f32.mrb[0].mxu0
        %v11111 = vadd.f32 %v10822, %v11110
        %v11112 = vpop.f32.mrb[0].mxu0
        %11113 = vmatprep.mubr.bf16.mxu0 0
        %11114 = vmatmul.mubr.bf16.gmra.mrb[0].mxu0 %v9189
        %v11115 = vpop.f32.mrb[0].mxu0
        %v11116 = vadd.f32 %v10827, %v11115
        %v11117 = vpop.f32.mrb[0].mxu0
        %v11118 = vpop.f32.mrb[0].mxu0
        %v11119 = vadd.f32 %v10830, %v11118
        %v11120 = vpop.f32.mrb[0].mxu0
        %11121 = vmatprep.mubr.bf16.mxu0 0
        %11122 = vmatmul.mubr.bf16.gmra.mrb[0].mxu0 %v9192
        %v11123 = vpop.f32.mrb[0].mxu0
        %v11124 = vadd.f32 %v10835, %v11123
        %v11125 = vpop.f32.mrb[0].mxu0
        %v11126 = vpop.f32.mrb[0].mxu0
        %v11127 = vadd.f32 %v10838, %v11126
        %v11128 = vpop.f32.mrb[0].mxu0
        %11129 = vmatprep.mubr.bf16.mxu0 0
        %11130 = vmatmul.mubr.bf16.gmra.mrb[0].mxu0 %v9194
        %v11131 = vpop.f32.mrb[0].mxu0
        %v11132 = vadd.f32 %v10843, %v11131
        %v11133 = vpop.f32.mrb[0].mxu0
        %v11134 = vpop.f32.mrb[0].mxu0
        %v11135 = vadd.f32 %v10846, %v11134
        %v11136 = vpop.f32.mrb[0].mxu0
        %11137 = vmatprep.mubr.bf16.mxu0 0
        %11138 = vmatmul.mubr.bf16.gmra.mrb[0].mxu0 %v9197
        %v11139 = vpop.f32.mrb[0].mxu0
        %v11140 = vadd.f32 %v10851, %v11139
        %v11141 = vpop.f32.mrb[0].mxu0
        %v11142 = vpop.f32.mrb[0].mxu0
        %v11143 = vadd.f32 %v10854, %v11142
        %v11144 = vpop.f32.mrb[0].mxu0
        %11145 = vmatprep.mubr.bf16.mxu0 0
        %11146 = vmatmul.mubr.bf16.gmra.mrb[0].mxu0 %v9199
        %v11147 = vpop.f32.mrb[0].mxu0
        %v11148 = vadd.f32 %v10859, %v11147
        %v11149 = vpop.f32.mrb[0].mxu0
        %v11150 = vpop.f32.mrb[0].mxu0
        %v11151 = vadd.f32 %v10862, %v11150
        %v11152 = vpop.f32.mrb[0].mxu0
        %11153 = vmatprep.mubr.bf16.mxu0 0
        %11154 = vmatmul.mubr.bf16.gmra.mrb[0].mxu0 %v9202
        %v11155 = vpop.f32.mrb[0].mxu0
        %v11156 = vadd.f32 %v10867, %v11155
        %v11157 = vpop.f32.mrb[0].mxu0
        %v11158 = vpop.f32.mrb[0].mxu0
        %v11159 = vadd.f32 %v10870, %v11158
        %v11160 = vpop.f32.mrb[0].mxu0
        %11161 = vmatprep.mubr.bf16.mxu0 0
        %11162 = vmatmul.mubr.bf16.gmra.mrb[0].mxu0 %v9204
        %v11163 = vpop.f32.mrb[0].mxu0
        %v11164 = vadd.f32 %v10875, %v11163
        %v11165 = vpop.f32.mrb[0].mxu0
        %v11166 = vpop.f32.mrb[0].mxu0
        %v11167 = vadd.f32 %v10878, %v11166
        %v11168 = vpop.f32.mrb[0].mxu0
        %11169 = vmatprep.mubr.bf16.mxu0 0
        %11170 = vmatmul.mubr.bf16.gmra.mrb[0].mxu0 %v9207
        %v11171 = vpop.f32.mrb[0].mxu0
        %v11172 = vadd.f32 %v10883, %v11171
        %v11173 = vpop.f32.mrb[0].mxu0
        %v11174 = vpop.f32.mrb[0].mxu0
        %v11175 = vadd.f32 %v10886, %v11174
        %v11176 = vpop.f32.mrb[0].mxu0
        %11177 = vmatprep.mubr.bf16.mxu0 0
        %11178 = vmatmul.mubr.bf16.gmra.mrb[0].mxu0 %v9209
        %v11179 = vpop.f32.mrb[0].mxu0
        %v11180 = vadd.f32 %v10891, %v11179
        %v11181 = vpop.f32.mrb[0].mxu0
        %v11182 = vpop.f32.mrb[0].mxu0
        %v11183 = vadd.f32 %v10894, %v11182
        %v11184 = vpop.f32.mrb[0].mxu0
        %11185 = vmatprep.mubr.bf16.mxu0 0
        %11186 = vmatmul.mubr.bf16.gmra.mrb[0].mxu0 %v9212
        %v11187 = vpop.f32.mrb[0].mxu0
        %v11188 = vadd.f32 %v10899, %v11187
        %v11189 = vpop.f32.mrb[0].mxu0
        %v11190 = vpop.f32.mrb[0].mxu0
        %v11191 = vadd.f32 %v10902, %v11190
        %v11192 = vpop.f32.mrb[0].mxu0
        %11193 = vmatprep.mubr.bf16.mxu0 0
        %11194 = vmatmul.mubr.bf16.gmra.mrb[0].mxu0 %v9214
        %v11195 = vpop.f32.mrb[0].mxu0
        %v11196 = vadd.f32 %v10907, %v11195
        %v11197 = vpop.f32.mrb[0].mxu0
        %v11198 = vpop.f32.mrb[0].mxu0
        %v11199 = vadd.f32 %v10910, %v11198
        %v11200 = vpop.f32.mrb[0].mxu0
        %11201 = vmatprep.mubr.bf16.mxu0 0
        %11202 = vmatmul.mubr.bf16.gmra.mrb[0].mxu0 %v9217
        %v11203 = vpop.f32.mrb[0].mxu0
        %v11204 = vadd.f32 %v10915, %v11203
        %v11205 = vpop.f32.mrb[0].mxu0
        %v11206 = vpop.f32.mrb[0].mxu0
        %v11207 = vadd.f32 %v10918, %v11206
        %v11208 = vpop.f32.mrb[0].mxu0
        %11209 = vmatprep.mubr.bf16.mxu0 0
        %11210 = vmatmul.mubr.bf16.gmra.mrb[0].mxu0 %v9219
        %v11211 = vpop.f32.mrb[0].mxu0
        %v11212 = vadd.f32 %v10923, %v11211
        %v11213 = vpop.f32.mrb[0].mxu0
        %v11214 = vpop.f32.mrb[0].mxu0
        %v11215 = vadd.f32 %v10926, %v11214
        %v11216 = vpop.f32.mrb[0].mxu0
        %11217 = vmatprep.mubr.bf16.mxu0 0
        %11218 = vmatmul.mubr.bf16.gmra.mrb[0].mxu0 %v9222
        %v11219 = vpop.f32.mrb[0].mxu0
        %v11220 = vadd.f32 %v10931, %v11219
        %v11221 = vpop.f32.mrb[0].mxu0
        %v11222 = vpop.f32.mrb[0].mxu0
        %v11223 = vadd.f32 %v10934, %v11222
        %v11224 = vpop.f32.mrb[0].mxu0
        %11225 = vmatprep.mubr.bf16.mxu0 0
        %11226 = vmatmul.mubr.bf16.gmra.mrb[0].mxu0 %v9224
        %v11227 = vpop.f32.mrb[0].mxu0
        %v11228 = vadd.f32 %v10939, %v11227
        %v11229 = vpop.f32.mrb[0].mxu0
        %v11230 = vpop.f32.mrb[0].mxu0
        %v11231 = vadd.f32 %v10942, %v11230
        %v11232 = vpop.f32.mrb[0].mxu0
        %11233 = vmatprep.mubr.bf16.mxu0 0
        %11234 = vmatmul.mubr.bf16.gmra.mrb[0].mxu0 %v9227
        %v11235 = vpop.f32.mrb[0].mxu0
        %v11236 = vadd.f32 %v10947, %v11235
        %v11237 = vpop.f32.mrb[0].mxu0
        %v11238 = vpop.f32.mrb[0].mxu0
        %v11239 = vadd.f32 %v10950, %v11238
        %v11240 = vpop.f32.mrb[0].mxu0
        %11241 = vmatprep.mubr.bf16.mxu0 0
        %11242 = vmatmul.mubr.bf16.gmra.mrb[0].mxu0 %v9229
        %v11243 = vpop.f32.mrb[0].mxu0
        %v11244 = vadd.f32 %v10955, %v11243
        %v11245 = vpop.f32.mrb[0].mxu0
        %v11246 = vpop.f32.mrb[0].mxu0
        %v11247 = vadd.f32 %v10958, %v11246
        %v11248 = vpop.f32.mrb[0].mxu0
        %11249 = vmatprep.mubr.bf16.mxu0 0
        %11250 = vmatmul.mubr.bf16.gmra.mrb[0].mxu0 %v9232
        %v11251 = vpop.f32.mrb[0].mxu0
        %v11252 = vadd.f32 %v10963, %v11251
        %v11253 = vpop.f32.mrb[0].mxu0
        %v11254 = vpop.f32.mrb[0].mxu0
        %v11255 = vadd.f32 %v10966, %v11254
        %v11256 = vpop.f32.mrb[0].mxu0
        %11257 = vmatprep.mubr.bf16.mxu0 0
        %11258 = vmatmul.mubr.bf16.gmra.mrb[0].mxu0 %v9234
        %v11259 = vpop.f32.mrb[0].mxu0
        %v11260 = vadd.f32 %v10971, %v11259
        %v11261 = vpop.f32.mrb[0].mxu0
        %v11262 = vpop.f32.mrb[0].mxu0
        %v11263 = vadd.f32 %v10974, %v11262
        %v11264 = vpop.f32.mrb[0].mxu0
        %11265 = vmatprep.mubr.bf16.mxu0 0
        %11266 = vmatmul.mubr.bf16.gmra.mrb[0].mxu0 %v9237
        %v11267 = vpop.f32.mrb[0].mxu0
        %v11268 = vadd.f32 %v10979, %v11267
        %v11269 = vpop.f32.mrb[0].mxu0
        %v11270 = vpop.f32.mrb[0].mxu0
        %v11271 = vadd.f32 %v10982, %v11270
        %v11272 = vpop.f32.mrb[0].mxu0
        %11273 = vmatprep.mubr.bf16.mxu0 0
        %11274 = vmatmul.mubr.bf16.gmra.mrb[0].mxu0 %v9239
        %v11275 = vpop.f32.mrb[0].mxu0
        %v11276 = vadd.f32 %v10987, %v11275
        %v11277 = vpop.f32.mrb[0].mxu0
        %v11278 = vpop.f32.mrb[0].mxu0
        %v11279 = vadd.f32 %v10990, %v11278
        %v11280 = vpop.f32.mrb[0].mxu0
        %11281 = vmatprep.mubr.bf16.mxu0 0
        %11282 = vmatmul.mubr.bf16.gmra.mrb[0].mxu0 %v9242
        %v11283 = vpop.f32.mrb[0].mxu0
        %v11284 = vadd.f32 %v10995, %v11283
        %v11285 = vpop.f32.mrb[0].mxu0
        %v11286 = vpop.f32.mrb[0].mxu0
        %v11287 = vadd.f32 %v10998, %v11286
        %v11288 = vpop.f32.mrb[0].mxu0
        %11289 = vmatprep.mubr.bf16.mxu0 0
        %11290 = vmatmul.mubr.bf16.gmra.mrb[0].mxu0 %v9244
        %v11291 = vpop.f32.mrb[0].mxu0
        %v11292 = vadd.f32 %v11003, %v11291
        %v11293 = vpop.f32.mrb[0].mxu0
        %v11294 = vpop.f32.mrb[0].mxu0
        %v11295 = vadd.f32 %v11006, %v11294
        %v11296 = vpop.f32.mrb[0].mxu0
        %11297 = vdwg.mxu0
        %v11298 = vld [vmem:[%s5] sm:$0x1]
        %v11300 = vlaneseq
        %v11301 = vshrl.u32 %v11300, 7
        %v11302 = vsub.s32 0, %v11301
        %v11303 = vrot.slane %v11298, %v11302
        %v11305 = vmul.f32 %v11044, %v11303
        %v11306 = vmul.f32 %v11047, %v11303
        %v11307 = vmul.f32 %v11052, %v11303
        %v11308 = vmul.f32 %v11055, %v11303
        %v11309 = vmul.f32 %v11060, %v11303
        %v11310 = vmul.f32 %v11063, %v11303
        %v11311 = vmul.f32 %v11068, %v11303
        %v11312 = vmul.f32 %v11071, %v11303
        %v11313 = vmul.f32 %v11076, %v11303
        %v11314 = vmul.f32 %v11079, %v11303
        %v11315 = vmul.f32 %v11084, %v11303
        %v11316 = vmul.f32 %v11087, %v11303
        %v11317 = vmul.f32 %v11092, %v11303
        %v11318 = vmul.f32 %v11095, %v11303
        %v11319 = vmul.f32 %v11100, %v11303
        %v11320 = vmul.f32 %v11103, %v11303
        %v11321 = vmul.f32 %v11108, %v11303
        %v11322 = vmul.f32 %v11111, %v11303
        %v11323 = vmul.f32 %v11116, %v11303
        %v11324 = vmul.f32 %v11119, %v11303
        %v11325 = vmul.f32 %v11124, %v11303
        %v11326 = vmul.f32 %v11127, %v11303
        %v11327 = vmul.f32 %v11132, %v11303
        %v11328 = vmul.f32 %v11135, %v11303
        %v11329 = vmul.f32 %v11140, %v11303
        %v11330 = vmul.f32 %v11143, %v11303
        %v11331 = vmul.f32 %v11148, %v11303
        %v11332 = vmul.f32 %v11151, %v11303
        %v11333 = vmul.f32 %v11156, %v11303
        %v11334 = vmul.f32 %v11159, %v11303
        %v11335 = vmul.f32 %v11164, %v11303
        %v11336 = vmul.f32 %v11167, %v11303
        %v11337 = vmul.f32 %v11172, %v11303
        %v11338 = vmul.f32 %v11175, %v11303
        %v11339 = vmul.f32 %v11180, %v11303
        %v11340 = vmul.f32 %v11183, %v11303
        %v11341 = vmul.f32 %v11188, %v11303
        %v11342 = vmul.f32 %v11191, %v11303
        %v11343 = vmul.f32 %v11196, %v11303
        %v11344 = vmul.f32 %v11199, %v11303
        %v11345 = vmul.f32 %v11204, %v11303
        %v11346 = vmul.f32 %v11207, %v11303
        %v11347 = vmul.f32 %v11212, %v11303
        %v11348 = vmul.f32 %v11215, %v11303
        %v11349 = vmul.f32 %v11220, %v11303
        %v11350 = vmul.f32 %v11223, %v11303
        %v11351 = vmul.f32 %v11228, %v11303
        %v11352 = vmul.f32 %v11231, %v11303
        %v11353 = vmul.f32 %v11236, %v11303
        %v11354 = vmul.f32 %v11239, %v11303
        %v11355 = vmul.f32 %v11244, %v11303
        %v11356 = vmul.f32 %v11247, %v11303
        %v11357 = vmul.f32 %v11252, %v11303
        %v11358 = vmul.f32 %v11255, %v11303
        %v11359 = vmul.f32 %v11260, %v11303
        %v11360 = vmul.f32 %v11263, %v11303
        %v11361 = vmul.f32 %v11268, %v11303
        %v11362 = vmul.f32 %v11271, %v11303
        %v11363 = vmul.f32 %v11276, %v11303
        %v11364 = vmul.f32 %v11279, %v11303
        %v11365 = vmul.f32 %v11284, %v11303
        %v11366 = vmul.f32 %v11287, %v11303
        %v11367 = vmul.f32 %v11292, %v11303
        %v11368 = vmul.f32 %v11295, %v11303
        %v11369 = vld [vmem:[%s6] sm:$0x1]
        %v11371 = vlaneseq
        %v11372 = vshrl.u32 %v11371, 7
        %v11373 = vsub.s32 0, %v11372
        %v11374 = vrot.slane %v11369, %v11373
        %v11376 = vadd.f32 %v11305, %v11374
        %v11377 = vadd.f32 %v11306, %v11374
        %v11378 = vadd.f32 %v11307, %v11374
        %v11379 = vadd.f32 %v11308, %v11374
        %v11380 = vadd.f32 %v11309, %v11374
        %v11381 = vadd.f32 %v11310, %v11374
        %v11382 = vadd.f32 %v11311, %v11374
        %v11383 = vadd.f32 %v11312, %v11374
        %v11384 = vadd.f32 %v11313, %v11374
        %v11385 = vadd.f32 %v11314, %v11374
        %v11386 = vadd.f32 %v11315, %v11374
        %v11387 = vadd.f32 %v11316, %v11374
        %v11388 = vadd.f32 %v11317, %v11374
        %v11389 = vadd.f32 %v11318, %v11374
        %v11390 = vadd.f32 %v11319, %v11374
        %v11391 = vadd.f32 %v11320, %v11374
        %v11392 = vadd.f32 %v11321, %v11374
        %v11393 = vadd.f32 %v11322, %v11374
        %v11394 = vadd.f32 %v11323, %v11374
        %v11395 = vadd.f32 %v11324, %v11374
        %v11396 = vadd.f32 %v11325, %v11374
        %v11397 = vadd.f32 %v11326, %v11374
        %v11398 = vadd.f32 %v11327, %v11374
        %v11399 = vadd.f32 %v11328, %v11374
        %v11400 = vadd.f32 %v11329, %v11374
        %v11401 = vadd.f32 %v11330, %v11374
        %v11402 = vadd.f32 %v11331, %v11374
        %v11403 = vadd.f32 %v11332, %v11374
        %v11404 = vadd.f32 %v11333, %v11374
        %v11405 = vadd.f32 %v11334, %v11374
        %v11406 = vadd.f32 %v11335, %v11374
        %v11407 = vadd.f32 %v11336, %v11374
        %v11408 = vadd.f32 %v11337, %v11374
        %v11409 = vadd.f32 %v11338, %v11374
        %v11410 = vadd.f32 %v11339, %v11374
        %v11411 = vadd.f32 %v11340, %v11374
        %v11412 = vadd.f32 %v11341, %v11374
        %v11413 = vadd.f32 %v11342, %v11374
        %v11414 = vadd.f32 %v11343, %v11374
        %v11415 = vadd.f32 %v11344, %v11374
        %v11416 = vadd.f32 %v11345, %v11374
        %v11417 = vadd.f32 %v11346, %v11374
        %v11418 = vadd.f32 %v11347, %v11374
        %v11419 = vadd.f32 %v11348, %v11374
        %v11420 = vadd.f32 %v11349, %v11374
        %v11421 = vadd.f32 %v11350, %v11374
        %v11422 = vadd.f32 %v11351, %v11374
        %v11423 = vadd.f32 %v11352, %v11374
        %v11424 = vadd.f32 %v11353, %v11374
        %v11425 = vadd.f32 %v11354, %v11374
        %v11426 = vadd.f32 %v11355, %v11374
        %v11427 = vadd.f32 %v11356, %v11374
        %v11428 = vadd.f32 %v11357, %v11374
        %v11429 = vadd.f32 %v11358, %v11374
        %v11430 = vadd.f32 %v11359, %v11374
        %v11431 = vadd.f32 %v11360, %v11374
        %v11432 = vadd.f32 %v11361, %v11374
        %v11433 = vadd.f32 %v11362, %v11374
        %v11434 = vadd.f32 %v11363, %v11374
        %v11435 = vadd.f32 %v11364, %v11374
        %v11436 = vadd.f32 %v11365, %v11374
        %v11437 = vadd.f32 %v11366, %v11374
        %v11438 = vadd.f32 %v11367, %v11374
        %v11439 = vadd.f32 %v11368, %v11374
        %vm11440 = vcmp.ge.f32.partialorder %v11376, 0.0
        %vm11441 = vcmp.ge.f32.partialorder %v11377, 0.0
        %vm11442 = vcmp.ge.f32.partialorder %v11378, 0.0
        %vm11443 = vcmp.ge.f32.partialorder %v11379, 0.0
        %vm11444 = vcmp.ge.f32.partialorder %v11380, 0.0
        %vm11445 = vcmp.ge.f32.partialorder %v11381, 0.0
        %vm11446 = vcmp.ge.f32.partialorder %v11382, 0.0
        %vm11447 = vcmp.ge.f32.partialorder %v11383, 0.0
        %vm11448 = vcmp.ge.f32.partialorder %v11384, 0.0
        %vm11449 = vcmp.ge.f32.partialorder %v11385, 0.0
        %vm11450 = vcmp.ge.f32.partialorder %v11386, 0.0
        %vm11451 = vcmp.ge.f32.partialorder %v11387, 0.0
        %vm11452 = vcmp.ge.f32.partialorder %v11388, 0.0
        %vm11453 = vcmp.ge.f32.partialorder %v11389, 0.0
        %vm11454 = vcmp.ge.f32.partialorder %v11390, 0.0
        %vm11455 = vcmp.ge.f32.partialorder %v11391, 0.0
        %vm11456 = vcmp.ge.f32.partialorder %v11392, 0.0
        %vm11457 = vcmp.ge.f32.partialorder %v11393, 0.0
        %vm11458 = vcmp.ge.f32.partialorder %v11394, 0.0
        %vm11459 = vcmp.ge.f32.partialorder %v11395, 0.0
        %vm11460 = vcmp.ge.f32.partialorder %v11396, 0.0
        %vm11461 = vcmp.ge.f32.partialorder %v11397, 0.0
        %vm11462 = vcmp.ge.f32.partialorder %v11398, 0.0
        %vm11463 = vcmp.ge.f32.partialorder %v11399, 0.0
        %vm11464 = vcmp.ge.f32.partialorder %v11400, 0.0
        %vm11465 = vcmp.ge.f32.partialorder %v11401, 0.0
        %vm11466 = vcmp.ge.f32.partialorder %v11402, 0.0
        %vm11467 = vcmp.ge.f32.partialorder %v11403, 0.0
        %vm11468 = vcmp.ge.f32.partialorder %v11404, 0.0
        %vm11469 = vcmp.ge.f32.partialorder %v11405, 0.0
        %vm11470 = vcmp.ge.f32.partialorder %v11406, 0.0
        %vm11471 = vcmp.ge.f32.partialorder %v11407, 0.0
        %vm11472 = vcmp.ge.f32.partialorder %v11408, 0.0
        %vm11473 = vcmp.ge.f32.partialorder %v11409, 0.0
        %vm11474 = vcmp.ge.f32.partialorder %v11410, 0.0
        %vm11475 = vcmp.ge.f32.partialorder %v11411, 0.0
        %vm11476 = vcmp.ge.f32.partialorder %v11412, 0.0
        %vm11477 = vcmp.ge.f32.partialorder %v11413, 0.0
        %vm11478 = vcmp.ge.f32.partialorder %v11414, 0.0
        %vm11479 = vcmp.ge.f32.partialorder %v11415, 0.0
        %vm11480 = vcmp.ge.f32.partialorder %v11416, 0.0
        %vm11481 = vcmp.ge.f32.partialorder %v11417, 0.0
        %vm11482 = vcmp.ge.f32.partialorder %v11418, 0.0
        %vm11483 = vcmp.ge.f32.partialorder %v11419, 0.0
        %vm11484 = vcmp.ge.f32.partialorder %v11420, 0.0
        %vm11485 = vcmp.ge.f32.partialorder %v11421, 0.0
        %vm11486 = vcmp.ge.f32.partialorder %v11422, 0.0
        %vm11487 = vcmp.ge.f32.partialorder %v11423, 0.0
        %vm11488 = vcmp.ge.f32.partialorder %v11424, 0.0
        %vm11489 = vcmp.ge.f32.partialorder %v11425, 0.0
        %vm11490 = vcmp.ge.f32.partialorder %v11426, 0.0
        %vm11491 = vcmp.ge.f32.partialorder %v11427, 0.0
        %vm11492 = vcmp.ge.f32.partialorder %v11428, 0.0
        %vm11493 = vcmp.ge.f32.partialorder %v11429, 0.0
        %vm11494 = vcmp.ge.f32.partialorder %v11430, 0.0
        %vm11495 = vcmp.ge.f32.partialorder %v11431, 0.0
        %vm11496 = vcmp.ge.f32.partialorder %v11432, 0.0
        %vm11497 = vcmp.ge.f32.partialorder %v11433, 0.0
        %vm11498 = vcmp.ge.f32.partialorder %v11434, 0.0
        %vm11499 = vcmp.ge.f32.partialorder %v11435, 0.0
        %vm11500 = vcmp.ge.f32.partialorder %v11436, 0.0
        %vm11501 = vcmp.ge.f32.partialorder %v11437, 0.0
        %vm11502 = vcmp.ge.f32.partialorder %v11438, 0.0
        %vm11503 = vcmp.ge.f32.partialorder %v11439, 0.0
        %v11504 = vmul.f32 %v11376, 0.01
        %v11505 = vmul.f32 %v11377, 0.01
        %v11506 = vmul.f32 %v11378, 0.01
        %v11507 = vmul.f32 %v11379, 0.01
        %v11508 = vmul.f32 %v11380, 0.01
        %v11509 = vmul.f32 %v11381, 0.01
        %v11510 = vmul.f32 %v11382, 0.01
        %v11511 = vmul.f32 %v11383, 0.01
        %v11512 = vmul.f32 %v11384, 0.01
        %v11513 = vmul.f32 %v11385, 0.01
        %v11514 = vmul.f32 %v11386, 0.01
        %v11515 = vmul.f32 %v11387, 0.01
        %v11516 = vmul.f32 %v11388, 0.01
        %v11517 = vmul.f32 %v11389, 0.01
        %v11518 = vmul.f32 %v11390, 0.01
        %v11519 = vmul.f32 %v11391, 0.01
        %v11520 = vmul.f32 %v11392, 0.01
        %v11521 = vmul.f32 %v11393, 0.01
        %v11522 = vmul.f32 %v11394, 0.01
        %v11523 = vmul.f32 %v11395, 0.01
        %v11524 = vmul.f32 %v11396, 0.01
        %v11525 = vmul.f32 %v11397, 0.01
        %v11526 = vmul.f32 %v11398, 0.01
        %v11527 = vmul.f32 %v11399, 0.01
        %v11528 = vmul.f32 %v11400, 0.01
        %v11529 = vmul.f32 %v11401, 0.01
        %v11530 = vmul.f32 %v11402, 0.01
        %v11531 = vmul.f32 %v11403, 0.01
        %v11532 = vmul.f32 %v11404, 0.01
        %v11533 = vmul.f32 %v11405, 0.01
        %v11534 = vmul.f32 %v11406, 0.01
        %v11535 = vmul.f32 %v11407, 0.01
        %v11536 = vmul.f32 %v11408, 0.01
        %v11537 = vmul.f32 %v11409, 0.01
        %v11538 = vmul.f32 %v11410, 0.01
        %v11539 = vmul.f32 %v11411, 0.01
        %v11540 = vmul.f32 %v11412, 0.01
        %v11541 = vmul.f32 %v11413, 0.01
        %v11542 = vmul.f32 %v11414, 0.01
        %v11543 = vmul.f32 %v11415, 0.01
        %v11544 = vmul.f32 %v11416, 0.01
        %v11545 = vmul.f32 %v11417, 0.01
        %v11546 = vmul.f32 %v11418, 0.01
        %v11547 = vmul.f32 %v11419, 0.01
        %v11548 = vmul.f32 %v11420, 0.01
        %v11549 = vmul.f32 %v11421, 0.01
        %v11550 = vmul.f32 %v11422, 0.01
        %v11551 = vmul.f32 %v11423, 0.01
        %v11552 = vmul.f32 %v11424, 0.01
        %v11553 = vmul.f32 %v11425, 0.01
        %v11554 = vmul.f32 %v11426, 0.01
        %v11555 = vmul.f32 %v11427, 0.01
        %v11556 = vmul.f32 %v11428, 0.01
        %v11557 = vmul.f32 %v11429, 0.01
        %v11558 = vmul.f32 %v11430, 0.01
        %v11559 = vmul.f32 %v11431, 0.01
        %v11560 = vmul.f32 %v11432, 0.01
        %v11561 = vmul.f32 %v11433, 0.01
        %v11562 = vmul.f32 %v11434, 0.01
        %v11563 = vmul.f32 %v11435, 0.01
        %v11564 = vmul.f32 %v11436, 0.01
        %v11565 = vmul.f32 %v11437, 0.01
        %v11566 = vmul.f32 %v11438, 0.01
        %v11567 = vmul.f32 %v11439, 0.01
        %v11568 = vsel %vm11440, %v11376, %v11504
        %v11569 = vsel %vm11441, %v11377, %v11505
        %v11570 = vsel %vm11442, %v11378, %v11506
        %v11571 = vsel %vm11443, %v11379, %v11507
        %v11572 = vsel %vm11444, %v11380, %v11508
        %v11573 = vsel %vm11445, %v11381, %v11509
        %v11574 = vsel %vm11446, %v11382, %v11510
        %v11575 = vsel %vm11447, %v11383, %v11511
        %v11576 = vsel %vm11448, %v11384, %v11512
        %v11577 = vsel %vm11449, %v11385, %v11513
        %v11578 = vsel %vm11450, %v11386, %v11514
        %v11579 = vsel %vm11451, %v11387, %v11515
        %v11580 = vsel %vm11452, %v11388, %v11516
        %v11581 = vsel %vm11453, %v11389, %v11517
        %v11582 = vsel %vm11454, %v11390, %v11518
        %v11583 = vsel %vm11455, %v11391, %v11519
        %v11584 = vsel %vm11456, %v11392, %v11520
        %v11585 = vsel %vm11457, %v11393, %v11521
        %v11586 = vsel %vm11458, %v11394, %v11522
        %v11587 = vsel %vm11459, %v11395, %v11523
        %v11588 = vsel %vm11460, %v11396, %v11524
        %v11589 = vsel %vm11461, %v11397, %v11525
        %v11590 = vsel %vm11462, %v11398, %v11526
        %v11591 = vsel %vm11463, %v11399, %v11527
        %v11592 = vsel %vm11464, %v11400, %v11528
        %v11593 = vsel %vm11465, %v11401, %v11529
        %v11594 = vsel %vm11466, %v11402, %v11530
        %v11595 = vsel %vm11467, %v11403, %v11531
        %v11596 = vsel %vm11468, %v11404, %v11532
        %v11597 = vsel %vm11469, %v11405, %v11533
        %v11598 = vsel %vm11470, %v11406, %v11534
        %v11599 = vsel %vm11471, %v11407, %v11535
        %v11600 = vsel %vm11472, %v11408, %v11536
        %v11601 = vsel %vm11473, %v11409, %v11537
        %v11602 = vsel %vm11474, %v11410, %v11538
        %v11603 = vsel %vm11475, %v11411, %v11539
        %v11604 = vsel %vm11476, %v11412, %v11540
        %v11605 = vsel %vm11477, %v11413, %v11541
        %v11606 = vsel %vm11478, %v11414, %v11542
        %v11607 = vsel %vm11479, %v11415, %v11543
        %v11608 = vsel %vm11480, %v11416, %v11544
        %v11609 = vsel %vm11481, %v11417, %v11545
        %v11610 = vsel %vm11482, %v11418, %v11546
        %v11611 = vsel %vm11483, %v11419, %v11547
        %v11612 = vsel %vm11484, %v11420, %v11548
        %v11613 = vsel %vm11485, %v11421, %v11549
        %v11614 = vsel %vm11486, %v11422, %v11550
        %v11615 = vsel %vm11487, %v11423, %v11551
        %v11616 = vsel %vm11488, %v11424, %v11552
        %v11617 = vsel %vm11489, %v11425, %v11553
        %v11618 = vsel %vm11490, %v11426, %v11554
        %v11619 = vsel %vm11491, %v11427, %v11555
        %v11620 = vsel %vm11492, %v11428, %v11556
        %v11621 = vsel %vm11493, %v11429, %v11557
        %v11622 = vsel %vm11494, %v11430, %v11558
        %v11623 = vsel %vm11495, %v11431, %v11559
        %v11624 = vsel %vm11496, %v11432, %v11560
        %v11625 = vsel %vm11497, %v11433, %v11561
        %v11626 = vsel %vm11498, %v11434, %v11562
        %v11627 = vsel %vm11499, %v11435, %v11563
        %v11628 = vsel %vm11500, %v11436, %v11564
        %v11629 = vsel %vm11501, %v11437, %v11565
        %v11630 = vsel %vm11502, %v11438, %v11566
        %v11631 = vsel %vm11503, %v11439, %v11567
        %11632 = vst [vmem:[%s285] sm:$0xff] %v11568
        %11633 = vst [vmem:[%s285 + $0x8] sm:$0xff] %v11569
        %11634 = vst [vmem:[%s285 + $0x10] sm:$0xff] %v11570
        %11635 = vst [vmem:[%s285 + $0x18] sm:$0xff] %v11571
        %11636 = vst [vmem:[%s285 + $0x20] sm:$0xff] %v11572
        %11637 = vst [vmem:[%s285 + $0x28] sm:$0xff] %v11573
        %11638 = vst [vmem:[%s285 + $0x30] sm:$0xff] %v11574
        %11639 = vst [vmem:[%s285 + $0x38] sm:$0xff] %v11575
        %11640 = vst [vmem:[%s285 + $0x40] sm:$0xff] %v11576
        %11641 = vst [vmem:[%s285 + $0x48] sm:$0xff] %v11577
        %11642 = vst [vmem:[%s285 + $0x50] sm:$0xff] %v11578
        %11643 = vst [vmem:[%s285 + $0x58] sm:$0xff] %v11579
        %11644 = vst [vmem:[%s285 + $0x60] sm:$0xff] %v11580
        %11645 = vst [vmem:[%s285 + $0x68] sm:$0xff] %v11581
        %11646 = vst [vmem:[%s285 + $0x70] sm:$0xff] %v11582
        %11647 = vst [vmem:[%s285 + $0x78] sm:$0xff] %v11583
        %11648 = vst [vmem:[%s285 + $0x80] sm:$0xff] %v11584
        %11649 = vst [vmem:[%s285 + $0x88] sm:$0xff] %v11585
        %11650 = vst [vmem:[%s285 + $0x90] sm:$0xff] %v11586
        %11651 = vst [vmem:[%s285 + $0x98] sm:$0xff] %v11587
        %11652 = vst [vmem:[%s285 + $0xa0] sm:$0xff] %v11588
        %11653 = vst [vmem:[%s285 + $0xa8] sm:$0xff] %v11589
        %11654 = vst [vmem:[%s285 + $0xb0] sm:$0xff] %v11590
        %11655 = vst [vmem:[%s285 + $0xb8] sm:$0xff] %v11591
        %11656 = vst [vmem:[%s285 + $0xc0] sm:$0xff] %v11592
        %11657 = vst [vmem:[%s285 + $0xc8] sm:$0xff] %v11593
        %11658 = vst [vmem:[%s285 + $0xd0] sm:$0xff] %v11594
        %11659 = vst [vmem:[%s285 + $0xd8] sm:$0xff] %v11595
        %11660 = vst [vmem:[%s285 + $0xe0] sm:$0xff] %v11596
        %11661 = vst [vmem:[%s285 + $0xe8] sm:$0xff] %v11597
        %11662 = vst [vmem:[%s285 + $0xf0] sm:$0xff] %v11598
        %11663 = vst [vmem:[%s285 + $0xf8] sm:$0xff] %v11599
        %11664 = vst [vmem:[%s285 + $0x100] sm:$0xff] %v11600
        %11665 = vst [vmem:[%s285 + $0x108] sm:$0xff] %v11601
        %11666 = vst [vmem:[%s285 + $0x110] sm:$0xff] %v11602
        %11667 = vst [vmem:[%s285 + $0x118] sm:$0xff] %v11603
        %11668 = vst [vmem:[%s285 + $0x120] sm:$0xff] %v11604
        %11669 = vst [vmem:[%s285 + $0x128] sm:$0xff] %v11605
        %11670 = vst [vmem:[%s285 + $0x130] sm:$0xff] %v11606
        %11671 = vst [vmem:[%s285 + $0x138] sm:$0xff] %v11607
        %11672 = vst [vmem:[%s285 + $0x140] sm:$0xff] %v11608
        %11673 = vst [vmem:[%s285 + $0x148] sm:$0xff] %v11609
        %11674 = vst [vmem:[%s285 + $0x150] sm:$0xff] %v11610
        %11675 = vst [vmem:[%s285 + $0x158] sm:$0xff] %v11611
        %11676 = vst [vmem:[%s285 + $0x160] sm:$0xff] %v11612
        %11677 = vst [vmem:[%s285 + $0x168] sm:$0xff] %v11613
        %11678 = vst [vmem:[%s285 + $0x170] sm:$0xff] %v11614
        %11679 = vst [vmem:[%s285 + $0x178] sm:$0xff] %v11615
        %11680 = vst [vmem:[%s285 + $0x180] sm:$0xff] %v11616
        %11681 = vst [vmem:[%s285 + $0x188] sm:$0xff] %v11617
        %11682 = vst [vmem:[%s285 + $0x190] sm:$0xff] %v11618
        %11683 = vst [vmem:[%s285 + $0x198] sm:$0xff] %v11619
        %11684 = vst [vmem:[%s285 + $0x1a0] sm:$0xff] %v11620
        %11685 = vst [vmem:[%s285 + $0x1a8] sm:$0xff] %v11621
        %11686 = vst [vmem:[%s285 + $0x1b0] sm:$0xff] %v11622
        %11687 = vst [vmem:[%s285 + $0x1b8] sm:$0xff] %v11623
        %11688 = vst [vmem:[%s285 + $0x1c0] sm:$0xff] %v11624
        %11689 = vst [vmem:[%s285 + $0x1c8] sm:$0xff] %v11625
        %11690 = vst [vmem:[%s285 + $0x1d0] sm:$0xff] %v11626
        %11691 = vst [vmem:[%s285 + $0x1d8] sm:$0xff] %v11627
        %11692 = vst [vmem:[%s285 + $0x1e0] sm:$0xff] %v11628
        %11693 = vst [vmem:[%s285 + $0x1e8] sm:$0xff] %v11629
        %11694 = vst [vmem:[%s285 + $0x1f0] sm:$0xff] %v11630
        %11695 = vst [vmem:[%s285 + $0x1f8] sm:$0xff] %v11631
        %s11696 = sand.u32 %s195, 1
        %s11697 = scalar_lea.sflag [#allocation4], %s11696
        %s11698 = sand.u32 %s195, 1
        %s11699 = smul.addr %s11698, 512
        %s11700 = scalar_lea.vmem [#allocation3], %s11699
        // Predicated region
        $region49: #{double_conv_block.1} parent=47 // pred_check
          %p11701 = pneg %p205
        $region50: #{double_conv_block.1} parent=47 // pred_check_branch
          %11703 = sbr.rel (%p11701) target = $region52
        $region51: #{double_conv_block.1} parent=47 // pred_region
          %s11704 = smul.u32 64, %s26
          %s11706 = ssub.s32 8192, 8192
          %11707 = vsyncadd %s11697, %s11706
          %s11708 = smul.addr %s25, 128
          %s11709 = sadd.s32 %s11704, %s11708
          %s11710 = smul.addr %s11709, 128
          %s11711 = scalar_lea.hbm %s7, %s11710
          %s11712 = sshll.u32 %s11700, 4
          %s11713 = int_to_ptr.vmem [resolvable:$true] %s11712
          %11718 = dma.vmem_to_hbm [thread:$0]  %s11713, 8192, %s11711, %s11697, 128, 128, 8
        $region52: #{double_conv_block.1} parent=47 // pred_fallthru
          _
      $region48: #{double_conv_block.1} parent=5 // pred_fallthru
        _
      %p11719 = scmp.le.s32.totalorder 2, %s16
      // Predicated region
      $region53: #{double_conv_block.1} parent=5 // pred_check
        %p11720 = pneg %p11719
      $region54: #{double_conv_block.1} parent=5 // pred_check_branch
        %11722 = sbr.rel (%p11720) target = $region56
      $region55: #{double_conv_block.1} parent=5 // pred_region
        %s11723 = ssub.s32 %s16, 2
        // Predicated region
        $region57: #{double_conv_block.1} parent=55 // pred_check
          %p11724 = pneg %p211
        $region58: #{double_conv_block.1} parent=55 // pred_check_branch
          %11726 = sbr.rel (%p11724) target = $region60
        $region59: #{double_conv_block.1} parent=55 // pred_region
          %s11727 = sand.u32 %s196, 1
          %s11728 = scalar_lea.sflag [#allocation4], %s11727
          %s11729 = sand.u32 %s196, 1
          %s11730 = smul.addr %s11729, 512
          %s11731 = scalar_lea.vmem [#allocation3], %s11730
          %11732 = dma.done %s11728, 8192
        $region60: #{double_conv_block.1} parent=55 // pred_fallthru
          _
      $region56: #{double_conv_block.1} parent=5 // pred_fallthru
        _
    $region6: #{double_conv_block.1} parent=1 // loop_footer
      %s20 = sadd.s32 1, %s16
    $region7: #{double_conv_block.1} parent=1 // loop_footer_branch
      %15 = sbr.rel target = $region3
    $region8: #{double_conv_block.1} parent=1 // loop_exit
      _
    %11733 = vsyncpa [#allocation4], 1
    %s11734 = scalar_lea.sflag [#allocation4], 1
    %11735 = vsyncpa %s11734, 1

</llo_original>
